<compile_context>
chip_gen: v7x
topology: tpu7x:2x2x1
jax: 0.10.0
libtpu: 0.0.40
codegen_flags: <defaults>
</compile_context>

<pallas_src>
import jax
import jax.numpy as jnp
from jax.experimental import pallas as pl
from jax.experimental.pallas import tpu as pltpu


# ----------------------------------------------------------------------------
# Fused conv3x3 + bias + ReLU + 2x2 maxpool kernel.
# patches: (B, 4, R, P*9*Cin)  -- 4 pooling-quadrant im2col matrices
# w_bd   : (P*9*Cin, P*Cout)   -- block-diagonal (kron(I_P, W_im2col))
# b_til  : (1, P*Cout)         -- bias tiled P times
# out    : (B, R, P*Cout)      -- pooled activations, lane-dense (P*Cout=128)
# ----------------------------------------------------------------------------
def _conv_pool_kernel(p_ref, w_ref, b_ref, o_ref):
    w = w_ref[...]
    m = jnp.dot(p_ref[0, 0], w, preferred_element_type=jnp.float32)
    for q in range(1, 4):
        m = jnp.maximum(
            m, jnp.dot(p_ref[0, q], w, preferred_element_type=jnp.float32))
    o_ref[0] = jnp.maximum(m + b_ref[...], 0.0)


def _conv_relu_pool(patches, w_bd, b_til):
    B, Q, R, PK = patches.shape
    PC = w_bd.shape[1]
    return pl.pallas_call(
        _conv_pool_kernel,
        out_shape=jax.ShapeDtypeStruct((B, R, PC), jnp.float32),
        grid_spec=pltpu.PrefetchScalarGridSpec(
            num_scalar_prefetch=0,
            grid=(B,),
            in_specs=[
                pl.BlockSpec((1, Q, R, PK), lambda b: (b, 0, 0, 0)),
                pl.BlockSpec((PK, PC), lambda b: (0, 0)),
                pl.BlockSpec((1, PC), lambda b: (0, 0)),
            ],
            out_specs=pl.BlockSpec((1, R, PC), lambda b: (b, 0, 0)),
        ),
        compiler_params=pltpu.CompilerParams(
            dimension_semantics=("parallel",)),
    )(patches, w_bd, b_til)


# ----------------------------------------------------------------------------
# Wrapper-side im2col gather (pure indexing glue, fused by XLA).
# For each pooling quadrant (dy, dx) and each 3x3 tap (ky, kx) it takes a
# stride-2 slice of the padded NHWC input and concatenates taps on the lane
# axis; `pack` consecutive pooled columns are packed into one row so the
# lane dim is dense.  Row r = (h2, w2_group); lane = (col_in_group, ky, kx, c).
# ----------------------------------------------------------------------------
def _pooled_patches(xpad, pack):
    B, Hp, Wp, C = xpad.shape
    H2, W2 = (Hp - 2) // 2, (Wp - 2) // 2
    quads = []
    for dy in range(2):
        for dx in range(2):
            taps = []
            for ky in range(3):
                for kx in range(3):
                    s = jax.lax.slice(
                        xpad,
                        (0, dy + ky, dx + kx, 0),
                        (B, dy + ky + 2 * H2 - 1, dx + kx + 2 * W2 - 1, C),
                        (1, 2, 2, 1))                      # (B, H2, W2, C)
                    taps.append(s)
            t = jnp.concatenate(taps, axis=-1)             # (B, H2, W2, 9C)
            t = t.reshape(B, H2, W2 // pack, pack * 9 * C)
            quads.append(t.reshape(B, H2 * (W2 // pack), pack * 9 * C))
    return jnp.stack(quads, axis=1)                        # (B, 4, R, pack*9C)


# ----------------------------------------------------------------------------
# fc_shared (+ReLU) and both heads (concatenated) in one K-tiled kernel.
# ----------------------------------------------------------------------------
def _fc_heads(x, wfc, bfc, wh, bh, tk=8192):
    B, K = x.shape
    D = wfc.shape[1]
    NO = wh.shape[1]
    assert K % tk == 0

    def kernel(x_ref, w_ref, b_ref, wh_ref, bh_ref, o_ref, acc_ref):
        k = pl.program_id(0)

        @pl.when(k == 0)
        def _():
            acc_ref[...] = jnp.zeros_like(acc_ref)

        acc_ref[...] += jnp.dot(x_ref[...], w_ref[...],
                                preferred_element_type=jnp.float32)

        @pl.when(k == pl.num_programs(0) - 1)
        def _():
            hid = jnp.maximum(acc_ref[...] + b_ref[...], 0.0)
            o_ref[...] = (jnp.dot(hid, wh_ref[...],
                                  preferred_element_type=jnp.float32)
                          + bh_ref[...])

    return pl.pallas_call(
        kernel,
        out_shape=jax.ShapeDtypeStruct((B, NO), jnp.float32),
        grid_spec=pltpu.PrefetchScalarGridSpec(
            num_scalar_prefetch=0,
            grid=(K // tk,),
            in_specs=[
                pl.BlockSpec((B, tk), lambda k: (0, k)),
                pl.BlockSpec((tk, D), lambda k: (k, 0)),
                pl.BlockSpec((1, D), lambda k: (0, 0)),
                pl.BlockSpec((D, NO), lambda k: (0, 0)),
                pl.BlockSpec((1, NO), lambda k: (0, 0)),
            ],
            out_specs=pl.BlockSpec((B, NO), lambda k: (0, 0)),
            scratch_shapes=[pltpu.VMEM((B, D), jnp.float32)],
        ),
        compiler_params=pltpu.CompilerParams(
            dimension_semantics=("arbitrary",)),
    )(x, wfc, bfc, wh, bh)


# ----------------------------------------------------------------------------
# One-time (outside jit) parameter preparation: im2col weight matrices,
# block-diagonal column packing, bias tiling, fc weight row permutation
# (CHW -> HWC flatten order) and head concatenation.
# ----------------------------------------------------------------------------
PACK1, PACK2 = 8, 4


def prepare_params(p):
    w1m = p["w1"].reshape(27, 16)                     # (ky,kx,ci) x co
    w2m = p["w2"].reshape(144, 32)
    wfc_hwc = (p["wfc"].reshape(32, 32, 32, 128)      # (C, H, W, D)
               .transpose(1, 2, 0, 3)                 # (H, W, C, D)
               .reshape(32 * 32 * 32, 128))
    eye1 = jnp.eye(PACK1, dtype=jnp.float32)
    eye2 = jnp.eye(PACK2, dtype=jnp.float32)
    return {
        "conv1_w": jnp.kron(eye1, w1m),                         # (216, 128)
        "conv1_b": jnp.tile(p["b1"].reshape(1, 16), (1, PACK1)),  # (1, 128)
        "conv2_w": jnp.kron(eye2, w2m),                         # (576, 128)
        "conv2_b": jnp.tile(p["b2"].reshape(1, 32), (1, PACK2)),  # (1, 128)
        "wfc": wfc_hwc,
        "bfc": p["bfc"],
        "wheads": jnp.concatenate([p["wf"], p["ws"]], axis=1),  # (128, 5)
        "bheads": jnp.concatenate([p["bf"], p["bs"]], axis=1),  # (1, 5)
    }


# ----------------------------------------------------------------------------
# Full forward (glue: transpose / pad / patch gather stays in plain JAX).
# ----------------------------------------------------------------------------
def dual_fruit_cnn_forward(x_nchw, prep):
    B = x_nchw.shape[0]
    x = jnp.transpose(x_nchw, (0, 2, 3, 1)).astype(jnp.float32)  # NHWC

    xp1 = jnp.pad(x, ((0, 0), (1, 1), (1, 1), (0, 0)))           # (B,130,130,3)
    pat1 = _pooled_patches(xp1, pack=PACK1)                      # (B,4,512,216)
    p1 = _conv_relu_pool(pat1, prep["conv1_w"], prep["conv1_b"])  # (B,512,128)
    p1 = p1.reshape(B, 64, 64, 16)                               # NHWC (free)

    xp2 = jnp.pad(p1, ((0, 0), (1, 1), (1, 1), (0, 0)))          # (B,66,66,16)
    pat2 = _pooled_patches(xp2, pack=PACK2)                      # (B,4,256,576)
    p2 = _conv_relu_pool(pat2, prep["conv2_w"], prep["conv2_b"])  # (B,256,128)

    flat = p2.reshape(B, 32 * 32 * 32)         # HWC order, matches permuted wfc
    out = _fc_heads(flat, prep["wfc"], prep["bfc"],
                    prep["wheads"], prep["bheads"])
    return out[:, :3], out[:, 3:]


# ----------------------------------------------------------------------------
# Deterministic synthetic parameters (PyTorch-default-style uniform init).
# ----------------------------------------------------------------------------
def init_params(key):
    ks = jax.random.split(key, 10)

    def uni(k, shape, fan_in):
        bound = fan_in ** -0.5
        return jax.random.uniform(k, shape, jnp.float32, -bound, bound)

    return {
        "w1": uni(ks[0], (3, 3, 3, 16), 27),        # (kh, kw, Cin, Cout)
        "b1": uni(ks[1], (1, 16), 27),
        "w2": uni(ks[2], (3, 3, 16, 32), 144),
        "b2": uni(ks[3], (1, 32), 144),
        "wfc": uni(ks[4], (32 * 32 * 32, 128), 32 * 32 * 32),
        "bfc": uni(ks[5], (1, 128), 32 * 32 * 32),
        "wf": uni(ks[6], (128, 3), 128),
        "bf": uni(ks[7], (1, 3), 128),
        "ws": uni(ks[8], (128, 2), 128),
        "bs": uni(ks[9], (1, 2), 128),
    }


# ----------------------------------------------------------------------------
# Pure-JAX reference (original CHW semantics) for correctness checking.
# ----------------------------------------------------------------------------
def reference_forward(x, p):
    def conv(z, w, b):
        w_oihw = jnp.transpose(w, (3, 2, 0, 1))
        y = jax.lax.conv_general_dilated(
            z, w_oihw, window_strides=(1, 1), padding="SAME",
            dimension_numbers=("NCHW", "OIHW", "NCHW"))
        return jax.nn.relu(y + b.reshape(1, -1, 1, 1))

    def pool(z):
        return jax.lax.reduce_window(z, -jnp.inf, jax.lax.max,
                                     (1, 1, 2, 2), (1, 1, 2, 2), "VALID")

    y = pool(conv(x, p["w1"], p["b1"]))
    y = pool(conv(y, p["w2"], p["b2"]))
    flat = y.reshape(y.shape[0], -1)
    hid = jax.nn.relu(flat @ p["wfc"] + p["bfc"])
    return hid @ p["wf"] + p["bf"], hid @ p["ws"] + p["bs"]


if __name__ == "__main__":
    key = jax.random.PRNGKey(0)
    pkey, xkey = jax.random.split(key)
    params = init_params(pkey)
    prep = prepare_params(params)          # one-time weight layout prep
    # fc_shared expects 32*32*32 features => input spatial must be 128x128.
    x = jax.random.normal(xkey, (2, 3, 128, 128), jnp.float32)

    fwd = jax.jit(lambda xx: dual_fruit_cnn_forward(xx, prep))
    fruit, state = fwd(x)
    jax.block_until_ready((fruit, state))

    assert fruit.shape == (2, 3) and state.shape == (2, 2)
    rf, rs = reference_forward(x, params)
    if not (jnp.allclose(fruit, rf, atol=1e-3, rtol=1e-3)
            and jnp.allclose(state, rs, atol=1e-3, rtol=1e-3)):
        raise AssertionError("Pallas forward does not match JAX reference")
    print("KERNEL_OK")
</pallas_src>

<mosaic_0001>
module attributes {stable_mosaic.version = 11 : i64} {
  func.func @_conv_pool_kernel(%arg0: i32, %arg1: memref<1x4x512x216xf32, #tpu.memory_space<vmem>>, %arg2: memref<216x128xf32, #tpu.memory_space<vmem>>, %arg3: memref<1x128xf32, #tpu.memory_space<vmem>>, %arg4: memref<1x512x128xf32, #tpu.memory_space<vmem>>) attributes {dimension_semantics = [#tpu.dimension_semantics<parallel>], iteration_bounds = array<i64: 2>, scalar_prefetch = 0 : i64, scratch_operands = 0 : i64, tpu.core_type = #tpu.core_type<tc>, window_params = [{transform_indices = @transform_0, window_bounds = array<i64: 1, 4, 512, 216>}, {pipeline_mode = #tpu.pipeline_mode<synchronous>, transform_indices = @transform_1, window_bounds = array<i64: 216, 128>}, {pipeline_mode = #tpu.pipeline_mode<synchronous>, transform_indices = @transform_2, window_bounds = array<i64: 1, 128>}, {transform_indices = @transform_3, window_bounds = array<i64: 1, 512, 128>}]} {
    %c0 = arith.constant 0 : index
    %c0_0 = arith.constant 0 : index
    %0 = vector.load %arg2[%c0, %c0_0] : memref<216x128xf32, #tpu.memory_space<vmem>>, vector<216x128xf32>
    %c0_1 = arith.constant 0 : index
    %c0_2 = arith.constant 0 : index
    %c0_3 = arith.constant 0 : index
    %c0_4 = arith.constant 0 : index
    %1 = vector.load %arg1[%c0_1, %c0_2, %c0_3, %c0_4] : memref<1x4x512x216xf32, #tpu.memory_space<vmem>>, vector<1x1x512x216xf32>
    %2 = vector.shape_cast %1 : vector<1x1x512x216xf32> to vector<512x216xf32>
    %cst = arith.constant dense<0.000000e+00> : vector<512x128xf32>
    %3 = tpu.matmul %2, %0, %cst {dimension_numbers = #tpu.dot_dimension_numbers<[1], [0], [0], [1], [0, 0, 1, 1], [], []>} : vector<512x216xf32>, vector<216x128xf32>, vector<512x128xf32> -> vector<512x128xf32>
    %c0_5 = arith.constant 0 : index
    %c1 = arith.constant 1 : index
    %c0_6 = arith.constant 0 : index
    %c0_7 = arith.constant 0 : index
    %4 = vector.load %arg1[%c0_5, %c1, %c0_6, %c0_7] : memref<1x4x512x216xf32, #tpu.memory_space<vmem>>, vector<1x1x512x216xf32>
    %5 = vector.shape_cast %4 : vector<1x1x512x216xf32> to vector<512x216xf32>
    %cst_8 = arith.constant dense<0.000000e+00> : vector<512x128xf32>
    %6 = tpu.matmul %5, %0, %cst_8 {dimension_numbers = #tpu.dot_dimension_numbers<[1], [0], [0], [1], [0, 0, 1, 1], [], []>} : vector<512x216xf32>, vector<216x128xf32>, vector<512x128xf32> -> vector<512x128xf32>
    %7 = arith.maximumf %3, %6 : vector<512x128xf32>
    %c0_9 = arith.constant 0 : index
    %c2 = arith.constant 2 : index
    %c0_10 = arith.constant 0 : index
    %c0_11 = arith.constant 0 : index
    %8 = vector.load %arg1[%c0_9, %c2, %c0_10, %c0_11] : memref<1x4x512x216xf32, #tpu.memory_space<vmem>>, vector<1x1x512x216xf32>
    %9 = vector.shape_cast %8 : vector<1x1x512x216xf32> to vector<512x216xf32>
    %cst_12 = arith.constant dense<0.000000e+00> : vector<512x128xf32>
    %10 = tpu.matmul %9, %0, %cst_12 {dimension_numbers = #tpu.dot_dimension_numbers<[1], [0], [0], [1], [0, 0, 1, 1], [], []>} : vector<512x216xf32>, vector<216x128xf32>, vector<512x128xf32> -> vector<512x128xf32>
    %11 = arith.maximumf %7, %10 : vector<512x128xf32>
    %c0_13 = arith.constant 0 : index
    %c3 = arith.constant 3 : index
    %c0_14 = arith.constant 0 : index
    %c0_15 = arith.constant 0 : index
    %12 = vector.load %arg1[%c0_13, %c3, %c0_14, %c0_15] : memref<1x4x512x216xf32, #tpu.memory_space<vmem>>, vector<1x1x512x216xf32>
    %13 = vector.shape_cast %12 : vector<1x1x512x216xf32> to vector<512x216xf32>
    %cst_16 = arith.constant dense<0.000000e+00> : vector<512x128xf32>
    %14 = tpu.matmul %13, %0, %cst_16 {dimension_numbers = #tpu.dot_dimension_numbers<[1], [0], [0], [1], [0, 0, 1, 1], [], []>} : vector<512x216xf32>, vector<216x128xf32>, vector<512x128xf32> -> vector<512x128xf32>
    %15 = arith.maximumf %11, %14 : vector<512x128xf32>
    %c0_17 = arith.constant 0 : index
    %c0_18 = arith.constant 0 : index
    %16 = vector.load %arg3[%c0_17, %c0_18] : memref<1x128xf32, #tpu.memory_space<vmem>>, vector<1x128xf32>
    %17 = vector.broadcast %16 : vector<1x128xf32> to vector<512x128xf32>
    %18 = arith.addf %15, %17 : vector<512x128xf32>
    %cst_19 = arith.constant 0.000000e+00 : f32
    %19 = vector.broadcast %cst_19 : f32 to vector<512x128xf32>
    %20 = arith.maximumf %18, %19 : vector<512x128xf32>
    %c0_20 = arith.constant 0 : index
    %c0_21 = arith.constant 0 : index
    %c0_22 = arith.constant 0 : index
    %21 = vector.load %arg4[%c0_20, %c0_21, %c0_22] : memref<1x512x128xf32, #tpu.memory_space<vmem>>, vector<1x512x128xf32>
    %22 = vector.shape_cast %21 : vector<1x512x128xf32> to vector<512x128xf32>
    %23 = vector.shape_cast %20 : vector<512x128xf32> to vector<1x512x128xf32>
    tpu.vector_store %arg4[%c0_20, %c0_21, %c0_22], %23 {strides = array<i32>} : memref<1x512x128xf32, #tpu.memory_space<vmem>>, vector<1x512x128xf32>,
    return
  }
  func.func @transform_0(%arg0: i32) -> (i32, i32, i32, i32) {
    %c0_i32 = arith.constant 0 : i32
    %c0_i32_0 = arith.constant 0 : i32
    %c0_i32_1 = arith.constant 0 : i32
    %c0_i32_2 = arith.constant 0 : i32
    return %arg0, %c0_i32, %c0_i32_0, %c0_i32_1 : i32, i32, i32, i32
  }
  func.func @transform_1(%arg0: i32) -> (i32, i32) {
    %c0_i32 = arith.constant 0 : i32
    %c0_i32_0 = arith.constant 0 : i32
    %c0_i32_1 = arith.constant 0 : i32
    return %c0_i32, %c0_i32_0 : i32, i32
  }
  func.func @transform_2(%arg0: i32) -> (i32, i32) {
    %c0_i32 = arith.constant 0 : i32
    %c0_i32_0 = arith.constant 0 : i32
    %c0_i32_1 = arith.constant 0 : i32
    return %c0_i32, %c0_i32_0 : i32, i32
  }
  func.func @transform_3(%arg0: i32) -> (i32, i32, i32) {
    %c0_i32 = arith.constant 0 : i32
    %c0_i32_0 = arith.constant 0 : i32
    %c0_i32_1 = arith.constant 0 : i32
    return %arg0, %c0_i32, %c0_i32_0 : i32, i32, i32
  }
}

module attributes {stable_mosaic.version = 11 : i64} {
  func.func @_conv_pool_kernel(%arg0: i32, %arg1: memref<1x4x256x576xf32, #tpu.memory_space<vmem>>, %arg2: memref<576x128xf32, #tpu.memory_space<vmem>>, %arg3: memref<1x128xf32, #tpu.memory_space<vmem>>, %arg4: memref<1x256x128xf32, #tpu.memory_space<vmem>>) attributes {dimension_semantics = [#tpu.dimension_semantics<parallel>], iteration_bounds = array<i64: 2>, scalar_prefetch = 0 : i64, scratch_operands = 0 : i64, tpu.core_type = #tpu.core_type<tc>, window_params = [{transform_indices = @transform_0, window_bounds = array<i64: 1, 4, 256, 576>}, {pipeline_mode = #tpu.pipeline_mode<synchronous>, transform_indices = @transform_1, window_bounds = array<i64: 576, 128>}, {pipeline_mode = #tpu.pipeline_mode<synchronous>, transform_indices = @transform_2, window_bounds = array<i64: 1, 128>}, {transform_indices = @transform_3, window_bounds = array<i64: 1, 256, 128>}]} {
    %c0 = arith.constant 0 : index
    %c0_0 = arith.constant 0 : index
    %0 = vector.load %arg2[%c0, %c0_0] : memref<576x128xf32, #tpu.memory_space<vmem>>, vector<576x128xf32>
    %c0_1 = arith.constant 0 : index
    %c0_2 = arith.constant 0 : index
    %c0_3 = arith.constant 0 : index
    %c0_4 = arith.constant 0 : index
    %1 = vector.load %arg1[%c0_1, %c0_2, %c0_3, %c0_4] : memref<1x4x256x576xf32, #tpu.memory_space<vmem>>, vector<1x1x256x576xf32>
    %2 = vector.shape_cast %1 : vector<1x1x256x576xf32> to vector<256x576xf32>
    %cst = arith.constant dense<0.000000e+00> : vector<256x128xf32>
    %3 = tpu.matmul %2, %0, %cst {dimension_numbers = #tpu.dot_dimension_numbers<[1], [0], [0], [1], [0, 0, 1, 1], [], []>} : vector<256x576xf32>, vector<576x128xf32>, vector<256x128xf32> -> vector<256x128xf32>
    %c0_5 = arith.constant 0 : index
    %c1 = arith.constant 1 : index
    %c0_6 = arith.constant 0 : index
    %c0_7 = arith.constant 0 : index
    %4 = vector.load %arg1[%c0_5, %c1, %c0_6, %c0_7] : memref<1x4x256x576xf32, #tpu.memory_space<vmem>>, vector<1x1x256x576xf32>
    %5 = vector.shape_cast %4 : vector<1x1x256x576xf32> to vector<256x576xf32>
    %cst_8 = arith.constant dense<0.000000e+00> : vector<256x128xf32>
    %6 = tpu.matmul %5, %0, %cst_8 {dimension_numbers = #tpu.dot_dimension_numbers<[1], [0], [0], [1], [0, 0, 1, 1], [], []>} : vector<256x576xf32>, vector<576x128xf32>, vector<256x128xf32> -> vector<256x128xf32>
    %7 = arith.maximumf %3, %6 : vector<256x128xf32>
    %c0_9 = arith.constant 0 : index
    %c2 = arith.constant 2 : index
    %c0_10 = arith.constant 0 : index
    %c0_11 = arith.constant 0 : index
    %8 = vector.load %arg1[%c0_9, %c2, %c0_10, %c0_11] : memref<1x4x256x576xf32, #tpu.memory_space<vmem>>, vector<1x1x256x576xf32>
    %9 = vector.shape_cast %8 : vector<1x1x256x576xf32> to vector<256x576xf32>
    %cst_12 = arith.constant dense<0.000000e+00> : vector<256x128xf32>
    %10 = tpu.matmul %9, %0, %cst_12 {dimension_numbers = #tpu.dot_dimension_numbers<[1], [0], [0], [1], [0, 0, 1, 1], [], []>} : vector<256x576xf32>, vector<576x128xf32>, vector<256x128xf32> -> vector<256x128xf32>
    %11 = arith.maximumf %7, %10 : vector<256x128xf32>
    %c0_13 = arith.constant 0 : index
    %c3 = arith.constant 3 : index
    %c0_14 = arith.constant 0 : index
    %c0_15 = arith.constant 0 : index
    %12 = vector.load %arg1[%c0_13, %c3, %c0_14, %c0_15] : memref<1x4x256x576xf32, #tpu.memory_space<vmem>>, vector<1x1x256x576xf32>
    %13 = vector.shape_cast %12 : vector<1x1x256x576xf32> to vector<256x576xf32>
    %cst_16 = arith.constant dense<0.000000e+00> : vector<256x128xf32>
    %14 = tpu.matmul %13, %0, %cst_16 {dimension_numbers = #tpu.dot_dimension_numbers<[1], [0], [0], [1], [0, 0, 1, 1], [], []>} : vector<256x576xf32>, vector<576x128xf32>, vector<256x128xf32> -> vector<256x128xf32>
    %15 = arith.maximumf %11, %14 : vector<256x128xf32>
    %c0_17 = arith.constant 0 : index
    %c0_18 = arith.constant 0 : index
    %16 = vector.load %arg3[%c0_17, %c0_18] : memref<1x128xf32, #tpu.memory_space<vmem>>, vector<1x128xf32>
    %17 = vector.broadcast %16 : vector<1x128xf32> to vector<256x128xf32>
    %18 = arith.addf %15, %17 : vector<256x128xf32>
    %cst_19 = arith.constant 0.000000e+00 : f32
    %19 = vector.broadcast %cst_19 : f32 to vector<256x128xf32>
    %20 = arith.maximumf %18, %19 : vector<256x128xf32>
    %c0_20 = arith.constant 0 : index
    %c0_21 = arith.constant 0 : index
    %c0_22 = arith.constant 0 : index
    %21 = vector.load %arg4[%c0_20, %c0_21, %c0_22] : memref<1x256x128xf32, #tpu.memory_space<vmem>>, vector<1x256x128xf32>
    %22 = vector.shape_cast %21 : vector<1x256x128xf32> to vector<256x128xf32>
    %23 = vector.shape_cast %20 : vector<256x128xf32> to vector<1x256x128xf32>
    tpu.vector_store %arg4[%c0_20, %c0_21, %c0_22], %23 {strides = array<i32>} : memref<1x256x128xf32, #tpu.memory_space<vmem>>, vector<1x256x128xf32>,
    return
  }
  func.func @transform_0(%arg0: i32) -> (i32, i32, i32, i32) {
    %c0_i32 = arith.constant 0 : i32
    %c0_i32_0 = arith.constant 0 : i32
    %c0_i32_1 = arith.constant 0 : i32
    %c0_i32_2 = arith.constant 0 : i32
    return %arg0, %c0_i32, %c0_i32_0, %c0_i32_1 : i32, i32, i32, i32
  }
  func.func @transform_1(%arg0: i32) -> (i32, i32) {
    %c0_i32 = arith.constant 0 : i32
    %c0_i32_0 = arith.constant 0 : i32
    %c0_i32_1 = arith.constant 0 : i32
    return %c0_i32, %c0_i32_0 : i32, i32
  }
  func.func @transform_2(%arg0: i32) -> (i32, i32) {
    %c0_i32 = arith.constant 0 : i32
    %c0_i32_0 = arith.constant 0 : i32
    %c0_i32_1 = arith.constant 0 : i32
    return %c0_i32, %c0_i32_0 : i32, i32
  }
  func.func @transform_3(%arg0: i32) -> (i32, i32, i32) {
    %c0_i32 = arith.constant 0 : i32
    %c0_i32_0 = arith.constant 0 : i32
    %c0_i32_1 = arith.constant 0 : i32
    return %arg0, %c0_i32, %c0_i32_0 : i32, i32, i32
  }
}

module attributes {stable_mosaic.version = 11 : i64} {
  func.func @kernel(%arg0: i32, %arg1: memref<2x8192xf32, #tpu.memory_space<vmem>>, %arg2: memref<8192x128xf32, #tpu.memory_space<vmem>>, %arg3: memref<1x128xf32, #tpu.memory_space<vmem>>, %arg4: memref<128x5xf32, #tpu.memory_space<vmem>>, %arg5: memref<1x5xf32, #tpu.memory_space<vmem>>, %arg6: memref<2x5xf32, #tpu.memory_space<vmem>>, %arg7: memref<2x128xf32, #tpu.memory_space<vmem>>) attributes {dimension_semantics = [#tpu.dimension_semantics<arbitrary>], iteration_bounds = array<i64: 4>, scalar_prefetch = 0 : i64, scratch_operands = 1 : i64, tpu.core_type = #tpu.core_type<tc>, window_params = [{transform_indices = @transform_0, window_bounds = array<i64: 2, 8192>}, {transform_indices = @transform_1, window_bounds = array<i64: 8192, 128>}, {pipeline_mode = #tpu.pipeline_mode<synchronous>, transform_indices = @transform_2, window_bounds = array<i64: 1, 128>}, {pipeline_mode = #tpu.pipeline_mode<synchronous>, transform_indices = @transform_3, window_bounds = array<i64: 128, 5>}, {pipeline_mode = #tpu.pipeline_mode<synchronous>, transform_indices = @transform_4, window_bounds = array<i64: 1, 5>}, {pipeline_mode = #tpu.pipeline_mode<synchronous>, transform_indices = @transform_5, window_bounds = array<i64: 2, 5>}]} {
    %c0_i32 = arith.constant 0 : i32
    %0 = arith.cmpi eq, %arg0, %c0_i32 : i32
    %1 = arith.extui %0 : i1 to i32
    %c0_i32_0 = arith.constant 0 : i32
    %2 = arith.cmpi ne, %1, %c0_i32_0 : i32
    scf.if %2 {
      %cst_9 = arith.constant 0.000000e+00 : f32
      %12 = vector.broadcast %cst_9 : f32 to vector<2x128xf32>
      %c0_10 = arith.constant 0 : index
      %c0_11 = arith.constant 0 : index
      %13 = vector.load %arg7[%c0_10, %c0_11] : memref<2x128xf32, #tpu.memory_space<vmem>>, vector<2x128xf32>
      tpu.vector_store %arg7[%c0_10, %c0_11], %12 {strides = array<i32>} : memref<2x128xf32, #tpu.memory_space<vmem>>, vector<2x128xf32>,
    } else {
    }
    %c0 = arith.constant 0 : index
    %c0_1 = arith.constant 0 : index
    %3 = vector.load %arg7[%c0, %c0_1] : memref<2x128xf32, #tpu.memory_space<vmem>>, vector<2x128xf32>
    %c0_2 = arith.constant 0 : index
    %c0_3 = arith.constant 0 : index
    %4 = vector.load %arg1[%c0_2, %c0_3] : memref<2x8192xf32, #tpu.memory_space<vmem>>, vector<2x8192xf32>
    %c0_4 = arith.constant 0 : index
    %c0_5 = arith.constant 0 : index
    %5 = vector.load %arg2[%c0_4, %c0_5] : memref<8192x128xf32, #tpu.memory_space<vmem>>, vector<8192x128xf32>
    %cst = arith.constant dense<0.000000e+00> : vector<2x128xf32>
    %6 = tpu.matmul %4, %5, %cst {dimension_numbers = #tpu.dot_dimension_numbers<[1], [0], [0], [1], [0, 0, 1, 1], [], []>} : vector<2x8192xf32>, vector<8192x128xf32>, vector<2x128xf32> -> vector<2x128xf32>
    %7 = arith.addf %3, %6 : vector<2x128xf32>
    %c0_6 = arith.constant 0 : index
    %c0_7 = arith.constant 0 : index
    %8 = vector.load %arg7[%c0_6, %c0_7] : memref<2x128xf32, #tpu.memory_space<vmem>>, vector<2x128xf32>
    tpu.vector_store %arg7[%c0_6, %c0_7], %7 {strides = array<i32>} : memref<2x128xf32, #tpu.memory_space<vmem>>, vector<2x128xf32>,
    %c3_i32 = arith.constant 3 : i32
    %9 = arith.cmpi eq, %arg0, %c3_i32 : i32
    %10 = arith.extui %9 : i1 to i32
    %c0_i32_8 = arith.constant 0 : i32
    %11 = arith.cmpi ne, %10, %c0_i32_8 : i32
    scf.if %11 {
      %c0_9 = arith.constant 0 : index
      %c0_10 = arith.constant 0 : index
      %12 = vector.load %arg7[%c0_9, %c0_10] : memref<2x128xf32, #tpu.memory_space<vmem>>, vector<2x128xf32>
      %c0_11 = arith.constant 0 : index
      %c0_12 = arith.constant 0 : index
      %13 = vector.load %arg3[%c0_11, %c0_12] : memref<1x128xf32, #tpu.memory_space<vmem>>, vector<1x128xf32>
      %14 = vector.broadcast %13 : vector<1x128xf32> to vector<2x128xf32>
      %15 = arith.addf %12, %14 : vector<2x128xf32>
      %cst_13 = arith.constant 0.000000e+00 : f32
      %16 = vector.broadcast %cst_13 : f32 to vector<2x128xf32>
      %17 = arith.maximumf %15, %16 : vector<2x128xf32>
      %c0_14 = arith.constant 0 : index
      %c0_15 = arith.constant 0 : index
      %18 = vector.load %arg4[%c0_14, %c0_15] : memref<128x5xf32, #tpu.memory_space<vmem>>, vector<128x5xf32>
      %cst_16 = arith.constant dense<0.000000e+00> : vector<2x5xf32>
      %19 = tpu.matmul %17, %18, %cst_16 {dimension_numbers = #tpu.dot_dimension_numbers<[1], [0], [0], [1], [0, 0, 1, 1], [], []>} : vector<2x128xf32>, vector<128x5xf32>, vector<2x5xf32> -> vector<2x5xf32>
      %c0_17 = arith.constant 0 : index
      %c0_18 = arith.constant 0 : index
      %20 = vector.load %arg5[%c0_17, %c0_18] : memref<1x5xf32, #tpu.memory_space<vmem>>, vector<1x5xf32>
      %21 = vector.broadcast %20 : vector<1x5xf32> to vector<2x5xf32>
      %22 = arith.addf %19, %21 : vector<2x5xf32>
      %c0_19 = arith.constant 0 : index
      %c0_20 = arith.constant 0 : index
      %23 = vector.load %arg6[%c0_19, %c0_20] : memref<2x5xf32, #tpu.memory_space<vmem>>, vector<2x5xf32>
      tpu.vector_store %arg6[%c0_19, %c0_20], %22 {strides = array<i32>} : memref<2x5xf32, #tpu.memory_space<vmem>>, vector<2x5xf32>,
    } else {
    }
    return
  }
  func.func @transform_0(%arg0: i32) -> (i32, i32) {
    %c0_i32 = arith.constant 0 : i32
    %c0_i32_0 = arith.constant 0 : i32
    return %c0_i32, %arg0 : i32, i32
  }
  func.func @transform_1(%arg0: i32) -> (i32, i32) {
    %c0_i32 = arith.constant 0 : i32
    %c0_i32_0 = arith.constant 0 : i32
    return %arg0, %c0_i32 : i32, i32
  }
  func.func @transform_2(%arg0: i32) -> (i32, i32) {
    %c0_i32 = arith.constant 0 : i32
    %c0_i32_0 = arith.constant 0 : i32
    %c0_i32_1 = arith.constant 0 : i32
    return %c0_i32, %c0_i32_0 : i32, i32
  }
  func.func @transform_3(%arg0: i32) -> (i32, i32) {
    %c0_i32 = arith.constant 0 : i32
    %c0_i32_0 = arith.constant 0 : i32
    %c0_i32_1 = arith.constant 0 : i32
    return %c0_i32, %c0_i32_0 : i32, i32
  }
  func.func @transform_4(%arg0: i32) -> (i32, i32) {
    %c0_i32 = arith.constant 0 : i32
    %c0_i32_0 = arith.constant 0 : i32
    %c0_i32_1 = arith.constant 0 : i32
    return %c0_i32, %c0_i32_0 : i32, i32
  }
  func.func @transform_5(%arg0: i32) -> (i32, i32) {
    %c0_i32 = arith.constant 0 : i32
    %c0_i32_0 = arith.constant 0 : i32
    %c0_i32_1 = arith.constant 0 : i32
    return %c0_i32, %c0_i32_0 : i32, i32
  }
}

</mosaic_0001>

<llo_original>
// kernel: _lambda_.3
$region0: #{_lambda_.3}
  #allocation0 [shape = 'u32[]', space=smem, size = 0x4, offset = 0x4, fixed_abs, tag = 'smem constant byte address 0x4 - core index']
  #allocation1 [shape = 'u32[144,128]{1,0:T(1,128)}', space=vmem, size = 0x12000, scoped, tag = 'internal scratch']
  %s0 = inlined_call_operand.vmem [shape: f32[2,4,512,216], index: 0, kind: input, shape index: {}]
  %s1 = inlined_call_operand.vmem [shape: f32[216,128], index: 1, kind: input, shape index: {}]
  %s2 = inlined_call_operand.vmem [shape: f32[1,128], index: 2, kind: input, shape index: {}]
  %s3 = inlined_call_operand.vmem [shape: f32[2,512,128], index: 3, kind: output, shape index: {}]
  %s4 = sld [smem:[#allocation0]]
  $region45: #{_lambda_.3} parent=0
    _
  %s6 = ssub.s32 1, %s4
  %s7 = scalar_select 0, %s6, %s4
  loop: start=0, step=1, limit=4
  $region2: #{_lambda_.3} parent=0 // loop_pre_header
    _
  $region3: #{_lambda_.3} parent=0 // loop_header
    %s9 = sphi 0, %s13
    %p10 = scmp.ge.s32.totalorder %s9, 4
    %s19 = sphi 0, %s21
    %s22 = sphi 0, %s19
    %s23 = sphi 0, %s22
    %s39 = sphi 0, %s23
    %s43 = sphi 0, %s43
    %s45 = sphi 0, %s43
    %s46 = sphi 0, %s45
    %s60 = sphi 0, %s46
    %s64 = sphi 0, %s64
    %s66 = sphi 0, %s64
    %s67 = sphi 0, %s66
    %s81 = sphi 0, %s67
    %s87 = sphi 0, %s89
    %s90 = sphi 0, %s87
    %s91 = sphi 0, %s90
    %s107 = sphi 0, %s91
  $region4: #{_lambda_.3} parent=0 // loop_header_branch
    %12 = sbr.rel (%p10) target = $region8
  $region5: #{_lambda_.3} parent=0 // loop_body
    %s14 = ssub.s32 %s9, 1
    %s15 = ssub.s32 %s9, 2
    %s16 = sadd.s32 %s9, 1
    %s17 = ssub.s32 %s9, %s16
    %p18 = scmp.eq.s32.totalorder %s17, 0
    %s20 = sadd.s32 %s19, 1
    %s21 = scalar_select %p18, %s19, %s20
    %p24 = pneg %p18
    %p25 = scmp.eq.s32.totalorder %s9, 1
    %p26 = por %p24, %p25
    %p27 = scmp.ne.s32.totalorder %s19, %s22
    %p28 = scmp.eq.s32.totalorder %s9, 0
    %p29 = por %p27, %p28
    %p30 = scmp.ne.s32.totalorder %s19, %s22
    %p31 = scmp.eq.s32.totalorder %s14, 1
    %p32 = por %p30, %p31
    %p33 = scmp.ne.s32.totalorder %s22, %s23
    %p34 = scmp.eq.s32.totalorder %s14, 0
    %p35 = por %p33, %p34
    %p36 = scmp.ne.s32.totalorder %s22, %s23
    %p37 = scmp.eq.s32.totalorder %s15, 1
    %p38 = por %p36, %p37
    %p40 = scmp.ne.s32.totalorder %s23, %s39
    %p41 = scmp.eq.s32.totalorder %s15, 0
    %p42 = por %p40, %p41
    %s44 = sadd.s32 %s43, 1
    %p47 = scmp.eq.s32.totalorder %s9, 1
    %p48 = scmp.ne.s32.totalorder %s43, %s45
    %p49 = scmp.eq.s32.totalorder %s9, 0
    %p50 = por %p48, %p49
    %p51 = scmp.ne.s32.totalorder %s43, %s45
    %p52 = scmp.eq.s32.totalorder %s14, 1
    %p53 = por %p51, %p52
    %p54 = scmp.ne.s32.totalorder %s45, %s46
    %p55 = scmp.eq.s32.totalorder %s14, 0
    %p56 = por %p54, %p55
    %p57 = scmp.ne.s32.totalorder %s45, %s46
    %p58 = scmp.eq.s32.totalorder %s15, 1
    %p59 = por %p57, %p58
    %p61 = scmp.ne.s32.totalorder %s46, %s60
    %p62 = scmp.eq.s32.totalorder %s15, 0
    %p63 = por %p61, %p62
    %s65 = sadd.s32 %s64, 1
    %p68 = scmp.eq.s32.totalorder %s9, 1
    %p69 = scmp.ne.s32.totalorder %s64, %s66
    %p70 = scmp.eq.s32.totalorder %s9, 0
    %p71 = por %p69, %p70
    %p72 = scmp.ne.s32.totalorder %s64, %s66
    %p73 = scmp.eq.s32.totalorder %s14, 1
    %p74 = por %p72, %p73
    %p75 = scmp.ne.s32.totalorder %s66, %s67
    %p76 = scmp.eq.s32.totalorder %s14, 0
    %p77 = por %p75, %p76
    %p78 = scmp.ne.s32.totalorder %s66, %s67
    %p79 = scmp.eq.s32.totalorder %s15, 1
    %p80 = por %p78, %p79
    %p82 = scmp.ne.s32.totalorder %s67, %s81
    %p83 = scmp.eq.s32.totalorder %s15, 0
    %p84 = por %p82, %p83
    %s85 = ssub.s32 %s9, %s16
    %p86 = scmp.eq.s32.totalorder %s85, 0
    %s88 = sadd.s32 %s87, 1
    %s89 = scalar_select %p86, %s87, %s88
    %p92 = pneg %p86
    %p93 = scmp.eq.s32.totalorder %s9, 1
    %p94 = por %p92, %p93
    %p95 = scmp.ne.s32.totalorder %s87, %s90
    %p96 = scmp.eq.s32.totalorder %s9, 0
    %p97 = por %p95, %p96
    %p98 = scmp.ne.s32.totalorder %s87, %s90
    %p99 = scmp.eq.s32.totalorder %s14, 1
    %p100 = por %p98, %p99
    %p101 = scmp.ne.s32.totalorder %s90, %s91
    %p102 = scmp.eq.s32.totalorder %s14, 0
    %p103 = por %p101, %p102
    %p104 = scmp.ne.s32.totalorder %s90, %s91
    %p105 = scmp.eq.s32.totalorder %s15, 1
    %p106 = por %p104, %p105
    %p108 = scmp.ne.s32.totalorder %s91, %s107
    %p109 = scmp.eq.s32.totalorder %s15, 0
    %p110 = por %p108, %p109
    %p111 = scmp.le.s32.totalorder 1, %s9
    %p112 = scmp.lt.s32.totalorder %s9, 3
    %p113 = pnand %p111, %p112
    %p114 = pneg %p113
    // Predicated region
    $region9: #{_lambda_.3} parent=5 // pred_check
      _
    $region10: #{_lambda_.3} parent=5 // pred_check_branch
      %116 = sbr.rel (%p113) target = $region12
    $region11: #{_lambda_.3} parent=5 // pred_region
      %s117 = ssub.s32 %s9, 1
      // Predicated region
      $region13: #{_lambda_.3} parent=11 // pred_check
        %p118 = pneg %p56
      $region14: #{_lambda_.3} parent=11 // pred_check_branch
        %120 = sbr.rel (%p118) target = $region16
      $region15: #{_lambda_.3} parent=11 // pred_region
        _
      $region16: #{_lambda_.3} parent=11 // pred_fallthru
        _
      // Predicated region
      $region17: #{_lambda_.3} parent=11 // pred_check
        %p121 = pneg %p77
      $region18: #{_lambda_.3} parent=11 // pred_check_branch
        %123 = sbr.rel (%p121) target = $region20
      $region19: #{_lambda_.3} parent=11 // pred_region
        _
      $region20: #{_lambda_.3} parent=11 // pred_fallthru
        _
    $region12: #{_lambda_.3} parent=5 // pred_fallthru
      _
    %p124 = scmp.lt.s32.totalorder %s9, 2
    // Predicated region
    $region21: #{_lambda_.3} parent=5 // pred_check
      %p125 = pneg %p124
    $region22: #{_lambda_.3} parent=5 // pred_check_branch
      %127 = sbr.rel (%p125) target = $region24
    $region23: #{_lambda_.3} parent=5 // pred_region
      // Predicated region
      $region25: #{_lambda_.3} parent=23 // pred_check
        %p128 = pneg %p29
      $region26: #{_lambda_.3} parent=23 // pred_check_branch
        %130 = sbr.rel (%p128) target = $region28
      $region27: #{_lambda_.3} parent=23 // pred_region
        %p131 = scmp.lt.s32.totalorder %s9, 1
        %s132 = scalar_select %p131, %s9, 1
        %s133 = smul.addr %s132, 512
        %s134 = smul.addr %s133, 8
        %s135 = scalar_lea.vmem %s0, %s134
      $region28: #{_lambda_.3} parent=23 // pred_fallthru
        _
    $region24: #{_lambda_.3} parent=5 // pred_fallthru
      _
    %p136 = scmp.le.s32.totalorder 1, %s9
    %p137 = scmp.lt.s32.totalorder %s9, 3
    %p138 = pnand %p136, %p137
    %p139 = pneg %p138
    // Predicated region
    $region29: #{_lambda_.3} parent=5 // pred_check
      _
    $region30: #{_lambda_.3} parent=5 // pred_check_branch
      %141 = sbr.rel (%p138) target = $region32
    $region31: #{_lambda_.3} parent=5 // pred_region
      %s142 = ssub.s32 %s9, 1
      %p143 = scmp.lt.s32.totalorder %s14, 1
      %s144 = scalar_select %p143, %s14, 1
      %s145 = smul.addr %s144, 512
      %s146 = smul.addr %s145, 8
      %s147 = scalar_lea.vmem %s0, %s146
      %p148 = pneg %p35
      %p149 = pneg %p32
      %p150 = pneg %p56
      %p151 = pneg %p53
      %p152 = pneg %p77
      %p153 = pneg %p74
      %p154 = pneg %p103
      %p155 = pneg %p100
      %p156 = scmp.lt.s32.totalorder %s14, 1
      %s157 = scalar_select %p156, %s14, 1
      %s158 = smul.addr %s157, 64
      %s159 = smul.addr %s158, 8
      %s160 = scalar_lea.vmem %s3, %s159
      %p161 = scmp.lt.s32.totalorder %s14, 1
      %s162 = scalar_select %p161, %s14, 1
      %s163 = smul.addr %s162, 512
      %s164 = smul.addr %s163, 8
      %s165 = scalar_lea.vmem %s0, %s164
      %p166 = scmp.lt.s32.totalorder %s14, 1
      %s167 = scalar_select %p166, %s14, 1
      %s168 = smul.addr %s167, 64
      %s169 = smul.addr %s168, 8
      %s170 = scalar_lea.vmem %s3, %s169
      %v171 = vld [vmem:[%s1] sm:$0xff]
      %v172 = vld [vmem:[%s1 + $0x8] sm:$0xff]
      %v173 = vld [vmem:[%s1 + $0x10] sm:$0xff]
      %v174 = vld [vmem:[%s1 + $0x18] sm:$0xff]
      %v175 = vld [vmem:[%s1 + $0x20] sm:$0xff]
      %v176 = vld [vmem:[%s1 + $0x28] sm:$0xff]
      %v177 = vld [vmem:[%s1 + $0x30] sm:$0xff]
      %v178 = vld [vmem:[%s1 + $0x38] sm:$0xff]
      %v179 = vld [vmem:[%s1 + $0x40] sm:$0xff]
      %v180 = vld [vmem:[%s1 + $0x48] sm:$0xff]
      %v181 = vld [vmem:[%s1 + $0x50] sm:$0xff]
      %v182 = vld [vmem:[%s1 + $0x58] sm:$0xff]
      %v183 = vld [vmem:[%s1 + $0x60] sm:$0xff]
      %v184 = vld [vmem:[%s1 + $0x68] sm:$0xff]
      %v185 = vld [vmem:[%s1 + $0x70] sm:$0xff]
      %v186 = vld [vmem:[%s1 + $0x78] sm:$0xff]
      %v187 = vld [vmem:[%s1 + $0x80] sm:$0xff]
      %v188 = vld [vmem:[%s1 + $0x88] sm:$0xff]
      %v189 = vld [vmem:[%s1 + $0x90] sm:$0xff]
      %v190 = vld [vmem:[%s1 + $0x98] sm:$0xff]
      %v191 = vld [vmem:[%s1 + $0xa0] sm:$0xff]
      %v192 = vld [vmem:[%s1 + $0xa8] sm:$0xff]
      %v193 = vld [vmem:[%s1 + $0xb0] sm:$0xff]
      %v194 = vld [vmem:[%s1 + $0xb8] sm:$0xff]
      %v195 = vld [vmem:[%s1 + $0xc0] sm:$0xff]
      %v196 = vld [vmem:[%s1 + $0xc8] sm:$0xff]
      %v197 = vld [vmem:[%s1 + $0xd0] sm:$0xff]
      %v198 = vld [vmem:[%s165] sm:$0xff]
      %v199 = vld [vmem:[%s165 + $0x8] sm:$0xff]
      %v200 = vld [vmem:[%s165 + $0x10] sm:$0xff]
      %v201 = vld [vmem:[%s165 + $0x18] sm:$0xff]
      %v202 = vld [vmem:[%s165 + $0x20] sm:$0xff]
      %v203 = vld [vmem:[%s165 + $0x28] sm:$0xff]
      %v204 = vld [vmem:[%s165 + $0x30] sm:$0xff]
      %v205 = vld [vmem:[%s165 + $0x38] sm:$0xff]
      %v206 = vld [vmem:[%s165 + $0x40] sm:$0xff]
      %v207 = vld [vmem:[%s165 + $0x48] sm:$0xff]
      %v208 = vld [vmem:[%s165 + $0x50] sm:$0xff]
      %v209 = vld [vmem:[%s165 + $0x58] sm:$0xff]
      %v210 = vld [vmem:[%s165 + $0x60] sm:$0xff]
      %v211 = vld [vmem:[%s165 + $0x68] sm:$0xff]
      %v212 = vld [vmem:[%s165 + $0x70] sm:$0xff]
      %v213 = vld [vmem:[%s165 + $0x78] sm:$0xff]
      %v214 = vld [vmem:[%s165 + $0x80] sm:$0xff]
      %v215 = vld [vmem:[%s165 + $0x88] sm:$0xff]
      %v216 = vld [vmem:[%s165 + $0x90] sm:$0xff]
      %v217 = vld [vmem:[%s165 + $0x98] sm:$0xff]
      %v218 = vld [vmem:[%s165 + $0xa0] sm:$0xff]
      %v219 = vld [vmem:[%s165 + $0xa8] sm:$0xff]
      %v220 = vld [vmem:[%s165 + $0xb0] sm:$0xff]
      %v221 = vld [vmem:[%s165 + $0xb8] sm:$0xff]
      %v222 = vld [vmem:[%s165 + $0xc0] sm:$0xff]
      %v223 = vld [vmem:[%s165 + $0xc8] sm:$0xff]
      %v224 = vld [vmem:[%s165 + $0xd0] sm:$0xff]
      %v225 = vld [vmem:[%s165 + $0xd8] sm:$0xff]
      %v226 = vld [vmem:[%s165 + $0xe0] sm:$0xff]
      %v227 = vld [vmem:[%s165 + $0xe8] sm:$0xff]
      %v228 = vld [vmem:[%s165 + $0xf0] sm:$0xff]
      %v229 = vld [vmem:[%s165 + $0xf8] sm:$0xff]
      %v230 = vld [vmem:[%s165 + $0x100] sm:$0xff]
      %v231 = vld [vmem:[%s165 + $0x108] sm:$0xff]
      %v232 = vld [vmem:[%s165 + $0x110] sm:$0xff]
      %v233 = vld [vmem:[%s165 + $0x118] sm:$0xff]
      %v234 = vld [vmem:[%s165 + $0x120] sm:$0xff]
      %v235 = vld [vmem:[%s165 + $0x128] sm:$0xff]
      %v236 = vld [vmem:[%s165 + $0x130] sm:$0xff]
      %v237 = vld [vmem:[%s165 + $0x138] sm:$0xff]
      %v238 = vld [vmem:[%s165 + $0x140] sm:$0xff]
      %v239 = vld [vmem:[%s165 + $0x148] sm:$0xff]
      %v240 = vld [vmem:[%s165 + $0x150] sm:$0xff]
      %v241 = vld [vmem:[%s165 + $0x158] sm:$0xff]
      %v242 = vld [vmem:[%s165 + $0x160] sm:$0xff]
      %v243 = vld [vmem:[%s165 + $0x168] sm:$0xff]
      %v244 = vld [vmem:[%s165 + $0x170] sm:$0xff]
      %v245 = vld [vmem:[%s165 + $0x178] sm:$0xff]
      %v246 = vld [vmem:[%s165 + $0x180] sm:$0xff]
      %v247 = vld [vmem:[%s165 + $0x188] sm:$0xff]
      %v248 = vld [vmem:[%s165 + $0x190] sm:$0xff]
      %v249 = vld [vmem:[%s165 + $0x198] sm:$0xff]
      %v250 = vld [vmem:[%s165 + $0x1a0] sm:$0xff]
      %v251 = vld [vmem:[%s165 + $0x1a8] sm:$0xff]
      %v252 = vld [vmem:[%s165 + $0x1b0] sm:$0xff]
      %v253 = vld [vmem:[%s165 + $0x1b8] sm:$0xff]
      %v254 = vld [vmem:[%s165 + $0x1c0] sm:$0xff]
      %v255 = vld [vmem:[%s165 + $0x1c8] sm:$0xff]
      %v256 = vld [vmem:[%s165 + $0x1d0] sm:$0xff]
      %v257 = vld [vmem:[%s165 + $0x1d8] sm:$0xff]
      %v258 = vld [vmem:[%s165 + $0x1e0] sm:$0xff]
      %v259 = vld [vmem:[%s165 + $0x1e8] sm:$0xff]
      %v260 = vld [vmem:[%s165 + $0x1f0] sm:$0xff]
      %v261 = vld [vmem:[%s165 + $0x1f8] sm:$0xff]
      %v262 = vld [vmem:[%s165 + $0x200] sm:$0xff]
      %v263 = vld [vmem:[%s165 + $0x208] sm:$0xff]
      %v264 = vld [vmem:[%s165 + $0x210] sm:$0xff]
      %v265 = vld [vmem:[%s165 + $0x218] sm:$0xff]
      %v266 = vld [vmem:[%s165 + $0x220] sm:$0xff]
      %v267 = vld [vmem:[%s165 + $0x228] sm:$0xff]
      %v268 = vld [vmem:[%s165 + $0x230] sm:$0xff]
      %v269 = vld [vmem:[%s165 + $0x238] sm:$0xff]
      %v270 = vld [vmem:[%s165 + $0x240] sm:$0xff]
      %v271 = vld [vmem:[%s165 + $0x248] sm:$0xff]
      %v272 = vld [vmem:[%s165 + $0x250] sm:$0xff]
      %v273 = vld [vmem:[%s165 + $0x258] sm:$0xff]
      %v274 = vld [vmem:[%s165 + $0x260] sm:$0xff]
      %v275 = vld [vmem:[%s165 + $0x268] sm:$0xff]
      %v276 = vld [vmem:[%s165 + $0x270] sm:$0xff]
      %v277 = vld [vmem:[%s165 + $0x278] sm:$0xff]
      %v278 = vld [vmem:[%s165 + $0x280] sm:$0xff]
      %v279 = vld [vmem:[%s165 + $0x288] sm:$0xff]
      %v280 = vld [vmem:[%s165 + $0x290] sm:$0xff]
      %v281 = vld [vmem:[%s165 + $0x298] sm:$0xff]
      %v282 = vld [vmem:[%s165 + $0x2a0] sm:$0xff]
      %v283 = vld [vmem:[%s165 + $0x2a8] sm:$0xff]
      %v284 = vld [vmem:[%s165 + $0x2b0] sm:$0xff]
      %v285 = vld [vmem:[%s165 + $0x2b8] sm:$0xff]
      %v286 = vld [vmem:[%s165 + $0x2c0] sm:$0xff]
      %v287 = vld [vmem:[%s165 + $0x2c8] sm:$0xff]
      %v288 = vld [vmem:[%s165 + $0x2d0] sm:$0xff]
      %v289 = vld [vmem:[%s165 + $0x2d8] sm:$0xff]
      %v290 = vld [vmem:[%s165 + $0x2e0] sm:$0xff]
      %v291 = vld [vmem:[%s165 + $0x2e8] sm:$0xff]
      %v292 = vld [vmem:[%s165 + $0x2f0] sm:$0xff]
      %v293 = vld [vmem:[%s165 + $0x2f8] sm:$0xff]
      %v294 = vld [vmem:[%s165 + $0x300] sm:$0xff]
      %v295 = vld [vmem:[%s165 + $0x308] sm:$0xff]
      %v296 = vld [vmem:[%s165 + $0x310] sm:$0xff]
      %v297 = vld [vmem:[%s165 + $0x318] sm:$0xff]
      %v298 = vld [vmem:[%s165 + $0x320] sm:$0xff]
      %v299 = vld [vmem:[%s165 + $0x328] sm:$0xff]
      %v300 = vld [vmem:[%s165 + $0x330] sm:$0xff]
      %v301 = vld [vmem:[%s165 + $0x338] sm:$0xff]
      %v302 = vld [vmem:[%s165 + $0x340] sm:$0xff]
      %v303 = vld [vmem:[%s165 + $0x348] sm:$0xff]
      %v304 = vld [vmem:[%s165 + $0x350] sm:$0xff]
      %v305 = vld [vmem:[%s165 + $0x358] sm:$0xff]
      %v306 = vld [vmem:[%s165 + $0x360] sm:$0xff]
      %v307 = vld [vmem:[%s165 + $0x368] sm:$0xff]
      %v308 = vld [vmem:[%s165 + $0x370] sm:$0xff]
      %v309 = vld [vmem:[%s165 + $0x378] sm:$0xff]
      %v310 = vld [vmem:[%s165 + $0x380] sm:$0xff]
      %v311 = vld [vmem:[%s165 + $0x388] sm:$0xff]
      %v312 = vld [vmem:[%s165 + $0x390] sm:$0xff]
      %v313 = vld [vmem:[%s165 + $0x398] sm:$0xff]
      %v314 = vld [vmem:[%s165 + $0x3a0] sm:$0xff]
      %v315 = vld [vmem:[%s165 + $0x3a8] sm:$0xff]
      %v316 = vld [vmem:[%s165 + $0x3b0] sm:$0xff]
      %v317 = vld [vmem:[%s165 + $0x3b8] sm:$0xff]
      %v318 = vld [vmem:[%s165 + $0x3c0] sm:$0xff]
      %v319 = vld [vmem:[%s165 + $0x3c8] sm:$0xff]
      %v320 = vld [vmem:[%s165 + $0x3d0] sm:$0xff]
      %v321 = vld [vmem:[%s165 + $0x3d8] sm:$0xff]
      %v322 = vld [vmem:[%s165 + $0x3e0] sm:$0xff]
      %v323 = vld [vmem:[%s165 + $0x3e8] sm:$0xff]
      %v324 = vld [vmem:[%s165 + $0x3f0] sm:$0xff]
      %v325 = vld [vmem:[%s165 + $0x3f8] sm:$0xff]
      %vm326 = vcmask 719872
      %v328 = vsel %vm326, %v199, 0
      %v331 = vsel %vm326, %v201, 0
      %v334 = vsel %vm326, %v203, 0
      %v337 = vsel %vm326, %v205, 0
      %v340 = vsel %vm326, %v207, 0
      %v343 = vsel %vm326, %v209, 0
      %v346 = vsel %vm326, %v211, 0
      %v349 = vsel %vm326, %v213, 0
      %v352 = vsel %vm326, %v215, 0
      %v355 = vsel %vm326, %v217, 0
      %v358 = vsel %vm326, %v219, 0
      %v361 = vsel %vm326, %v221, 0
      %v364 = vsel %vm326, %v223, 0
      %v367 = vsel %vm326, %v225, 0
      %v370 = vsel %vm326, %v227, 0
      %v373 = vsel %vm326, %v229, 0
      %v376 = vsel %vm326, %v231, 0
      %v379 = vsel %vm326, %v233, 0
      %v382 = vsel %vm326, %v235, 0
      %v385 = vsel %vm326, %v237, 0
      %v388 = vsel %vm326, %v239, 0
      %v391 = vsel %vm326, %v241, 0
      %v394 = vsel %vm326, %v243, 0
      %v397 = vsel %vm326, %v245, 0
      %v400 = vsel %vm326, %v247, 0
      %v403 = vsel %vm326, %v249, 0
      %v406 = vsel %vm326, %v251, 0
      %v409 = vsel %vm326, %v253, 0
      %v412 = vsel %vm326, %v255, 0
      %v415 = vsel %vm326, %v257, 0
      %v418 = vsel %vm326, %v259, 0
      %v421 = vsel %vm326, %v261, 0
      %v424 = vsel %vm326, %v263, 0
      %v427 = vsel %vm326, %v265, 0
      %v430 = vsel %vm326, %v267, 0
      %v433 = vsel %vm326, %v269, 0
      %v436 = vsel %vm326, %v271, 0
      %v439 = vsel %vm326, %v273, 0
      %v442 = vsel %vm326, %v275, 0
      %v445 = vsel %vm326, %v277, 0
      %v448 = vsel %vm326, %v279, 0
      %v451 = vsel %vm326, %v281, 0
      %v454 = vsel %vm326, %v283, 0
      %v457 = vsel %vm326, %v285, 0
      %v460 = vsel %vm326, %v287, 0
      %v463 = vsel %vm326, %v289, 0
      %v466 = vsel %vm326, %v291, 0
      %v469 = vsel %vm326, %v293, 0
      %v472 = vsel %vm326, %v295, 0
      %v475 = vsel %vm326, %v297, 0
      %v478 = vsel %vm326, %v299, 0
      %v481 = vsel %vm326, %v301, 0
      %v484 = vsel %vm326, %v303, 0
      %v487 = vsel %vm326, %v305, 0
      %v490 = vsel %vm326, %v307, 0
      %v493 = vsel %vm326, %v309, 0
      %v496 = vsel %vm326, %v311, 0
      %v499 = vsel %vm326, %v313, 0
      %v502 = vsel %vm326, %v315, 0
      %v505 = vsel %vm326, %v317, 0
      %v508 = vsel %vm326, %v319, 0
      %v511 = vsel %vm326, %v321, 0
      %v514 = vsel %vm326, %v323, 0
      %v517 = vsel %vm326, %v325, 0
      %519 = vmatprep.subr.mxu0 0.0
      %520 = vmatpush1.msra.mxu0 %v171
      %521 = vmatprep.subr.mxu0 0.0
      %522 = vmatpush1.msra.mxu0 %v172
      %523 = vmatprep.subr.mxu0 0.0
      %524 = vmatpush1.msra.mxu0 %v173
      %525 = vmatprep.subr.mxu0 0.0
      %526 = vmatpush1.msra.mxu0 %v174
      %527 = vmatprep.subr.mxu0 0.0
      %528 = vmatpush1.msra.mxu0 %v175
      %529 = vmatprep.subr.mxu0 0.0
      %530 = vmatpush1.msra.mxu0 %v176
      %531 = vmatprep.subr.mxu0 0.0
      %532 = vmatpush1.msra.mxu0 %v177
      %533 = vmatprep.subr.mxu0 0.0
      %534 = vmatpush1.msra.mxu0 %v178
      %535 = vmatprep.subr.mxu0 0.0
      %536 = vmatpush1.msra.mxu0 %v179
      %537 = vmatprep.subr.mxu0 0.0
      %538 = vmatpush1.msra.mxu0 %v180
      %539 = vmatprep.subr.mxu0 0.0
      %540 = vmatpush1.msra.mxu0 %v181
      %541 = vmatprep.subr.mxu0 0.0
      %542 = vmatpush1.msra.mxu0 %v182
      %543 = vmatprep.subr.mxu0 0.0
      %544 = vmatpush1.msra.mxu0 %v183
      %545 = vmatprep.subr.mxu0 0.0
      %546 = vmatpush1.msra.mxu0 %v184
      %547 = vmatprep.subr.mxu0 0.0
      %548 = vmatpush1.msra.mxu0 %v185
      %549 = vmatprep.subr.mxu0 0.0
      %550 = vmatpush1.msra.mxu0 %v186
      %551 = vmatprep.subr.mxu0 0.0
      %552 = vmatpush1.msra.mxu0 %v187
      %553 = vmatprep.subr.mxu0 0.0
      %554 = vmatpush1.msra.mxu0 %v188
      %555 = vmatprep.subr.mxu0 0.0
      %556 = vmatpush1.msra.mxu0 %v189
      %557 = vmatprep.subr.mxu0 0.0
      %558 = vmatpush1.msra.mxu0 %v190
      %559 = vmatprep.subr.mxu0 0.0
      %560 = vmatpush1.msra.mxu0 %v191
      %561 = vmatprep.subr.mxu0 0.0
      %562 = vmatpush1.msra.mxu0 %v192
      %563 = vmatprep.subr.mxu0 0.0
      %564 = vmatpush1.msra.mxu0 %v193
      %565 = vmatprep.subr.mxu0 0.0
      %566 = vmatpush1.msra.mxu0 %v194
      %567 = vmatprep.subr.mxu0 0.0
      %568 = vmatpush1.msra.mxu0 %v195
      %569 = vmatprep.subr.mxu0 0.0
      %570 = vmatpush1.msra.mxu0 %v196
      %571 = vmatprep.subr.mxu0 0.0
      %572 = vmatpush1.msra.mxu0 %v197
      %573 = vmatprep.subr.mxu0 0.0
      %574 = vmatpush1.msra.mxu0 0.0
      %575 = vmatprep.subr.mxu0 0.0
      %576 = vmatpush1.msra.mxu0 0.0
      %577 = vmatprep.subr.mxu0 0.0
      %578 = vmatpush1.msra.mxu0 0.0
      %579 = vmatprep.subr.mxu0 0.0
      %580 = vmatpush1.msra.mxu0 0.0
      %581 = vmatprep.subr.mxu0 0.0
      %582 = vmatpush1.msra.mxu0 0.0
      %583 = vmatprep.mubr.f32.mxu0 %v328
      %584 = vmatmul.mubr.f32.gmra.mrb[0].mxu0 %v198
      %v585 = vpop.f32.mrb[0].mxu0
      %v586 = vadd.f32 0.0, %v585
      %v587 = vpop.f32.mrb[0].mxu0
      %588 = vmatprep.mubr.f32.mxu0 %v331
      %589 = vmatmul.mubr.f32.gmra.mrb[0].mxu0 %v200
      %v590 = vpop.f32.mrb[0].mxu0
      %v591 = vadd.f32 0.0, %v590
      %v592 = vpop.f32.mrb[0].mxu0
      %593 = vmatprep.mubr.f32.mxu0 %v334
      %594 = vmatmul.mubr.f32.gmra.mrb[0].mxu0 %v202
      %v595 = vpop.f32.mrb[0].mxu0
      %v596 = vadd.f32 0.0, %v595
      %v597 = vpop.f32.mrb[0].mxu0
      %598 = vmatprep.mubr.f32.mxu0 %v337
      %599 = vmatmul.mubr.f32.gmra.mrb[0].mxu0 %v204
      %v600 = vpop.f32.mrb[0].mxu0
      %v601 = vadd.f32 0.0, %v600
      %v602 = vpop.f32.mrb[0].mxu0
      %603 = vmatprep.mubr.f32.mxu0 %v340
      %604 = vmatmul.mubr.f32.gmra.mrb[0].mxu0 %v206
      %v605 = vpop.f32.mrb[0].mxu0
      %v606 = vadd.f32 0.0, %v605
      %v607 = vpop.f32.mrb[0].mxu0
      %608 = vmatprep.mubr.f32.mxu0 %v343
      %609 = vmatmul.mubr.f32.gmra.mrb[0].mxu0 %v208
      %v610 = vpop.f32.mrb[0].mxu0
      %v611 = vadd.f32 0.0, %v610
      %v612 = vpop.f32.mrb[0].mxu0
      %613 = vmatprep.mubr.f32.mxu0 %v346
      %614 = vmatmul.mubr.f32.gmra.mrb[0].mxu0 %v210
      %v615 = vpop.f32.mrb[0].mxu0
      %v616 = vadd.f32 0.0, %v615
      %v617 = vpop.f32.mrb[0].mxu0
      %618 = vmatprep.mubr.f32.mxu0 %v349
      %619 = vmatmul.mubr.f32.gmra.mrb[0].mxu0 %v212
      %v620 = vpop.f32.mrb[0].mxu0
      %v621 = vadd.f32 0.0, %v620
      %v622 = vpop.f32.mrb[0].mxu0
      %623 = vmatprep.mubr.f32.mxu0 %v352
      %624 = vmatmul.mubr.f32.gmra.mrb[0].mxu0 %v214
      %v625 = vpop.f32.mrb[0].mxu0
      %v626 = vadd.f32 0.0, %v625
      %v627 = vpop.f32.mrb[0].mxu0
      %628 = vmatprep.mubr.f32.mxu0 %v355
      %629 = vmatmul.mubr.f32.gmra.mrb[0].mxu0 %v216
      %v630 = vpop.f32.mrb[0].mxu0
      %v631 = vadd.f32 0.0, %v630
      %v632 = vpop.f32.mrb[0].mxu0
      %633 = vmatprep.mubr.f32.mxu0 %v358
      %634 = vmatmul.mubr.f32.gmra.mrb[0].mxu0 %v218
      %v635 = vpop.f32.mrb[0].mxu0
      %v636 = vadd.f32 0.0, %v635
      %v637 = vpop.f32.mrb[0].mxu0
      %638 = vmatprep.mubr.f32.mxu0 %v361
      %639 = vmatmul.mubr.f32.gmra.mrb[0].mxu0 %v220
      %v640 = vpop.f32.mrb[0].mxu0
      %v641 = vadd.f32 0.0, %v640
      %v642 = vpop.f32.mrb[0].mxu0
      %643 = vmatprep.mubr.f32.mxu0 %v364
      %644 = vmatmul.mubr.f32.gmra.mrb[0].mxu0 %v222
      %v645 = vpop.f32.mrb[0].mxu0
      %v646 = vadd.f32 0.0, %v645
      %v647 = vpop.f32.mrb[0].mxu0
      %648 = vmatprep.mubr.f32.mxu0 %v367
      %649 = vmatmul.mubr.f32.gmra.mrb[0].mxu0 %v224
      %v650 = vpop.f32.mrb[0].mxu0
      %v651 = vadd.f32 0.0, %v650
      %v652 = vpop.f32.mrb[0].mxu0
      %653 = vmatprep.mubr.f32.mxu0 %v370
      %654 = vmatmul.mubr.f32.gmra.mrb[0].mxu0 %v226
      %v655 = vpop.f32.mrb[0].mxu0
      %v656 = vadd.f32 0.0, %v655
      %v657 = vpop.f32.mrb[0].mxu0
      %658 = vmatprep.mubr.f32.mxu0 %v373
      %659 = vmatmul.mubr.f32.gmra.mrb[0].mxu0 %v228
      %v660 = vpop.f32.mrb[0].mxu0
      %v661 = vadd.f32 0.0, %v660
      %v662 = vpop.f32.mrb[0].mxu0
      %663 = vmatprep.mubr.f32.mxu0 %v376
      %664 = vmatmul.mubr.f32.gmra.mrb[0].mxu0 %v230
      %v665 = vpop.f32.mrb[0].mxu0
      %v666 = vadd.f32 0.0, %v665
      %v667 = vpop.f32.mrb[0].mxu0
      %668 = vmatprep.mubr.f32.mxu0 %v379
      %669 = vmatmul.mubr.f32.gmra.mrb[0].mxu0 %v232
      %v670 = vpop.f32.mrb[0].mxu0
      %v671 = vadd.f32 0.0, %v670
      %v672 = vpop.f32.mrb[0].mxu0
      %673 = vmatprep.mubr.f32.mxu0 %v382
      %674 = vmatmul.mubr.f32.gmra.mrb[0].mxu0 %v234
      %v675 = vpop.f32.mrb[0].mxu0
      %v676 = vadd.f32 0.0, %v675
      %v677 = vpop.f32.mrb[0].mxu0
      %678 = vmatprep.mubr.f32.mxu0 %v385
      %679 = vmatmul.mubr.f32.gmra.mrb[0].mxu0 %v236
      %v680 = vpop.f32.mrb[0].mxu0
      %v681 = vadd.f32 0.0, %v680
      %v682 = vpop.f32.mrb[0].mxu0
      %683 = vmatprep.mubr.f32.mxu0 %v388
      %684 = vmatmul.mubr.f32.gmra.mrb[0].mxu0 %v238
      %v685 = vpop.f32.mrb[0].mxu0
      %v686 = vadd.f32 0.0, %v685
      %v687 = vpop.f32.mrb[0].mxu0
      %688 = vmatprep.mubr.f32.mxu0 %v391
      %689 = vmatmul.mubr.f32.gmra.mrb[0].mxu0 %v240
      %v690 = vpop.f32.mrb[0].mxu0
      %v691 = vadd.f32 0.0, %v690
      %v692 = vpop.f32.mrb[0].mxu0
      %693 = vmatprep.mubr.f32.mxu0 %v394
      %694 = vmatmul.mubr.f32.gmra.mrb[0].mxu0 %v242
      %v695 = vpop.f32.mrb[0].mxu0
      %v696 = vadd.f32 0.0, %v695
      %v697 = vpop.f32.mrb[0].mxu0
      %698 = vmatprep.mubr.f32.mxu0 %v397
      %699 = vmatmul.mubr.f32.gmra.mrb[0].mxu0 %v244
      %v700 = vpop.f32.mrb[0].mxu0
      %v701 = vadd.f32 0.0, %v700
      %v702 = vpop.f32.mrb[0].mxu0
      %703 = vmatprep.mubr.f32.mxu0 %v400
      %704 = vmatmul.mubr.f32.gmra.mrb[0].mxu0 %v246
      %v705 = vpop.f32.mrb[0].mxu0
      %v706 = vadd.f32 0.0, %v705
      %v707 = vpop.f32.mrb[0].mxu0
      %708 = vmatprep.mubr.f32.mxu0 %v403
      %709 = vmatmul.mubr.f32.gmra.mrb[0].mxu0 %v248
      %v710 = vpop.f32.mrb[0].mxu0
      %v711 = vadd.f32 0.0, %v710
      %v712 = vpop.f32.mrb[0].mxu0
      %713 = vmatprep.mubr.f32.mxu0 %v406
      %714 = vmatmul.mubr.f32.gmra.mrb[0].mxu0 %v250
      %v715 = vpop.f32.mrb[0].mxu0
      %v716 = vadd.f32 0.0, %v715
      %v717 = vpop.f32.mrb[0].mxu0
      %718 = vmatprep.mubr.f32.mxu0 %v409
      %719 = vmatmul.mubr.f32.gmra.mrb[0].mxu0 %v252
      %v720 = vpop.f32.mrb[0].mxu0
      %v721 = vadd.f32 0.0, %v720
      %v722 = vpop.f32.mrb[0].mxu0
      %723 = vmatprep.mubr.f32.mxu0 %v412
      %724 = vmatmul.mubr.f32.gmra.mrb[0].mxu0 %v254
      %v725 = vpop.f32.mrb[0].mxu0
      %v726 = vadd.f32 0.0, %v725
      %v727 = vpop.f32.mrb[0].mxu0
      %728 = vmatprep.mubr.f32.mxu0 %v415
      %729 = vmatmul.mubr.f32.gmra.mrb[0].mxu0 %v256
      %v730 = vpop.f32.mrb[0].mxu0
      %v731 = vadd.f32 0.0, %v730
      %v732 = vpop.f32.mrb[0].mxu0
      %733 = vmatprep.mubr.f32.mxu0 %v418
      %734 = vmatmul.mubr.f32.gmra.mrb[0].mxu0 %v258
      %v735 = vpop.f32.mrb[0].mxu0
      %v736 = vadd.f32 0.0, %v735
      %v737 = vpop.f32.mrb[0].mxu0
      %738 = vmatprep.mubr.f32.mxu0 %v421
      %739 = vmatmul.mubr.f32.gmra.mrb[0].mxu0 %v260
      %v740 = vpop.f32.mrb[0].mxu0
      %v741 = vadd.f32 0.0, %v740
      %v742 = vpop.f32.mrb[0].mxu0
      %743 = vmatprep.mubr.f32.mxu0 %v424
      %744 = vmatmul.mubr.f32.gmra.mrb[0].mxu0 %v262
      %v745 = vpop.f32.mrb[0].mxu0
      %v746 = vadd.f32 0.0, %v745
      %v747 = vpop.f32.mrb[0].mxu0
      %748 = vmatprep.mubr.f32.mxu0 %v427
      %749 = vmatmul.mubr.f32.gmra.mrb[0].mxu0 %v264
      %v750 = vpop.f32.mrb[0].mxu0
      %v751 = vadd.f32 0.0, %v750
      %v752 = vpop.f32.mrb[0].mxu0
      %753 = vmatprep.mubr.f32.mxu0 %v430
      %754 = vmatmul.mubr.f32.gmra.mrb[0].mxu0 %v266
      %v755 = vpop.f32.mrb[0].mxu0
      %v756 = vadd.f32 0.0, %v755
      %v757 = vpop.f32.mrb[0].mxu0
      %758 = vmatprep.mubr.f32.mxu0 %v433
      %759 = vmatmul.mubr.f32.gmra.mrb[0].mxu0 %v268
      %v760 = vpop.f32.mrb[0].mxu0
      %v761 = vadd.f32 0.0, %v760
      %v762 = vpop.f32.mrb[0].mxu0
      %763 = vmatprep.mubr.f32.mxu0 %v436
      %764 = vmatmul.mubr.f32.gmra.mrb[0].mxu0 %v270
      %v765 = vpop.f32.mrb[0].mxu0
      %v766 = vadd.f32 0.0, %v765
      %v767 = vpop.f32.mrb[0].mxu0
      %768 = vmatprep.mubr.f32.mxu0 %v439
      %769 = vmatmul.mubr.f32.gmra.mrb[0].mxu0 %v272
      %v770 = vpop.f32.mrb[0].mxu0
      %v771 = vadd.f32 0.0, %v770
      %v772 = vpop.f32.mrb[0].mxu0
      %773 = vmatprep.mubr.f32.mxu0 %v442
      %774 = vmatmul.mubr.f32.gmra.mrb[0].mxu0 %v274
      %v775 = vpop.f32.mrb[0].mxu0
      %v776 = vadd.f32 0.0, %v775
      %v777 = vpop.f32.mrb[0].mxu0
      %778 = vmatprep.mubr.f32.mxu0 %v445
      %779 = vmatmul.mubr.f32.gmra.mrb[0].mxu0 %v276
      %v780 = vpop.f32.mrb[0].mxu0
      %v781 = vadd.f32 0.0, %v780
      %v782 = vpop.f32.mrb[0].mxu0
      %783 = vmatprep.mubr.f32.mxu0 %v448
      %784 = vmatmul.mubr.f32.gmra.mrb[0].mxu0 %v278
      %v785 = vpop.f32.mrb[0].mxu0
      %v786 = vadd.f32 0.0, %v785
      %v787 = vpop.f32.mrb[0].mxu0
      %788 = vmatprep.mubr.f32.mxu0 %v451
      %789 = vmatmul.mubr.f32.gmra.mrb[0].mxu0 %v280
      %v790 = vpop.f32.mrb[0].mxu0
      %v791 = vadd.f32 0.0, %v790
      %v792 = vpop.f32.mrb[0].mxu0
      %793 = vmatprep.mubr.f32.mxu0 %v454
      %794 = vmatmul.mubr.f32.gmra.mrb[0].mxu0 %v282
      %v795 = vpop.f32.mrb[0].mxu0
      %v796 = vadd.f32 0.0, %v795
      %v797 = vpop.f32.mrb[0].mxu0
      %798 = vmatprep.mubr.f32.mxu0 %v457
      %799 = vmatmul.mubr.f32.gmra.mrb[0].mxu0 %v284
      %v800 = vpop.f32.mrb[0].mxu0
      %v801 = vadd.f32 0.0, %v800
      %v802 = vpop.f32.mrb[0].mxu0
      %803 = vmatprep.mubr.f32.mxu0 %v460
      %804 = vmatmul.mubr.f32.gmra.mrb[0].mxu0 %v286
      %v805 = vpop.f32.mrb[0].mxu0
      %v806 = vadd.f32 0.0, %v805
      %v807 = vpop.f32.mrb[0].mxu0
      %808 = vmatprep.mubr.f32.mxu0 %v463
      %809 = vmatmul.mubr.f32.gmra.mrb[0].mxu0 %v288
      %v810 = vpop.f32.mrb[0].mxu0
      %v811 = vadd.f32 0.0, %v810
      %v812 = vpop.f32.mrb[0].mxu0
      %813 = vmatprep.mubr.f32.mxu0 %v466
      %814 = vmatmul.mubr.f32.gmra.mrb[0].mxu0 %v290
      %v815 = vpop.f32.mrb[0].mxu0
      %v816 = vadd.f32 0.0, %v815
      %v817 = vpop.f32.mrb[0].mxu0
      %818 = vmatprep.mubr.f32.mxu0 %v469
      %819 = vmatmul.mubr.f32.gmra.mrb[0].mxu0 %v292
      %v820 = vpop.f32.mrb[0].mxu0
      %v821 = vadd.f32 0.0, %v820
      %v822 = vpop.f32.mrb[0].mxu0
      %823 = vmatprep.mubr.f32.mxu0 %v472
      %824 = vmatmul.mubr.f32.gmra.mrb[0].mxu0 %v294
      %v825 = vpop.f32.mrb[0].mxu0
      %v826 = vadd.f32 0.0, %v825
      %v827 = vpop.f32.mrb[0].mxu0
      %828 = vmatprep.mubr.f32.mxu0 %v475
      %829 = vmatmul.mubr.f32.gmra.mrb[0].mxu0 %v296
      %v830 = vpop.f32.mrb[0].mxu0
      %v831 = vadd.f32 0.0, %v830
      %v832 = vpop.f32.mrb[0].mxu0
      %833 = vmatprep.mubr.f32.mxu0 %v478
      %834 = vmatmul.mubr.f32.gmra.mrb[0].mxu0 %v298
      %v835 = vpop.f32.mrb[0].mxu0
      %v836 = vadd.f32 0.0, %v835
      %v837 = vpop.f32.mrb[0].mxu0
      %838 = vmatprep.mubr.f32.mxu0 %v481
      %839 = vmatmul.mubr.f32.gmra.mrb[0].mxu0 %v300
      %v840 = vpop.f32.mrb[0].mxu0
      %v841 = vadd.f32 0.0, %v840
      %v842 = vpop.f32.mrb[0].mxu0
      %843 = vmatprep.mubr.f32.mxu0 %v484
      %844 = vmatmul.mubr.f32.gmra.mrb[0].mxu0 %v302
      %v845 = vpop.f32.mrb[0].mxu0
      %v846 = vadd.f32 0.0, %v845
      %v847 = vpop.f32.mrb[0].mxu0
      %848 = vmatprep.mubr.f32.mxu0 %v487
      %849 = vmatmul.mubr.f32.gmra.mrb[0].mxu0 %v304
      %v850 = vpop.f32.mrb[0].mxu0
      %v851 = vadd.f32 0.0, %v850
      %v852 = vpop.f32.mrb[0].mxu0
      %853 = vmatprep.mubr.f32.mxu0 %v490
      %854 = vmatmul.mubr.f32.gmra.mrb[0].mxu0 %v306
      %v855 = vpop.f32.mrb[0].mxu0
      %v856 = vadd.f32 0.0, %v855
      %v857 = vpop.f32.mrb[0].mxu0
      %858 = vmatprep.mubr.f32.mxu0 %v493
      %859 = vmatmul.mubr.f32.gmra.mrb[0].mxu0 %v308
      %v860 = vpop.f32.mrb[0].mxu0
      %v861 = vadd.f32 0.0, %v860
      %v862 = vpop.f32.mrb[0].mxu0
      %863 = vmatprep.mubr.f32.mxu0 %v496
      %864 = vmatmul.mubr.f32.gmra.mrb[0].mxu0 %v310
      %v865 = vpop.f32.mrb[0].mxu0
      %v866 = vadd.f32 0.0, %v865
      %v867 = vpop.f32.mrb[0].mxu0
      %868 = vmatprep.mubr.f32.mxu0 %v499
      %869 = vmatmul.mubr.f32.gmra.mrb[0].mxu0 %v312
      %v870 = vpop.f32.mrb[0].mxu0
      %v871 = vadd.f32 0.0, %v870
      %v872 = vpop.f32.mrb[0].mxu0
      %873 = vmatprep.mubr.f32.mxu0 %v502
      %874 = vmatmul.mubr.f32.gmra.mrb[0].mxu0 %v314
      %v875 = vpop.f32.mrb[0].mxu0
      %v876 = vadd.f32 0.0, %v875
      %v877 = vpop.f32.mrb[0].mxu0
      %878 = vmatprep.mubr.f32.mxu0 %v505
      %879 = vmatmul.mubr.f32.gmra.mrb[0].mxu0 %v316
      %v880 = vpop.f32.mrb[0].mxu0
      %v881 = vadd.f32 0.0, %v880
      %v882 = vpop.f32.mrb[0].mxu0
      %883 = vmatprep.mubr.f32.mxu0 %v508
      %884 = vmatmul.mubr.f32.gmra.mrb[0].mxu0 %v318
      %v885 = vpop.f32.mrb[0].mxu0
      %v886 = vadd.f32 0.0, %v885
      %v887 = vpop.f32.mrb[0].mxu0
      %888 = vmatprep.mubr.f32.mxu0 %v511
      %889 = vmatmul.mubr.f32.gmra.mrb[0].mxu0 %v320
      %v890 = vpop.f32.mrb[0].mxu0
      %v891 = vadd.f32 0.0, %v890
      %v892 = vpop.f32.mrb[0].mxu0
      %893 = vmatprep.mubr.f32.mxu0 %v514
      %894 = vmatmul.mubr.f32.gmra.mrb[0].mxu0 %v322
      %v895 = vpop.f32.mrb[0].mxu0
      %v896 = vadd.f32 0.0, %v895
      %v897 = vpop.f32.mrb[0].mxu0
      %898 = vmatprep.mubr.f32.mxu0 %v517
      %899 = vmatmul.mubr.f32.gmra.mrb[0].mxu0 %v324
      %v900 = vpop.f32.mrb[0].mxu0
      %v901 = vadd.f32 0.0, %v900
      %v902 = vpop.f32.mrb[0].mxu0
      %903 = vdwg.mxu0
      %s904 = scalar_lea.vmem %s165, 1024
      %v905 = vld [vmem:[%s904] sm:$0xff]
      %v906 = vld [vmem:[%s904 + $0x8] sm:$0xff]
      %v907 = vld [vmem:[%s904 + $0x10] sm:$0xff]
      %v908 = vld [vmem:[%s904 + $0x18] sm:$0xff]
      %v909 = vld [vmem:[%s904 + $0x20] sm:$0xff]
      %v910 = vld [vmem:[%s904 + $0x28] sm:$0xff]
      %v911 = vld [vmem:[%s904 + $0x30] sm:$0xff]
      %v912 = vld [vmem:[%s904 + $0x38] sm:$0xff]
      %v913 = vld [vmem:[%s904 + $0x40] sm:$0xff]
      %v914 = vld [vmem:[%s904 + $0x48] sm:$0xff]
      %v915 = vld [vmem:[%s904 + $0x50] sm:$0xff]
      %v916 = vld [vmem:[%s904 + $0x58] sm:$0xff]
      %v917 = vld [vmem:[%s904 + $0x60] sm:$0xff]
      %v918 = vld [vmem:[%s904 + $0x68] sm:$0xff]
      %v919 = vld [vmem:[%s904 + $0x70] sm:$0xff]
      %v920 = vld [vmem:[%s904 + $0x78] sm:$0xff]
      %v921 = vld [vmem:[%s904 + $0x80] sm:$0xff]
      %v922 = vld [vmem:[%s904 + $0x88] sm:$0xff]
      %v923 = vld [vmem:[%s904 + $0x90] sm:$0xff]
      %v924 = vld [vmem:[%s904 + $0x98] sm:$0xff]
      %v925 = vld [vmem:[%s904 + $0xa0] sm:$0xff]
      %v926 = vld [vmem:[%s904 + $0xa8] sm:$0xff]
      %v927 = vld [vmem:[%s904 + $0xb0] sm:$0xff]
      %v928 = vld [vmem:[%s904 + $0xb8] sm:$0xff]
      %v929 = vld [vmem:[%s904 + $0xc0] sm:$0xff]
      %v930 = vld [vmem:[%s904 + $0xc8] sm:$0xff]
      %v931 = vld [vmem:[%s904 + $0xd0] sm:$0xff]
      %v932 = vld [vmem:[%s904 + $0xd8] sm:$0xff]
      %v933 = vld [vmem:[%s904 + $0xe0] sm:$0xff]
      %v934 = vld [vmem:[%s904 + $0xe8] sm:$0xff]
      %v935 = vld [vmem:[%s904 + $0xf0] sm:$0xff]
      %v936 = vld [vmem:[%s904 + $0xf8] sm:$0xff]
      %v937 = vld [vmem:[%s904 + $0x100] sm:$0xff]
      %v938 = vld [vmem:[%s904 + $0x108] sm:$0xff]
      %v939 = vld [vmem:[%s904 + $0x110] sm:$0xff]
      %v940 = vld [vmem:[%s904 + $0x118] sm:$0xff]
      %v941 = vld [vmem:[%s904 + $0x120] sm:$0xff]
      %v942 = vld [vmem:[%s904 + $0x128] sm:$0xff]
      %v943 = vld [vmem:[%s904 + $0x130] sm:$0xff]
      %v944 = vld [vmem:[%s904 + $0x138] sm:$0xff]
      %v945 = vld [vmem:[%s904 + $0x140] sm:$0xff]
      %v946 = vld [vmem:[%s904 + $0x148] sm:$0xff]
      %v947 = vld [vmem:[%s904 + $0x150] sm:$0xff]
      %v948 = vld [vmem:[%s904 + $0x158] sm:$0xff]
      %v949 = vld [vmem:[%s904 + $0x160] sm:$0xff]
      %v950 = vld [vmem:[%s904 + $0x168] sm:$0xff]
      %v951 = vld [vmem:[%s904 + $0x170] sm:$0xff]
      %v952 = vld [vmem:[%s904 + $0x178] sm:$0xff]
      %v953 = vld [vmem:[%s904 + $0x180] sm:$0xff]
      %v954 = vld [vmem:[%s904 + $0x188] sm:$0xff]
      %v955 = vld [vmem:[%s904 + $0x190] sm:$0xff]
      %v956 = vld [vmem:[%s904 + $0x198] sm:$0xff]
      %v957 = vld [vmem:[%s904 + $0x1a0] sm:$0xff]
      %v958 = vld [vmem:[%s904 + $0x1a8] sm:$0xff]
      %v959 = vld [vmem:[%s904 + $0x1b0] sm:$0xff]
      %v960 = vld [vmem:[%s904 + $0x1b8] sm:$0xff]
      %v961 = vld [vmem:[%s904 + $0x1c0] sm:$0xff]
      %v962 = vld [vmem:[%s904 + $0x1c8] sm:$0xff]
      %v963 = vld [vmem:[%s904 + $0x1d0] sm:$0xff]
      %v964 = vld [vmem:[%s904 + $0x1d8] sm:$0xff]
      %v965 = vld [vmem:[%s904 + $0x1e0] sm:$0xff]
      %v966 = vld [vmem:[%s904 + $0x1e8] sm:$0xff]
      %v967 = vld [vmem:[%s904 + $0x1f0] sm:$0xff]
      %v968 = vld [vmem:[%s904 + $0x1f8] sm:$0xff]
      %v969 = vld [vmem:[%s904 + $0x200] sm:$0xff]
      %v970 = vld [vmem:[%s904 + $0x208] sm:$0xff]
      %v971 = vld [vmem:[%s904 + $0x210] sm:$0xff]
      %v972 = vld [vmem:[%s904 + $0x218] sm:$0xff]
      %v973 = vld [vmem:[%s904 + $0x220] sm:$0xff]
      %v974 = vld [vmem:[%s904 + $0x228] sm:$0xff]
      %v975 = vld [vmem:[%s904 + $0x230] sm:$0xff]
      %v976 = vld [vmem:[%s904 + $0x238] sm:$0xff]
      %v977 = vld [vmem:[%s904 + $0x240] sm:$0xff]
      %v978 = vld [vmem:[%s904 + $0x248] sm:$0xff]
      %v979 = vld [vmem:[%s904 + $0x250] sm:$0xff]
      %v980 = vld [vmem:[%s904 + $0x258] sm:$0xff]
      %v981 = vld [vmem:[%s904 + $0x260] sm:$0xff]
      %v982 = vld [vmem:[%s904 + $0x268] sm:$0xff]
      %v983 = vld [vmem:[%s904 + $0x270] sm:$0xff]
      %v984 = vld [vmem:[%s904 + $0x278] sm:$0xff]
      %v985 = vld [vmem:[%s904 + $0x280] sm:$0xff]
      %v986 = vld [vmem:[%s904 + $0x288] sm:$0xff]
      %v987 = vld [vmem:[%s904 + $0x290] sm:$0xff]
      %v988 = vld [vmem:[%s904 + $0x298] sm:$0xff]
      %v989 = vld [vmem:[%s904 + $0x2a0] sm:$0xff]
      %v990 = vld [vmem:[%s904 + $0x2a8] sm:$0xff]
      %v991 = vld [vmem:[%s904 + $0x2b0] sm:$0xff]
      %v992 = vld [vmem:[%s904 + $0x2b8] sm:$0xff]
      %v993 = vld [vmem:[%s904 + $0x2c0] sm:$0xff]
      %v994 = vld [vmem:[%s904 + $0x2c8] sm:$0xff]
      %v995 = vld [vmem:[%s904 + $0x2d0] sm:$0xff]
      %v996 = vld [vmem:[%s904 + $0x2d8] sm:$0xff]
      %v997 = vld [vmem:[%s904 + $0x2e0] sm:$0xff]
      %v998 = vld [vmem:[%s904 + $0x2e8] sm:$0xff]
      %v999 = vld [vmem:[%s904 + $0x2f0] sm:$0xff]
      %v1000 = vld [vmem:[%s904 + $0x2f8] sm:$0xff]
      %v1001 = vld [vmem:[%s904 + $0x300] sm:$0xff]
      %v1002 = vld [vmem:[%s904 + $0x308] sm:$0xff]
      %v1003 = vld [vmem:[%s904 + $0x310] sm:$0xff]
      %v1004 = vld [vmem:[%s904 + $0x318] sm:$0xff]
      %v1005 = vld [vmem:[%s904 + $0x320] sm:$0xff]
      %v1006 = vld [vmem:[%s904 + $0x328] sm:$0xff]
      %v1007 = vld [vmem:[%s904 + $0x330] sm:$0xff]
      %v1008 = vld [vmem:[%s904 + $0x338] sm:$0xff]
      %v1009 = vld [vmem:[%s904 + $0x340] sm:$0xff]
      %v1010 = vld [vmem:[%s904 + $0x348] sm:$0xff]
      %v1011 = vld [vmem:[%s904 + $0x350] sm:$0xff]
      %v1012 = vld [vmem:[%s904 + $0x358] sm:$0xff]
      %v1013 = vld [vmem:[%s904 + $0x360] sm:$0xff]
      %v1014 = vld [vmem:[%s904 + $0x368] sm:$0xff]
      %v1015 = vld [vmem:[%s904 + $0x370] sm:$0xff]
      %v1016 = vld [vmem:[%s904 + $0x378] sm:$0xff]
      %v1017 = vld [vmem:[%s904 + $0x380] sm:$0xff]
      %v1018 = vld [vmem:[%s904 + $0x388] sm:$0xff]
      %v1019 = vld [vmem:[%s904 + $0x390] sm:$0xff]
      %v1020 = vld [vmem:[%s904 + $0x398] sm:$0xff]
      %v1021 = vld [vmem:[%s904 + $0x3a0] sm:$0xff]
      %v1022 = vld [vmem:[%s904 + $0x3a8] sm:$0xff]
      %v1023 = vld [vmem:[%s904 + $0x3b0] sm:$0xff]
      %v1024 = vld [vmem:[%s904 + $0x3b8] sm:$0xff]
      %v1025 = vld [vmem:[%s904 + $0x3c0] sm:$0xff]
      %v1026 = vld [vmem:[%s904 + $0x3c8] sm:$0xff]
      %v1027 = vld [vmem:[%s904 + $0x3d0] sm:$0xff]
      %v1028 = vld [vmem:[%s904 + $0x3d8] sm:$0xff]
      %v1029 = vld [vmem:[%s904 + $0x3e0] sm:$0xff]
      %v1030 = vld [vmem:[%s904 + $0x3e8] sm:$0xff]
      %v1031 = vld [vmem:[%s904 + $0x3f0] sm:$0xff]
      %v1032 = vld [vmem:[%s904 + $0x3f8] sm:$0xff]
      %v1034 = vsel %vm326, %v906, 0
      %v1037 = vsel %vm326, %v908, 0
      %v1040 = vsel %vm326, %v910, 0
      %v1043 = vsel %vm326, %v912, 0
      %v1046 = vsel %vm326, %v914, 0
      %v1049 = vsel %vm326, %v916, 0
      %v1052 = vsel %vm326, %v918, 0
      %v1055 = vsel %vm326, %v920, 0
      %v1058 = vsel %vm326, %v922, 0
      %v1061 = vsel %vm326, %v924, 0
      %v1064 = vsel %vm326, %v926, 0
      %v1067 = vsel %vm326, %v928, 0
      %v1070 = vsel %vm326, %v930, 0
      %v1073 = vsel %vm326, %v932, 0
      %v1076 = vsel %vm326, %v934, 0
      %v1079 = vsel %vm326, %v936, 0
      %v1082 = vsel %vm326, %v938, 0
      %v1085 = vsel %vm326, %v940, 0
      %v1088 = vsel %vm326, %v942, 0
      %v1091 = vsel %vm326, %v944, 0
      %v1094 = vsel %vm326, %v946, 0
      %v1097 = vsel %vm326, %v948, 0
      %v1100 = vsel %vm326, %v950, 0
      %v1103 = vsel %vm326, %v952, 0
      %v1106 = vsel %vm326, %v954, 0
      %v1109 = vsel %vm326, %v956, 0
      %v1112 = vsel %vm326, %v958, 0
      %v1115 = vsel %vm326, %v960, 0
      %v1118 = vsel %vm326, %v962, 0
      %v1121 = vsel %vm326, %v964, 0
      %v1124 = vsel %vm326, %v966, 0
      %v1127 = vsel %vm326, %v968, 0
      %v1130 = vsel %vm326, %v970, 0
      %v1133 = vsel %vm326, %v972, 0
      %v1136 = vsel %vm326, %v974, 0
      %v1139 = vsel %vm326, %v976, 0
      %v1142 = vsel %vm326, %v978, 0
      %v1145 = vsel %vm326, %v980, 0
      %v1148 = vsel %vm326, %v982, 0
      %v1151 = vsel %vm326, %v984, 0
      %v1154 = vsel %vm326, %v986, 0
      %v1157 = vsel %vm326, %v988, 0
      %v1160 = vsel %vm326, %v990, 0
      %v1163 = vsel %vm326, %v992, 0
      %v1166 = vsel %vm326, %v994, 0
      %v1169 = vsel %vm326, %v996, 0
      %v1172 = vsel %vm326, %v998, 0
      %v1175 = vsel %vm326, %v1000, 0
      %v1178 = vsel %vm326, %v1002, 0
      %v1181 = vsel %vm326, %v1004, 0
      %v1184 = vsel %vm326, %v1006, 0
      %v1187 = vsel %vm326, %v1008, 0
      %v1190 = vsel %vm326, %v1010, 0
      %v1193 = vsel %vm326, %v1012, 0
      %v1196 = vsel %vm326, %v1014, 0
      %v1199 = vsel %vm326, %v1016, 0
      %v1202 = vsel %vm326, %v1018, 0
      %v1205 = vsel %vm326, %v1020, 0
      %v1208 = vsel %vm326, %v1022, 0
      %v1211 = vsel %vm326, %v1024, 0
      %v1214 = vsel %vm326, %v1026, 0
      %v1217 = vsel %vm326, %v1028, 0
      %v1220 = vsel %vm326, %v1030, 0
      %v1223 = vsel %vm326, %v1032, 0
      %1225 = vmatprep.subr.mxu0 0.0
      %1226 = vmatpush1.msra.mxu0 %v171
      %1227 = vmatprep.subr.mxu0 0.0
      %1228 = vmatpush1.msra.mxu0 %v172
      %1229 = vmatprep.subr.mxu0 0.0
      %1230 = vmatpush1.msra.mxu0 %v173
      %1231 = vmatprep.subr.mxu0 0.0
      %1232 = vmatpush1.msra.mxu0 %v174
      %1233 = vmatprep.subr.mxu0 0.0
      %1234 = vmatpush1.msra.mxu0 %v175
      %1235 = vmatprep.subr.mxu0 0.0
      %1236 = vmatpush1.msra.mxu0 %v176
      %1237 = vmatprep.subr.mxu0 0.0
      %1238 = vmatpush1.msra.mxu0 %v177
      %1239 = vmatprep.subr.mxu0 0.0
      %1240 = vmatpush1.msra.mxu0 %v178
      %1241 = vmatprep.subr.mxu0 0.0
      %1242 = vmatpush1.msra.mxu0 %v179
      %1243 = vmatprep.subr.mxu0 0.0
      %1244 = vmatpush1.msra.mxu0 %v180
      %1245 = vmatprep.subr.mxu0 0.0
      %1246 = vmatpush1.msra.mxu0 %v181
      %1247 = vmatprep.subr.mxu0 0.0
      %1248 = vmatpush1.msra.mxu0 %v182
      %1249 = vmatprep.subr.mxu0 0.0
      %1250 = vmatpush1.msra.mxu0 %v183
      %1251 = vmatprep.subr.mxu0 0.0
      %1252 = vmatpush1.msra.mxu0 %v184
      %1253 = vmatprep.subr.mxu0 0.0
      %1254 = vmatpush1.msra.mxu0 %v185
      %1255 = vmatprep.subr.mxu0 0.0
      %1256 = vmatpush1.msra.mxu0 %v186
      %1257 = vmatprep.subr.mxu0 0.0
      %1258 = vmatpush1.msra.mxu0 %v187
      %1259 = vmatprep.subr.mxu0 0.0
      %1260 = vmatpush1.msra.mxu0 %v188
      %1261 = vmatprep.subr.mxu0 0.0
      %1262 = vmatpush1.msra.mxu0 %v189
      %1263 = vmatprep.subr.mxu0 0.0
      %1264 = vmatpush1.msra.mxu0 %v190
      %1265 = vmatprep.subr.mxu0 0.0
      %1266 = vmatpush1.msra.mxu0 %v191
      %1267 = vmatprep.subr.mxu0 0.0
      %1268 = vmatpush1.msra.mxu0 %v192
      %1269 = vmatprep.subr.mxu0 0.0
      %1270 = vmatpush1.msra.mxu0 %v193
      %1271 = vmatprep.subr.mxu0 0.0
      %1272 = vmatpush1.msra.mxu0 %v194
      %1273 = vmatprep.subr.mxu0 0.0
      %1274 = vmatpush1.msra.mxu0 %v195
      %1275 = vmatprep.subr.mxu0 0.0
      %1276 = vmatpush1.msra.mxu0 %v196
      %1277 = vmatprep.subr.mxu0 0.0
      %1278 = vmatpush1.msra.mxu0 %v197
      %1279 = vmatprep.subr.mxu0 0.0
      %1280 = vmatpush1.msra.mxu0 0.0
      %1281 = vmatprep.subr.mxu0 0.0
      %1282 = vmatpush1.msra.mxu0 0.0
      %1283 = vmatprep.subr.mxu0 0.0
      %1284 = vmatpush1.msra.mxu0 0.0
      %1285 = vmatprep.subr.mxu0 0.0
      %1286 = vmatpush1.msra.mxu0 0.0
      %1287 = vmatprep.subr.mxu0 0.0
      %1288 = vmatpush1.msra.mxu0 0.0
      %1289 = vmatprep.mubr.f32.mxu0 %v1034
      %1290 = vmatmul.mubr.f32.gmra.mrb[0].mxu0 %v905
      %v1291 = vpop.f32.mrb[0].mxu0
      %v1292 = vadd.f32 0.0, %v1291
      %v1293 = vpop.f32.mrb[0].mxu0
      %1294 = vmatprep.mubr.f32.mxu0 %v1037
      %1295 = vmatmul.mubr.f32.gmra.mrb[0].mxu0 %v907
      %v1296 = vpop.f32.mrb[0].mxu0
      %v1297 = vadd.f32 0.0, %v1296
      %v1298 = vpop.f32.mrb[0].mxu0
      %1299 = vmatprep.mubr.f32.mxu0 %v1040
      %1300 = vmatmul.mubr.f32.gmra.mrb[0].mxu0 %v909
      %v1301 = vpop.f32.mrb[0].mxu0
      %v1302 = vadd.f32 0.0, %v1301
      %v1303 = vpop.f32.mrb[0].mxu0
      %1304 = vmatprep.mubr.f32.mxu0 %v1043
      %1305 = vmatmul.mubr.f32.gmra.mrb[0].mxu0 %v911
      %v1306 = vpop.f32.mrb[0].mxu0
      %v1307 = vadd.f32 0.0, %v1306
      %v1308 = vpop.f32.mrb[0].mxu0
      %1309 = vmatprep.mubr.f32.mxu0 %v1046
      %1310 = vmatmul.mubr.f32.gmra.mrb[0].mxu0 %v913
      %v1311 = vpop.f32.mrb[0].mxu0
      %v1312 = vadd.f32 0.0, %v1311
      %v1313 = vpop.f32.mrb[0].mxu0
      %1314 = vmatprep.mubr.f32.mxu0 %v1049
      %1315 = vmatmul.mubr.f32.gmra.mrb[0].mxu0 %v915
      %v1316 = vpop.f32.mrb[0].mxu0
      %v1317 = vadd.f32 0.0, %v1316
      %v1318 = vpop.f32.mrb[0].mxu0
      %1319 = vmatprep.mubr.f32.mxu0 %v1052
      %1320 = vmatmul.mubr.f32.gmra.mrb[0].mxu0 %v917
      %v1321 = vpop.f32.mrb[0].mxu0
      %v1322 = vadd.f32 0.0, %v1321
      %v1323 = vpop.f32.mrb[0].mxu0
      %1324 = vmatprep.mubr.f32.mxu0 %v1055
      %1325 = vmatmul.mubr.f32.gmra.mrb[0].mxu0 %v919
      %v1326 = vpop.f32.mrb[0].mxu0
      %v1327 = vadd.f32 0.0, %v1326
      %v1328 = vpop.f32.mrb[0].mxu0
      %1329 = vmatprep.mubr.f32.mxu0 %v1058
      %1330 = vmatmul.mubr.f32.gmra.mrb[0].mxu0 %v921
      %v1331 = vpop.f32.mrb[0].mxu0
      %v1332 = vadd.f32 0.0, %v1331
      %v1333 = vpop.f32.mrb[0].mxu0
      %1334 = vmatprep.mubr.f32.mxu0 %v1061
      %1335 = vmatmul.mubr.f32.gmra.mrb[0].mxu0 %v923
      %v1336 = vpop.f32.mrb[0].mxu0
      %v1337 = vadd.f32 0.0, %v1336
      %v1338 = vpop.f32.mrb[0].mxu0
      %1339 = vmatprep.mubr.f32.mxu0 %v1064
      %1340 = vmatmul.mubr.f32.gmra.mrb[0].mxu0 %v925
      %v1341 = vpop.f32.mrb[0].mxu0
      %v1342 = vadd.f32 0.0, %v1341
      %v1343 = vpop.f32.mrb[0].mxu0
      %1344 = vmatprep.mubr.f32.mxu0 %v1067
      %1345 = vmatmul.mubr.f32.gmra.mrb[0].mxu0 %v927
      %v1346 = vpop.f32.mrb[0].mxu0
      %v1347 = vadd.f32 0.0, %v1346
      %v1348 = vpop.f32.mrb[0].mxu0
      %1349 = vmatprep.mubr.f32.mxu0 %v1070
      %1350 = vmatmul.mubr.f32.gmra.mrb[0].mxu0 %v929
      %v1351 = vpop.f32.mrb[0].mxu0
      %v1352 = vadd.f32 0.0, %v1351
      %v1353 = vpop.f32.mrb[0].mxu0
      %1354 = vmatprep.mubr.f32.mxu0 %v1073
      %1355 = vmatmul.mubr.f32.gmra.mrb[0].mxu0 %v931
      %v1356 = vpop.f32.mrb[0].mxu0
      %v1357 = vadd.f32 0.0, %v1356
      %v1358 = vpop.f32.mrb[0].mxu0
      %1359 = vmatprep.mubr.f32.mxu0 %v1076
      %1360 = vmatmul.mubr.f32.gmra.mrb[0].mxu0 %v933
      %v1361 = vpop.f32.mrb[0].mxu0
      %v1362 = vadd.f32 0.0, %v1361
      %v1363 = vpop.f32.mrb[0].mxu0
      %1364 = vmatprep.mubr.f32.mxu0 %v1079
      %1365 = vmatmul.mubr.f32.gmra.mrb[0].mxu0 %v935
      %v1366 = vpop.f32.mrb[0].mxu0
      %v1367 = vadd.f32 0.0, %v1366
      %v1368 = vpop.f32.mrb[0].mxu0
      %1369 = vmatprep.mubr.f32.mxu0 %v1082
      %1370 = vmatmul.mubr.f32.gmra.mrb[0].mxu0 %v937
      %v1371 = vpop.f32.mrb[0].mxu0
      %v1372 = vadd.f32 0.0, %v1371
      %v1373 = vpop.f32.mrb[0].mxu0
      %1374 = vmatprep.mubr.f32.mxu0 %v1085
      %1375 = vmatmul.mubr.f32.gmra.mrb[0].mxu0 %v939
      %v1376 = vpop.f32.mrb[0].mxu0
      %v1377 = vadd.f32 0.0, %v1376
      %v1378 = vpop.f32.mrb[0].mxu0
      %1379 = vmatprep.mubr.f32.mxu0 %v1088
      %1380 = vmatmul.mubr.f32.gmra.mrb[0].mxu0 %v941
      %v1381 = vpop.f32.mrb[0].mxu0
      %v1382 = vadd.f32 0.0, %v1381
      %v1383 = vpop.f32.mrb[0].mxu0
      %1384 = vmatprep.mubr.f32.mxu0 %v1091
      %1385 = vmatmul.mubr.f32.gmra.mrb[0].mxu0 %v943
      %v1386 = vpop.f32.mrb[0].mxu0
      %v1387 = vadd.f32 0.0, %v1386
      %v1388 = vpop.f32.mrb[0].mxu0
      %1389 = vmatprep.mubr.f32.mxu0 %v1094
      %1390 = vmatmul.mubr.f32.gmra.mrb[0].mxu0 %v945
      %v1391 = vpop.f32.mrb[0].mxu0
      %v1392 = vadd.f32 0.0, %v1391
      %v1393 = vpop.f32.mrb[0].mxu0
      %1394 = vmatprep.mubr.f32.mxu0 %v1097
      %1395 = vmatmul.mubr.f32.gmra.mrb[0].mxu0 %v947
      %v1396 = vpop.f32.mrb[0].mxu0
      %v1397 = vadd.f32 0.0, %v1396
      %v1398 = vpop.f32.mrb[0].mxu0
      %1399 = vmatprep.mubr.f32.mxu0 %v1100
      %1400 = vmatmul.mubr.f32.gmra.mrb[0].mxu0 %v949
      %v1401 = vpop.f32.mrb[0].mxu0
      %v1402 = vadd.f32 0.0, %v1401
      %v1403 = vpop.f32.mrb[0].mxu0
      %1404 = vmatprep.mubr.f32.mxu0 %v1103
      %1405 = vmatmul.mubr.f32.gmra.mrb[0].mxu0 %v951
      %v1406 = vpop.f32.mrb[0].mxu0
      %v1407 = vadd.f32 0.0, %v1406
      %v1408 = vpop.f32.mrb[0].mxu0
      %1409 = vmatprep.mubr.f32.mxu0 %v1106
      %1410 = vmatmul.mubr.f32.gmra.mrb[0].mxu0 %v953
      %v1411 = vpop.f32.mrb[0].mxu0
      %v1412 = vadd.f32 0.0, %v1411
      %v1413 = vpop.f32.mrb[0].mxu0
      %1414 = vmatprep.mubr.f32.mxu0 %v1109
      %1415 = vmatmul.mubr.f32.gmra.mrb[0].mxu0 %v955
      %v1416 = vpop.f32.mrb[0].mxu0
      %v1417 = vadd.f32 0.0, %v1416
      %v1418 = vpop.f32.mrb[0].mxu0
      %1419 = vmatprep.mubr.f32.mxu0 %v1112
      %1420 = vmatmul.mubr.f32.gmra.mrb[0].mxu0 %v957
      %v1421 = vpop.f32.mrb[0].mxu0
      %v1422 = vadd.f32 0.0, %v1421
      %v1423 = vpop.f32.mrb[0].mxu0
      %1424 = vmatprep.mubr.f32.mxu0 %v1115
      %1425 = vmatmul.mubr.f32.gmra.mrb[0].mxu0 %v959
      %v1426 = vpop.f32.mrb[0].mxu0
      %v1427 = vadd.f32 0.0, %v1426
      %v1428 = vpop.f32.mrb[0].mxu0
      %1429 = vmatprep.mubr.f32.mxu0 %v1118
      %1430 = vmatmul.mubr.f32.gmra.mrb[0].mxu0 %v961
      %v1431 = vpop.f32.mrb[0].mxu0
      %v1432 = vadd.f32 0.0, %v1431
      %v1433 = vpop.f32.mrb[0].mxu0
      %1434 = vmatprep.mubr.f32.mxu0 %v1121
      %1435 = vmatmul.mubr.f32.gmra.mrb[0].mxu0 %v963
      %v1436 = vpop.f32.mrb[0].mxu0
      %v1437 = vadd.f32 0.0, %v1436
      %v1438 = vpop.f32.mrb[0].mxu0
      %1439 = vmatprep.mubr.f32.mxu0 %v1124
      %1440 = vmatmul.mubr.f32.gmra.mrb[0].mxu0 %v965
      %v1441 = vpop.f32.mrb[0].mxu0
      %v1442 = vadd.f32 0.0, %v1441
      %v1443 = vpop.f32.mrb[0].mxu0
      %1444 = vmatprep.mubr.f32.mxu0 %v1127
      %1445 = vmatmul.mubr.f32.gmra.mrb[0].mxu0 %v967
      %v1446 = vpop.f32.mrb[0].mxu0
      %v1447 = vadd.f32 0.0, %v1446
      %v1448 = vpop.f32.mrb[0].mxu0
      %1449 = vmatprep.mubr.f32.mxu0 %v1130
      %1450 = vmatmul.mubr.f32.gmra.mrb[0].mxu0 %v969
      %v1451 = vpop.f32.mrb[0].mxu0
      %v1452 = vadd.f32 0.0, %v1451
      %v1453 = vpop.f32.mrb[0].mxu0
      %1454 = vmatprep.mubr.f32.mxu0 %v1133
      %1455 = vmatmul.mubr.f32.gmra.mrb[0].mxu0 %v971
      %v1456 = vpop.f32.mrb[0].mxu0
      %v1457 = vadd.f32 0.0, %v1456
      %v1458 = vpop.f32.mrb[0].mxu0
      %1459 = vmatprep.mubr.f32.mxu0 %v1136
      %1460 = vmatmul.mubr.f32.gmra.mrb[0].mxu0 %v973
      %v1461 = vpop.f32.mrb[0].mxu0
      %v1462 = vadd.f32 0.0, %v1461
      %v1463 = vpop.f32.mrb[0].mxu0
      %1464 = vmatprep.mubr.f32.mxu0 %v1139
      %1465 = vmatmul.mubr.f32.gmra.mrb[0].mxu0 %v975
      %v1466 = vpop.f32.mrb[0].mxu0
      %v1467 = vadd.f32 0.0, %v1466
      %v1468 = vpop.f32.mrb[0].mxu0
      %1469 = vmatprep.mubr.f32.mxu0 %v1142
      %1470 = vmatmul.mubr.f32.gmra.mrb[0].mxu0 %v977
      %v1471 = vpop.f32.mrb[0].mxu0
      %v1472 = vadd.f32 0.0, %v1471
      %v1473 = vpop.f32.mrb[0].mxu0
      %1474 = vmatprep.mubr.f32.mxu0 %v1145
      %1475 = vmatmul.mubr.f32.gmra.mrb[0].mxu0 %v979
      %v1476 = vpop.f32.mrb[0].mxu0
      %v1477 = vadd.f32 0.0, %v1476
      %v1478 = vpop.f32.mrb[0].mxu0
      %1479 = vmatprep.mubr.f32.mxu0 %v1148
      %1480 = vmatmul.mubr.f32.gmra.mrb[0].mxu0 %v981
      %v1481 = vpop.f32.mrb[0].mxu0
      %v1482 = vadd.f32 0.0, %v1481
      %v1483 = vpop.f32.mrb[0].mxu0
      %1484 = vmatprep.mubr.f32.mxu0 %v1151
      %1485 = vmatmul.mubr.f32.gmra.mrb[0].mxu0 %v983
      %v1486 = vpop.f32.mrb[0].mxu0
      %v1487 = vadd.f32 0.0, %v1486
      %v1488 = vpop.f32.mrb[0].mxu0
      %1489 = vmatprep.mubr.f32.mxu0 %v1154
      %1490 = vmatmul.mubr.f32.gmra.mrb[0].mxu0 %v985
      %v1491 = vpop.f32.mrb[0].mxu0
      %v1492 = vadd.f32 0.0, %v1491
      %v1493 = vpop.f32.mrb[0].mxu0
      %1494 = vmatprep.mubr.f32.mxu0 %v1157
      %1495 = vmatmul.mubr.f32.gmra.mrb[0].mxu0 %v987
      %v1496 = vpop.f32.mrb[0].mxu0
      %v1497 = vadd.f32 0.0, %v1496
      %v1498 = vpop.f32.mrb[0].mxu0
      %1499 = vmatprep.mubr.f32.mxu0 %v1160
      %1500 = vmatmul.mubr.f32.gmra.mrb[0].mxu0 %v989
      %v1501 = vpop.f32.mrb[0].mxu0
      %v1502 = vadd.f32 0.0, %v1501
      %v1503 = vpop.f32.mrb[0].mxu0
      %1504 = vmatprep.mubr.f32.mxu0 %v1163
      %1505 = vmatmul.mubr.f32.gmra.mrb[0].mxu0 %v991
      %v1506 = vpop.f32.mrb[0].mxu0
      %v1507 = vadd.f32 0.0, %v1506
      %v1508 = vpop.f32.mrb[0].mxu0
      %1509 = vmatprep.mubr.f32.mxu0 %v1166
      %1510 = vmatmul.mubr.f32.gmra.mrb[0].mxu0 %v993
      %v1511 = vpop.f32.mrb[0].mxu0
      %v1512 = vadd.f32 0.0, %v1511
      %v1513 = vpop.f32.mrb[0].mxu0
      %1514 = vmatprep.mubr.f32.mxu0 %v1169
      %1515 = vmatmul.mubr.f32.gmra.mrb[0].mxu0 %v995
      %v1516 = vpop.f32.mrb[0].mxu0
      %v1517 = vadd.f32 0.0, %v1516
      %v1518 = vpop.f32.mrb[0].mxu0
      %1519 = vmatprep.mubr.f32.mxu0 %v1172
      %1520 = vmatmul.mubr.f32.gmra.mrb[0].mxu0 %v997
      %v1521 = vpop.f32.mrb[0].mxu0
      %v1522 = vadd.f32 0.0, %v1521
      %v1523 = vpop.f32.mrb[0].mxu0
      %1524 = vmatprep.mubr.f32.mxu0 %v1175
      %1525 = vmatmul.mubr.f32.gmra.mrb[0].mxu0 %v999
      %v1526 = vpop.f32.mrb[0].mxu0
      %v1527 = vadd.f32 0.0, %v1526
      %v1528 = vpop.f32.mrb[0].mxu0
      %1529 = vmatprep.mubr.f32.mxu0 %v1178
      %1530 = vmatmul.mubr.f32.gmra.mrb[0].mxu0 %v1001
      %v1531 = vpop.f32.mrb[0].mxu0
      %v1532 = vadd.f32 0.0, %v1531
      %v1533 = vpop.f32.mrb[0].mxu0
      %1534 = vmatprep.mubr.f32.mxu0 %v1181
      %1535 = vmatmul.mubr.f32.gmra.mrb[0].mxu0 %v1003
      %v1536 = vpop.f32.mrb[0].mxu0
      %v1537 = vadd.f32 0.0, %v1536
      %v1538 = vpop.f32.mrb[0].mxu0
      %1539 = vmatprep.mubr.f32.mxu0 %v1184
      %1540 = vmatmul.mubr.f32.gmra.mrb[0].mxu0 %v1005
      %v1541 = vpop.f32.mrb[0].mxu0
      %v1542 = vadd.f32 0.0, %v1541
      %v1543 = vpop.f32.mrb[0].mxu0
      %1544 = vmatprep.mubr.f32.mxu0 %v1187
      %1545 = vmatmul.mubr.f32.gmra.mrb[0].mxu0 %v1007
      %v1546 = vpop.f32.mrb[0].mxu0
      %v1547 = vadd.f32 0.0, %v1546
      %v1548 = vpop.f32.mrb[0].mxu0
      %1549 = vmatprep.mubr.f32.mxu0 %v1190
      %1550 = vmatmul.mubr.f32.gmra.mrb[0].mxu0 %v1009
      %v1551 = vpop.f32.mrb[0].mxu0
      %v1552 = vadd.f32 0.0, %v1551
      %v1553 = vpop.f32.mrb[0].mxu0
      %1554 = vmatprep.mubr.f32.mxu0 %v1193
      %1555 = vmatmul.mubr.f32.gmra.mrb[0].mxu0 %v1011
      %v1556 = vpop.f32.mrb[0].mxu0
      %v1557 = vadd.f32 0.0, %v1556
      %v1558 = vpop.f32.mrb[0].mxu0
      %1559 = vmatprep.mubr.f32.mxu0 %v1196
      %1560 = vmatmul.mubr.f32.gmra.mrb[0].mxu0 %v1013
      %v1561 = vpop.f32.mrb[0].mxu0
      %v1562 = vadd.f32 0.0, %v1561
      %v1563 = vpop.f32.mrb[0].mxu0
      %1564 = vmatprep.mubr.f32.mxu0 %v1199
      %1565 = vmatmul.mubr.f32.gmra.mrb[0].mxu0 %v1015
      %v1566 = vpop.f32.mrb[0].mxu0
      %v1567 = vadd.f32 0.0, %v1566
      %v1568 = vpop.f32.mrb[0].mxu0
      %1569 = vmatprep.mubr.f32.mxu0 %v1202
      %1570 = vmatmul.mubr.f32.gmra.mrb[0].mxu0 %v1017
      %v1571 = vpop.f32.mrb[0].mxu0
      %v1572 = vadd.f32 0.0, %v1571
      %v1573 = vpop.f32.mrb[0].mxu0
      %1574 = vmatprep.mubr.f32.mxu0 %v1205
      %1575 = vmatmul.mubr.f32.gmra.mrb[0].mxu0 %v1019
      %v1576 = vpop.f32.mrb[0].mxu0
      %v1577 = vadd.f32 0.0, %v1576
      %v1578 = vpop.f32.mrb[0].mxu0
      %1579 = vmatprep.mubr.f32.mxu0 %v1208
      %1580 = vmatmul.mubr.f32.gmra.mrb[0].mxu0 %v1021
      %v1581 = vpop.f32.mrb[0].mxu0
      %v1582 = vadd.f32 0.0, %v1581
      %v1583 = vpop.f32.mrb[0].mxu0
      %1584 = vmatprep.mubr.f32.mxu0 %v1211
      %1585 = vmatmul.mubr.f32.gmra.mrb[0].mxu0 %v1023
      %v1586 = vpop.f32.mrb[0].mxu0
      %v1587 = vadd.f32 0.0, %v1586
      %v1588 = vpop.f32.mrb[0].mxu0
      %1589 = vmatprep.mubr.f32.mxu0 %v1214
      %1590 = vmatmul.mubr.f32.gmra.mrb[0].mxu0 %v1025
      %v1591 = vpop.f32.mrb[0].mxu0
      %v1592 = vadd.f32 0.0, %v1591
      %v1593 = vpop.f32.mrb[0].mxu0
      %1594 = vmatprep.mubr.f32.mxu0 %v1217
      %1595 = vmatmul.mubr.f32.gmra.mrb[0].mxu0 %v1027
      %v1596 = vpop.f32.mrb[0].mxu0
      %v1597 = vadd.f32 0.0, %v1596
      %v1598 = vpop.f32.mrb[0].mxu0
      %1599 = vmatprep.mubr.f32.mxu0 %v1220
      %1600 = vmatmul.mubr.f32.gmra.mrb[0].mxu0 %v1029
      %v1601 = vpop.f32.mrb[0].mxu0
      %v1602 = vadd.f32 0.0, %v1601
      %v1603 = vpop.f32.mrb[0].mxu0
      %1604 = vmatprep.mubr.f32.mxu0 %v1223
      %1605 = vmatmul.mubr.f32.gmra.mrb[0].mxu0 %v1031
      %v1606 = vpop.f32.mrb[0].mxu0
      %v1607 = vadd.f32 0.0, %v1606
      %v1608 = vpop.f32.mrb[0].mxu0
      %1609 = vdwg.mxu0
      %v1610 = vmax.f32 %v586, %v1292
      %v1611 = vmax.f32 %v591, %v1297
      %v1612 = vmax.f32 %v596, %v1302
      %v1613 = vmax.f32 %v601, %v1307
      %v1614 = vmax.f32 %v606, %v1312
      %v1615 = vmax.f32 %v611, %v1317
      %v1616 = vmax.f32 %v616, %v1322
      %v1617 = vmax.f32 %v621, %v1327
      %v1618 = vmax.f32 %v626, %v1332
      %v1619 = vmax.f32 %v631, %v1337
      %v1620 = vmax.f32 %v636, %v1342
      %v1621 = vmax.f32 %v641, %v1347
      %v1622 = vmax.f32 %v646, %v1352
      %v1623 = vmax.f32 %v651, %v1357
      %v1624 = vmax.f32 %v656, %v1362
      %v1625 = vmax.f32 %v661, %v1367
      %v1626 = vmax.f32 %v666, %v1372
      %v1627 = vmax.f32 %v671, %v1377
      %v1628 = vmax.f32 %v676, %v1382
      %v1629 = vmax.f32 %v681, %v1387
      %v1630 = vmax.f32 %v686, %v1392
      %v1631 = vmax.f32 %v691, %v1397
      %v1632 = vmax.f32 %v696, %v1402
      %v1633 = vmax.f32 %v701, %v1407
      %v1634 = vmax.f32 %v706, %v1412
      %v1635 = vmax.f32 %v711, %v1417
      %v1636 = vmax.f32 %v716, %v1422
      %v1637 = vmax.f32 %v721, %v1427
      %v1638 = vmax.f32 %v726, %v1432
      %v1639 = vmax.f32 %v731, %v1437
      %v1640 = vmax.f32 %v736, %v1442
      %v1641 = vmax.f32 %v741, %v1447
      %v1642 = vmax.f32 %v746, %v1452
      %v1643 = vmax.f32 %v751, %v1457
      %v1644 = vmax.f32 %v756, %v1462
      %v1645 = vmax.f32 %v761, %v1467
      %v1646 = vmax.f32 %v766, %v1472
      %v1647 = vmax.f32 %v771, %v1477
      %v1648 = vmax.f32 %v776, %v1482
      %v1649 = vmax.f32 %v781, %v1487
      %v1650 = vmax.f32 %v786, %v1492
      %v1651 = vmax.f32 %v791, %v1497
      %v1652 = vmax.f32 %v796, %v1502
      %v1653 = vmax.f32 %v801, %v1507
      %v1654 = vmax.f32 %v806, %v1512
      %v1655 = vmax.f32 %v811, %v1517
      %v1656 = vmax.f32 %v816, %v1522
      %v1657 = vmax.f32 %v821, %v1527
      %v1658 = vmax.f32 %v826, %v1532
      %v1659 = vmax.f32 %v831, %v1537
      %v1660 = vmax.f32 %v836, %v1542
      %v1661 = vmax.f32 %v841, %v1547
      %v1662 = vmax.f32 %v846, %v1552
      %v1663 = vmax.f32 %v851, %v1557
      %v1664 = vmax.f32 %v856, %v1562
      %v1665 = vmax.f32 %v861, %v1567
      %v1666 = vmax.f32 %v866, %v1572
      %v1667 = vmax.f32 %v871, %v1577
      %v1668 = vmax.f32 %v876, %v1582
      %v1669 = vmax.f32 %v881, %v1587
      %v1670 = vmax.f32 %v886, %v1592
      %v1671 = vmax.f32 %v891, %v1597
      %v1672 = vmax.f32 %v896, %v1602
      %v1673 = vmax.f32 %v901, %v1607
      %s1674 = scalar_lea.vmem %s165, 2048
      %v1675 = vld [vmem:[%s1674] sm:$0xff]
      %v1676 = vld [vmem:[%s1674 + $0x8] sm:$0xff]
      %v1677 = vld [vmem:[%s1674 + $0x10] sm:$0xff]
      %v1678 = vld [vmem:[%s1674 + $0x18] sm:$0xff]
      %v1679 = vld [vmem:[%s1674 + $0x20] sm:$0xff]
      %v1680 = vld [vmem:[%s1674 + $0x28] sm:$0xff]
      %v1681 = vld [vmem:[%s1674 + $0x30] sm:$0xff]
      %v1682 = vld [vmem:[%s1674 + $0x38] sm:$0xff]
      %v1683 = vld [vmem:[%s1674 + $0x40] sm:$0xff]
      %v1684 = vld [vmem:[%s1674 + $0x48] sm:$0xff]
      %v1685 = vld [vmem:[%s1674 + $0x50] sm:$0xff]
      %v1686 = vld [vmem:[%s1674 + $0x58] sm:$0xff]
      %v1687 = vld [vmem:[%s1674 + $0x60] sm:$0xff]
      %v1688 = vld [vmem:[%s1674 + $0x68] sm:$0xff]
      %v1689 = vld [vmem:[%s1674 + $0x70] sm:$0xff]
      %v1690 = vld [vmem:[%s1674 + $0x78] sm:$0xff]
      %v1691 = vld [vmem:[%s1674 + $0x80] sm:$0xff]
      %v1692 = vld [vmem:[%s1674 + $0x88] sm:$0xff]
      %v1693 = vld [vmem:[%s1674 + $0x90] sm:$0xff]
      %v1694 = vld [vmem:[%s1674 + $0x98] sm:$0xff]
      %v1695 = vld [vmem:[%s1674 + $0xa0] sm:$0xff]
      %v1696 = vld [vmem:[%s1674 + $0xa8] sm:$0xff]
      %v1697 = vld [vmem:[%s1674 + $0xb0] sm:$0xff]
      %v1698 = vld [vmem:[%s1674 + $0xb8] sm:$0xff]
      %v1699 = vld [vmem:[%s1674 + $0xc0] sm:$0xff]
      %v1700 = vld [vmem:[%s1674 + $0xc8] sm:$0xff]
      %v1701 = vld [vmem:[%s1674 + $0xd0] sm:$0xff]
      %v1702 = vld [vmem:[%s1674 + $0xd8] sm:$0xff]
      %v1703 = vld [vmem:[%s1674 + $0xe0] sm:$0xff]
      %v1704 = vld [vmem:[%s1674 + $0xe8] sm:$0xff]
      %v1705 = vld [vmem:[%s1674 + $0xf0] sm:$0xff]
      %v1706 = vld [vmem:[%s1674 + $0xf8] sm:$0xff]
      %v1707 = vld [vmem:[%s1674 + $0x100] sm:$0xff]
      %v1708 = vld [vmem:[%s1674 + $0x108] sm:$0xff]
      %v1709 = vld [vmem:[%s1674 + $0x110] sm:$0xff]
      %v1710 = vld [vmem:[%s1674 + $0x118] sm:$0xff]
      %v1711 = vld [vmem:[%s1674 + $0x120] sm:$0xff]
      %v1712 = vld [vmem:[%s1674 + $0x128] sm:$0xff]
      %v1713 = vld [vmem:[%s1674 + $0x130] sm:$0xff]
      %v1714 = vld [vmem:[%s1674 + $0x138] sm:$0xff]
      %v1715 = vld [vmem:[%s1674 + $0x140] sm:$0xff]
      %v1716 = vld [vmem:[%s1674 + $0x148] sm:$0xff]
      %v1717 = vld [vmem:[%s1674 + $0x150] sm:$0xff]
      %v1718 = vld [vmem:[%s1674 + $0x158] sm:$0xff]
      %v1719 = vld [vmem:[%s1674 + $0x160] sm:$0xff]
      %v1720 = vld [vmem:[%s1674 + $0x168] sm:$0xff]
      %v1721 = vld [vmem:[%s1674 + $0x170] sm:$0xff]
      %v1722 = vld [vmem:[%s1674 + $0x178] sm:$0xff]
      %v1723 = vld [vmem:[%s1674 + $0x180] sm:$0xff]
      %v1724 = vld [vmem:[%s1674 + $0x188] sm:$0xff]
      %v1725 = vld [vmem:[%s1674 + $0x190] sm:$0xff]
      %v1726 = vld [vmem:[%s1674 + $0x198] sm:$0xff]
      %v1727 = vld [vmem:[%s1674 + $0x1a0] sm:$0xff]
      %v1728 = vld [vmem:[%s1674 + $0x1a8] sm:$0xff]
      %v1729 = vld [vmem:[%s1674 + $0x1b0] sm:$0xff]
      %v1730 = vld [vmem:[%s1674 + $0x1b8] sm:$0xff]
      %v1731 = vld [vmem:[%s1674 + $0x1c0] sm:$0xff]
      %v1732 = vld [vmem:[%s1674 + $0x1c8] sm:$0xff]
      %v1733 = vld [vmem:[%s1674 + $0x1d0] sm:$0xff]
      %v1734 = vld [vmem:[%s1674 + $0x1d8] sm:$0xff]
      %v1735 = vld [vmem:[%s1674 + $0x1e0] sm:$0xff]
      %v1736 = vld [vmem:[%s1674 + $0x1e8] sm:$0xff]
      %v1737 = vld [vmem:[%s1674 + $0x1f0] sm:$0xff]
      %v1738 = vld [vmem:[%s1674 + $0x1f8] sm:$0xff]
      %v1739 = vld [vmem:[%s1674 + $0x200] sm:$0xff]
      %v1740 = vld [vmem:[%s1674 + $0x208] sm:$0xff]
      %v1741 = vld [vmem:[%s1674 + $0x210] sm:$0xff]
      %v1742 = vld [vmem:[%s1674 + $0x218] sm:$0xff]
      %v1743 = vld [vmem:[%s1674 + $0x220] sm:$0xff]
      %v1744 = vld [vmem:[%s1674 + $0x228] sm:$0xff]
      %v1745 = vld [vmem:[%s1674 + $0x230] sm:$0xff]
      %v1746 = vld [vmem:[%s1674 + $0x238] sm:$0xff]
      %v1747 = vld [vmem:[%s1674 + $0x240] sm:$0xff]
      %v1748 = vld [vmem:[%s1674 + $0x248] sm:$0xff]
      %v1749 = vld [vmem:[%s1674 + $0x250] sm:$0xff]
      %v1750 = vld [vmem:[%s1674 + $0x258] sm:$0xff]
      %v1751 = vld [vmem:[%s1674 + $0x260] sm:$0xff]
      %v1752 = vld [vmem:[%s1674 + $0x268] sm:$0xff]
      %v1753 = vld [vmem:[%s1674 + $0x270] sm:$0xff]
      %v1754 = vld [vmem:[%s1674 + $0x278] sm:$0xff]
      %v1755 = vld [vmem:[%s1674 + $0x280] sm:$0xff]
      %v1756 = vld [vmem:[%s1674 + $0x288] sm:$0xff]
      %v1757 = vld [vmem:[%s1674 + $0x290] sm:$0xff]
      %v1758 = vld [vmem:[%s1674 + $0x298] sm:$0xff]
      %v1759 = vld [vmem:[%s1674 + $0x2a0] sm:$0xff]
      %v1760 = vld [vmem:[%s1674 + $0x2a8] sm:$0xff]
      %v1761 = vld [vmem:[%s1674 + $0x2b0] sm:$0xff]
      %v1762 = vld [vmem:[%s1674 + $0x2b8] sm:$0xff]
      %v1763 = vld [vmem:[%s1674 + $0x2c0] sm:$0xff]
      %v1764 = vld [vmem:[%s1674 + $0x2c8] sm:$0xff]
      %v1765 = vld [vmem:[%s1674 + $0x2d0] sm:$0xff]
      %v1766 = vld [vmem:[%s1674 + $0x2d8] sm:$0xff]
      %v1767 = vld [vmem:[%s1674 + $0x2e0] sm:$0xff]
      %v1768 = vld [vmem:[%s1674 + $0x2e8] sm:$0xff]
      %v1769 = vld [vmem:[%s1674 + $0x2f0] sm:$0xff]
      %v1770 = vld [vmem:[%s1674 + $0x2f8] sm:$0xff]
      %v1771 = vld [vmem:[%s1674 + $0x300] sm:$0xff]
      %v1772 = vld [vmem:[%s1674 + $0x308] sm:$0xff]
      %v1773 = vld [vmem:[%s1674 + $0x310] sm:$0xff]
      %v1774 = vld [vmem:[%s1674 + $0x318] sm:$0xff]
      %v1775 = vld [vmem:[%s1674 + $0x320] sm:$0xff]
      %v1776 = vld [vmem:[%s1674 + $0x328] sm:$0xff]
      %v1777 = vld [vmem:[%s1674 + $0x330] sm:$0xff]
      %v1778 = vld [vmem:[%s1674 + $0x338] sm:$0xff]
      %v1779 = vld [vmem:[%s1674 + $0x340] sm:$0xff]
      %v1780 = vld [vmem:[%s1674 + $0x348] sm:$0xff]
      %v1781 = vld [vmem:[%s1674 + $0x350] sm:$0xff]
      %v1782 = vld [vmem:[%s1674 + $0x358] sm:$0xff]
      %v1783 = vld [vmem:[%s1674 + $0x360] sm:$0xff]
      %v1784 = vld [vmem:[%s1674 + $0x368] sm:$0xff]
      %v1785 = vld [vmem:[%s1674 + $0x370] sm:$0xff]
      %v1786 = vld [vmem:[%s1674 + $0x378] sm:$0xff]
      %v1787 = vld [vmem:[%s1674 + $0x380] sm:$0xff]
      %v1788 = vld [vmem:[%s1674 + $0x388] sm:$0xff]
      %v1789 = vld [vmem:[%s1674 + $0x390] sm:$0xff]
      %v1790 = vld [vmem:[%s1674 + $0x398] sm:$0xff]
      %v1791 = vld [vmem:[%s1674 + $0x3a0] sm:$0xff]
      %v1792 = vld [vmem:[%s1674 + $0x3a8] sm:$0xff]
      %v1793 = vld [vmem:[%s1674 + $0x3b0] sm:$0xff]
      %v1794 = vld [vmem:[%s1674 + $0x3b8] sm:$0xff]
      %v1795 = vld [vmem:[%s1674 + $0x3c0] sm:$0xff]
      %v1796 = vld [vmem:[%s1674 + $0x3c8] sm:$0xff]
      %v1797 = vld [vmem:[%s1674 + $0x3d0] sm:$0xff]
      %v1798 = vld [vmem:[%s1674 + $0x3d8] sm:$0xff]
      %v1799 = vld [vmem:[%s1674 + $0x3e0] sm:$0xff]
      %v1800 = vld [vmem:[%s1674 + $0x3e8] sm:$0xff]
      %v1801 = vld [vmem:[%s1674 + $0x3f0] sm:$0xff]
      %v1802 = vld [vmem:[%s1674 + $0x3f8] sm:$0xff]
      %v1804 = vsel %vm326, %v1676, 0
      %v1807 = vsel %vm326, %v1678, 0
      %v1810 = vsel %vm326, %v1680, 0
      %v1813 = vsel %vm326, %v1682, 0
      %v1816 = vsel %vm326, %v1684, 0
      %v1819 = vsel %vm326, %v1686, 0
      %v1822 = vsel %vm326, %v1688, 0
      %v1825 = vsel %vm326, %v1690, 0
      %v1828 = vsel %vm326, %v1692, 0
      %v1831 = vsel %vm326, %v1694, 0
      %v1834 = vsel %vm326, %v1696, 0
      %v1837 = vsel %vm326, %v1698, 0
      %v1840 = vsel %vm326, %v1700, 0
      %v1843 = vsel %vm326, %v1702, 0
      %v1846 = vsel %vm326, %v1704, 0
      %v1849 = vsel %vm326, %v1706, 0
      %v1852 = vsel %vm326, %v1708, 0
      %v1855 = vsel %vm326, %v1710, 0
      %v1858 = vsel %vm326, %v1712, 0
      %v1861 = vsel %vm326, %v1714, 0
      %v1864 = vsel %vm326, %v1716, 0
      %v1867 = vsel %vm326, %v1718, 0
      %v1870 = vsel %vm326, %v1720, 0
      %v1873 = vsel %vm326, %v1722, 0
      %v1876 = vsel %vm326, %v1724, 0
      %v1879 = vsel %vm326, %v1726, 0
      %v1882 = vsel %vm326, %v1728, 0
      %v1885 = vsel %vm326, %v1730, 0
      %v1888 = vsel %vm326, %v1732, 0
      %v1891 = vsel %vm326, %v1734, 0
      %v1894 = vsel %vm326, %v1736, 0
      %v1897 = vsel %vm326, %v1738, 0
      %v1900 = vsel %vm326, %v1740, 0
      %v1903 = vsel %vm326, %v1742, 0
      %v1906 = vsel %vm326, %v1744, 0
      %v1909 = vsel %vm326, %v1746, 0
      %v1912 = vsel %vm326, %v1748, 0
      %v1915 = vsel %vm326, %v1750, 0
      %v1918 = vsel %vm326, %v1752, 0
      %v1921 = vsel %vm326, %v1754, 0
      %v1924 = vsel %vm326, %v1756, 0
      %v1927 = vsel %vm326, %v1758, 0
      %v1930 = vsel %vm326, %v1760, 0
      %v1933 = vsel %vm326, %v1762, 0
      %v1936 = vsel %vm326, %v1764, 0
      %v1939 = vsel %vm326, %v1766, 0
      %v1942 = vsel %vm326, %v1768, 0
      %v1945 = vsel %vm326, %v1770, 0
      %v1948 = vsel %vm326, %v1772, 0
      %v1951 = vsel %vm326, %v1774, 0
      %v1954 = vsel %vm326, %v1776, 0
      %v1957 = vsel %vm326, %v1778, 0
      %v1960 = vsel %vm326, %v1780, 0
      %v1963 = vsel %vm326, %v1782, 0
      %v1966 = vsel %vm326, %v1784, 0
      %v1969 = vsel %vm326, %v1786, 0
      %v1972 = vsel %vm326, %v1788, 0
      %v1975 = vsel %vm326, %v1790, 0
      %v1978 = vsel %vm326, %v1792, 0
      %v1981 = vsel %vm326, %v1794, 0
      %v1984 = vsel %vm326, %v1796, 0
      %v1987 = vsel %vm326, %v1798, 0
      %v1990 = vsel %vm326, %v1800, 0
      %v1993 = vsel %vm326, %v1802, 0
      %1995 = vmatprep.subr.mxu0 0.0
      %1996 = vmatpush1.msra.mxu0 %v171
      %1997 = vmatprep.subr.mxu0 0.0
      %1998 = vmatpush1.msra.mxu0 %v172
      %1999 = vmatprep.subr.mxu0 0.0
      %2000 = vmatpush1.msra.mxu0 %v173
      %2001 = vmatprep.subr.mxu0 0.0
      %2002 = vmatpush1.msra.mxu0 %v174
      %2003 = vmatprep.subr.mxu0 0.0
      %2004 = vmatpush1.msra.mxu0 %v175
      %2005 = vmatprep.subr.mxu0 0.0
      %2006 = vmatpush1.msra.mxu0 %v176
      %2007 = vmatprep.subr.mxu0 0.0
      %2008 = vmatpush1.msra.mxu0 %v177
      %2009 = vmatprep.subr.mxu0 0.0
      %2010 = vmatpush1.msra.mxu0 %v178
      %2011 = vmatprep.subr.mxu0 0.0
      %2012 = vmatpush1.msra.mxu0 %v179
      %2013 = vmatprep.subr.mxu0 0.0
      %2014 = vmatpush1.msra.mxu0 %v180
      %2015 = vmatprep.subr.mxu0 0.0
      %2016 = vmatpush1.msra.mxu0 %v181
      %2017 = vmatprep.subr.mxu0 0.0
      %2018 = vmatpush1.msra.mxu0 %v182
      %2019 = vmatprep.subr.mxu0 0.0
      %2020 = vmatpush1.msra.mxu0 %v183
      %2021 = vmatprep.subr.mxu0 0.0
      %2022 = vmatpush1.msra.mxu0 %v184
      %2023 = vmatprep.subr.mxu0 0.0
      %2024 = vmatpush1.msra.mxu0 %v185
      %2025 = vmatprep.subr.mxu0 0.0
      %2026 = vmatpush1.msra.mxu0 %v186
      %2027 = vmatprep.subr.mxu0 0.0
      %2028 = vmatpush1.msra.mxu0 %v187
      %2029 = vmatprep.subr.mxu0 0.0
      %2030 = vmatpush1.msra.mxu0 %v188
      %2031 = vmatprep.subr.mxu0 0.0
      %2032 = vmatpush1.msra.mxu0 %v189
      %2033 = vmatprep.subr.mxu0 0.0
      %2034 = vmatpush1.msra.mxu0 %v190
      %2035 = vmatprep.subr.mxu0 0.0
      %2036 = vmatpush1.msra.mxu0 %v191
      %2037 = vmatprep.subr.mxu0 0.0
      %2038 = vmatpush1.msra.mxu0 %v192
      %2039 = vmatprep.subr.mxu0 0.0
      %2040 = vmatpush1.msra.mxu0 %v193
      %2041 = vmatprep.subr.mxu0 0.0
      %2042 = vmatpush1.msra.mxu0 %v194
      %2043 = vmatprep.subr.mxu0 0.0
      %2044 = vmatpush1.msra.mxu0 %v195
      %2045 = vmatprep.subr.mxu0 0.0
      %2046 = vmatpush1.msra.mxu0 %v196
      %2047 = vmatprep.subr.mxu0 0.0
      %2048 = vmatpush1.msra.mxu0 %v197
      %2049 = vmatprep.subr.mxu0 0.0
      %2050 = vmatpush1.msra.mxu0 0.0
      %2051 = vmatprep.subr.mxu0 0.0
      %2052 = vmatpush1.msra.mxu0 0.0
      %2053 = vmatprep.subr.mxu0 0.0
      %2054 = vmatpush1.msra.mxu0 0.0
      %2055 = vmatprep.subr.mxu0 0.0
      %2056 = vmatpush1.msra.mxu0 0.0
      %2057 = vmatprep.subr.mxu0 0.0
      %2058 = vmatpush1.msra.mxu0 0.0
      %2059 = vmatprep.mubr.f32.mxu0 %v1804
      %2060 = vmatmul.mubr.f32.gmra.mrb[0].mxu0 %v1675
      %v2061 = vpop.f32.mrb[0].mxu0
      %v2062 = vadd.f32 0.0, %v2061
      %v2063 = vpop.f32.mrb[0].mxu0
      %2064 = vmatprep.mubr.f32.mxu0 %v1807
      %2065 = vmatmul.mubr.f32.gmra.mrb[0].mxu0 %v1677
      %v2066 = vpop.f32.mrb[0].mxu0
      %v2067 = vadd.f32 0.0, %v2066
      %v2068 = vpop.f32.mrb[0].mxu0
      %2069 = vmatprep.mubr.f32.mxu0 %v1810
      %2070 = vmatmul.mubr.f32.gmra.mrb[0].mxu0 %v1679
      %v2071 = vpop.f32.mrb[0].mxu0
      %v2072 = vadd.f32 0.0, %v2071
      %v2073 = vpop.f32.mrb[0].mxu0
      %2074 = vmatprep.mubr.f32.mxu0 %v1813
      %2075 = vmatmul.mubr.f32.gmra.mrb[0].mxu0 %v1681
      %v2076 = vpop.f32.mrb[0].mxu0
      %v2077 = vadd.f32 0.0, %v2076
      %v2078 = vpop.f32.mrb[0].mxu0
      %2079 = vmatprep.mubr.f32.mxu0 %v1816
      %2080 = vmatmul.mubr.f32.gmra.mrb[0].mxu0 %v1683
      %v2081 = vpop.f32.mrb[0].mxu0
      %v2082 = vadd.f32 0.0, %v2081
      %v2083 = vpop.f32.mrb[0].mxu0
      %2084 = vmatprep.mubr.f32.mxu0 %v1819
      %2085 = vmatmul.mubr.f32.gmra.mrb[0].mxu0 %v1685
      %v2086 = vpop.f32.mrb[0].mxu0
      %v2087 = vadd.f32 0.0, %v2086
      %v2088 = vpop.f32.mrb[0].mxu0
      %2089 = vmatprep.mubr.f32.mxu0 %v1822
      %2090 = vmatmul.mubr.f32.gmra.mrb[0].mxu0 %v1687
      %v2091 = vpop.f32.mrb[0].mxu0
      %v2092 = vadd.f32 0.0, %v2091
      %v2093 = vpop.f32.mrb[0].mxu0
      %2094 = vmatprep.mubr.f32.mxu0 %v1825
      %2095 = vmatmul.mubr.f32.gmra.mrb[0].mxu0 %v1689
      %v2096 = vpop.f32.mrb[0].mxu0
      %v2097 = vadd.f32 0.0, %v2096
      %v2098 = vpop.f32.mrb[0].mxu0
      %2099 = vmatprep.mubr.f32.mxu0 %v1828
      %2100 = vmatmul.mubr.f32.gmra.mrb[0].mxu0 %v1691
      %v2101 = vpop.f32.mrb[0].mxu0
      %v2102 = vadd.f32 0.0, %v2101
      %v2103 = vpop.f32.mrb[0].mxu0
      %2104 = vmatprep.mubr.f32.mxu0 %v1831
      %2105 = vmatmul.mubr.f32.gmra.mrb[0].mxu0 %v1693
      %v2106 = vpop.f32.mrb[0].mxu0
      %v2107 = vadd.f32 0.0, %v2106
      %v2108 = vpop.f32.mrb[0].mxu0
      %2109 = vmatprep.mubr.f32.mxu0 %v1834
      %2110 = vmatmul.mubr.f32.gmra.mrb[0].mxu0 %v1695
      %v2111 = vpop.f32.mrb[0].mxu0
      %v2112 = vadd.f32 0.0, %v2111
      %v2113 = vpop.f32.mrb[0].mxu0
      %2114 = vmatprep.mubr.f32.mxu0 %v1837
      %2115 = vmatmul.mubr.f32.gmra.mrb[0].mxu0 %v1697
      %v2116 = vpop.f32.mrb[0].mxu0
      %v2117 = vadd.f32 0.0, %v2116
      %v2118 = vpop.f32.mrb[0].mxu0
      %2119 = vmatprep.mubr.f32.mxu0 %v1840
      %2120 = vmatmul.mubr.f32.gmra.mrb[0].mxu0 %v1699
      %v2121 = vpop.f32.mrb[0].mxu0
      %v2122 = vadd.f32 0.0, %v2121
      %v2123 = vpop.f32.mrb[0].mxu0
      %2124 = vmatprep.mubr.f32.mxu0 %v1843
      %2125 = vmatmul.mubr.f32.gmra.mrb[0].mxu0 %v1701
      %v2126 = vpop.f32.mrb[0].mxu0
      %v2127 = vadd.f32 0.0, %v2126
      %v2128 = vpop.f32.mrb[0].mxu0
      %2129 = vmatprep.mubr.f32.mxu0 %v1846
      %2130 = vmatmul.mubr.f32.gmra.mrb[0].mxu0 %v1703
      %v2131 = vpop.f32.mrb[0].mxu0
      %v2132 = vadd.f32 0.0, %v2131
      %v2133 = vpop.f32.mrb[0].mxu0
      %2134 = vmatprep.mubr.f32.mxu0 %v1849
      %2135 = vmatmul.mubr.f32.gmra.mrb[0].mxu0 %v1705
      %v2136 = vpop.f32.mrb[0].mxu0
      %v2137 = vadd.f32 0.0, %v2136
      %v2138 = vpop.f32.mrb[0].mxu0
      %2139 = vmatprep.mubr.f32.mxu0 %v1852
      %2140 = vmatmul.mubr.f32.gmra.mrb[0].mxu0 %v1707
      %v2141 = vpop.f32.mrb[0].mxu0
      %v2142 = vadd.f32 0.0, %v2141
      %v2143 = vpop.f32.mrb[0].mxu0
      %2144 = vmatprep.mubr.f32.mxu0 %v1855
      %2145 = vmatmul.mubr.f32.gmra.mrb[0].mxu0 %v1709
      %v2146 = vpop.f32.mrb[0].mxu0
      %v2147 = vadd.f32 0.0, %v2146
      %v2148 = vpop.f32.mrb[0].mxu0
      %2149 = vmatprep.mubr.f32.mxu0 %v1858
      %2150 = vmatmul.mubr.f32.gmra.mrb[0].mxu0 %v1711
      %v2151 = vpop.f32.mrb[0].mxu0
      %v2152 = vadd.f32 0.0, %v2151
      %v2153 = vpop.f32.mrb[0].mxu0
      %2154 = vmatprep.mubr.f32.mxu0 %v1861
      %2155 = vmatmul.mubr.f32.gmra.mrb[0].mxu0 %v1713
      %v2156 = vpop.f32.mrb[0].mxu0
      %v2157 = vadd.f32 0.0, %v2156
      %v2158 = vpop.f32.mrb[0].mxu0
      %2159 = vmatprep.mubr.f32.mxu0 %v1864
      %2160 = vmatmul.mubr.f32.gmra.mrb[0].mxu0 %v1715
      %v2161 = vpop.f32.mrb[0].mxu0
      %v2162 = vadd.f32 0.0, %v2161
      %v2163 = vpop.f32.mrb[0].mxu0
      %2164 = vmatprep.mubr.f32.mxu0 %v1867
      %2165 = vmatmul.mubr.f32.gmra.mrb[0].mxu0 %v1717
      %v2166 = vpop.f32.mrb[0].mxu0
      %v2167 = vadd.f32 0.0, %v2166
      %v2168 = vpop.f32.mrb[0].mxu0
      %2169 = vmatprep.mubr.f32.mxu0 %v1870
      %2170 = vmatmul.mubr.f32.gmra.mrb[0].mxu0 %v1719
      %v2171 = vpop.f32.mrb[0].mxu0
      %v2172 = vadd.f32 0.0, %v2171
      %v2173 = vpop.f32.mrb[0].mxu0
      %2174 = vmatprep.mubr.f32.mxu0 %v1873
      %2175 = vmatmul.mubr.f32.gmra.mrb[0].mxu0 %v1721
      %v2176 = vpop.f32.mrb[0].mxu0
      %v2177 = vadd.f32 0.0, %v2176
      %v2178 = vpop.f32.mrb[0].mxu0
      %2179 = vmatprep.mubr.f32.mxu0 %v1876
      %2180 = vmatmul.mubr.f32.gmra.mrb[0].mxu0 %v1723
      %v2181 = vpop.f32.mrb[0].mxu0
      %v2182 = vadd.f32 0.0, %v2181
      %v2183 = vpop.f32.mrb[0].mxu0
      %2184 = vmatprep.mubr.f32.mxu0 %v1879
      %2185 = vmatmul.mubr.f32.gmra.mrb[0].mxu0 %v1725
      %v2186 = vpop.f32.mrb[0].mxu0
      %v2187 = vadd.f32 0.0, %v2186
      %v2188 = vpop.f32.mrb[0].mxu0
      %2189 = vmatprep.mubr.f32.mxu0 %v1882
      %2190 = vmatmul.mubr.f32.gmra.mrb[0].mxu0 %v1727
      %v2191 = vpop.f32.mrb[0].mxu0
      %v2192 = vadd.f32 0.0, %v2191
      %v2193 = vpop.f32.mrb[0].mxu0
      %2194 = vmatprep.mubr.f32.mxu0 %v1885
      %2195 = vmatmul.mubr.f32.gmra.mrb[0].mxu0 %v1729
      %v2196 = vpop.f32.mrb[0].mxu0
      %v2197 = vadd.f32 0.0, %v2196
      %v2198 = vpop.f32.mrb[0].mxu0
      %2199 = vmatprep.mubr.f32.mxu0 %v1888
      %2200 = vmatmul.mubr.f32.gmra.mrb[0].mxu0 %v1731
      %v2201 = vpop.f32.mrb[0].mxu0
      %v2202 = vadd.f32 0.0, %v2201
      %v2203 = vpop.f32.mrb[0].mxu0
      %2204 = vmatprep.mubr.f32.mxu0 %v1891
      %2205 = vmatmul.mubr.f32.gmra.mrb[0].mxu0 %v1733
      %v2206 = vpop.f32.mrb[0].mxu0
      %v2207 = vadd.f32 0.0, %v2206
      %v2208 = vpop.f32.mrb[0].mxu0
      %2209 = vmatprep.mubr.f32.mxu0 %v1894
      %2210 = vmatmul.mubr.f32.gmra.mrb[0].mxu0 %v1735
      %v2211 = vpop.f32.mrb[0].mxu0
      %v2212 = vadd.f32 0.0, %v2211
      %v2213 = vpop.f32.mrb[0].mxu0
      %2214 = vmatprep.mubr.f32.mxu0 %v1897
      %2215 = vmatmul.mubr.f32.gmra.mrb[0].mxu0 %v1737
      %v2216 = vpop.f32.mrb[0].mxu0
      %v2217 = vadd.f32 0.0, %v2216
      %v2218 = vpop.f32.mrb[0].mxu0
      %2219 = vmatprep.mubr.f32.mxu0 %v1900
      %2220 = vmatmul.mubr.f32.gmra.mrb[0].mxu0 %v1739
      %v2221 = vpop.f32.mrb[0].mxu0
      %v2222 = vadd.f32 0.0, %v2221
      %v2223 = vpop.f32.mrb[0].mxu0
      %2224 = vmatprep.mubr.f32.mxu0 %v1903
      %2225 = vmatmul.mubr.f32.gmra.mrb[0].mxu0 %v1741
      %v2226 = vpop.f32.mrb[0].mxu0
      %v2227 = vadd.f32 0.0, %v2226
      %v2228 = vpop.f32.mrb[0].mxu0
      %2229 = vmatprep.mubr.f32.mxu0 %v1906
      %2230 = vmatmul.mubr.f32.gmra.mrb[0].mxu0 %v1743
      %v2231 = vpop.f32.mrb[0].mxu0
      %v2232 = vadd.f32 0.0, %v2231
      %v2233 = vpop.f32.mrb[0].mxu0
      %2234 = vmatprep.mubr.f32.mxu0 %v1909
      %2235 = vmatmul.mubr.f32.gmra.mrb[0].mxu0 %v1745
      %v2236 = vpop.f32.mrb[0].mxu0
      %v2237 = vadd.f32 0.0, %v2236
      %v2238 = vpop.f32.mrb[0].mxu0
      %2239 = vmatprep.mubr.f32.mxu0 %v1912
      %2240 = vmatmul.mubr.f32.gmra.mrb[0].mxu0 %v1747
      %v2241 = vpop.f32.mrb[0].mxu0
      %v2242 = vadd.f32 0.0, %v2241
      %v2243 = vpop.f32.mrb[0].mxu0
      %2244 = vmatprep.mubr.f32.mxu0 %v1915
      %2245 = vmatmul.mubr.f32.gmra.mrb[0].mxu0 %v1749
      %v2246 = vpop.f32.mrb[0].mxu0
      %v2247 = vadd.f32 0.0, %v2246
      %v2248 = vpop.f32.mrb[0].mxu0
      %2249 = vmatprep.mubr.f32.mxu0 %v1918
      %2250 = vmatmul.mubr.f32.gmra.mrb[0].mxu0 %v1751
      %v2251 = vpop.f32.mrb[0].mxu0
      %v2252 = vadd.f32 0.0, %v2251
      %v2253 = vpop.f32.mrb[0].mxu0
      %2254 = vmatprep.mubr.f32.mxu0 %v1921
      %2255 = vmatmul.mubr.f32.gmra.mrb[0].mxu0 %v1753
      %v2256 = vpop.f32.mrb[0].mxu0
      %v2257 = vadd.f32 0.0, %v2256
      %v2258 = vpop.f32.mrb[0].mxu0
      %2259 = vmatprep.mubr.f32.mxu0 %v1924
      %2260 = vmatmul.mubr.f32.gmra.mrb[0].mxu0 %v1755
      %v2261 = vpop.f32.mrb[0].mxu0
      %v2262 = vadd.f32 0.0, %v2261
      %v2263 = vpop.f32.mrb[0].mxu0
      %2264 = vmatprep.mubr.f32.mxu0 %v1927
      %2265 = vmatmul.mubr.f32.gmra.mrb[0].mxu0 %v1757
      %v2266 = vpop.f32.mrb[0].mxu0
      %v2267 = vadd.f32 0.0, %v2266
      %v2268 = vpop.f32.mrb[0].mxu0
      %2269 = vmatprep.mubr.f32.mxu0 %v1930
      %2270 = vmatmul.mubr.f32.gmra.mrb[0].mxu0 %v1759
      %v2271 = vpop.f32.mrb[0].mxu0
      %v2272 = vadd.f32 0.0, %v2271
      %v2273 = vpop.f32.mrb[0].mxu0
      %2274 = vmatprep.mubr.f32.mxu0 %v1933
      %2275 = vmatmul.mubr.f32.gmra.mrb[0].mxu0 %v1761
      %v2276 = vpop.f32.mrb[0].mxu0
      %v2277 = vadd.f32 0.0, %v2276
      %v2278 = vpop.f32.mrb[0].mxu0
      %2279 = vmatprep.mubr.f32.mxu0 %v1936
      %2280 = vmatmul.mubr.f32.gmra.mrb[0].mxu0 %v1763
      %v2281 = vpop.f32.mrb[0].mxu0
      %v2282 = vadd.f32 0.0, %v2281
      %v2283 = vpop.f32.mrb[0].mxu0
      %2284 = vmatprep.mubr.f32.mxu0 %v1939
      %2285 = vmatmul.mubr.f32.gmra.mrb[0].mxu0 %v1765
      %v2286 = vpop.f32.mrb[0].mxu0
      %v2287 = vadd.f32 0.0, %v2286
      %v2288 = vpop.f32.mrb[0].mxu0
      %2289 = vmatprep.mubr.f32.mxu0 %v1942
      %2290 = vmatmul.mubr.f32.gmra.mrb[0].mxu0 %v1767
      %v2291 = vpop.f32.mrb[0].mxu0
      %v2292 = vadd.f32 0.0, %v2291
      %v2293 = vpop.f32.mrb[0].mxu0
      %2294 = vmatprep.mubr.f32.mxu0 %v1945
      %2295 = vmatmul.mubr.f32.gmra.mrb[0].mxu0 %v1769
      %v2296 = vpop.f32.mrb[0].mxu0
      %v2297 = vadd.f32 0.0, %v2296
      %v2298 = vpop.f32.mrb[0].mxu0
      %2299 = vmatprep.mubr.f32.mxu0 %v1948
      %2300 = vmatmul.mubr.f32.gmra.mrb[0].mxu0 %v1771
      %v2301 = vpop.f32.mrb[0].mxu0
      %v2302 = vadd.f32 0.0, %v2301
      %v2303 = vpop.f32.mrb[0].mxu0
      %2304 = vmatprep.mubr.f32.mxu0 %v1951
      %2305 = vmatmul.mubr.f32.gmra.mrb[0].mxu0 %v1773
      %v2306 = vpop.f32.mrb[0].mxu0
      %v2307 = vadd.f32 0.0, %v2306
      %v2308 = vpop.f32.mrb[0].mxu0
      %2309 = vmatprep.mubr.f32.mxu0 %v1954
      %2310 = vmatmul.mubr.f32.gmra.mrb[0].mxu0 %v1775
      %v2311 = vpop.f32.mrb[0].mxu0
      %v2312 = vadd.f32 0.0, %v2311
      %v2313 = vpop.f32.mrb[0].mxu0
      %2314 = vmatprep.mubr.f32.mxu0 %v1957
      %2315 = vmatmul.mubr.f32.gmra.mrb[0].mxu0 %v1777
      %v2316 = vpop.f32.mrb[0].mxu0
      %v2317 = vadd.f32 0.0, %v2316
      %v2318 = vpop.f32.mrb[0].mxu0
      %2319 = vmatprep.mubr.f32.mxu0 %v1960
      %2320 = vmatmul.mubr.f32.gmra.mrb[0].mxu0 %v1779
      %v2321 = vpop.f32.mrb[0].mxu0
      %v2322 = vadd.f32 0.0, %v2321
      %v2323 = vpop.f32.mrb[0].mxu0
      %2324 = vmatprep.mubr.f32.mxu0 %v1963
      %2325 = vmatmul.mubr.f32.gmra.mrb[0].mxu0 %v1781
      %v2326 = vpop.f32.mrb[0].mxu0
      %v2327 = vadd.f32 0.0, %v2326
      %v2328 = vpop.f32.mrb[0].mxu0
      %2329 = vmatprep.mubr.f32.mxu0 %v1966
      %2330 = vmatmul.mubr.f32.gmra.mrb[0].mxu0 %v1783
      %v2331 = vpop.f32.mrb[0].mxu0
      %v2332 = vadd.f32 0.0, %v2331
      %v2333 = vpop.f32.mrb[0].mxu0
      %2334 = vmatprep.mubr.f32.mxu0 %v1969
      %2335 = vmatmul.mubr.f32.gmra.mrb[0].mxu0 %v1785
      %v2336 = vpop.f32.mrb[0].mxu0
      %v2337 = vadd.f32 0.0, %v2336
      %v2338 = vpop.f32.mrb[0].mxu0
      %2339 = vmatprep.mubr.f32.mxu0 %v1972
      %2340 = vmatmul.mubr.f32.gmra.mrb[0].mxu0 %v1787
      %v2341 = vpop.f32.mrb[0].mxu0
      %v2342 = vadd.f32 0.0, %v2341
      %v2343 = vpop.f32.mrb[0].mxu0
      %2344 = vmatprep.mubr.f32.mxu0 %v1975
      %2345 = vmatmul.mubr.f32.gmra.mrb[0].mxu0 %v1789
      %v2346 = vpop.f32.mrb[0].mxu0
      %v2347 = vadd.f32 0.0, %v2346
      %v2348 = vpop.f32.mrb[0].mxu0
      %2349 = vmatprep.mubr.f32.mxu0 %v1978
      %2350 = vmatmul.mubr.f32.gmra.mrb[0].mxu0 %v1791
      %v2351 = vpop.f32.mrb[0].mxu0
      %v2352 = vadd.f32 0.0, %v2351
      %v2353 = vpop.f32.mrb[0].mxu0
      %2354 = vmatprep.mubr.f32.mxu0 %v1981
      %2355 = vmatmul.mubr.f32.gmra.mrb[0].mxu0 %v1793
      %v2356 = vpop.f32.mrb[0].mxu0
      %v2357 = vadd.f32 0.0, %v2356
      %v2358 = vpop.f32.mrb[0].mxu0
      %2359 = vmatprep.mubr.f32.mxu0 %v1984
      %2360 = vmatmul.mubr.f32.gmra.mrb[0].mxu0 %v1795
      %v2361 = vpop.f32.mrb[0].mxu0
      %v2362 = vadd.f32 0.0, %v2361
      %v2363 = vpop.f32.mrb[0].mxu0
      %2364 = vmatprep.mubr.f32.mxu0 %v1987
      %2365 = vmatmul.mubr.f32.gmra.mrb[0].mxu0 %v1797
      %v2366 = vpop.f32.mrb[0].mxu0
      %v2367 = vadd.f32 0.0, %v2366
      %v2368 = vpop.f32.mrb[0].mxu0
      %2369 = vmatprep.mubr.f32.mxu0 %v1990
      %2370 = vmatmul.mubr.f32.gmra.mrb[0].mxu0 %v1799
      %v2371 = vpop.f32.mrb[0].mxu0
      %v2372 = vadd.f32 0.0, %v2371
      %v2373 = vpop.f32.mrb[0].mxu0
      %2374 = vmatprep.mubr.f32.mxu0 %v1993
      %2375 = vmatmul.mubr.f32.gmra.mrb[0].mxu0 %v1801
      %v2376 = vpop.f32.mrb[0].mxu0
      %v2377 = vadd.f32 0.0, %v2376
      %v2378 = vpop.f32.mrb[0].mxu0
      %2379 = vdwg.mxu0
      %v2380 = vmax.f32 %v1610, %v2062
      %v2381 = vmax.f32 %v1611, %v2067
      %v2382 = vmax.f32 %v1612, %v2072
      %v2383 = vmax.f32 %v1613, %v2077
      %v2384 = vmax.f32 %v1614, %v2082
      %v2385 = vmax.f32 %v1615, %v2087
      %v2386 = vmax.f32 %v1616, %v2092
      %v2387 = vmax.f32 %v1617, %v2097
      %v2388 = vmax.f32 %v1618, %v2102
      %v2389 = vmax.f32 %v1619, %v2107
      %v2390 = vmax.f32 %v1620, %v2112
      %v2391 = vmax.f32 %v1621, %v2117
      %v2392 = vmax.f32 %v1622, %v2122
      %v2393 = vmax.f32 %v1623, %v2127
      %v2394 = vmax.f32 %v1624, %v2132
      %v2395 = vmax.f32 %v1625, %v2137
      %v2396 = vmax.f32 %v1626, %v2142
      %v2397 = vmax.f32 %v1627, %v2147
      %v2398 = vmax.f32 %v1628, %v2152
      %v2399 = vmax.f32 %v1629, %v2157
      %v2400 = vmax.f32 %v1630, %v2162
      %v2401 = vmax.f32 %v1631, %v2167
      %v2402 = vmax.f32 %v1632, %v2172
      %v2403 = vmax.f32 %v1633, %v2177
      %v2404 = vmax.f32 %v1634, %v2182
      %v2405 = vmax.f32 %v1635, %v2187
      %v2406 = vmax.f32 %v1636, %v2192
      %v2407 = vmax.f32 %v1637, %v2197
      %v2408 = vmax.f32 %v1638, %v2202
      %v2409 = vmax.f32 %v1639, %v2207
      %v2410 = vmax.f32 %v1640, %v2212
      %v2411 = vmax.f32 %v1641, %v2217
      %v2412 = vmax.f32 %v1642, %v2222
      %v2413 = vmax.f32 %v1643, %v2227
      %v2414 = vmax.f32 %v1644, %v2232
      %v2415 = vmax.f32 %v1645, %v2237
      %v2416 = vmax.f32 %v1646, %v2242
      %v2417 = vmax.f32 %v1647, %v2247
      %v2418 = vmax.f32 %v1648, %v2252
      %v2419 = vmax.f32 %v1649, %v2257
      %v2420 = vmax.f32 %v1650, %v2262
      %v2421 = vmax.f32 %v1651, %v2267
      %v2422 = vmax.f32 %v1652, %v2272
      %v2423 = vmax.f32 %v1653, %v2277
      %v2424 = vmax.f32 %v1654, %v2282
      %v2425 = vmax.f32 %v1655, %v2287
      %v2426 = vmax.f32 %v1656, %v2292
      %v2427 = vmax.f32 %v1657, %v2297
      %v2428 = vmax.f32 %v1658, %v2302
      %v2429 = vmax.f32 %v1659, %v2307
      %v2430 = vmax.f32 %v1660, %v2312
      %v2431 = vmax.f32 %v1661, %v2317
      %v2432 = vmax.f32 %v1662, %v2322
      %v2433 = vmax.f32 %v1663, %v2327
      %v2434 = vmax.f32 %v1664, %v2332
      %v2435 = vmax.f32 %v1665, %v2337
      %v2436 = vmax.f32 %v1666, %v2342
      %v2437 = vmax.f32 %v1667, %v2347
      %v2438 = vmax.f32 %v1668, %v2352
      %v2439 = vmax.f32 %v1669, %v2357
      %v2440 = vmax.f32 %v1670, %v2362
      %v2441 = vmax.f32 %v1671, %v2367
      %v2442 = vmax.f32 %v1672, %v2372
      %v2443 = vmax.f32 %v1673, %v2377
      %s2444 = scalar_lea.vmem %s165, 3072
      %v2445 = vld [vmem:[%s2444] sm:$0xff]
      %v2446 = vld [vmem:[%s2444 + $0x8] sm:$0xff]
      %v2447 = vld [vmem:[%s2444 + $0x10] sm:$0xff]
      %v2448 = vld [vmem:[%s2444 + $0x18] sm:$0xff]
      %v2449 = vld [vmem:[%s2444 + $0x20] sm:$0xff]
      %v2450 = vld [vmem:[%s2444 + $0x28] sm:$0xff]
      %v2451 = vld [vmem:[%s2444 + $0x30] sm:$0xff]
      %v2452 = vld [vmem:[%s2444 + $0x38] sm:$0xff]
      %v2453 = vld [vmem:[%s2444 + $0x40] sm:$0xff]
      %v2454 = vld [vmem:[%s2444 + $0x48] sm:$0xff]
      %v2455 = vld [vmem:[%s2444 + $0x50] sm:$0xff]
      %v2456 = vld [vmem:[%s2444 + $0x58] sm:$0xff]
      %v2457 = vld [vmem:[%s2444 + $0x60] sm:$0xff]
      %v2458 = vld [vmem:[%s2444 + $0x68] sm:$0xff]
      %v2459 = vld [vmem:[%s2444 + $0x70] sm:$0xff]
      %v2460 = vld [vmem:[%s2444 + $0x78] sm:$0xff]
      %v2461 = vld [vmem:[%s2444 + $0x80] sm:$0xff]
      %v2462 = vld [vmem:[%s2444 + $0x88] sm:$0xff]
      %v2463 = vld [vmem:[%s2444 + $0x90] sm:$0xff]
      %v2464 = vld [vmem:[%s2444 + $0x98] sm:$0xff]
      %v2465 = vld [vmem:[%s2444 + $0xa0] sm:$0xff]
      %v2466 = vld [vmem:[%s2444 + $0xa8] sm:$0xff]
      %v2467 = vld [vmem:[%s2444 + $0xb0] sm:$0xff]
      %v2468 = vld [vmem:[%s2444 + $0xb8] sm:$0xff]
      %v2469 = vld [vmem:[%s2444 + $0xc0] sm:$0xff]
      %v2470 = vld [vmem:[%s2444 + $0xc8] sm:$0xff]
      %v2471 = vld [vmem:[%s2444 + $0xd0] sm:$0xff]
      %v2472 = vld [vmem:[%s2444 + $0xd8] sm:$0xff]
      %v2473 = vld [vmem:[%s2444 + $0xe0] sm:$0xff]
      %v2474 = vld [vmem:[%s2444 + $0xe8] sm:$0xff]
      %v2475 = vld [vmem:[%s2444 + $0xf0] sm:$0xff]
      %v2476 = vld [vmem:[%s2444 + $0xf8] sm:$0xff]
      %v2477 = vld [vmem:[%s2444 + $0x100] sm:$0xff]
      %v2478 = vld [vmem:[%s2444 + $0x108] sm:$0xff]
      %v2479 = vld [vmem:[%s2444 + $0x110] sm:$0xff]
      %v2480 = vld [vmem:[%s2444 + $0x118] sm:$0xff]
      %v2481 = vld [vmem:[%s2444 + $0x120] sm:$0xff]
      %v2482 = vld [vmem:[%s2444 + $0x128] sm:$0xff]
      %v2483 = vld [vmem:[%s2444 + $0x130] sm:$0xff]
      %v2484 = vld [vmem:[%s2444 + $0x138] sm:$0xff]
      %v2485 = vld [vmem:[%s2444 + $0x140] sm:$0xff]
      %v2486 = vld [vmem:[%s2444 + $0x148] sm:$0xff]
      %v2487 = vld [vmem:[%s2444 + $0x150] sm:$0xff]
      %v2488 = vld [vmem:[%s2444 + $0x158] sm:$0xff]
      %v2489 = vld [vmem:[%s2444 + $0x160] sm:$0xff]
      %v2490 = vld [vmem:[%s2444 + $0x168] sm:$0xff]
      %v2491 = vld [vmem:[%s2444 + $0x170] sm:$0xff]
      %v2492 = vld [vmem:[%s2444 + $0x178] sm:$0xff]
      %v2493 = vld [vmem:[%s2444 + $0x180] sm:$0xff]
      %v2494 = vld [vmem:[%s2444 + $0x188] sm:$0xff]
      %v2495 = vld [vmem:[%s2444 + $0x190] sm:$0xff]
      %v2496 = vld [vmem:[%s2444 + $0x198] sm:$0xff]
      %v2497 = vld [vmem:[%s2444 + $0x1a0] sm:$0xff]
      %v2498 = vld [vmem:[%s2444 + $0x1a8] sm:$0xff]
      %v2499 = vld [vmem:[%s2444 + $0x1b0] sm:$0xff]
      %v2500 = vld [vmem:[%s2444 + $0x1b8] sm:$0xff]
      %v2501 = vld [vmem:[%s2444 + $0x1c0] sm:$0xff]
      %v2502 = vld [vmem:[%s2444 + $0x1c8] sm:$0xff]
      %v2503 = vld [vmem:[%s2444 + $0x1d0] sm:$0xff]
      %v2504 = vld [vmem:[%s2444 + $0x1d8] sm:$0xff]
      %v2505 = vld [vmem:[%s2444 + $0x1e0] sm:$0xff]
      %v2506 = vld [vmem:[%s2444 + $0x1e8] sm:$0xff]
      %v2507 = vld [vmem:[%s2444 + $0x1f0] sm:$0xff]
      %v2508 = vld [vmem:[%s2444 + $0x1f8] sm:$0xff]
      %v2509 = vld [vmem:[%s2444 + $0x200] sm:$0xff]
      %v2510 = vld [vmem:[%s2444 + $0x208] sm:$0xff]
      %v2511 = vld [vmem:[%s2444 + $0x210] sm:$0xff]
      %v2512 = vld [vmem:[%s2444 + $0x218] sm:$0xff]
      %v2513 = vld [vmem:[%s2444 + $0x220] sm:$0xff]
      %v2514 = vld [vmem:[%s2444 + $0x228] sm:$0xff]
      %v2515 = vld [vmem:[%s2444 + $0x230] sm:$0xff]
      %v2516 = vld [vmem:[%s2444 + $0x238] sm:$0xff]
      %v2517 = vld [vmem:[%s2444 + $0x240] sm:$0xff]
      %v2518 = vld [vmem:[%s2444 + $0x248] sm:$0xff]
      %v2519 = vld [vmem:[%s2444 + $0x250] sm:$0xff]
      %v2520 = vld [vmem:[%s2444 + $0x258] sm:$0xff]
      %v2521 = vld [vmem:[%s2444 + $0x260] sm:$0xff]
      %v2522 = vld [vmem:[%s2444 + $0x268] sm:$0xff]
      %v2523 = vld [vmem:[%s2444 + $0x270] sm:$0xff]
      %v2524 = vld [vmem:[%s2444 + $0x278] sm:$0xff]
      %v2525 = vld [vmem:[%s2444 + $0x280] sm:$0xff]
      %v2526 = vld [vmem:[%s2444 + $0x288] sm:$0xff]
      %v2527 = vld [vmem:[%s2444 + $0x290] sm:$0xff]
      %v2528 = vld [vmem:[%s2444 + $0x298] sm:$0xff]
      %v2529 = vld [vmem:[%s2444 + $0x2a0] sm:$0xff]
      %v2530 = vld [vmem:[%s2444 + $0x2a8] sm:$0xff]
      %v2531 = vld [vmem:[%s2444 + $0x2b0] sm:$0xff]
      %v2532 = vld [vmem:[%s2444 + $0x2b8] sm:$0xff]
      %v2533 = vld [vmem:[%s2444 + $0x2c0] sm:$0xff]
      %v2534 = vld [vmem:[%s2444 + $0x2c8] sm:$0xff]
      %v2535 = vld [vmem:[%s2444 + $0x2d0] sm:$0xff]
      %v2536 = vld [vmem:[%s2444 + $0x2d8] sm:$0xff]
      %v2537 = vld [vmem:[%s2444 + $0x2e0] sm:$0xff]
      %v2538 = vld [vmem:[%s2444 + $0x2e8] sm:$0xff]
      %v2539 = vld [vmem:[%s2444 + $0x2f0] sm:$0xff]
      %v2540 = vld [vmem:[%s2444 + $0x2f8] sm:$0xff]
      %v2541 = vld [vmem:[%s2444 + $0x300] sm:$0xff]
      %v2542 = vld [vmem:[%s2444 + $0x308] sm:$0xff]
      %v2543 = vld [vmem:[%s2444 + $0x310] sm:$0xff]
      %v2544 = vld [vmem:[%s2444 + $0x318] sm:$0xff]
      %v2545 = vld [vmem:[%s2444 + $0x320] sm:$0xff]
      %v2546 = vld [vmem:[%s2444 + $0x328] sm:$0xff]
      %v2547 = vld [vmem:[%s2444 + $0x330] sm:$0xff]
      %v2548 = vld [vmem:[%s2444 + $0x338] sm:$0xff]
      %v2549 = vld [vmem:[%s2444 + $0x340] sm:$0xff]
      %v2550 = vld [vmem:[%s2444 + $0x348] sm:$0xff]
      %v2551 = vld [vmem:[%s2444 + $0x350] sm:$0xff]
      %v2552 = vld [vmem:[%s2444 + $0x358] sm:$0xff]
      %v2553 = vld [vmem:[%s2444 + $0x360] sm:$0xff]
      %v2554 = vld [vmem:[%s2444 + $0x368] sm:$0xff]
      %v2555 = vld [vmem:[%s2444 + $0x370] sm:$0xff]
      %v2556 = vld [vmem:[%s2444 + $0x378] sm:$0xff]
      %v2557 = vld [vmem:[%s2444 + $0x380] sm:$0xff]
      %v2558 = vld [vmem:[%s2444 + $0x388] sm:$0xff]
      %v2559 = vld [vmem:[%s2444 + $0x390] sm:$0xff]
      %v2560 = vld [vmem:[%s2444 + $0x398] sm:$0xff]
      %v2561 = vld [vmem:[%s2444 + $0x3a0] sm:$0xff]
      %v2562 = vld [vmem:[%s2444 + $0x3a8] sm:$0xff]
      %v2563 = vld [vmem:[%s2444 + $0x3b0] sm:$0xff]
      %v2564 = vld [vmem:[%s2444 + $0x3b8] sm:$0xff]
      %v2565 = vld [vmem:[%s2444 + $0x3c0] sm:$0xff]
      %v2566 = vld [vmem:[%s2444 + $0x3c8] sm:$0xff]
      %v2567 = vld [vmem:[%s2444 + $0x3d0] sm:$0xff]
      %v2568 = vld [vmem:[%s2444 + $0x3d8] sm:$0xff]
      %v2569 = vld [vmem:[%s2444 + $0x3e0] sm:$0xff]
      %v2570 = vld [vmem:[%s2444 + $0x3e8] sm:$0xff]
      %v2571 = vld [vmem:[%s2444 + $0x3f0] sm:$0xff]
      %v2572 = vld [vmem:[%s2444 + $0x3f8] sm:$0xff]
      %v2574 = vsel %vm326, %v2446, 0
      %v2577 = vsel %vm326, %v2448, 0
      %v2580 = vsel %vm326, %v2450, 0
      %v2583 = vsel %vm326, %v2452, 0
      %v2586 = vsel %vm326, %v2454, 0
      %v2589 = vsel %vm326, %v2456, 0
      %v2592 = vsel %vm326, %v2458, 0
      %v2595 = vsel %vm326, %v2460, 0
      %v2598 = vsel %vm326, %v2462, 0
      %v2601 = vsel %vm326, %v2464, 0
      %v2604 = vsel %vm326, %v2466, 0
      %v2607 = vsel %vm326, %v2468, 0
      %v2610 = vsel %vm326, %v2470, 0
      %v2613 = vsel %vm326, %v2472, 0
      %v2616 = vsel %vm326, %v2474, 0
      %v2619 = vsel %vm326, %v2476, 0
      %v2622 = vsel %vm326, %v2478, 0
      %v2625 = vsel %vm326, %v2480, 0
      %v2628 = vsel %vm326, %v2482, 0
      %v2631 = vsel %vm326, %v2484, 0
      %v2634 = vsel %vm326, %v2486, 0
      %v2637 = vsel %vm326, %v2488, 0
      %v2640 = vsel %vm326, %v2490, 0
      %v2643 = vsel %vm326, %v2492, 0
      %v2646 = vsel %vm326, %v2494, 0
      %v2649 = vsel %vm326, %v2496, 0
      %v2652 = vsel %vm326, %v2498, 0
      %v2655 = vsel %vm326, %v2500, 0
      %v2658 = vsel %vm326, %v2502, 0
      %v2661 = vsel %vm326, %v2504, 0
      %v2664 = vsel %vm326, %v2506, 0
      %v2667 = vsel %vm326, %v2508, 0
      %v2670 = vsel %vm326, %v2510, 0
      %v2673 = vsel %vm326, %v2512, 0
      %v2676 = vsel %vm326, %v2514, 0
      %v2679 = vsel %vm326, %v2516, 0
      %v2682 = vsel %vm326, %v2518, 0
      %v2685 = vsel %vm326, %v2520, 0
      %v2688 = vsel %vm326, %v2522, 0
      %v2691 = vsel %vm326, %v2524, 0
      %v2694 = vsel %vm326, %v2526, 0
      %v2697 = vsel %vm326, %v2528, 0
      %v2700 = vsel %vm326, %v2530, 0
      %v2703 = vsel %vm326, %v2532, 0
      %v2706 = vsel %vm326, %v2534, 0
      %v2709 = vsel %vm326, %v2536, 0
      %v2712 = vsel %vm326, %v2538, 0
      %v2715 = vsel %vm326, %v2540, 0
      %v2718 = vsel %vm326, %v2542, 0
      %v2721 = vsel %vm326, %v2544, 0
      %v2724 = vsel %vm326, %v2546, 0
      %v2727 = vsel %vm326, %v2548, 0
      %v2730 = vsel %vm326, %v2550, 0
      %v2733 = vsel %vm326, %v2552, 0
      %v2736 = vsel %vm326, %v2554, 0
      %v2739 = vsel %vm326, %v2556, 0
      %v2742 = vsel %vm326, %v2558, 0
      %v2745 = vsel %vm326, %v2560, 0
      %v2748 = vsel %vm326, %v2562, 0
      %v2751 = vsel %vm326, %v2564, 0
      %v2754 = vsel %vm326, %v2566, 0
      %v2757 = vsel %vm326, %v2568, 0
      %v2760 = vsel %vm326, %v2570, 0
      %v2763 = vsel %vm326, %v2572, 0
      %2765 = vmatprep.subr.mxu0 0.0
      %2766 = vmatpush1.msra.mxu0 %v171
      %2767 = vmatprep.subr.mxu0 0.0
      %2768 = vmatpush1.msra.mxu0 %v172
      %2769 = vmatprep.subr.mxu0 0.0
      %2770 = vmatpush1.msra.mxu0 %v173
      %2771 = vmatprep.subr.mxu0 0.0
      %2772 = vmatpush1.msra.mxu0 %v174
      %2773 = vmatprep.subr.mxu0 0.0
      %2774 = vmatpush1.msra.mxu0 %v175
      %2775 = vmatprep.subr.mxu0 0.0
      %2776 = vmatpush1.msra.mxu0 %v176
      %2777 = vmatprep.subr.mxu0 0.0
      %2778 = vmatpush1.msra.mxu0 %v177
      %2779 = vmatprep.subr.mxu0 0.0
      %2780 = vmatpush1.msra.mxu0 %v178
      %2781 = vmatprep.subr.mxu0 0.0
      %2782 = vmatpush1.msra.mxu0 %v179
      %2783 = vmatprep.subr.mxu0 0.0
      %2784 = vmatpush1.msra.mxu0 %v180
      %2785 = vmatprep.subr.mxu0 0.0
      %2786 = vmatpush1.msra.mxu0 %v181
      %2787 = vmatprep.subr.mxu0 0.0
      %2788 = vmatpush1.msra.mxu0 %v182
      %2789 = vmatprep.subr.mxu0 0.0
      %2790 = vmatpush1.msra.mxu0 %v183
      %2791 = vmatprep.subr.mxu0 0.0
      %2792 = vmatpush1.msra.mxu0 %v184
      %2793 = vmatprep.subr.mxu0 0.0
      %2794 = vmatpush1.msra.mxu0 %v185
      %2795 = vmatprep.subr.mxu0 0.0
      %2796 = vmatpush1.msra.mxu0 %v186
      %2797 = vmatprep.subr.mxu0 0.0
      %2798 = vmatpush1.msra.mxu0 %v187
      %2799 = vmatprep.subr.mxu0 0.0
      %2800 = vmatpush1.msra.mxu0 %v188
      %2801 = vmatprep.subr.mxu0 0.0
      %2802 = vmatpush1.msra.mxu0 %v189
      %2803 = vmatprep.subr.mxu0 0.0
      %2804 = vmatpush1.msra.mxu0 %v190
      %2805 = vmatprep.subr.mxu0 0.0
      %2806 = vmatpush1.msra.mxu0 %v191
      %2807 = vmatprep.subr.mxu0 0.0
      %2808 = vmatpush1.msra.mxu0 %v192
      %2809 = vmatprep.subr.mxu0 0.0
      %2810 = vmatpush1.msra.mxu0 %v193
      %2811 = vmatprep.subr.mxu0 0.0
      %2812 = vmatpush1.msra.mxu0 %v194
      %2813 = vmatprep.subr.mxu0 0.0
      %2814 = vmatpush1.msra.mxu0 %v195
      %2815 = vmatprep.subr.mxu0 0.0
      %2816 = vmatpush1.msra.mxu0 %v196
      %2817 = vmatprep.subr.mxu0 0.0
      %2818 = vmatpush1.msra.mxu0 %v197
      %2819 = vmatprep.subr.mxu0 0.0
      %2820 = vmatpush1.msra.mxu0 0.0
      %2821 = vmatprep.subr.mxu0 0.0
      %2822 = vmatpush1.msra.mxu0 0.0
      %2823 = vmatprep.subr.mxu0 0.0
      %2824 = vmatpush1.msra.mxu0 0.0
      %2825 = vmatprep.subr.mxu0 0.0
      %2826 = vmatpush1.msra.mxu0 0.0
      %2827 = vmatprep.subr.mxu0 0.0
      %2828 = vmatpush1.msra.mxu0 0.0
      %2829 = vmatprep.mubr.f32.mxu0 %v2574
      %2830 = vmatmul.mubr.f32.gmra.mrb[0].mxu0 %v2445
      %v2831 = vpop.f32.mrb[0].mxu0
      %v2832 = vadd.f32 0.0, %v2831
      %v2833 = vpop.f32.mrb[0].mxu0
      %2834 = vmatprep.mubr.f32.mxu0 %v2577
      %2835 = vmatmul.mubr.f32.gmra.mrb[0].mxu0 %v2447
      %v2836 = vpop.f32.mrb[0].mxu0
      %v2837 = vadd.f32 0.0, %v2836
      %v2838 = vpop.f32.mrb[0].mxu0
      %2839 = vmatprep.mubr.f32.mxu0 %v2580
      %2840 = vmatmul.mubr.f32.gmra.mrb[0].mxu0 %v2449
      %v2841 = vpop.f32.mrb[0].mxu0
      %v2842 = vadd.f32 0.0, %v2841
      %v2843 = vpop.f32.mrb[0].mxu0
      %2844 = vmatprep.mubr.f32.mxu0 %v2583
      %2845 = vmatmul.mubr.f32.gmra.mrb[0].mxu0 %v2451
      %v2846 = vpop.f32.mrb[0].mxu0
      %v2847 = vadd.f32 0.0, %v2846
      %v2848 = vpop.f32.mrb[0].mxu0
      %2849 = vmatprep.mubr.f32.mxu0 %v2586
      %2850 = vmatmul.mubr.f32.gmra.mrb[0].mxu0 %v2453
      %v2851 = vpop.f32.mrb[0].mxu0
      %v2852 = vadd.f32 0.0, %v2851
      %v2853 = vpop.f32.mrb[0].mxu0
      %2854 = vmatprep.mubr.f32.mxu0 %v2589
      %2855 = vmatmul.mubr.f32.gmra.mrb[0].mxu0 %v2455
      %v2856 = vpop.f32.mrb[0].mxu0
      %v2857 = vadd.f32 0.0, %v2856
      %v2858 = vpop.f32.mrb[0].mxu0
      %2859 = vmatprep.mubr.f32.mxu0 %v2592
      %2860 = vmatmul.mubr.f32.gmra.mrb[0].mxu0 %v2457
      %v2861 = vpop.f32.mrb[0].mxu0
      %v2862 = vadd.f32 0.0, %v2861
      %v2863 = vpop.f32.mrb[0].mxu0
      %2864 = vmatprep.mubr.f32.mxu0 %v2595
      %2865 = vmatmul.mubr.f32.gmra.mrb[0].mxu0 %v2459
      %v2866 = vpop.f32.mrb[0].mxu0
      %v2867 = vadd.f32 0.0, %v2866
      %v2868 = vpop.f32.mrb[0].mxu0
      %2869 = vmatprep.mubr.f32.mxu0 %v2598
      %2870 = vmatmul.mubr.f32.gmra.mrb[0].mxu0 %v2461
      %v2871 = vpop.f32.mrb[0].mxu0
      %v2872 = vadd.f32 0.0, %v2871
      %v2873 = vpop.f32.mrb[0].mxu0
      %2874 = vmatprep.mubr.f32.mxu0 %v2601
      %2875 = vmatmul.mubr.f32.gmra.mrb[0].mxu0 %v2463
      %v2876 = vpop.f32.mrb[0].mxu0
      %v2877 = vadd.f32 0.0, %v2876
      %v2878 = vpop.f32.mrb[0].mxu0
      %2879 = vmatprep.mubr.f32.mxu0 %v2604
      %2880 = vmatmul.mubr.f32.gmra.mrb[0].mxu0 %v2465
      %v2881 = vpop.f32.mrb[0].mxu0
      %v2882 = vadd.f32 0.0, %v2881
      %v2883 = vpop.f32.mrb[0].mxu0
      %2884 = vmatprep.mubr.f32.mxu0 %v2607
      %2885 = vmatmul.mubr.f32.gmra.mrb[0].mxu0 %v2467
      %v2886 = vpop.f32.mrb[0].mxu0
      %v2887 = vadd.f32 0.0, %v2886
      %v2888 = vpop.f32.mrb[0].mxu0
      %2889 = vmatprep.mubr.f32.mxu0 %v2610
      %2890 = vmatmul.mubr.f32.gmra.mrb[0].mxu0 %v2469
      %v2891 = vpop.f32.mrb[0].mxu0
      %v2892 = vadd.f32 0.0, %v2891
      %v2893 = vpop.f32.mrb[0].mxu0
      %2894 = vmatprep.mubr.f32.mxu0 %v2613
      %2895 = vmatmul.mubr.f32.gmra.mrb[0].mxu0 %v2471
      %v2896 = vpop.f32.mrb[0].mxu0
      %v2897 = vadd.f32 0.0, %v2896
      %v2898 = vpop.f32.mrb[0].mxu0
      %2899 = vmatprep.mubr.f32.mxu0 %v2616
      %2900 = vmatmul.mubr.f32.gmra.mrb[0].mxu0 %v2473
      %v2901 = vpop.f32.mrb[0].mxu0
      %v2902 = vadd.f32 0.0, %v2901
      %v2903 = vpop.f32.mrb[0].mxu0
      %2904 = vmatprep.mubr.f32.mxu0 %v2619
      %2905 = vmatmul.mubr.f32.gmra.mrb[0].mxu0 %v2475
      %v2906 = vpop.f32.mrb[0].mxu0
      %v2907 = vadd.f32 0.0, %v2906
      %v2908 = vpop.f32.mrb[0].mxu0
      %2909 = vmatprep.mubr.f32.mxu0 %v2622
      %2910 = vmatmul.mubr.f32.gmra.mrb[0].mxu0 %v2477
      %v2911 = vpop.f32.mrb[0].mxu0
      %v2912 = vadd.f32 0.0, %v2911
      %v2913 = vpop.f32.mrb[0].mxu0
      %2914 = vmatprep.mubr.f32.mxu0 %v2625
      %2915 = vmatmul.mubr.f32.gmra.mrb[0].mxu0 %v2479
      %v2916 = vpop.f32.mrb[0].mxu0
      %v2917 = vadd.f32 0.0, %v2916
      %v2918 = vpop.f32.mrb[0].mxu0
      %2919 = vmatprep.mubr.f32.mxu0 %v2628
      %2920 = vmatmul.mubr.f32.gmra.mrb[0].mxu0 %v2481
      %v2921 = vpop.f32.mrb[0].mxu0
      %v2922 = vadd.f32 0.0, %v2921
      %v2923 = vpop.f32.mrb[0].mxu0
      %2924 = vmatprep.mubr.f32.mxu0 %v2631
      %2925 = vmatmul.mubr.f32.gmra.mrb[0].mxu0 %v2483
      %v2926 = vpop.f32.mrb[0].mxu0
      %v2927 = vadd.f32 0.0, %v2926
      %v2928 = vpop.f32.mrb[0].mxu0
      %2929 = vmatprep.mubr.f32.mxu0 %v2634
      %2930 = vmatmul.mubr.f32.gmra.mrb[0].mxu0 %v2485
      %v2931 = vpop.f32.mrb[0].mxu0
      %v2932 = vadd.f32 0.0, %v2931
      %v2933 = vpop.f32.mrb[0].mxu0
      %2934 = vmatprep.mubr.f32.mxu0 %v2637
      %2935 = vmatmul.mubr.f32.gmra.mrb[0].mxu0 %v2487
      %v2936 = vpop.f32.mrb[0].mxu0
      %v2937 = vadd.f32 0.0, %v2936
      %v2938 = vpop.f32.mrb[0].mxu0
      %2939 = vmatprep.mubr.f32.mxu0 %v2640
      %2940 = vmatmul.mubr.f32.gmra.mrb[0].mxu0 %v2489
      %v2941 = vpop.f32.mrb[0].mxu0
      %v2942 = vadd.f32 0.0, %v2941
      %v2943 = vpop.f32.mrb[0].mxu0
      %2944 = vmatprep.mubr.f32.mxu0 %v2643
      %2945 = vmatmul.mubr.f32.gmra.mrb[0].mxu0 %v2491
      %v2946 = vpop.f32.mrb[0].mxu0
      %v2947 = vadd.f32 0.0, %v2946
      %v2948 = vpop.f32.mrb[0].mxu0
      %2949 = vmatprep.mubr.f32.mxu0 %v2646
      %2950 = vmatmul.mubr.f32.gmra.mrb[0].mxu0 %v2493
      %v2951 = vpop.f32.mrb[0].mxu0
      %v2952 = vadd.f32 0.0, %v2951
      %v2953 = vpop.f32.mrb[0].mxu0
      %2954 = vmatprep.mubr.f32.mxu0 %v2649
      %2955 = vmatmul.mubr.f32.gmra.mrb[0].mxu0 %v2495
      %v2956 = vpop.f32.mrb[0].mxu0
      %v2957 = vadd.f32 0.0, %v2956
      %v2958 = vpop.f32.mrb[0].mxu0
      %2959 = vmatprep.mubr.f32.mxu0 %v2652
      %2960 = vmatmul.mubr.f32.gmra.mrb[0].mxu0 %v2497
      %v2961 = vpop.f32.mrb[0].mxu0
      %v2962 = vadd.f32 0.0, %v2961
      %v2963 = vpop.f32.mrb[0].mxu0
      %2964 = vmatprep.mubr.f32.mxu0 %v2655
      %2965 = vmatmul.mubr.f32.gmra.mrb[0].mxu0 %v2499
      %v2966 = vpop.f32.mrb[0].mxu0
      %v2967 = vadd.f32 0.0, %v2966
      %v2968 = vpop.f32.mrb[0].mxu0
      %2969 = vmatprep.mubr.f32.mxu0 %v2658
      %2970 = vmatmul.mubr.f32.gmra.mrb[0].mxu0 %v2501
      %v2971 = vpop.f32.mrb[0].mxu0
      %v2972 = vadd.f32 0.0, %v2971
      %v2973 = vpop.f32.mrb[0].mxu0
      %2974 = vmatprep.mubr.f32.mxu0 %v2661
      %2975 = vmatmul.mubr.f32.gmra.mrb[0].mxu0 %v2503
      %v2976 = vpop.f32.mrb[0].mxu0
      %v2977 = vadd.f32 0.0, %v2976
      %v2978 = vpop.f32.mrb[0].mxu0
      %2979 = vmatprep.mubr.f32.mxu0 %v2664
      %2980 = vmatmul.mubr.f32.gmra.mrb[0].mxu0 %v2505
      %v2981 = vpop.f32.mrb[0].mxu0
      %v2982 = vadd.f32 0.0, %v2981
      %v2983 = vpop.f32.mrb[0].mxu0
      %2984 = vmatprep.mubr.f32.mxu0 %v2667
      %2985 = vmatmul.mubr.f32.gmra.mrb[0].mxu0 %v2507
      %v2986 = vpop.f32.mrb[0].mxu0
      %v2987 = vadd.f32 0.0, %v2986
      %v2988 = vpop.f32.mrb[0].mxu0
      %2989 = vmatprep.mubr.f32.mxu0 %v2670
      %2990 = vmatmul.mubr.f32.gmra.mrb[0].mxu0 %v2509
      %v2991 = vpop.f32.mrb[0].mxu0
      %v2992 = vadd.f32 0.0, %v2991
      %v2993 = vpop.f32.mrb[0].mxu0
      %2994 = vmatprep.mubr.f32.mxu0 %v2673
      %2995 = vmatmul.mubr.f32.gmra.mrb[0].mxu0 %v2511
      %v2996 = vpop.f32.mrb[0].mxu0
      %v2997 = vadd.f32 0.0, %v2996
      %v2998 = vpop.f32.mrb[0].mxu0
      %2999 = vmatprep.mubr.f32.mxu0 %v2676
      %3000 = vmatmul.mubr.f32.gmra.mrb[0].mxu0 %v2513
      %v3001 = vpop.f32.mrb[0].mxu0
      %v3002 = vadd.f32 0.0, %v3001
      %v3003 = vpop.f32.mrb[0].mxu0
      %3004 = vmatprep.mubr.f32.mxu0 %v2679
      %3005 = vmatmul.mubr.f32.gmra.mrb[0].mxu0 %v2515
      %v3006 = vpop.f32.mrb[0].mxu0
      %v3007 = vadd.f32 0.0, %v3006
      %v3008 = vpop.f32.mrb[0].mxu0
      %3009 = vmatprep.mubr.f32.mxu0 %v2682
      %3010 = vmatmul.mubr.f32.gmra.mrb[0].mxu0 %v2517
      %v3011 = vpop.f32.mrb[0].mxu0
      %v3012 = vadd.f32 0.0, %v3011
      %v3013 = vpop.f32.mrb[0].mxu0
      %3014 = vmatprep.mubr.f32.mxu0 %v2685
      %3015 = vmatmul.mubr.f32.gmra.mrb[0].mxu0 %v2519
      %v3016 = vpop.f32.mrb[0].mxu0
      %v3017 = vadd.f32 0.0, %v3016
      %v3018 = vpop.f32.mrb[0].mxu0
      %3019 = vmatprep.mubr.f32.mxu0 %v2688
      %3020 = vmatmul.mubr.f32.gmra.mrb[0].mxu0 %v2521
      %v3021 = vpop.f32.mrb[0].mxu0
      %v3022 = vadd.f32 0.0, %v3021
      %v3023 = vpop.f32.mrb[0].mxu0
      %3024 = vmatprep.mubr.f32.mxu0 %v2691
      %3025 = vmatmul.mubr.f32.gmra.mrb[0].mxu0 %v2523
      %v3026 = vpop.f32.mrb[0].mxu0
      %v3027 = vadd.f32 0.0, %v3026
      %v3028 = vpop.f32.mrb[0].mxu0
      %3029 = vmatprep.mubr.f32.mxu0 %v2694
      %3030 = vmatmul.mubr.f32.gmra.mrb[0].mxu0 %v2525
      %v3031 = vpop.f32.mrb[0].mxu0
      %v3032 = vadd.f32 0.0, %v3031
      %v3033 = vpop.f32.mrb[0].mxu0
      %3034 = vmatprep.mubr.f32.mxu0 %v2697
      %3035 = vmatmul.mubr.f32.gmra.mrb[0].mxu0 %v2527
      %v3036 = vpop.f32.mrb[0].mxu0
      %v3037 = vadd.f32 0.0, %v3036
      %v3038 = vpop.f32.mrb[0].mxu0
      %3039 = vmatprep.mubr.f32.mxu0 %v2700
      %3040 = vmatmul.mubr.f32.gmra.mrb[0].mxu0 %v2529
      %v3041 = vpop.f32.mrb[0].mxu0
      %v3042 = vadd.f32 0.0, %v3041
      %v3043 = vpop.f32.mrb[0].mxu0
      %3044 = vmatprep.mubr.f32.mxu0 %v2703
      %3045 = vmatmul.mubr.f32.gmra.mrb[0].mxu0 %v2531
      %v3046 = vpop.f32.mrb[0].mxu0
      %v3047 = vadd.f32 0.0, %v3046
      %v3048 = vpop.f32.mrb[0].mxu0
      %3049 = vmatprep.mubr.f32.mxu0 %v2706
      %3050 = vmatmul.mubr.f32.gmra.mrb[0].mxu0 %v2533
      %v3051 = vpop.f32.mrb[0].mxu0
      %v3052 = vadd.f32 0.0, %v3051
      %v3053 = vpop.f32.mrb[0].mxu0
      %3054 = vmatprep.mubr.f32.mxu0 %v2709
      %3055 = vmatmul.mubr.f32.gmra.mrb[0].mxu0 %v2535
      %v3056 = vpop.f32.mrb[0].mxu0
      %v3057 = vadd.f32 0.0, %v3056
      %v3058 = vpop.f32.mrb[0].mxu0
      %3059 = vmatprep.mubr.f32.mxu0 %v2712
      %3060 = vmatmul.mubr.f32.gmra.mrb[0].mxu0 %v2537
      %v3061 = vpop.f32.mrb[0].mxu0
      %v3062 = vadd.f32 0.0, %v3061
      %v3063 = vpop.f32.mrb[0].mxu0
      %3064 = vmatprep.mubr.f32.mxu0 %v2715
      %3065 = vmatmul.mubr.f32.gmra.mrb[0].mxu0 %v2539
      %v3066 = vpop.f32.mrb[0].mxu0
      %v3067 = vadd.f32 0.0, %v3066
      %v3068 = vpop.f32.mrb[0].mxu0
      %3069 = vmatprep.mubr.f32.mxu0 %v2718
      %3070 = vmatmul.mubr.f32.gmra.mrb[0].mxu0 %v2541
      %v3071 = vpop.f32.mrb[0].mxu0
      %v3072 = vadd.f32 0.0, %v3071
      %v3073 = vpop.f32.mrb[0].mxu0
      %3074 = vmatprep.mubr.f32.mxu0 %v2721
      %3075 = vmatmul.mubr.f32.gmra.mrb[0].mxu0 %v2543
      %v3076 = vpop.f32.mrb[0].mxu0
      %v3077 = vadd.f32 0.0, %v3076
      %v3078 = vpop.f32.mrb[0].mxu0
      %3079 = vmatprep.mubr.f32.mxu0 %v2724
      %3080 = vmatmul.mubr.f32.gmra.mrb[0].mxu0 %v2545
      %v3081 = vpop.f32.mrb[0].mxu0
      %v3082 = vadd.f32 0.0, %v3081
      %v3083 = vpop.f32.mrb[0].mxu0
      %3084 = vmatprep.mubr.f32.mxu0 %v2727
      %3085 = vmatmul.mubr.f32.gmra.mrb[0].mxu0 %v2547
      %v3086 = vpop.f32.mrb[0].mxu0
      %v3087 = vadd.f32 0.0, %v3086
      %v3088 = vpop.f32.mrb[0].mxu0
      %3089 = vmatprep.mubr.f32.mxu0 %v2730
      %3090 = vmatmul.mubr.f32.gmra.mrb[0].mxu0 %v2549
      %v3091 = vpop.f32.mrb[0].mxu0
      %v3092 = vadd.f32 0.0, %v3091
      %v3093 = vpop.f32.mrb[0].mxu0
      %3094 = vmatprep.mubr.f32.mxu0 %v2733
      %3095 = vmatmul.mubr.f32.gmra.mrb[0].mxu0 %v2551
      %v3096 = vpop.f32.mrb[0].mxu0
      %v3097 = vadd.f32 0.0, %v3096
      %v3098 = vpop.f32.mrb[0].mxu0
      %3099 = vmatprep.mubr.f32.mxu0 %v2736
      %3100 = vmatmul.mubr.f32.gmra.mrb[0].mxu0 %v2553
      %v3101 = vpop.f32.mrb[0].mxu0
      %v3102 = vadd.f32 0.0, %v3101
      %v3103 = vpop.f32.mrb[0].mxu0
      %3104 = vmatprep.mubr.f32.mxu0 %v2739
      %3105 = vmatmul.mubr.f32.gmra.mrb[0].mxu0 %v2555
      %v3106 = vpop.f32.mrb[0].mxu0
      %v3107 = vadd.f32 0.0, %v3106
      %v3108 = vpop.f32.mrb[0].mxu0
      %3109 = vmatprep.mubr.f32.mxu0 %v2742
      %3110 = vmatmul.mubr.f32.gmra.mrb[0].mxu0 %v2557
      %v3111 = vpop.f32.mrb[0].mxu0
      %v3112 = vadd.f32 0.0, %v3111
      %v3113 = vpop.f32.mrb[0].mxu0
      %3114 = vmatprep.mubr.f32.mxu0 %v2745
      %3115 = vmatmul.mubr.f32.gmra.mrb[0].mxu0 %v2559
      %v3116 = vpop.f32.mrb[0].mxu0
      %v3117 = vadd.f32 0.0, %v3116
      %v3118 = vpop.f32.mrb[0].mxu0
      %3119 = vmatprep.mubr.f32.mxu0 %v2748
      %3120 = vmatmul.mubr.f32.gmra.mrb[0].mxu0 %v2561
      %v3121 = vpop.f32.mrb[0].mxu0
      %v3122 = vadd.f32 0.0, %v3121
      %v3123 = vpop.f32.mrb[0].mxu0
      %3124 = vmatprep.mubr.f32.mxu0 %v2751
      %3125 = vmatmul.mubr.f32.gmra.mrb[0].mxu0 %v2563
      %v3126 = vpop.f32.mrb[0].mxu0
      %v3127 = vadd.f32 0.0, %v3126
      %v3128 = vpop.f32.mrb[0].mxu0
      %3129 = vmatprep.mubr.f32.mxu0 %v2754
      %3130 = vmatmul.mubr.f32.gmra.mrb[0].mxu0 %v2565
      %v3131 = vpop.f32.mrb[0].mxu0
      %v3132 = vadd.f32 0.0, %v3131
      %v3133 = vpop.f32.mrb[0].mxu0
      %3134 = vmatprep.mubr.f32.mxu0 %v2757
      %3135 = vmatmul.mubr.f32.gmra.mrb[0].mxu0 %v2567
      %v3136 = vpop.f32.mrb[0].mxu0
      %v3137 = vadd.f32 0.0, %v3136
      %v3138 = vpop.f32.mrb[0].mxu0
      %3139 = vmatprep.mubr.f32.mxu0 %v2760
      %3140 = vmatmul.mubr.f32.gmra.mrb[0].mxu0 %v2569
      %v3141 = vpop.f32.mrb[0].mxu0
      %v3142 = vadd.f32 0.0, %v3141
      %v3143 = vpop.f32.mrb[0].mxu0
      %3144 = vmatprep.mubr.f32.mxu0 %v2763
      %3145 = vmatmul.mubr.f32.gmra.mrb[0].mxu0 %v2571
      %v3146 = vpop.f32.mrb[0].mxu0
      %v3147 = vadd.f32 0.0, %v3146
      %v3148 = vpop.f32.mrb[0].mxu0
      %3149 = vdwg.mxu0
      %v3150 = vmax.f32 %v2380, %v2832
      %v3151 = vmax.f32 %v2381, %v2837
      %v3152 = vmax.f32 %v2382, %v2842
      %v3153 = vmax.f32 %v2383, %v2847
      %v3154 = vmax.f32 %v2384, %v2852
      %v3155 = vmax.f32 %v2385, %v2857
      %v3156 = vmax.f32 %v2386, %v2862
      %v3157 = vmax.f32 %v2387, %v2867
      %v3158 = vmax.f32 %v2388, %v2872
      %v3159 = vmax.f32 %v2389, %v2877
      %v3160 = vmax.f32 %v2390, %v2882
      %v3161 = vmax.f32 %v2391, %v2887
      %v3162 = vmax.f32 %v2392, %v2892
      %v3163 = vmax.f32 %v2393, %v2897
      %v3164 = vmax.f32 %v2394, %v2902
      %v3165 = vmax.f32 %v2395, %v2907
      %v3166 = vmax.f32 %v2396, %v2912
      %v3167 = vmax.f32 %v2397, %v2917
      %v3168 = vmax.f32 %v2398, %v2922
      %v3169 = vmax.f32 %v2399, %v2927
      %v3170 = vmax.f32 %v2400, %v2932
      %v3171 = vmax.f32 %v2401, %v2937
      %v3172 = vmax.f32 %v2402, %v2942
      %v3173 = vmax.f32 %v2403, %v2947
      %v3174 = vmax.f32 %v2404, %v2952
      %v3175 = vmax.f32 %v2405, %v2957
      %v3176 = vmax.f32 %v2406, %v2962
      %v3177 = vmax.f32 %v2407, %v2967
      %v3178 = vmax.f32 %v2408, %v2972
      %v3179 = vmax.f32 %v2409, %v2977
      %v3180 = vmax.f32 %v2410, %v2982
      %v3181 = vmax.f32 %v2411, %v2987
      %v3182 = vmax.f32 %v2412, %v2992
      %v3183 = vmax.f32 %v2413, %v2997
      %v3184 = vmax.f32 %v2414, %v3002
      %v3185 = vmax.f32 %v2415, %v3007
      %v3186 = vmax.f32 %v2416, %v3012
      %v3187 = vmax.f32 %v2417, %v3017
      %v3188 = vmax.f32 %v2418, %v3022
      %v3189 = vmax.f32 %v2419, %v3027
      %v3190 = vmax.f32 %v2420, %v3032
      %v3191 = vmax.f32 %v2421, %v3037
      %v3192 = vmax.f32 %v2422, %v3042
      %v3193 = vmax.f32 %v2423, %v3047
      %v3194 = vmax.f32 %v2424, %v3052
      %v3195 = vmax.f32 %v2425, %v3057
      %v3196 = vmax.f32 %v2426, %v3062
      %v3197 = vmax.f32 %v2427, %v3067
      %v3198 = vmax.f32 %v2428, %v3072
      %v3199 = vmax.f32 %v2429, %v3077
      %v3200 = vmax.f32 %v2430, %v3082
      %v3201 = vmax.f32 %v2431, %v3087
      %v3202 = vmax.f32 %v2432, %v3092
      %v3203 = vmax.f32 %v2433, %v3097
      %v3204 = vmax.f32 %v2434, %v3102
      %v3205 = vmax.f32 %v2435, %v3107
      %v3206 = vmax.f32 %v2436, %v3112
      %v3207 = vmax.f32 %v2437, %v3117
      %v3208 = vmax.f32 %v2438, %v3122
      %v3209 = vmax.f32 %v2439, %v3127
      %v3210 = vmax.f32 %v2440, %v3132
      %v3211 = vmax.f32 %v2441, %v3137
      %v3212 = vmax.f32 %v2442, %v3142
      %v3213 = vmax.f32 %v2443, %v3147
      %v3214 = vld [vmem:[%s2] sm:$0x1]
      %v3216 = vlaneseq
      %v3217 = vshrl.u32 %v3216, 7
      %v3218 = vsub.s32 0, %v3217
      %v3219 = vrot.slane %v3214, %v3218
      %v3221 = vadd.f32 %v3150, %v3219
      %v3222 = vadd.f32 %v3151, %v3219
      %v3223 = vadd.f32 %v3152, %v3219
      %v3224 = vadd.f32 %v3153, %v3219
      %v3225 = vadd.f32 %v3154, %v3219
      %v3226 = vadd.f32 %v3155, %v3219
      %v3227 = vadd.f32 %v3156, %v3219
      %v3228 = vadd.f32 %v3157, %v3219
      %v3229 = vadd.f32 %v3158, %v3219
      %v3230 = vadd.f32 %v3159, %v3219
      %v3231 = vadd.f32 %v3160, %v3219
      %v3232 = vadd.f32 %v3161, %v3219
      %v3233 = vadd.f32 %v3162, %v3219
      %v3234 = vadd.f32 %v3163, %v3219
      %v3235 = vadd.f32 %v3164, %v3219
      %v3236 = vadd.f32 %v3165, %v3219
      %v3237 = vadd.f32 %v3166, %v3219
      %v3238 = vadd.f32 %v3167, %v3219
      %v3239 = vadd.f32 %v3168, %v3219
      %v3240 = vadd.f32 %v3169, %v3219
      %v3241 = vadd.f32 %v3170, %v3219
      %v3242 = vadd.f32 %v3171, %v3219
      %v3243 = vadd.f32 %v3172, %v3219
      %v3244 = vadd.f32 %v3173, %v3219
      %v3245 = vadd.f32 %v3174, %v3219
      %v3246 = vadd.f32 %v3175, %v3219
      %v3247 = vadd.f32 %v3176, %v3219
      %v3248 = vadd.f32 %v3177, %v3219
      %v3249 = vadd.f32 %v3178, %v3219
      %v3250 = vadd.f32 %v3179, %v3219
      %v3251 = vadd.f32 %v3180, %v3219
      %v3252 = vadd.f32 %v3181, %v3219
      %v3253 = vadd.f32 %v3182, %v3219
      %v3254 = vadd.f32 %v3183, %v3219
      %v3255 = vadd.f32 %v3184, %v3219
      %v3256 = vadd.f32 %v3185, %v3219
      %v3257 = vadd.f32 %v3186, %v3219
      %v3258 = vadd.f32 %v3187, %v3219
      %v3259 = vadd.f32 %v3188, %v3219
      %v3260 = vadd.f32 %v3189, %v3219
      %v3261 = vadd.f32 %v3190, %v3219
      %v3262 = vadd.f32 %v3191, %v3219
      %v3263 = vadd.f32 %v3192, %v3219
      %v3264 = vadd.f32 %v3193, %v3219
      %v3265 = vadd.f32 %v3194, %v3219
      %v3266 = vadd.f32 %v3195, %v3219
      %v3267 = vadd.f32 %v3196, %v3219
      %v3268 = vadd.f32 %v3197, %v3219
      %v3269 = vadd.f32 %v3198, %v3219
      %v3270 = vadd.f32 %v3199, %v3219
      %v3271 = vadd.f32 %v3200, %v3219
      %v3272 = vadd.f32 %v3201, %v3219
      %v3273 = vadd.f32 %v3202, %v3219
      %v3274 = vadd.f32 %v3203, %v3219
      %v3275 = vadd.f32 %v3204, %v3219
      %v3276 = vadd.f32 %v3205, %v3219
      %v3277 = vadd.f32 %v3206, %v3219
      %v3278 = vadd.f32 %v3207, %v3219
      %v3279 = vadd.f32 %v3208, %v3219
      %v3280 = vadd.f32 %v3209, %v3219
      %v3281 = vadd.f32 %v3210, %v3219
      %v3282 = vadd.f32 %v3211, %v3219
      %v3283 = vadd.f32 %v3212, %v3219
      %v3284 = vadd.f32 %v3213, %v3219
      %v3285 = vmax.f32 %v3221, 0.0
      %v3286 = vmax.f32 %v3222, 0.0
      %v3287 = vmax.f32 %v3223, 0.0
      %v3288 = vmax.f32 %v3224, 0.0
      %v3289 = vmax.f32 %v3225, 0.0
      %v3290 = vmax.f32 %v3226, 0.0
      %v3291 = vmax.f32 %v3227, 0.0
      %v3292 = vmax.f32 %v3228, 0.0
      %v3293 = vmax.f32 %v3229, 0.0
      %v3294 = vmax.f32 %v3230, 0.0
      %v3295 = vmax.f32 %v3231, 0.0
      %v3296 = vmax.f32 %v3232, 0.0
      %v3297 = vmax.f32 %v3233, 0.0
      %v3298 = vmax.f32 %v3234, 0.0
      %v3299 = vmax.f32 %v3235, 0.0
      %v3300 = vmax.f32 %v3236, 0.0
      %v3301 = vmax.f32 %v3237, 0.0
      %v3302 = vmax.f32 %v3238, 0.0
      %v3303 = vmax.f32 %v3239, 0.0
      %v3304 = vmax.f32 %v3240, 0.0
      %v3305 = vmax.f32 %v3241, 0.0
      %v3306 = vmax.f32 %v3242, 0.0
      %v3307 = vmax.f32 %v3243, 0.0
      %v3308 = vmax.f32 %v3244, 0.0
      %v3309 = vmax.f32 %v3245, 0.0
      %v3310 = vmax.f32 %v3246, 0.0
      %v3311 = vmax.f32 %v3247, 0.0
      %v3312 = vmax.f32 %v3248, 0.0
      %v3313 = vmax.f32 %v3249, 0.0
      %v3314 = vmax.f32 %v3250, 0.0
      %v3315 = vmax.f32 %v3251, 0.0
      %v3316 = vmax.f32 %v3252, 0.0
      %v3317 = vmax.f32 %v3253, 0.0
      %v3318 = vmax.f32 %v3254, 0.0
      %v3319 = vmax.f32 %v3255, 0.0
      %v3320 = vmax.f32 %v3256, 0.0
      %v3321 = vmax.f32 %v3257, 0.0
      %v3322 = vmax.f32 %v3258, 0.0
      %v3323 = vmax.f32 %v3259, 0.0
      %v3324 = vmax.f32 %v3260, 0.0
      %v3325 = vmax.f32 %v3261, 0.0
      %v3326 = vmax.f32 %v3262, 0.0
      %v3327 = vmax.f32 %v3263, 0.0
      %v3328 = vmax.f32 %v3264, 0.0
      %v3329 = vmax.f32 %v3265, 0.0
      %v3330 = vmax.f32 %v3266, 0.0
      %v3331 = vmax.f32 %v3267, 0.0
      %v3332 = vmax.f32 %v3268, 0.0
      %v3333 = vmax.f32 %v3269, 0.0
      %v3334 = vmax.f32 %v3270, 0.0
      %v3335 = vmax.f32 %v3271, 0.0
      %v3336 = vmax.f32 %v3272, 0.0
      %v3337 = vmax.f32 %v3273, 0.0
      %v3338 = vmax.f32 %v3274, 0.0
      %v3339 = vmax.f32 %v3275, 0.0
      %v3340 = vmax.f32 %v3276, 0.0
      %v3341 = vmax.f32 %v3277, 0.0
      %v3342 = vmax.f32 %v3278, 0.0
      %v3343 = vmax.f32 %v3279, 0.0
      %v3344 = vmax.f32 %v3280, 0.0
      %v3345 = vmax.f32 %v3281, 0.0
      %v3346 = vmax.f32 %v3282, 0.0
      %v3347 = vmax.f32 %v3283, 0.0
      %v3348 = vmax.f32 %v3284, 0.0
      %3349 = vst [vmem:[%s170] sm:$0xff] %v3285
      %3350 = vst [vmem:[%s170 + $0x8] sm:$0xff] %v3286
      %3351 = vst [vmem:[%s170 + $0x10] sm:$0xff] %v3287
      %3352 = vst [vmem:[%s170 + $0x18] sm:$0xff] %v3288
      %3353 = vst [vmem:[%s170 + $0x20] sm:$0xff] %v3289
      %3354 = vst [vmem:[%s170 + $0x28] sm:$0xff] %v3290
      %3355 = vst [vmem:[%s170 + $0x30] sm:$0xff] %v3291
      %3356 = vst [vmem:[%s170 + $0x38] sm:$0xff] %v3292
      %3357 = vst [vmem:[%s170 + $0x40] sm:$0xff] %v3293
      %3358 = vst [vmem:[%s170 + $0x48] sm:$0xff] %v3294
      %3359 = vst [vmem:[%s170 + $0x50] sm:$0xff] %v3295
      %3360 = vst [vmem:[%s170 + $0x58] sm:$0xff] %v3296
      %3361 = vst [vmem:[%s170 + $0x60] sm:$0xff] %v3297
      %3362 = vst [vmem:[%s170 + $0x68] sm:$0xff] %v3298
      %3363 = vst [vmem:[%s170 + $0x70] sm:$0xff] %v3299
      %3364 = vst [vmem:[%s170 + $0x78] sm:$0xff] %v3300
      %3365 = vst [vmem:[%s170 + $0x80] sm:$0xff] %v3301
      %3366 = vst [vmem:[%s170 + $0x88] sm:$0xff] %v3302
      %3367 = vst [vmem:[%s170 + $0x90] sm:$0xff] %v3303
      %3368 = vst [vmem:[%s170 + $0x98] sm:$0xff] %v3304
      %3369 = vst [vmem:[%s170 + $0xa0] sm:$0xff] %v3305
      %3370 = vst [vmem:[%s170 + $0xa8] sm:$0xff] %v3306
      %3371 = vst [vmem:[%s170 + $0xb0] sm:$0xff] %v3307
      %3372 = vst [vmem:[%s170 + $0xb8] sm:$0xff] %v3308
      %3373 = vst [vmem:[%s170 + $0xc0] sm:$0xff] %v3309
      %3374 = vst [vmem:[%s170 + $0xc8] sm:$0xff] %v3310
      %3375 = vst [vmem:[%s170 + $0xd0] sm:$0xff] %v3311
      %3376 = vst [vmem:[%s170 + $0xd8] sm:$0xff] %v3312
      %3377 = vst [vmem:[%s170 + $0xe0] sm:$0xff] %v3313
      %3378 = vst [vmem:[%s170 + $0xe8] sm:$0xff] %v3314
      %3379 = vst [vmem:[%s170 + $0xf0] sm:$0xff] %v3315
      %3380 = vst [vmem:[%s170 + $0xf8] sm:$0xff] %v3316
      %3381 = vst [vmem:[%s170 + $0x100] sm:$0xff] %v3317
      %3382 = vst [vmem:[%s170 + $0x108] sm:$0xff] %v3318
      %3383 = vst [vmem:[%s170 + $0x110] sm:$0xff] %v3319
      %3384 = vst [vmem:[%s170 + $0x118] sm:$0xff] %v3320
      %3385 = vst [vmem:[%s170 + $0x120] sm:$0xff] %v3321
      %3386 = vst [vmem:[%s170 + $0x128] sm:$0xff] %v3322
      %3387 = vst [vmem:[%s170 + $0x130] sm:$0xff] %v3323
      %3388 = vst [vmem:[%s170 + $0x138] sm:$0xff] %v3324
      %3389 = vst [vmem:[%s170 + $0x140] sm:$0xff] %v3325
      %3390 = vst [vmem:[%s170 + $0x148] sm:$0xff] %v3326
      %3391 = vst [vmem:[%s170 + $0x150] sm:$0xff] %v3327
      %3392 = vst [vmem:[%s170 + $0x158] sm:$0xff] %v3328
      %3393 = vst [vmem:[%s170 + $0x160] sm:$0xff] %v3329
      %3394 = vst [vmem:[%s170 + $0x168] sm:$0xff] %v3330
      %3395 = vst [vmem:[%s170 + $0x170] sm:$0xff] %v3331
      %3396 = vst [vmem:[%s170 + $0x178] sm:$0xff] %v3332
      %3397 = vst [vmem:[%s170 + $0x180] sm:$0xff] %v3333
      %3398 = vst [vmem:[%s170 + $0x188] sm:$0xff] %v3334
      %3399 = vst [vmem:[%s170 + $0x190] sm:$0xff] %v3335
      %3400 = vst [vmem:[%s170 + $0x198] sm:$0xff] %v3336
      %3401 = vst [vmem:[%s170 + $0x1a0] sm:$0xff] %v3337
      %3402 = vst [vmem:[%s170 + $0x1a8] sm:$0xff] %v3338
      %3403 = vst [vmem:[%s170 + $0x1b0] sm:$0xff] %v3339
      %3404 = vst [vmem:[%s170 + $0x1b8] sm:$0xff] %v3340
      %3405 = vst [vmem:[%s170 + $0x1c0] sm:$0xff] %v3341
      %3406 = vst [vmem:[%s170 + $0x1c8] sm:$0xff] %v3342
      %3407 = vst [vmem:[%s170 + $0x1d0] sm:$0xff] %v3343
      %3408 = vst [vmem:[%s170 + $0x1d8] sm:$0xff] %v3344
      %3409 = vst [vmem:[%s170 + $0x1e0] sm:$0xff] %v3345
      %3410 = vst [vmem:[%s170 + $0x1e8] sm:$0xff] %v3346
      %3411 = vst [vmem:[%s170 + $0x1f0] sm:$0xff] %v3347
      %3412 = vst [vmem:[%s170 + $0x1f8] sm:$0xff] %v3348
      %p3413 = scmp.lt.s32.totalorder %s14, 1
      %s3414 = scalar_select %p3413, %s14, 1
      %s3415 = smul.addr %s3414, 64
      %s3416 = smul.addr %s3415, 8
      %s3417 = scalar_lea.vmem %s3, %s3416
      // Predicated region
      $region33: #{_lambda_.3} parent=31 // pred_check
        %p3418 = pneg %p100
      $region34: #{_lambda_.3} parent=31 // pred_check_branch
        %3420 = sbr.rel (%p3418) target = $region36
      $region35: #{_lambda_.3} parent=31 // pred_region
        _
      $region36: #{_lambda_.3} parent=31 // pred_fallthru
        _
    $region32: #{_lambda_.3} parent=5 // pred_fallthru
      _
    %p3421 = scmp.le.s32.totalorder 2, %s9
    // Predicated region
    $region37: #{_lambda_.3} parent=5 // pred_check
      %p3422 = pneg %p3421
    $region38: #{_lambda_.3} parent=5 // pred_check_branch
      %3424 = sbr.rel (%p3422) target = $region40
    $region39: #{_lambda_.3} parent=5 // pred_region
      %s3425 = ssub.s32 %s9, 2
      // Predicated region
      $region41: #{_lambda_.3} parent=39 // pred_check
        %p3426 = pneg %p106
      $region42: #{_lambda_.3} parent=39 // pred_check_branch
        %3428 = sbr.rel (%p3426) target = $region44
      $region43: #{_lambda_.3} parent=39 // pred_region
        %p3429 = scmp.lt.s32.totalorder %s15, 1
        %s3430 = scalar_select %p3429, %s15, 1
        %s3431 = smul.addr %s3430, 64
        %s3432 = smul.addr %s3431, 8
        %s3433 = scalar_lea.vmem %s3, %s3432
      $region44: #{_lambda_.3} parent=39 // pred_fallthru
        _
    $region40: #{_lambda_.3} parent=5 // pred_fallthru
      _
  $region6: #{_lambda_.3} parent=0 // loop_footer
    %s13 = sadd.s32 1, %s9
  $region7: #{_lambda_.3} parent=0 // loop_footer_branch
    %8 = sbr.rel target = $region3
  $region8: #{_lambda_.3} parent=0 // loop_exit
    _

// kernel: _lambda_.4
$region0: #{_lambda_.4}
  #allocation0 [shape = 'u32[]', space=smem, size = 0x4, offset = 0x4, fixed_abs, tag = 'smem constant byte address 0x4 - core index']
  #allocation1 [shape = 'u32[144,128]{1,0:T(1,128)}', space=vmem, size = 0x12000, scoped, tag = 'internal scratch']
  %s0 = inlined_call_operand.vmem [shape: f32[2,4,256,576], index: 0, kind: input, shape index: {}]
  %s1 = inlined_call_operand.vmem [shape: f32[576,128], index: 1, kind: input, shape index: {}]
  %s2 = inlined_call_operand.vmem [shape: f32[1,128], index: 2, kind: input, shape index: {}]
  %s3 = inlined_call_operand.vmem [shape: f32[2,256,128], index: 3, kind: output, shape index: {}]
  %s4 = sld [smem:[#allocation0]]
  $region45: #{_lambda_.4} parent=0
    _
  %s6 = ssub.s32 1, %s4
  %s7 = scalar_select 0, %s6, %s4
  loop: start=0, step=1, limit=4
  $region2: #{_lambda_.4} parent=0 // loop_pre_header
    _
  $region3: #{_lambda_.4} parent=0 // loop_header
    %s9 = sphi 0, %s13
    %p10 = scmp.ge.s32.totalorder %s9, 4
    %s19 = sphi 0, %s21
    %s22 = sphi 0, %s19
    %s23 = sphi 0, %s22
    %s39 = sphi 0, %s23
    %s43 = sphi 0, %s43
    %s45 = sphi 0, %s43
    %s46 = sphi 0, %s45
    %s60 = sphi 0, %s46
    %s64 = sphi 0, %s64
    %s66 = sphi 0, %s64
    %s67 = sphi 0, %s66
    %s81 = sphi 0, %s67
    %s87 = sphi 0, %s89
    %s90 = sphi 0, %s87
    %s91 = sphi 0, %s90
    %s107 = sphi 0, %s91
  $region4: #{_lambda_.4} parent=0 // loop_header_branch
    %12 = sbr.rel (%p10) target = $region8
  $region5: #{_lambda_.4} parent=0 // loop_body
    %s14 = ssub.s32 %s9, 1
    %s15 = ssub.s32 %s9, 2
    %s16 = sadd.s32 %s9, 1
    %s17 = ssub.s32 %s9, %s16
    %p18 = scmp.eq.s32.totalorder %s17, 0
    %s20 = sadd.s32 %s19, 1
    %s21 = scalar_select %p18, %s19, %s20
    %p24 = pneg %p18
    %p25 = scmp.eq.s32.totalorder %s9, 1
    %p26 = por %p24, %p25
    %p27 = scmp.ne.s32.totalorder %s19, %s22
    %p28 = scmp.eq.s32.totalorder %s9, 0
    %p29 = por %p27, %p28
    %p30 = scmp.ne.s32.totalorder %s19, %s22
    %p31 = scmp.eq.s32.totalorder %s14, 1
    %p32 = por %p30, %p31
    %p33 = scmp.ne.s32.totalorder %s22, %s23
    %p34 = scmp.eq.s32.totalorder %s14, 0
    %p35 = por %p33, %p34
    %p36 = scmp.ne.s32.totalorder %s22, %s23
    %p37 = scmp.eq.s32.totalorder %s15, 1
    %p38 = por %p36, %p37
    %p40 = scmp.ne.s32.totalorder %s23, %s39
    %p41 = scmp.eq.s32.totalorder %s15, 0
    %p42 = por %p40, %p41
    %s44 = sadd.s32 %s43, 1
    %p47 = scmp.eq.s32.totalorder %s9, 1
    %p48 = scmp.ne.s32.totalorder %s43, %s45
    %p49 = scmp.eq.s32.totalorder %s9, 0
    %p50 = por %p48, %p49
    %p51 = scmp.ne.s32.totalorder %s43, %s45
    %p52 = scmp.eq.s32.totalorder %s14, 1
    %p53 = por %p51, %p52
    %p54 = scmp.ne.s32.totalorder %s45, %s46
    %p55 = scmp.eq.s32.totalorder %s14, 0
    %p56 = por %p54, %p55
    %p57 = scmp.ne.s32.totalorder %s45, %s46
    %p58 = scmp.eq.s32.totalorder %s15, 1
    %p59 = por %p57, %p58
    %p61 = scmp.ne.s32.totalorder %s46, %s60
    %p62 = scmp.eq.s32.totalorder %s15, 0
    %p63 = por %p61, %p62
    %s65 = sadd.s32 %s64, 1
    %p68 = scmp.eq.s32.totalorder %s9, 1
    %p69 = scmp.ne.s32.totalorder %s64, %s66
    %p70 = scmp.eq.s32.totalorder %s9, 0
    %p71 = por %p69, %p70
    %p72 = scmp.ne.s32.totalorder %s64, %s66
    %p73 = scmp.eq.s32.totalorder %s14, 1
    %p74 = por %p72, %p73
    %p75 = scmp.ne.s32.totalorder %s66, %s67
    %p76 = scmp.eq.s32.totalorder %s14, 0
    %p77 = por %p75, %p76
    %p78 = scmp.ne.s32.totalorder %s66, %s67
    %p79 = scmp.eq.s32.totalorder %s15, 1
    %p80 = por %p78, %p79
    %p82 = scmp.ne.s32.totalorder %s67, %s81
    %p83 = scmp.eq.s32.totalorder %s15, 0
    %p84 = por %p82, %p83
    %s85 = ssub.s32 %s9, %s16
    %p86 = scmp.eq.s32.totalorder %s85, 0
    %s88 = sadd.s32 %s87, 1
    %s89 = scalar_select %p86, %s87, %s88
    %p92 = pneg %p86
    %p93 = scmp.eq.s32.totalorder %s9, 1
    %p94 = por %p92, %p93
    %p95 = scmp.ne.s32.totalorder %s87, %s90
    %p96 = scmp.eq.s32.totalorder %s9, 0
    %p97 = por %p95, %p96
    %p98 = scmp.ne.s32.totalorder %s87, %s90
    %p99 = scmp.eq.s32.totalorder %s14, 1
    %p100 = por %p98, %p99
    %p101 = scmp.ne.s32.totalorder %s90, %s91
    %p102 = scmp.eq.s32.totalorder %s14, 0
    %p103 = por %p101, %p102
    %p104 = scmp.ne.s32.totalorder %s90, %s91
    %p105 = scmp.eq.s32.totalorder %s15, 1
    %p106 = por %p104, %p105
    %p108 = scmp.ne.s32.totalorder %s91, %s107
    %p109 = scmp.eq.s32.totalorder %s15, 0
    %p110 = por %p108, %p109
    %p111 = scmp.le.s32.totalorder 1, %s9
    %p112 = scmp.lt.s32.totalorder %s9, 3
    %p113 = pnand %p111, %p112
    %p114 = pneg %p113
    // Predicated region
    $region9: #{_lambda_.4} parent=5 // pred_check
      _
    $region10: #{_lambda_.4} parent=5 // pred_check_branch
      %116 = sbr.rel (%p113) target = $region12
    $region11: #{_lambda_.4} parent=5 // pred_region
      %s117 = ssub.s32 %s9, 1
      // Predicated region
      $region13: #{_lambda_.4} parent=11 // pred_check
        %p118 = pneg %p56
      $region14: #{_lambda_.4} parent=11 // pred_check_branch
        %120 = sbr.rel (%p118) target = $region16
      $region15: #{_lambda_.4} parent=11 // pred_region
        _
      $region16: #{_lambda_.4} parent=11 // pred_fallthru
        _
      // Predicated region
      $region17: #{_lambda_.4} parent=11 // pred_check
        %p121 = pneg %p77
      $region18: #{_lambda_.4} parent=11 // pred_check_branch
        %123 = sbr.rel (%p121) target = $region20
      $region19: #{_lambda_.4} parent=11 // pred_region
        _
      $region20: #{_lambda_.4} parent=11 // pred_fallthru
        _
    $region12: #{_lambda_.4} parent=5 // pred_fallthru
      _
    %p124 = scmp.lt.s32.totalorder %s9, 2
    // Predicated region
    $region21: #{_lambda_.4} parent=5 // pred_check
      %p125 = pneg %p124
    $region22: #{_lambda_.4} parent=5 // pred_check_branch
      %127 = sbr.rel (%p125) target = $region24
    $region23: #{_lambda_.4} parent=5 // pred_region
      // Predicated region
      $region25: #{_lambda_.4} parent=23 // pred_check
        %p128 = pneg %p29
      $region26: #{_lambda_.4} parent=23 // pred_check_branch
        %130 = sbr.rel (%p128) target = $region28
      $region27: #{_lambda_.4} parent=23 // pred_region
        %p131 = scmp.lt.s32.totalorder %s9, 1
        %s132 = scalar_select %p131, %s9, 1
        %s133 = smul.addr %s132, 640
        %s134 = smul.addr %s133, 8
        %s135 = scalar_lea.vmem %s0, %s134
      $region28: #{_lambda_.4} parent=23 // pred_fallthru
        _
    $region24: #{_lambda_.4} parent=5 // pred_fallthru
      _
    %p136 = scmp.le.s32.totalorder 1, %s9
    %p137 = scmp.lt.s32.totalorder %s9, 3
    %p138 = pnand %p136, %p137
    %p139 = pneg %p138
    // Predicated region
    $region29: #{_lambda_.4} parent=5 // pred_check
      _
    $region30: #{_lambda_.4} parent=5 // pred_check_branch
      %141 = sbr.rel (%p138) target = $region32
    $region31: #{_lambda_.4} parent=5 // pred_region
      %s142 = ssub.s32 %s9, 1
      %p143 = scmp.lt.s32.totalorder %s14, 1
      %s144 = scalar_select %p143, %s14, 1
      %s145 = smul.addr %s144, 640
      %s146 = smul.addr %s145, 8
      %s147 = scalar_lea.vmem %s0, %s146
      %p148 = pneg %p35
      %p149 = pneg %p32
      %p150 = pneg %p56
      %p151 = pneg %p53
      %p152 = pneg %p77
      %p153 = pneg %p74
      %p154 = pneg %p103
      %p155 = pneg %p100
      %p156 = scmp.lt.s32.totalorder %s14, 1
      %s157 = scalar_select %p156, %s14, 1
      %s158 = smul.addr %s157, 32
      %s159 = smul.addr %s158, 8
      %s160 = scalar_lea.vmem %s3, %s159
      %p161 = scmp.lt.s32.totalorder %s14, 1
      %s162 = scalar_select %p161, %s14, 1
      %s163 = smul.addr %s162, 640
      %s164 = smul.addr %s163, 8
      %s165 = scalar_lea.vmem %s0, %s164
      %p166 = scmp.lt.s32.totalorder %s14, 1
      %s167 = scalar_select %p166, %s14, 1
      %s168 = smul.addr %s167, 32
      %s169 = smul.addr %s168, 8
      %s170 = scalar_lea.vmem %s3, %s169
      %v171 = vld [vmem:[%s1] sm:$0xff]
      %v172 = vld [vmem:[%s1 + $0x8] sm:$0xff]
      %v173 = vld [vmem:[%s1 + $0x10] sm:$0xff]
      %v174 = vld [vmem:[%s1 + $0x18] sm:$0xff]
      %v175 = vld [vmem:[%s1 + $0x20] sm:$0xff]
      %v176 = vld [vmem:[%s1 + $0x28] sm:$0xff]
      %v177 = vld [vmem:[%s1 + $0x30] sm:$0xff]
      %v178 = vld [vmem:[%s1 + $0x38] sm:$0xff]
      %v179 = vld [vmem:[%s1 + $0x40] sm:$0xff]
      %v180 = vld [vmem:[%s1 + $0x48] sm:$0xff]
      %v181 = vld [vmem:[%s1 + $0x50] sm:$0xff]
      %v182 = vld [vmem:[%s1 + $0x58] sm:$0xff]
      %v183 = vld [vmem:[%s1 + $0x60] sm:$0xff]
      %v184 = vld [vmem:[%s1 + $0x68] sm:$0xff]
      %v185 = vld [vmem:[%s1 + $0x70] sm:$0xff]
      %v186 = vld [vmem:[%s1 + $0x78] sm:$0xff]
      %v187 = vld [vmem:[%s1 + $0x80] sm:$0xff]
      %v188 = vld [vmem:[%s1 + $0x88] sm:$0xff]
      %v189 = vld [vmem:[%s1 + $0x90] sm:$0xff]
      %v190 = vld [vmem:[%s1 + $0x98] sm:$0xff]
      %v191 = vld [vmem:[%s1 + $0xa0] sm:$0xff]
      %v192 = vld [vmem:[%s1 + $0xa8] sm:$0xff]
      %v193 = vld [vmem:[%s1 + $0xb0] sm:$0xff]
      %v194 = vld [vmem:[%s1 + $0xb8] sm:$0xff]
      %v195 = vld [vmem:[%s1 + $0xc0] sm:$0xff]
      %v196 = vld [vmem:[%s1 + $0xc8] sm:$0xff]
      %v197 = vld [vmem:[%s1 + $0xd0] sm:$0xff]
      %v198 = vld [vmem:[%s1 + $0xd8] sm:$0xff]
      %v199 = vld [vmem:[%s1 + $0xe0] sm:$0xff]
      %v200 = vld [vmem:[%s1 + $0xe8] sm:$0xff]
      %v201 = vld [vmem:[%s1 + $0xf0] sm:$0xff]
      %v202 = vld [vmem:[%s1 + $0xf8] sm:$0xff]
      %v203 = vld [vmem:[%s1 + $0x100] sm:$0xff]
      %v204 = vld [vmem:[%s1 + $0x108] sm:$0xff]
      %v205 = vld [vmem:[%s1 + $0x110] sm:$0xff]
      %v206 = vld [vmem:[%s1 + $0x118] sm:$0xff]
      %v207 = vld [vmem:[%s1 + $0x120] sm:$0xff]
      %v208 = vld [vmem:[%s1 + $0x128] sm:$0xff]
      %v209 = vld [vmem:[%s1 + $0x130] sm:$0xff]
      %v210 = vld [vmem:[%s1 + $0x138] sm:$0xff]
      %v211 = vld [vmem:[%s1 + $0x140] sm:$0xff]
      %v212 = vld [vmem:[%s1 + $0x148] sm:$0xff]
      %v213 = vld [vmem:[%s1 + $0x150] sm:$0xff]
      %v214 = vld [vmem:[%s1 + $0x158] sm:$0xff]
      %v215 = vld [vmem:[%s1 + $0x160] sm:$0xff]
      %v216 = vld [vmem:[%s1 + $0x168] sm:$0xff]
      %v217 = vld [vmem:[%s1 + $0x170] sm:$0xff]
      %v218 = vld [vmem:[%s1 + $0x178] sm:$0xff]
      %v219 = vld [vmem:[%s1 + $0x180] sm:$0xff]
      %v220 = vld [vmem:[%s1 + $0x188] sm:$0xff]
      %v221 = vld [vmem:[%s1 + $0x190] sm:$0xff]
      %v222 = vld [vmem:[%s1 + $0x198] sm:$0xff]
      %v223 = vld [vmem:[%s1 + $0x1a0] sm:$0xff]
      %v224 = vld [vmem:[%s1 + $0x1a8] sm:$0xff]
      %v225 = vld [vmem:[%s1 + $0x1b0] sm:$0xff]
      %v226 = vld [vmem:[%s1 + $0x1b8] sm:$0xff]
      %v227 = vld [vmem:[%s1 + $0x1c0] sm:$0xff]
      %v228 = vld [vmem:[%s1 + $0x1c8] sm:$0xff]
      %v229 = vld [vmem:[%s1 + $0x1d0] sm:$0xff]
      %v230 = vld [vmem:[%s1 + $0x1d8] sm:$0xff]
      %v231 = vld [vmem:[%s1 + $0x1e0] sm:$0xff]
      %v232 = vld [vmem:[%s1 + $0x1e8] sm:$0xff]
      %v233 = vld [vmem:[%s1 + $0x1f0] sm:$0xff]
      %v234 = vld [vmem:[%s1 + $0x1f8] sm:$0xff]
      %v235 = vld [vmem:[%s1 + $0x200] sm:$0xff]
      %v236 = vld [vmem:[%s1 + $0x208] sm:$0xff]
      %v237 = vld [vmem:[%s1 + $0x210] sm:$0xff]
      %v238 = vld [vmem:[%s1 + $0x218] sm:$0xff]
      %v239 = vld [vmem:[%s1 + $0x220] sm:$0xff]
      %v240 = vld [vmem:[%s1 + $0x228] sm:$0xff]
      %v241 = vld [vmem:[%s1 + $0x230] sm:$0xff]
      %v242 = vld [vmem:[%s1 + $0x238] sm:$0xff]
      %v243 = vld [vmem:[%s165] sm:$0xff]
      %v244 = vld [vmem:[%s165 + $0x8] sm:$0xff]
      %v245 = vld [vmem:[%s165 + $0x10] sm:$0xff]
      %v246 = vld [vmem:[%s165 + $0x18] sm:$0xff]
      %v247 = vld [vmem:[%s165 + $0x20] sm:$0xff]
      %v248 = vld [vmem:[%s165 + $0x28] sm:$0xff]
      %v249 = vld [vmem:[%s165 + $0x30] sm:$0xff]
      %v250 = vld [vmem:[%s165 + $0x38] sm:$0xff]
      %v251 = vld [vmem:[%s165 + $0x40] sm:$0xff]
      %v252 = vld [vmem:[%s165 + $0x48] sm:$0xff]
      %v253 = vld [vmem:[%s165 + $0x50] sm:$0xff]
      %v254 = vld [vmem:[%s165 + $0x58] sm:$0xff]
      %v255 = vld [vmem:[%s165 + $0x60] sm:$0xff]
      %v256 = vld [vmem:[%s165 + $0x68] sm:$0xff]
      %v257 = vld [vmem:[%s165 + $0x70] sm:$0xff]
      %v258 = vld [vmem:[%s165 + $0x78] sm:$0xff]
      %v259 = vld [vmem:[%s165 + $0x80] sm:$0xff]
      %v260 = vld [vmem:[%s165 + $0x88] sm:$0xff]
      %v261 = vld [vmem:[%s165 + $0x90] sm:$0xff]
      %v262 = vld [vmem:[%s165 + $0x98] sm:$0xff]
      %v263 = vld [vmem:[%s165 + $0xa0] sm:$0xff]
      %v264 = vld [vmem:[%s165 + $0xa8] sm:$0xff]
      %v265 = vld [vmem:[%s165 + $0xb0] sm:$0xff]
      %v266 = vld [vmem:[%s165 + $0xb8] sm:$0xff]
      %v267 = vld [vmem:[%s165 + $0xc0] sm:$0xff]
      %v268 = vld [vmem:[%s165 + $0xc8] sm:$0xff]
      %v269 = vld [vmem:[%s165 + $0xd0] sm:$0xff]
      %v270 = vld [vmem:[%s165 + $0xd8] sm:$0xff]
      %v271 = vld [vmem:[%s165 + $0xe0] sm:$0xff]
      %v272 = vld [vmem:[%s165 + $0xe8] sm:$0xff]
      %v273 = vld [vmem:[%s165 + $0xf0] sm:$0xff]
      %v274 = vld [vmem:[%s165 + $0xf8] sm:$0xff]
      %v275 = vld [vmem:[%s165 + $0x100] sm:$0xff]
      %v276 = vld [vmem:[%s165 + $0x108] sm:$0xff]
      %v277 = vld [vmem:[%s165 + $0x110] sm:$0xff]
      %v278 = vld [vmem:[%s165 + $0x118] sm:$0xff]
      %v279 = vld [vmem:[%s165 + $0x120] sm:$0xff]
      %v280 = vld [vmem:[%s165 + $0x128] sm:$0xff]
      %v281 = vld [vmem:[%s165 + $0x130] sm:$0xff]
      %v282 = vld [vmem:[%s165 + $0x138] sm:$0xff]
      %v283 = vld [vmem:[%s165 + $0x140] sm:$0xff]
      %v284 = vld [vmem:[%s165 + $0x148] sm:$0xff]
      %v285 = vld [vmem:[%s165 + $0x150] sm:$0xff]
      %v286 = vld [vmem:[%s165 + $0x158] sm:$0xff]
      %v287 = vld [vmem:[%s165 + $0x160] sm:$0xff]
      %v288 = vld [vmem:[%s165 + $0x168] sm:$0xff]
      %v289 = vld [vmem:[%s165 + $0x170] sm:$0xff]
      %v290 = vld [vmem:[%s165 + $0x178] sm:$0xff]
      %v291 = vld [vmem:[%s165 + $0x180] sm:$0xff]
      %v292 = vld [vmem:[%s165 + $0x188] sm:$0xff]
      %v293 = vld [vmem:[%s165 + $0x190] sm:$0xff]
      %v294 = vld [vmem:[%s165 + $0x198] sm:$0xff]
      %v295 = vld [vmem:[%s165 + $0x1a0] sm:$0xff]
      %v296 = vld [vmem:[%s165 + $0x1a8] sm:$0xff]
      %v297 = vld [vmem:[%s165 + $0x1b0] sm:$0xff]
      %v298 = vld [vmem:[%s165 + $0x1b8] sm:$0xff]
      %v299 = vld [vmem:[%s165 + $0x1c0] sm:$0xff]
      %v300 = vld [vmem:[%s165 + $0x1c8] sm:$0xff]
      %v301 = vld [vmem:[%s165 + $0x1d0] sm:$0xff]
      %v302 = vld [vmem:[%s165 + $0x1d8] sm:$0xff]
      %v303 = vld [vmem:[%s165 + $0x1e0] sm:$0xff]
      %v304 = vld [vmem:[%s165 + $0x1e8] sm:$0xff]
      %v305 = vld [vmem:[%s165 + $0x1f0] sm:$0xff]
      %v306 = vld [vmem:[%s165 + $0x1f8] sm:$0xff]
      %v307 = vld [vmem:[%s165 + $0x200] sm:$0xff]
      %v308 = vld [vmem:[%s165 + $0x208] sm:$0xff]
      %v309 = vld [vmem:[%s165 + $0x210] sm:$0xff]
      %v310 = vld [vmem:[%s165 + $0x218] sm:$0xff]
      %v311 = vld [vmem:[%s165 + $0x220] sm:$0xff]
      %v312 = vld [vmem:[%s165 + $0x228] sm:$0xff]
      %v313 = vld [vmem:[%s165 + $0x230] sm:$0xff]
      %v314 = vld [vmem:[%s165 + $0x238] sm:$0xff]
      %v315 = vld [vmem:[%s165 + $0x240] sm:$0xff]
      %v316 = vld [vmem:[%s165 + $0x248] sm:$0xff]
      %v317 = vld [vmem:[%s165 + $0x250] sm:$0xff]
      %v318 = vld [vmem:[%s165 + $0x258] sm:$0xff]
      %v319 = vld [vmem:[%s165 + $0x260] sm:$0xff]
      %v320 = vld [vmem:[%s165 + $0x268] sm:$0xff]
      %v321 = vld [vmem:[%s165 + $0x270] sm:$0xff]
      %v322 = vld [vmem:[%s165 + $0x278] sm:$0xff]
      %v323 = vld [vmem:[%s165 + $0x280] sm:$0xff]
      %v324 = vld [vmem:[%s165 + $0x288] sm:$0xff]
      %v325 = vld [vmem:[%s165 + $0x290] sm:$0xff]
      %v326 = vld [vmem:[%s165 + $0x298] sm:$0xff]
      %v327 = vld [vmem:[%s165 + $0x2a0] sm:$0xff]
      %v328 = vld [vmem:[%s165 + $0x2a8] sm:$0xff]
      %v329 = vld [vmem:[%s165 + $0x2b0] sm:$0xff]
      %v330 = vld [vmem:[%s165 + $0x2b8] sm:$0xff]
      %v331 = vld [vmem:[%s165 + $0x2c0] sm:$0xff]
      %v332 = vld [vmem:[%s165 + $0x2c8] sm:$0xff]
      %v333 = vld [vmem:[%s165 + $0x2d0] sm:$0xff]
      %v334 = vld [vmem:[%s165 + $0x2d8] sm:$0xff]
      %v335 = vld [vmem:[%s165 + $0x2e0] sm:$0xff]
      %v336 = vld [vmem:[%s165 + $0x2e8] sm:$0xff]
      %v337 = vld [vmem:[%s165 + $0x2f0] sm:$0xff]
      %v338 = vld [vmem:[%s165 + $0x2f8] sm:$0xff]
      %v339 = vld [vmem:[%s165 + $0x300] sm:$0xff]
      %v340 = vld [vmem:[%s165 + $0x308] sm:$0xff]
      %v341 = vld [vmem:[%s165 + $0x310] sm:$0xff]
      %v342 = vld [vmem:[%s165 + $0x318] sm:$0xff]
      %v343 = vld [vmem:[%s165 + $0x320] sm:$0xff]
      %v344 = vld [vmem:[%s165 + $0x328] sm:$0xff]
      %v345 = vld [vmem:[%s165 + $0x330] sm:$0xff]
      %v346 = vld [vmem:[%s165 + $0x338] sm:$0xff]
      %v347 = vld [vmem:[%s165 + $0x340] sm:$0xff]
      %v348 = vld [vmem:[%s165 + $0x348] sm:$0xff]
      %v349 = vld [vmem:[%s165 + $0x350] sm:$0xff]
      %v350 = vld [vmem:[%s165 + $0x358] sm:$0xff]
      %v351 = vld [vmem:[%s165 + $0x360] sm:$0xff]
      %v352 = vld [vmem:[%s165 + $0x368] sm:$0xff]
      %v353 = vld [vmem:[%s165 + $0x370] sm:$0xff]
      %v354 = vld [vmem:[%s165 + $0x378] sm:$0xff]
      %v355 = vld [vmem:[%s165 + $0x380] sm:$0xff]
      %v356 = vld [vmem:[%s165 + $0x388] sm:$0xff]
      %v357 = vld [vmem:[%s165 + $0x390] sm:$0xff]
      %v358 = vld [vmem:[%s165 + $0x398] sm:$0xff]
      %v359 = vld [vmem:[%s165 + $0x3a0] sm:$0xff]
      %v360 = vld [vmem:[%s165 + $0x3a8] sm:$0xff]
      %v361 = vld [vmem:[%s165 + $0x3b0] sm:$0xff]
      %v362 = vld [vmem:[%s165 + $0x3b8] sm:$0xff]
      %v363 = vld [vmem:[%s165 + $0x3c0] sm:$0xff]
      %v364 = vld [vmem:[%s165 + $0x3c8] sm:$0xff]
      %v365 = vld [vmem:[%s165 + $0x3d0] sm:$0xff]
      %v366 = vld [vmem:[%s165 + $0x3d8] sm:$0xff]
      %v367 = vld [vmem:[%s165 + $0x3e0] sm:$0xff]
      %v368 = vld [vmem:[%s165 + $0x3e8] sm:$0xff]
      %v369 = vld [vmem:[%s165 + $0x3f0] sm:$0xff]
      %v370 = vld [vmem:[%s165 + $0x3f8] sm:$0xff]
      %v371 = vld [vmem:[%s165 + $0x400] sm:$0xff]
      %v372 = vld [vmem:[%s165 + $0x408] sm:$0xff]
      %v373 = vld [vmem:[%s165 + $0x410] sm:$0xff]
      %v374 = vld [vmem:[%s165 + $0x418] sm:$0xff]
      %v375 = vld [vmem:[%s165 + $0x420] sm:$0xff]
      %v376 = vld [vmem:[%s165 + $0x428] sm:$0xff]
      %v377 = vld [vmem:[%s165 + $0x430] sm:$0xff]
      %v378 = vld [vmem:[%s165 + $0x438] sm:$0xff]
      %v379 = vld [vmem:[%s165 + $0x440] sm:$0xff]
      %v380 = vld [vmem:[%s165 + $0x448] sm:$0xff]
      %v381 = vld [vmem:[%s165 + $0x450] sm:$0xff]
      %v382 = vld [vmem:[%s165 + $0x458] sm:$0xff]
      %v383 = vld [vmem:[%s165 + $0x460] sm:$0xff]
      %v384 = vld [vmem:[%s165 + $0x468] sm:$0xff]
      %v385 = vld [vmem:[%s165 + $0x470] sm:$0xff]
      %v386 = vld [vmem:[%s165 + $0x478] sm:$0xff]
      %v387 = vld [vmem:[%s165 + $0x480] sm:$0xff]
      %v388 = vld [vmem:[%s165 + $0x488] sm:$0xff]
      %v389 = vld [vmem:[%s165 + $0x490] sm:$0xff]
      %v390 = vld [vmem:[%s165 + $0x498] sm:$0xff]
      %v391 = vld [vmem:[%s165 + $0x4a0] sm:$0xff]
      %v392 = vld [vmem:[%s165 + $0x4a8] sm:$0xff]
      %v393 = vld [vmem:[%s165 + $0x4b0] sm:$0xff]
      %v394 = vld [vmem:[%s165 + $0x4b8] sm:$0xff]
      %v395 = vld [vmem:[%s165 + $0x4c0] sm:$0xff]
      %v396 = vld [vmem:[%s165 + $0x4c8] sm:$0xff]
      %v397 = vld [vmem:[%s165 + $0x4d0] sm:$0xff]
      %v398 = vld [vmem:[%s165 + $0x4d8] sm:$0xff]
      %v399 = vld [vmem:[%s165 + $0x4e0] sm:$0xff]
      %v400 = vld [vmem:[%s165 + $0x4e8] sm:$0xff]
      %v401 = vld [vmem:[%s165 + $0x4f0] sm:$0xff]
      %v402 = vld [vmem:[%s165 + $0x4f8] sm:$0xff]
      %vm403 = vcmask 523264
      %v405 = vsel %vm403, %v247, 0
      %v408 = vsel %vm403, %v252, 0
      %v411 = vsel %vm403, %v257, 0
      %v414 = vsel %vm403, %v262, 0
      %v417 = vsel %vm403, %v267, 0
      %v420 = vsel %vm403, %v272, 0
      %v423 = vsel %vm403, %v277, 0
      %v426 = vsel %vm403, %v282, 0
      %v429 = vsel %vm403, %v287, 0
      %v432 = vsel %vm403, %v292, 0
      %v435 = vsel %vm403, %v297, 0
      %v438 = vsel %vm403, %v302, 0
      %v441 = vsel %vm403, %v307, 0
      %v444 = vsel %vm403, %v312, 0
      %v447 = vsel %vm403, %v317, 0
      %v450 = vsel %vm403, %v322, 0
      %v453 = vsel %vm403, %v327, 0
      %v456 = vsel %vm403, %v332, 0
      %v459 = vsel %vm403, %v337, 0
      %v462 = vsel %vm403, %v342, 0
      %v465 = vsel %vm403, %v347, 0
      %v468 = vsel %vm403, %v352, 0
      %v471 = vsel %vm403, %v357, 0
      %v474 = vsel %vm403, %v362, 0
      %v477 = vsel %vm403, %v367, 0
      %v480 = vsel %vm403, %v372, 0
      %v483 = vsel %vm403, %v377, 0
      %v486 = vsel %vm403, %v382, 0
      %v489 = vsel %vm403, %v387, 0
      %v492 = vsel %vm403, %v392, 0
      %v495 = vsel %vm403, %v397, 0
      %v498 = vsel %vm403, %v402, 0
      %500 = vmatprep.subr.mxu0 0.0
      %501 = vmatpush1.msra.mxu0 %v171
      %502 = vmatprep.subr.mxu0 0.0
      %503 = vmatpush1.msra.mxu0 %v172
      %504 = vmatprep.subr.mxu0 0.0
      %505 = vmatpush1.msra.mxu0 %v173
      %506 = vmatprep.subr.mxu0 0.0
      %507 = vmatpush1.msra.mxu0 %v174
      %508 = vmatprep.subr.mxu0 0.0
      %509 = vmatpush1.msra.mxu0 %v175
      %510 = vmatprep.subr.mxu0 0.0
      %511 = vmatpush1.msra.mxu0 %v176
      %512 = vmatprep.subr.mxu0 0.0
      %513 = vmatpush1.msra.mxu0 %v177
      %514 = vmatprep.subr.mxu0 0.0
      %515 = vmatpush1.msra.mxu0 %v178
      %516 = vmatprep.subr.mxu0 0.0
      %517 = vmatpush1.msra.mxu0 %v179
      %518 = vmatprep.subr.mxu0 0.0
      %519 = vmatpush1.msra.mxu0 %v180
      %520 = vmatprep.subr.mxu0 0.0
      %521 = vmatpush1.msra.mxu0 %v181
      %522 = vmatprep.subr.mxu0 0.0
      %523 = vmatpush1.msra.mxu0 %v182
      %524 = vmatprep.subr.mxu0 0.0
      %525 = vmatpush1.msra.mxu0 %v183
      %526 = vmatprep.subr.mxu0 0.0
      %527 = vmatpush1.msra.mxu0 %v184
      %528 = vmatprep.subr.mxu0 0.0
      %529 = vmatpush1.msra.mxu0 %v185
      %530 = vmatprep.subr.mxu0 0.0
      %531 = vmatpush1.msra.mxu0 %v186
      %532 = vmatprep.subr.mxu0 0.0
      %533 = vmatpush1.msra.mxu0 %v187
      %534 = vmatprep.subr.mxu0 0.0
      %535 = vmatpush1.msra.mxu0 %v188
      %536 = vmatprep.subr.mxu0 0.0
      %537 = vmatpush1.msra.mxu0 %v189
      %538 = vmatprep.subr.mxu0 0.0
      %539 = vmatpush1.msra.mxu0 %v190
      %540 = vmatprep.subr.mxu0 0.0
      %541 = vmatpush1.msra.mxu0 %v191
      %542 = vmatprep.subr.mxu0 0.0
      %543 = vmatpush1.msra.mxu0 %v192
      %544 = vmatprep.subr.mxu0 0.0
      %545 = vmatpush1.msra.mxu0 %v193
      %546 = vmatprep.subr.mxu0 0.0
      %547 = vmatpush1.msra.mxu0 %v194
      %548 = vmatprep.subr.mxu0 0.0
      %549 = vmatpush1.msra.mxu0 %v195
      %550 = vmatprep.subr.mxu0 0.0
      %551 = vmatpush1.msra.mxu0 %v196
      %552 = vmatprep.subr.mxu0 0.0
      %553 = vmatpush1.msra.mxu0 %v197
      %554 = vmatprep.subr.mxu0 0.0
      %555 = vmatpush1.msra.mxu0 %v198
      %556 = vmatprep.subr.mxu0 0.0
      %557 = vmatpush1.msra.mxu0 %v199
      %558 = vmatprep.subr.mxu0 0.0
      %559 = vmatpush1.msra.mxu0 %v200
      %560 = vmatprep.subr.mxu0 0.0
      %561 = vmatpush1.msra.mxu0 %v201
      %562 = vmatprep.subr.mxu0 0.0
      %563 = vmatpush1.msra.mxu0 %v202
      %564 = vmatprep.mubr.f32.mxu0 %v244
      %565 = vmatmul.mubr.f32.gmra.mrb[0].mxu0 %v243
      %v566 = vpop.f32.mrb[0].mxu0
      %v567 = vadd.f32 0.0, %v566
      %v568 = vpop.f32.mrb[0].mxu0
      %569 = vmatprep.mubr.f32.mxu0 %v249
      %570 = vmatmul.mubr.f32.gmra.mrb[0].mxu0 %v248
      %v571 = vpop.f32.mrb[0].mxu0
      %v572 = vadd.f32 0.0, %v571
      %v573 = vpop.f32.mrb[0].mxu0
      %574 = vmatprep.mubr.f32.mxu0 %v254
      %575 = vmatmul.mubr.f32.gmra.mrb[0].mxu0 %v253
      %v576 = vpop.f32.mrb[0].mxu0
      %v577 = vadd.f32 0.0, %v576
      %v578 = vpop.f32.mrb[0].mxu0
      %579 = vmatprep.mubr.f32.mxu0 %v259
      %580 = vmatmul.mubr.f32.gmra.mrb[0].mxu0 %v258
      %v581 = vpop.f32.mrb[0].mxu0
      %v582 = vadd.f32 0.0, %v581
      %v583 = vpop.f32.mrb[0].mxu0
      %584 = vmatprep.mubr.f32.mxu0 %v264
      %585 = vmatmul.mubr.f32.gmra.mrb[0].mxu0 %v263
      %v586 = vpop.f32.mrb[0].mxu0
      %v587 = vadd.f32 0.0, %v586
      %v588 = vpop.f32.mrb[0].mxu0
      %589 = vmatprep.mubr.f32.mxu0 %v269
      %590 = vmatmul.mubr.f32.gmra.mrb[0].mxu0 %v268
      %v591 = vpop.f32.mrb[0].mxu0
      %v592 = vadd.f32 0.0, %v591
      %v593 = vpop.f32.mrb[0].mxu0
      %594 = vmatprep.mubr.f32.mxu0 %v274
      %595 = vmatmul.mubr.f32.gmra.mrb[0].mxu0 %v273
      %v596 = vpop.f32.mrb[0].mxu0
      %v597 = vadd.f32 0.0, %v596
      %v598 = vpop.f32.mrb[0].mxu0
      %599 = vmatprep.mubr.f32.mxu0 %v279
      %600 = vmatmul.mubr.f32.gmra.mrb[0].mxu0 %v278
      %v601 = vpop.f32.mrb[0].mxu0
      %v602 = vadd.f32 0.0, %v601
      %v603 = vpop.f32.mrb[0].mxu0
      %604 = vmatprep.mubr.f32.mxu0 %v284
      %605 = vmatmul.mubr.f32.gmra.mrb[0].mxu0 %v283
      %v606 = vpop.f32.mrb[0].mxu0
      %v607 = vadd.f32 0.0, %v606
      %v608 = vpop.f32.mrb[0].mxu0
      %609 = vmatprep.mubr.f32.mxu0 %v289
      %610 = vmatmul.mubr.f32.gmra.mrb[0].mxu0 %v288
      %v611 = vpop.f32.mrb[0].mxu0
      %v612 = vadd.f32 0.0, %v611
      %v613 = vpop.f32.mrb[0].mxu0
      %614 = vmatprep.mubr.f32.mxu0 %v294
      %615 = vmatmul.mubr.f32.gmra.mrb[0].mxu0 %v293
      %v616 = vpop.f32.mrb[0].mxu0
      %v617 = vadd.f32 0.0, %v616
      %v618 = vpop.f32.mrb[0].mxu0
      %619 = vmatprep.mubr.f32.mxu0 %v299
      %620 = vmatmul.mubr.f32.gmra.mrb[0].mxu0 %v298
      %v621 = vpop.f32.mrb[0].mxu0
      %v622 = vadd.f32 0.0, %v621
      %v623 = vpop.f32.mrb[0].mxu0
      %624 = vmatprep.mubr.f32.mxu0 %v304
      %625 = vmatmul.mubr.f32.gmra.mrb[0].mxu0 %v303
      %v626 = vpop.f32.mrb[0].mxu0
      %v627 = vadd.f32 0.0, %v626
      %v628 = vpop.f32.mrb[0].mxu0
      %629 = vmatprep.mubr.f32.mxu0 %v309
      %630 = vmatmul.mubr.f32.gmra.mrb[0].mxu0 %v308
      %v631 = vpop.f32.mrb[0].mxu0
      %v632 = vadd.f32 0.0, %v631
      %v633 = vpop.f32.mrb[0].mxu0
      %634 = vmatprep.mubr.f32.mxu0 %v314
      %635 = vmatmul.mubr.f32.gmra.mrb[0].mxu0 %v313
      %v636 = vpop.f32.mrb[0].mxu0
      %v637 = vadd.f32 0.0, %v636
      %v638 = vpop.f32.mrb[0].mxu0
      %639 = vmatprep.mubr.f32.mxu0 %v319
      %640 = vmatmul.mubr.f32.gmra.mrb[0].mxu0 %v318
      %v641 = vpop.f32.mrb[0].mxu0
      %v642 = vadd.f32 0.0, %v641
      %v643 = vpop.f32.mrb[0].mxu0
      %644 = vmatprep.mubr.f32.mxu0 %v324
      %645 = vmatmul.mubr.f32.gmra.mrb[0].mxu0 %v323
      %v646 = vpop.f32.mrb[0].mxu0
      %v647 = vadd.f32 0.0, %v646
      %v648 = vpop.f32.mrb[0].mxu0
      %649 = vmatprep.mubr.f32.mxu0 %v329
      %650 = vmatmul.mubr.f32.gmra.mrb[0].mxu0 %v328
      %v651 = vpop.f32.mrb[0].mxu0
      %v652 = vadd.f32 0.0, %v651
      %v653 = vpop.f32.mrb[0].mxu0
      %654 = vmatprep.mubr.f32.mxu0 %v334
      %655 = vmatmul.mubr.f32.gmra.mrb[0].mxu0 %v333
      %v656 = vpop.f32.mrb[0].mxu0
      %v657 = vadd.f32 0.0, %v656
      %v658 = vpop.f32.mrb[0].mxu0
      %659 = vmatprep.mubr.f32.mxu0 %v339
      %660 = vmatmul.mubr.f32.gmra.mrb[0].mxu0 %v338
      %v661 = vpop.f32.mrb[0].mxu0
      %v662 = vadd.f32 0.0, %v661
      %v663 = vpop.f32.mrb[0].mxu0
      %664 = vmatprep.mubr.f32.mxu0 %v344
      %665 = vmatmul.mubr.f32.gmra.mrb[0].mxu0 %v343
      %v666 = vpop.f32.mrb[0].mxu0
      %v667 = vadd.f32 0.0, %v666
      %v668 = vpop.f32.mrb[0].mxu0
      %669 = vmatprep.mubr.f32.mxu0 %v349
      %670 = vmatmul.mubr.f32.gmra.mrb[0].mxu0 %v348
      %v671 = vpop.f32.mrb[0].mxu0
      %v672 = vadd.f32 0.0, %v671
      %v673 = vpop.f32.mrb[0].mxu0
      %674 = vmatprep.mubr.f32.mxu0 %v354
      %675 = vmatmul.mubr.f32.gmra.mrb[0].mxu0 %v353
      %v676 = vpop.f32.mrb[0].mxu0
      %v677 = vadd.f32 0.0, %v676
      %v678 = vpop.f32.mrb[0].mxu0
      %679 = vmatprep.mubr.f32.mxu0 %v359
      %680 = vmatmul.mubr.f32.gmra.mrb[0].mxu0 %v358
      %v681 = vpop.f32.mrb[0].mxu0
      %v682 = vadd.f32 0.0, %v681
      %v683 = vpop.f32.mrb[0].mxu0
      %684 = vmatprep.mubr.f32.mxu0 %v364
      %685 = vmatmul.mubr.f32.gmra.mrb[0].mxu0 %v363
      %v686 = vpop.f32.mrb[0].mxu0
      %v687 = vadd.f32 0.0, %v686
      %v688 = vpop.f32.mrb[0].mxu0
      %689 = vmatprep.mubr.f32.mxu0 %v369
      %690 = vmatmul.mubr.f32.gmra.mrb[0].mxu0 %v368
      %v691 = vpop.f32.mrb[0].mxu0
      %v692 = vadd.f32 0.0, %v691
      %v693 = vpop.f32.mrb[0].mxu0
      %694 = vmatprep.mubr.f32.mxu0 %v374
      %695 = vmatmul.mubr.f32.gmra.mrb[0].mxu0 %v373
      %v696 = vpop.f32.mrb[0].mxu0
      %v697 = vadd.f32 0.0, %v696
      %v698 = vpop.f32.mrb[0].mxu0
      %699 = vmatprep.mubr.f32.mxu0 %v379
      %700 = vmatmul.mubr.f32.gmra.mrb[0].mxu0 %v378
      %v701 = vpop.f32.mrb[0].mxu0
      %v702 = vadd.f32 0.0, %v701
      %v703 = vpop.f32.mrb[0].mxu0
      %704 = vmatprep.mubr.f32.mxu0 %v384
      %705 = vmatmul.mubr.f32.gmra.mrb[0].mxu0 %v383
      %v706 = vpop.f32.mrb[0].mxu0
      %v707 = vadd.f32 0.0, %v706
      %v708 = vpop.f32.mrb[0].mxu0
      %709 = vmatprep.mubr.f32.mxu0 %v389
      %710 = vmatmul.mubr.f32.gmra.mrb[0].mxu0 %v388
      %v711 = vpop.f32.mrb[0].mxu0
      %v712 = vadd.f32 0.0, %v711
      %v713 = vpop.f32.mrb[0].mxu0
      %714 = vmatprep.mubr.f32.mxu0 %v394
      %715 = vmatmul.mubr.f32.gmra.mrb[0].mxu0 %v393
      %v716 = vpop.f32.mrb[0].mxu0
      %v717 = vadd.f32 0.0, %v716
      %v718 = vpop.f32.mrb[0].mxu0
      %719 = vmatprep.mubr.f32.mxu0 %v399
      %720 = vmatmul.mubr.f32.gmra.mrb[0].mxu0 %v398
      %v721 = vpop.f32.mrb[0].mxu0
      %v722 = vadd.f32 0.0, %v721
      %v723 = vpop.f32.mrb[0].mxu0
      %724 = vdwg.mxu0
      %725 = vmatprep.subr.mxu0 0.0
      %726 = vmatpush1.msra.mxu0 %v203
      %727 = vmatprep.subr.mxu0 0.0
      %728 = vmatpush1.msra.mxu0 %v204
      %729 = vmatprep.subr.mxu0 0.0
      %730 = vmatpush1.msra.mxu0 %v205
      %731 = vmatprep.subr.mxu0 0.0
      %732 = vmatpush1.msra.mxu0 %v206
      %733 = vmatprep.subr.mxu0 0.0
      %734 = vmatpush1.msra.mxu0 %v207
      %735 = vmatprep.subr.mxu0 0.0
      %736 = vmatpush1.msra.mxu0 %v208
      %737 = vmatprep.subr.mxu0 0.0
      %738 = vmatpush1.msra.mxu0 %v209
      %739 = vmatprep.subr.mxu0 0.0
      %740 = vmatpush1.msra.mxu0 %v210
      %741 = vmatprep.subr.mxu0 0.0
      %742 = vmatpush1.msra.mxu0 %v211
      %743 = vmatprep.subr.mxu0 0.0
      %744 = vmatpush1.msra.mxu0 %v212
      %745 = vmatprep.subr.mxu0 0.0
      %746 = vmatpush1.msra.mxu0 %v213
      %747 = vmatprep.subr.mxu0 0.0
      %748 = vmatpush1.msra.mxu0 %v214
      %749 = vmatprep.subr.mxu0 0.0
      %750 = vmatpush1.msra.mxu0 %v215
      %751 = vmatprep.subr.mxu0 0.0
      %752 = vmatpush1.msra.mxu0 %v216
      %753 = vmatprep.subr.mxu0 0.0
      %754 = vmatpush1.msra.mxu0 %v217
      %755 = vmatprep.subr.mxu0 0.0
      %756 = vmatpush1.msra.mxu0 %v218
      %757 = vmatprep.subr.mxu0 0.0
      %758 = vmatpush1.msra.mxu0 %v219
      %759 = vmatprep.subr.mxu0 0.0
      %760 = vmatpush1.msra.mxu0 %v220
      %761 = vmatprep.subr.mxu0 0.0
      %762 = vmatpush1.msra.mxu0 %v221
      %763 = vmatprep.subr.mxu0 0.0
      %764 = vmatpush1.msra.mxu0 %v222
      %765 = vmatprep.subr.mxu0 0.0
      %766 = vmatpush1.msra.mxu0 %v223
      %767 = vmatprep.subr.mxu0 0.0
      %768 = vmatpush1.msra.mxu0 %v224
      %769 = vmatprep.subr.mxu0 0.0
      %770 = vmatpush1.msra.mxu0 %v225
      %771 = vmatprep.subr.mxu0 0.0
      %772 = vmatpush1.msra.mxu0 %v226
      %773 = vmatprep.subr.mxu0 0.0
      %774 = vmatpush1.msra.mxu0 %v227
      %775 = vmatprep.subr.mxu0 0.0
      %776 = vmatpush1.msra.mxu0 %v228
      %777 = vmatprep.subr.mxu0 0.0
      %778 = vmatpush1.msra.mxu0 %v229
      %779 = vmatprep.subr.mxu0 0.0
      %780 = vmatpush1.msra.mxu0 %v230
      %781 = vmatprep.subr.mxu0 0.0
      %782 = vmatpush1.msra.mxu0 %v231
      %783 = vmatprep.subr.mxu0 0.0
      %784 = vmatpush1.msra.mxu0 %v232
      %785 = vmatprep.subr.mxu0 0.0
      %786 = vmatpush1.msra.mxu0 %v233
      %787 = vmatprep.subr.mxu0 0.0
      %788 = vmatpush1.msra.mxu0 %v234
      %789 = vmatprep.mubr.f32.mxu0 %v246
      %790 = vmatmul.mubr.f32.gmra.mrb[0].mxu0 %v245
      %v791 = vpop.f32.mrb[0].mxu0
      %v792 = vadd.f32 %v567, %v791
      %v793 = vpop.f32.mrb[0].mxu0
      %794 = vmatprep.mubr.f32.mxu0 %v251
      %795 = vmatmul.mubr.f32.gmra.mrb[0].mxu0 %v250
      %v796 = vpop.f32.mrb[0].mxu0
      %v797 = vadd.f32 %v572, %v796
      %v798 = vpop.f32.mrb[0].mxu0
      %799 = vmatprep.mubr.f32.mxu0 %v256
      %800 = vmatmul.mubr.f32.gmra.mrb[0].mxu0 %v255
      %v801 = vpop.f32.mrb[0].mxu0
      %v802 = vadd.f32 %v577, %v801
      %v803 = vpop.f32.mrb[0].mxu0
      %804 = vmatprep.mubr.f32.mxu0 %v261
      %805 = vmatmul.mubr.f32.gmra.mrb[0].mxu0 %v260
      %v806 = vpop.f32.mrb[0].mxu0
      %v807 = vadd.f32 %v582, %v806
      %v808 = vpop.f32.mrb[0].mxu0
      %809 = vmatprep.mubr.f32.mxu0 %v266
      %810 = vmatmul.mubr.f32.gmra.mrb[0].mxu0 %v265
      %v811 = vpop.f32.mrb[0].mxu0
      %v812 = vadd.f32 %v587, %v811
      %v813 = vpop.f32.mrb[0].mxu0
      %814 = vmatprep.mubr.f32.mxu0 %v271
      %815 = vmatmul.mubr.f32.gmra.mrb[0].mxu0 %v270
      %v816 = vpop.f32.mrb[0].mxu0
      %v817 = vadd.f32 %v592, %v816
      %v818 = vpop.f32.mrb[0].mxu0
      %819 = vmatprep.mubr.f32.mxu0 %v276
      %820 = vmatmul.mubr.f32.gmra.mrb[0].mxu0 %v275
      %v821 = vpop.f32.mrb[0].mxu0
      %v822 = vadd.f32 %v597, %v821
      %v823 = vpop.f32.mrb[0].mxu0
      %824 = vmatprep.mubr.f32.mxu0 %v281
      %825 = vmatmul.mubr.f32.gmra.mrb[0].mxu0 %v280
      %v826 = vpop.f32.mrb[0].mxu0
      %v827 = vadd.f32 %v602, %v826
      %v828 = vpop.f32.mrb[0].mxu0
      %829 = vmatprep.mubr.f32.mxu0 %v286
      %830 = vmatmul.mubr.f32.gmra.mrb[0].mxu0 %v285
      %v831 = vpop.f32.mrb[0].mxu0
      %v832 = vadd.f32 %v607, %v831
      %v833 = vpop.f32.mrb[0].mxu0
      %834 = vmatprep.mubr.f32.mxu0 %v291
      %835 = vmatmul.mubr.f32.gmra.mrb[0].mxu0 %v290
      %v836 = vpop.f32.mrb[0].mxu0
      %v837 = vadd.f32 %v612, %v836
      %v838 = vpop.f32.mrb[0].mxu0
      %839 = vmatprep.mubr.f32.mxu0 %v296
      %840 = vmatmul.mubr.f32.gmra.mrb[0].mxu0 %v295
      %v841 = vpop.f32.mrb[0].mxu0
      %v842 = vadd.f32 %v617, %v841
      %v843 = vpop.f32.mrb[0].mxu0
      %844 = vmatprep.mubr.f32.mxu0 %v301
      %845 = vmatmul.mubr.f32.gmra.mrb[0].mxu0 %v300
      %v846 = vpop.f32.mrb[0].mxu0
      %v847 = vadd.f32 %v622, %v846
      %v848 = vpop.f32.mrb[0].mxu0
      %849 = vmatprep.mubr.f32.mxu0 %v306
      %850 = vmatmul.mubr.f32.gmra.mrb[0].mxu0 %v305
      %v851 = vpop.f32.mrb[0].mxu0
      %v852 = vadd.f32 %v627, %v851
      %v853 = vpop.f32.mrb[0].mxu0
      %854 = vmatprep.mubr.f32.mxu0 %v311
      %855 = vmatmul.mubr.f32.gmra.mrb[0].mxu0 %v310
      %v856 = vpop.f32.mrb[0].mxu0
      %v857 = vadd.f32 %v632, %v856
      %v858 = vpop.f32.mrb[0].mxu0
      %859 = vmatprep.mubr.f32.mxu0 %v316
      %860 = vmatmul.mubr.f32.gmra.mrb[0].mxu0 %v315
      %v861 = vpop.f32.mrb[0].mxu0
      %v862 = vadd.f32 %v637, %v861
      %v863 = vpop.f32.mrb[0].mxu0
      %864 = vmatprep.mubr.f32.mxu0 %v321
      %865 = vmatmul.mubr.f32.gmra.mrb[0].mxu0 %v320
      %v866 = vpop.f32.mrb[0].mxu0
      %v867 = vadd.f32 %v642, %v866
      %v868 = vpop.f32.mrb[0].mxu0
      %869 = vmatprep.mubr.f32.mxu0 %v326
      %870 = vmatmul.mubr.f32.gmra.mrb[0].mxu0 %v325
      %v871 = vpop.f32.mrb[0].mxu0
      %v872 = vadd.f32 %v647, %v871
      %v873 = vpop.f32.mrb[0].mxu0
      %874 = vmatprep.mubr.f32.mxu0 %v331
      %875 = vmatmul.mubr.f32.gmra.mrb[0].mxu0 %v330
      %v876 = vpop.f32.mrb[0].mxu0
      %v877 = vadd.f32 %v652, %v876
      %v878 = vpop.f32.mrb[0].mxu0
      %879 = vmatprep.mubr.f32.mxu0 %v336
      %880 = vmatmul.mubr.f32.gmra.mrb[0].mxu0 %v335
      %v881 = vpop.f32.mrb[0].mxu0
      %v882 = vadd.f32 %v657, %v881
      %v883 = vpop.f32.mrb[0].mxu0
      %884 = vmatprep.mubr.f32.mxu0 %v341
      %885 = vmatmul.mubr.f32.gmra.mrb[0].mxu0 %v340
      %v886 = vpop.f32.mrb[0].mxu0
      %v887 = vadd.f32 %v662, %v886
      %v888 = vpop.f32.mrb[0].mxu0
      %889 = vmatprep.mubr.f32.mxu0 %v346
      %890 = vmatmul.mubr.f32.gmra.mrb[0].mxu0 %v345
      %v891 = vpop.f32.mrb[0].mxu0
      %v892 = vadd.f32 %v667, %v891
      %v893 = vpop.f32.mrb[0].mxu0
      %894 = vmatprep.mubr.f32.mxu0 %v351
      %895 = vmatmul.mubr.f32.gmra.mrb[0].mxu0 %v350
      %v896 = vpop.f32.mrb[0].mxu0
      %v897 = vadd.f32 %v672, %v896
      %v898 = vpop.f32.mrb[0].mxu0
      %899 = vmatprep.mubr.f32.mxu0 %v356
      %900 = vmatmul.mubr.f32.gmra.mrb[0].mxu0 %v355
      %v901 = vpop.f32.mrb[0].mxu0
      %v902 = vadd.f32 %v677, %v901
      %v903 = vpop.f32.mrb[0].mxu0
      %904 = vmatprep.mubr.f32.mxu0 %v361
      %905 = vmatmul.mubr.f32.gmra.mrb[0].mxu0 %v360
      %v906 = vpop.f32.mrb[0].mxu0
      %v907 = vadd.f32 %v682, %v906
      %v908 = vpop.f32.mrb[0].mxu0
      %909 = vmatprep.mubr.f32.mxu0 %v366
      %910 = vmatmul.mubr.f32.gmra.mrb[0].mxu0 %v365
      %v911 = vpop.f32.mrb[0].mxu0
      %v912 = vadd.f32 %v687, %v911
      %v913 = vpop.f32.mrb[0].mxu0
      %914 = vmatprep.mubr.f32.mxu0 %v371
      %915 = vmatmul.mubr.f32.gmra.mrb[0].mxu0 %v370
      %v916 = vpop.f32.mrb[0].mxu0
      %v917 = vadd.f32 %v692, %v916
      %v918 = vpop.f32.mrb[0].mxu0
      %919 = vmatprep.mubr.f32.mxu0 %v376
      %920 = vmatmul.mubr.f32.gmra.mrb[0].mxu0 %v375
      %v921 = vpop.f32.mrb[0].mxu0
      %v922 = vadd.f32 %v697, %v921
      %v923 = vpop.f32.mrb[0].mxu0
      %924 = vmatprep.mubr.f32.mxu0 %v381
      %925 = vmatmul.mubr.f32.gmra.mrb[0].mxu0 %v380
      %v926 = vpop.f32.mrb[0].mxu0
      %v927 = vadd.f32 %v702, %v926
      %v928 = vpop.f32.mrb[0].mxu0
      %929 = vmatprep.mubr.f32.mxu0 %v386
      %930 = vmatmul.mubr.f32.gmra.mrb[0].mxu0 %v385
      %v931 = vpop.f32.mrb[0].mxu0
      %v932 = vadd.f32 %v707, %v931
      %v933 = vpop.f32.mrb[0].mxu0
      %934 = vmatprep.mubr.f32.mxu0 %v391
      %935 = vmatmul.mubr.f32.gmra.mrb[0].mxu0 %v390
      %v936 = vpop.f32.mrb[0].mxu0
      %v937 = vadd.f32 %v712, %v936
      %v938 = vpop.f32.mrb[0].mxu0
      %939 = vmatprep.mubr.f32.mxu0 %v396
      %940 = vmatmul.mubr.f32.gmra.mrb[0].mxu0 %v395
      %v941 = vpop.f32.mrb[0].mxu0
      %v942 = vadd.f32 %v717, %v941
      %v943 = vpop.f32.mrb[0].mxu0
      %944 = vmatprep.mubr.f32.mxu0 %v401
      %945 = vmatmul.mubr.f32.gmra.mrb[0].mxu0 %v400
      %v946 = vpop.f32.mrb[0].mxu0
      %v947 = vadd.f32 %v722, %v946
      %v948 = vpop.f32.mrb[0].mxu0
      %949 = vdwg.mxu0
      %950 = vmatprep.subr.mxu0 0.0
      %951 = vmatpush1.msra.mxu0 %v235
      %952 = vmatprep.subr.mxu0 0.0
      %953 = vmatpush1.msra.mxu0 %v236
      %954 = vmatprep.subr.mxu0 0.0
      %955 = vmatpush1.msra.mxu0 %v237
      %956 = vmatprep.subr.mxu0 0.0
      %957 = vmatpush1.msra.mxu0 %v238
      %958 = vmatprep.subr.mxu0 0.0
      %959 = vmatpush1.msra.mxu0 %v239
      %960 = vmatprep.subr.mxu0 0.0
      %961 = vmatpush1.msra.mxu0 %v240
      %962 = vmatprep.subr.mxu0 0.0
      %963 = vmatpush1.msra.mxu0 %v241
      %964 = vmatprep.subr.mxu0 0.0
      %965 = vmatpush1.msra.mxu0 %v242
      %966 = vmatprep.subr.mxu0 0.0
      %967 = vmatpush1.msra.mxu0 0.0
      %968 = vmatprep.subr.mxu0 0.0
      %969 = vmatpush1.msra.mxu0 0.0
      %970 = vmatprep.subr.mxu0 0.0
      %971 = vmatpush1.msra.mxu0 0.0
      %972 = vmatprep.subr.mxu0 0.0
      %973 = vmatpush1.msra.mxu0 0.0
      %974 = vmatprep.subr.mxu0 0.0
      %975 = vmatpush1.msra.mxu0 0.0
      %976 = vmatprep.subr.mxu0 0.0
      %977 = vmatpush1.msra.mxu0 0.0
      %978 = vmatprep.subr.mxu0 0.0
      %979 = vmatpush1.msra.mxu0 0.0
      %980 = vmatprep.subr.mxu0 0.0
      %981 = vmatpush1.msra.mxu0 0.0
      %982 = vmatprep.subr.mxu0 0.0
      %983 = vmatpush1.msra.mxu0 0.0
      %984 = vmatprep.subr.mxu0 0.0
      %985 = vmatpush1.msra.mxu0 0.0
      %986 = vmatprep.subr.mxu0 0.0
      %987 = vmatpush1.msra.mxu0 0.0
      %988 = vmatprep.subr.mxu0 0.0
      %989 = vmatpush1.msra.mxu0 0.0
      %990 = vmatprep.subr.mxu0 0.0
      %991 = vmatpush1.msra.mxu0 0.0
      %992 = vmatprep.subr.mxu0 0.0
      %993 = vmatpush1.msra.mxu0 0.0
      %994 = vmatprep.subr.mxu0 0.0
      %995 = vmatpush1.msra.mxu0 0.0
      %996 = vmatprep.subr.mxu0 0.0
      %997 = vmatpush1.msra.mxu0 0.0
      %998 = vmatprep.subr.mxu0 0.0
      %999 = vmatpush1.msra.mxu0 0.0
      %1000 = vmatprep.subr.mxu0 0.0
      %1001 = vmatpush1.msra.mxu0 0.0
      %1002 = vmatprep.subr.mxu0 0.0
      %1003 = vmatpush1.msra.mxu0 0.0
      %1004 = vmatprep.subr.mxu0 0.0
      %1005 = vmatpush1.msra.mxu0 0.0
      %1006 = vmatprep.subr.mxu0 0.0
      %1007 = vmatpush1.msra.mxu0 0.0
      %1008 = vmatprep.subr.mxu0 0.0
      %1009 = vmatpush1.msra.mxu0 0.0
      %1010 = vmatprep.subr.mxu0 0.0
      %1011 = vmatpush1.msra.mxu0 0.0
      %1012 = vmatprep.subr.mxu0 0.0
      %1013 = vmatpush1.msra.mxu0 0.0
      %1014 = vmatprep.mubr.f32.mxu0 0.0
      %1015 = vmatmul.mubr.f32.gmra.mrb[0].mxu0 %v405
      %v1016 = vpop.f32.mrb[0].mxu0
      %v1017 = vadd.f32 %v792, %v1016
      %v1018 = vpop.f32.mrb[0].mxu0
      %1019 = vmatprep.mubr.f32.mxu0 0.0
      %1020 = vmatmul.mubr.f32.gmra.mrb[0].mxu0 %v408
      %v1021 = vpop.f32.mrb[0].mxu0
      %v1022 = vadd.f32 %v797, %v1021
      %v1023 = vpop.f32.mrb[0].mxu0
      %1024 = vmatprep.mubr.f32.mxu0 0.0
      %1025 = vmatmul.mubr.f32.gmra.mrb[0].mxu0 %v411
      %v1026 = vpop.f32.mrb[0].mxu0
      %v1027 = vadd.f32 %v802, %v1026
      %v1028 = vpop.f32.mrb[0].mxu0
      %1029 = vmatprep.mubr.f32.mxu0 0.0
      %1030 = vmatmul.mubr.f32.gmra.mrb[0].mxu0 %v414
      %v1031 = vpop.f32.mrb[0].mxu0
      %v1032 = vadd.f32 %v807, %v1031
      %v1033 = vpop.f32.mrb[0].mxu0
      %1034 = vmatprep.mubr.f32.mxu0 0.0
      %1035 = vmatmul.mubr.f32.gmra.mrb[0].mxu0 %v417
      %v1036 = vpop.f32.mrb[0].mxu0
      %v1037 = vadd.f32 %v812, %v1036
      %v1038 = vpop.f32.mrb[0].mxu0
      %1039 = vmatprep.mubr.f32.mxu0 0.0
      %1040 = vmatmul.mubr.f32.gmra.mrb[0].mxu0 %v420
      %v1041 = vpop.f32.mrb[0].mxu0
      %v1042 = vadd.f32 %v817, %v1041
      %v1043 = vpop.f32.mrb[0].mxu0
      %1044 = vmatprep.mubr.f32.mxu0 0.0
      %1045 = vmatmul.mubr.f32.gmra.mrb[0].mxu0 %v423
      %v1046 = vpop.f32.mrb[0].mxu0
      %v1047 = vadd.f32 %v822, %v1046
      %v1048 = vpop.f32.mrb[0].mxu0
      %1049 = vmatprep.mubr.f32.mxu0 0.0
      %1050 = vmatmul.mubr.f32.gmra.mrb[0].mxu0 %v426
      %v1051 = vpop.f32.mrb[0].mxu0
      %v1052 = vadd.f32 %v827, %v1051
      %v1053 = vpop.f32.mrb[0].mxu0
      %1054 = vmatprep.mubr.f32.mxu0 0.0
      %1055 = vmatmul.mubr.f32.gmra.mrb[0].mxu0 %v429
      %v1056 = vpop.f32.mrb[0].mxu0
      %v1057 = vadd.f32 %v832, %v1056
      %v1058 = vpop.f32.mrb[0].mxu0
      %1059 = vmatprep.mubr.f32.mxu0 0.0
      %1060 = vmatmul.mubr.f32.gmra.mrb[0].mxu0 %v432
      %v1061 = vpop.f32.mrb[0].mxu0
      %v1062 = vadd.f32 %v837, %v1061
      %v1063 = vpop.f32.mrb[0].mxu0
      %1064 = vmatprep.mubr.f32.mxu0 0.0
      %1065 = vmatmul.mubr.f32.gmra.mrb[0].mxu0 %v435
      %v1066 = vpop.f32.mrb[0].mxu0
      %v1067 = vadd.f32 %v842, %v1066
      %v1068 = vpop.f32.mrb[0].mxu0
      %1069 = vmatprep.mubr.f32.mxu0 0.0
      %1070 = vmatmul.mubr.f32.gmra.mrb[0].mxu0 %v438
      %v1071 = vpop.f32.mrb[0].mxu0
      %v1072 = vadd.f32 %v847, %v1071
      %v1073 = vpop.f32.mrb[0].mxu0
      %1074 = vmatprep.mubr.f32.mxu0 0.0
      %1075 = vmatmul.mubr.f32.gmra.mrb[0].mxu0 %v441
      %v1076 = vpop.f32.mrb[0].mxu0
      %v1077 = vadd.f32 %v852, %v1076
      %v1078 = vpop.f32.mrb[0].mxu0
      %1079 = vmatprep.mubr.f32.mxu0 0.0
      %1080 = vmatmul.mubr.f32.gmra.mrb[0].mxu0 %v444
      %v1081 = vpop.f32.mrb[0].mxu0
      %v1082 = vadd.f32 %v857, %v1081
      %v1083 = vpop.f32.mrb[0].mxu0
      %1084 = vmatprep.mubr.f32.mxu0 0.0
      %1085 = vmatmul.mubr.f32.gmra.mrb[0].mxu0 %v447
      %v1086 = vpop.f32.mrb[0].mxu0
      %v1087 = vadd.f32 %v862, %v1086
      %v1088 = vpop.f32.mrb[0].mxu0
      %1089 = vmatprep.mubr.f32.mxu0 0.0
      %1090 = vmatmul.mubr.f32.gmra.mrb[0].mxu0 %v450
      %v1091 = vpop.f32.mrb[0].mxu0
      %v1092 = vadd.f32 %v867, %v1091
      %v1093 = vpop.f32.mrb[0].mxu0
      %1094 = vmatprep.mubr.f32.mxu0 0.0
      %1095 = vmatmul.mubr.f32.gmra.mrb[0].mxu0 %v453
      %v1096 = vpop.f32.mrb[0].mxu0
      %v1097 = vadd.f32 %v872, %v1096
      %v1098 = vpop.f32.mrb[0].mxu0
      %1099 = vmatprep.mubr.f32.mxu0 0.0
      %1100 = vmatmul.mubr.f32.gmra.mrb[0].mxu0 %v456
      %v1101 = vpop.f32.mrb[0].mxu0
      %v1102 = vadd.f32 %v877, %v1101
      %v1103 = vpop.f32.mrb[0].mxu0
      %1104 = vmatprep.mubr.f32.mxu0 0.0
      %1105 = vmatmul.mubr.f32.gmra.mrb[0].mxu0 %v459
      %v1106 = vpop.f32.mrb[0].mxu0
      %v1107 = vadd.f32 %v882, %v1106
      %v1108 = vpop.f32.mrb[0].mxu0
      %1109 = vmatprep.mubr.f32.mxu0 0.0
      %1110 = vmatmul.mubr.f32.gmra.mrb[0].mxu0 %v462
      %v1111 = vpop.f32.mrb[0].mxu0
      %v1112 = vadd.f32 %v887, %v1111
      %v1113 = vpop.f32.mrb[0].mxu0
      %1114 = vmatprep.mubr.f32.mxu0 0.0
      %1115 = vmatmul.mubr.f32.gmra.mrb[0].mxu0 %v465
      %v1116 = vpop.f32.mrb[0].mxu0
      %v1117 = vadd.f32 %v892, %v1116
      %v1118 = vpop.f32.mrb[0].mxu0
      %1119 = vmatprep.mubr.f32.mxu0 0.0
      %1120 = vmatmul.mubr.f32.gmra.mrb[0].mxu0 %v468
      %v1121 = vpop.f32.mrb[0].mxu0
      %v1122 = vadd.f32 %v897, %v1121
      %v1123 = vpop.f32.mrb[0].mxu0
      %1124 = vmatprep.mubr.f32.mxu0 0.0
      %1125 = vmatmul.mubr.f32.gmra.mrb[0].mxu0 %v471
      %v1126 = vpop.f32.mrb[0].mxu0
      %v1127 = vadd.f32 %v902, %v1126
      %v1128 = vpop.f32.mrb[0].mxu0
      %1129 = vmatprep.mubr.f32.mxu0 0.0
      %1130 = vmatmul.mubr.f32.gmra.mrb[0].mxu0 %v474
      %v1131 = vpop.f32.mrb[0].mxu0
      %v1132 = vadd.f32 %v907, %v1131
      %v1133 = vpop.f32.mrb[0].mxu0
      %1134 = vmatprep.mubr.f32.mxu0 0.0
      %1135 = vmatmul.mubr.f32.gmra.mrb[0].mxu0 %v477
      %v1136 = vpop.f32.mrb[0].mxu0
      %v1137 = vadd.f32 %v912, %v1136
      %v1138 = vpop.f32.mrb[0].mxu0
      %1139 = vmatprep.mubr.f32.mxu0 0.0
      %1140 = vmatmul.mubr.f32.gmra.mrb[0].mxu0 %v480
      %v1141 = vpop.f32.mrb[0].mxu0
      %v1142 = vadd.f32 %v917, %v1141
      %v1143 = vpop.f32.mrb[0].mxu0
      %1144 = vmatprep.mubr.f32.mxu0 0.0
      %1145 = vmatmul.mubr.f32.gmra.mrb[0].mxu0 %v483
      %v1146 = vpop.f32.mrb[0].mxu0
      %v1147 = vadd.f32 %v922, %v1146
      %v1148 = vpop.f32.mrb[0].mxu0
      %1149 = vmatprep.mubr.f32.mxu0 0.0
      %1150 = vmatmul.mubr.f32.gmra.mrb[0].mxu0 %v486
      %v1151 = vpop.f32.mrb[0].mxu0
      %v1152 = vadd.f32 %v927, %v1151
      %v1153 = vpop.f32.mrb[0].mxu0
      %1154 = vmatprep.mubr.f32.mxu0 0.0
      %1155 = vmatmul.mubr.f32.gmra.mrb[0].mxu0 %v489
      %v1156 = vpop.f32.mrb[0].mxu0
      %v1157 = vadd.f32 %v932, %v1156
      %v1158 = vpop.f32.mrb[0].mxu0
      %1159 = vmatprep.mubr.f32.mxu0 0.0
      %1160 = vmatmul.mubr.f32.gmra.mrb[0].mxu0 %v492
      %v1161 = vpop.f32.mrb[0].mxu0
      %v1162 = vadd.f32 %v937, %v1161
      %v1163 = vpop.f32.mrb[0].mxu0
      %1164 = vmatprep.mubr.f32.mxu0 0.0
      %1165 = vmatmul.mubr.f32.gmra.mrb[0].mxu0 %v495
      %v1166 = vpop.f32.mrb[0].mxu0
      %v1167 = vadd.f32 %v942, %v1166
      %v1168 = vpop.f32.mrb[0].mxu0
      %1169 = vmatprep.mubr.f32.mxu0 0.0
      %1170 = vmatmul.mubr.f32.gmra.mrb[0].mxu0 %v498
      %v1171 = vpop.f32.mrb[0].mxu0
      %v1172 = vadd.f32 %v947, %v1171
      %v1173 = vpop.f32.mrb[0].mxu0
      %1174 = vdwg.mxu0
      %s1175 = scalar_lea.vmem %s165, 1280
      %v1176 = vld [vmem:[%s1175] sm:$0xff]
      %v1177 = vld [vmem:[%s1175 + $0x8] sm:$0xff]
      %v1178 = vld [vmem:[%s1175 + $0x10] sm:$0xff]
      %v1179 = vld [vmem:[%s1175 + $0x18] sm:$0xff]
      %v1180 = vld [vmem:[%s1175 + $0x20] sm:$0xff]
      %v1181 = vld [vmem:[%s1175 + $0x28] sm:$0xff]
      %v1182 = vld [vmem:[%s1175 + $0x30] sm:$0xff]
      %v1183 = vld [vmem:[%s1175 + $0x38] sm:$0xff]
      %v1184 = vld [vmem:[%s1175 + $0x40] sm:$0xff]
      %v1185 = vld [vmem:[%s1175 + $0x48] sm:$0xff]
      %v1186 = vld [vmem:[%s1175 + $0x50] sm:$0xff]
      %v1187 = vld [vmem:[%s1175 + $0x58] sm:$0xff]
      %v1188 = vld [vmem:[%s1175 + $0x60] sm:$0xff]
      %v1189 = vld [vmem:[%s1175 + $0x68] sm:$0xff]
      %v1190 = vld [vmem:[%s1175 + $0x70] sm:$0xff]
      %v1191 = vld [vmem:[%s1175 + $0x78] sm:$0xff]
      %v1192 = vld [vmem:[%s1175 + $0x80] sm:$0xff]
      %v1193 = vld [vmem:[%s1175 + $0x88] sm:$0xff]
      %v1194 = vld [vmem:[%s1175 + $0x90] sm:$0xff]
      %v1195 = vld [vmem:[%s1175 + $0x98] sm:$0xff]
      %v1196 = vld [vmem:[%s1175 + $0xa0] sm:$0xff]
      %v1197 = vld [vmem:[%s1175 + $0xa8] sm:$0xff]
      %v1198 = vld [vmem:[%s1175 + $0xb0] sm:$0xff]
      %v1199 = vld [vmem:[%s1175 + $0xb8] sm:$0xff]
      %v1200 = vld [vmem:[%s1175 + $0xc0] sm:$0xff]
      %v1201 = vld [vmem:[%s1175 + $0xc8] sm:$0xff]
      %v1202 = vld [vmem:[%s1175 + $0xd0] sm:$0xff]
      %v1203 = vld [vmem:[%s1175 + $0xd8] sm:$0xff]
      %v1204 = vld [vmem:[%s1175 + $0xe0] sm:$0xff]
      %v1205 = vld [vmem:[%s1175 + $0xe8] sm:$0xff]
      %v1206 = vld [vmem:[%s1175 + $0xf0] sm:$0xff]
      %v1207 = vld [vmem:[%s1175 + $0xf8] sm:$0xff]
      %v1208 = vld [vmem:[%s1175 + $0x100] sm:$0xff]
      %v1209 = vld [vmem:[%s1175 + $0x108] sm:$0xff]
      %v1210 = vld [vmem:[%s1175 + $0x110] sm:$0xff]
      %v1211 = vld [vmem:[%s1175 + $0x118] sm:$0xff]
      %v1212 = vld [vmem:[%s1175 + $0x120] sm:$0xff]
      %v1213 = vld [vmem:[%s1175 + $0x128] sm:$0xff]
      %v1214 = vld [vmem:[%s1175 + $0x130] sm:$0xff]
      %v1215 = vld [vmem:[%s1175 + $0x138] sm:$0xff]
      %v1216 = vld [vmem:[%s1175 + $0x140] sm:$0xff]
      %v1217 = vld [vmem:[%s1175 + $0x148] sm:$0xff]
      %v1218 = vld [vmem:[%s1175 + $0x150] sm:$0xff]
      %v1219 = vld [vmem:[%s1175 + $0x158] sm:$0xff]
      %v1220 = vld [vmem:[%s1175 + $0x160] sm:$0xff]
      %v1221 = vld [vmem:[%s1175 + $0x168] sm:$0xff]
      %v1222 = vld [vmem:[%s1175 + $0x170] sm:$0xff]
      %v1223 = vld [vmem:[%s1175 + $0x178] sm:$0xff]
      %v1224 = vld [vmem:[%s1175 + $0x180] sm:$0xff]
      %v1225 = vld [vmem:[%s1175 + $0x188] sm:$0xff]
      %v1226 = vld [vmem:[%s1175 + $0x190] sm:$0xff]
      %v1227 = vld [vmem:[%s1175 + $0x198] sm:$0xff]
      %v1228 = vld [vmem:[%s1175 + $0x1a0] sm:$0xff]
      %v1229 = vld [vmem:[%s1175 + $0x1a8] sm:$0xff]
      %v1230 = vld [vmem:[%s1175 + $0x1b0] sm:$0xff]
      %v1231 = vld [vmem:[%s1175 + $0x1b8] sm:$0xff]
      %v1232 = vld [vmem:[%s1175 + $0x1c0] sm:$0xff]
      %v1233 = vld [vmem:[%s1175 + $0x1c8] sm:$0xff]
      %v1234 = vld [vmem:[%s1175 + $0x1d0] sm:$0xff]
      %v1235 = vld [vmem:[%s1175 + $0x1d8] sm:$0xff]
      %v1236 = vld [vmem:[%s1175 + $0x1e0] sm:$0xff]
      %v1237 = vld [vmem:[%s1175 + $0x1e8] sm:$0xff]
      %v1238 = vld [vmem:[%s1175 + $0x1f0] sm:$0xff]
      %v1239 = vld [vmem:[%s1175 + $0x1f8] sm:$0xff]
      %v1240 = vld [vmem:[%s1175 + $0x200] sm:$0xff]
      %v1241 = vld [vmem:[%s1175 + $0x208] sm:$0xff]
      %v1242 = vld [vmem:[%s1175 + $0x210] sm:$0xff]
      %v1243 = vld [vmem:[%s1175 + $0x218] sm:$0xff]
      %v1244 = vld [vmem:[%s1175 + $0x220] sm:$0xff]
      %v1245 = vld [vmem:[%s1175 + $0x228] sm:$0xff]
      %v1246 = vld [vmem:[%s1175 + $0x230] sm:$0xff]
      %v1247 = vld [vmem:[%s1175 + $0x238] sm:$0xff]
      %v1248 = vld [vmem:[%s1175 + $0x240] sm:$0xff]
      %v1249 = vld [vmem:[%s1175 + $0x248] sm:$0xff]
      %v1250 = vld [vmem:[%s1175 + $0x250] sm:$0xff]
      %v1251 = vld [vmem:[%s1175 + $0x258] sm:$0xff]
      %v1252 = vld [vmem:[%s1175 + $0x260] sm:$0xff]
      %v1253 = vld [vmem:[%s1175 + $0x268] sm:$0xff]
      %v1254 = vld [vmem:[%s1175 + $0x270] sm:$0xff]
      %v1255 = vld [vmem:[%s1175 + $0x278] sm:$0xff]
      %v1256 = vld [vmem:[%s1175 + $0x280] sm:$0xff]
      %v1257 = vld [vmem:[%s1175 + $0x288] sm:$0xff]
      %v1258 = vld [vmem:[%s1175 + $0x290] sm:$0xff]
      %v1259 = vld [vmem:[%s1175 + $0x298] sm:$0xff]
      %v1260 = vld [vmem:[%s1175 + $0x2a0] sm:$0xff]
      %v1261 = vld [vmem:[%s1175 + $0x2a8] sm:$0xff]
      %v1262 = vld [vmem:[%s1175 + $0x2b0] sm:$0xff]
      %v1263 = vld [vmem:[%s1175 + $0x2b8] sm:$0xff]
      %v1264 = vld [vmem:[%s1175 + $0x2c0] sm:$0xff]
      %v1265 = vld [vmem:[%s1175 + $0x2c8] sm:$0xff]
      %v1266 = vld [vmem:[%s1175 + $0x2d0] sm:$0xff]
      %v1267 = vld [vmem:[%s1175 + $0x2d8] sm:$0xff]
      %v1268 = vld [vmem:[%s1175 + $0x2e0] sm:$0xff]
      %v1269 = vld [vmem:[%s1175 + $0x2e8] sm:$0xff]
      %v1270 = vld [vmem:[%s1175 + $0x2f0] sm:$0xff]
      %v1271 = vld [vmem:[%s1175 + $0x2f8] sm:$0xff]
      %v1272 = vld [vmem:[%s1175 + $0x300] sm:$0xff]
      %v1273 = vld [vmem:[%s1175 + $0x308] sm:$0xff]
      %v1274 = vld [vmem:[%s1175 + $0x310] sm:$0xff]
      %v1275 = vld [vmem:[%s1175 + $0x318] sm:$0xff]
      %v1276 = vld [vmem:[%s1175 + $0x320] sm:$0xff]
      %v1277 = vld [vmem:[%s1175 + $0x328] sm:$0xff]
      %v1278 = vld [vmem:[%s1175 + $0x330] sm:$0xff]
      %v1279 = vld [vmem:[%s1175 + $0x338] sm:$0xff]
      %v1280 = vld [vmem:[%s1175 + $0x340] sm:$0xff]
      %v1281 = vld [vmem:[%s1175 + $0x348] sm:$0xff]
      %v1282 = vld [vmem:[%s1175 + $0x350] sm:$0xff]
      %v1283 = vld [vmem:[%s1175 + $0x358] sm:$0xff]
      %v1284 = vld [vmem:[%s1175 + $0x360] sm:$0xff]
      %v1285 = vld [vmem:[%s1175 + $0x368] sm:$0xff]
      %v1286 = vld [vmem:[%s1175 + $0x370] sm:$0xff]
      %v1287 = vld [vmem:[%s1175 + $0x378] sm:$0xff]
      %v1288 = vld [vmem:[%s1175 + $0x380] sm:$0xff]
      %v1289 = vld [vmem:[%s1175 + $0x388] sm:$0xff]
      %v1290 = vld [vmem:[%s1175 + $0x390] sm:$0xff]
      %v1291 = vld [vmem:[%s1175 + $0x398] sm:$0xff]
      %v1292 = vld [vmem:[%s1175 + $0x3a0] sm:$0xff]
      %v1293 = vld [vmem:[%s1175 + $0x3a8] sm:$0xff]
      %v1294 = vld [vmem:[%s1175 + $0x3b0] sm:$0xff]
      %v1295 = vld [vmem:[%s1175 + $0x3b8] sm:$0xff]
      %v1296 = vld [vmem:[%s1175 + $0x3c0] sm:$0xff]
      %v1297 = vld [vmem:[%s1175 + $0x3c8] sm:$0xff]
      %v1298 = vld [vmem:[%s1175 + $0x3d0] sm:$0xff]
      %v1299 = vld [vmem:[%s1175 + $0x3d8] sm:$0xff]
      %v1300 = vld [vmem:[%s1175 + $0x3e0] sm:$0xff]
      %v1301 = vld [vmem:[%s1175 + $0x3e8] sm:$0xff]
      %v1302 = vld [vmem:[%s1175 + $0x3f0] sm:$0xff]
      %v1303 = vld [vmem:[%s1175 + $0x3f8] sm:$0xff]
      %v1304 = vld [vmem:[%s1175 + $0x400] sm:$0xff]
      %v1305 = vld [vmem:[%s1175 + $0x408] sm:$0xff]
      %v1306 = vld [vmem:[%s1175 + $0x410] sm:$0xff]
      %v1307 = vld [vmem:[%s1175 + $0x418] sm:$0xff]
      %v1308 = vld [vmem:[%s1175 + $0x420] sm:$0xff]
      %v1309 = vld [vmem:[%s1175 + $0x428] sm:$0xff]
      %v1310 = vld [vmem:[%s1175 + $0x430] sm:$0xff]
      %v1311 = vld [vmem:[%s1175 + $0x438] sm:$0xff]
      %v1312 = vld [vmem:[%s1175 + $0x440] sm:$0xff]
      %v1313 = vld [vmem:[%s1175 + $0x448] sm:$0xff]
      %v1314 = vld [vmem:[%s1175 + $0x450] sm:$0xff]
      %v1315 = vld [vmem:[%s1175 + $0x458] sm:$0xff]
      %v1316 = vld [vmem:[%s1175 + $0x460] sm:$0xff]
      %v1317 = vld [vmem:[%s1175 + $0x468] sm:$0xff]
      %v1318 = vld [vmem:[%s1175 + $0x470] sm:$0xff]
      %v1319 = vld [vmem:[%s1175 + $0x478] sm:$0xff]
      %v1320 = vld [vmem:[%s1175 + $0x480] sm:$0xff]
      %v1321 = vld [vmem:[%s1175 + $0x488] sm:$0xff]
      %v1322 = vld [vmem:[%s1175 + $0x490] sm:$0xff]
      %v1323 = vld [vmem:[%s1175 + $0x498] sm:$0xff]
      %v1324 = vld [vmem:[%s1175 + $0x4a0] sm:$0xff]
      %v1325 = vld [vmem:[%s1175 + $0x4a8] sm:$0xff]
      %v1326 = vld [vmem:[%s1175 + $0x4b0] sm:$0xff]
      %v1327 = vld [vmem:[%s1175 + $0x4b8] sm:$0xff]
      %v1328 = vld [vmem:[%s1175 + $0x4c0] sm:$0xff]
      %v1329 = vld [vmem:[%s1175 + $0x4c8] sm:$0xff]
      %v1330 = vld [vmem:[%s1175 + $0x4d0] sm:$0xff]
      %v1331 = vld [vmem:[%s1175 + $0x4d8] sm:$0xff]
      %v1332 = vld [vmem:[%s1175 + $0x4e0] sm:$0xff]
      %v1333 = vld [vmem:[%s1175 + $0x4e8] sm:$0xff]
      %v1334 = vld [vmem:[%s1175 + $0x4f0] sm:$0xff]
      %v1335 = vld [vmem:[%s1175 + $0x4f8] sm:$0xff]
      %v1337 = vsel %vm403, %v1180, 0
      %v1340 = vsel %vm403, %v1185, 0
      %v1343 = vsel %vm403, %v1190, 0
      %v1346 = vsel %vm403, %v1195, 0
      %v1349 = vsel %vm403, %v1200, 0
      %v1352 = vsel %vm403, %v1205, 0
      %v1355 = vsel %vm403, %v1210, 0
      %v1358 = vsel %vm403, %v1215, 0
      %v1361 = vsel %vm403, %v1220, 0
      %v1364 = vsel %vm403, %v1225, 0
      %v1367 = vsel %vm403, %v1230, 0
      %v1370 = vsel %vm403, %v1235, 0
      %v1373 = vsel %vm403, %v1240, 0
      %v1376 = vsel %vm403, %v1245, 0
      %v1379 = vsel %vm403, %v1250, 0
      %v1382 = vsel %vm403, %v1255, 0
      %v1385 = vsel %vm403, %v1260, 0
      %v1388 = vsel %vm403, %v1265, 0
      %v1391 = vsel %vm403, %v1270, 0
      %v1394 = vsel %vm403, %v1275, 0
      %v1397 = vsel %vm403, %v1280, 0
      %v1400 = vsel %vm403, %v1285, 0
      %v1403 = vsel %vm403, %v1290, 0
      %v1406 = vsel %vm403, %v1295, 0
      %v1409 = vsel %vm403, %v1300, 0
      %v1412 = vsel %vm403, %v1305, 0
      %v1415 = vsel %vm403, %v1310, 0
      %v1418 = vsel %vm403, %v1315, 0
      %v1421 = vsel %vm403, %v1320, 0
      %v1424 = vsel %vm403, %v1325, 0
      %v1427 = vsel %vm403, %v1330, 0
      %v1430 = vsel %vm403, %v1335, 0
      %1432 = vmatprep.subr.mxu0 0.0
      %1433 = vmatpush1.msra.mxu0 %v171
      %1434 = vmatprep.subr.mxu0 0.0
      %1435 = vmatpush1.msra.mxu0 %v172
      %1436 = vmatprep.subr.mxu0 0.0
      %1437 = vmatpush1.msra.mxu0 %v173
      %1438 = vmatprep.subr.mxu0 0.0
      %1439 = vmatpush1.msra.mxu0 %v174
      %1440 = vmatprep.subr.mxu0 0.0
      %1441 = vmatpush1.msra.mxu0 %v175
      %1442 = vmatprep.subr.mxu0 0.0
      %1443 = vmatpush1.msra.mxu0 %v176
      %1444 = vmatprep.subr.mxu0 0.0
      %1445 = vmatpush1.msra.mxu0 %v177
      %1446 = vmatprep.subr.mxu0 0.0
      %1447 = vmatpush1.msra.mxu0 %v178
      %1448 = vmatprep.subr.mxu0 0.0
      %1449 = vmatpush1.msra.mxu0 %v179
      %1450 = vmatprep.subr.mxu0 0.0
      %1451 = vmatpush1.msra.mxu0 %v180
      %1452 = vmatprep.subr.mxu0 0.0
      %1453 = vmatpush1.msra.mxu0 %v181
      %1454 = vmatprep.subr.mxu0 0.0
      %1455 = vmatpush1.msra.mxu0 %v182
      %1456 = vmatprep.subr.mxu0 0.0
      %1457 = vmatpush1.msra.mxu0 %v183
      %1458 = vmatprep.subr.mxu0 0.0
      %1459 = vmatpush1.msra.mxu0 %v184
      %1460 = vmatprep.subr.mxu0 0.0
      %1461 = vmatpush1.msra.mxu0 %v185
      %1462 = vmatprep.subr.mxu0 0.0
      %1463 = vmatpush1.msra.mxu0 %v186
      %1464 = vmatprep.subr.mxu0 0.0
      %1465 = vmatpush1.msra.mxu0 %v187
      %1466 = vmatprep.subr.mxu0 0.0
      %1467 = vmatpush1.msra.mxu0 %v188
      %1468 = vmatprep.subr.mxu0 0.0
      %1469 = vmatpush1.msra.mxu0 %v189
      %1470 = vmatprep.subr.mxu0 0.0
      %1471 = vmatpush1.msra.mxu0 %v190
      %1472 = vmatprep.subr.mxu0 0.0
      %1473 = vmatpush1.msra.mxu0 %v191
      %1474 = vmatprep.subr.mxu0 0.0
      %1475 = vmatpush1.msra.mxu0 %v192
      %1476 = vmatprep.subr.mxu0 0.0
      %1477 = vmatpush1.msra.mxu0 %v193
      %1478 = vmatprep.subr.mxu0 0.0
      %1479 = vmatpush1.msra.mxu0 %v194
      %1480 = vmatprep.subr.mxu0 0.0
      %1481 = vmatpush1.msra.mxu0 %v195
      %1482 = vmatprep.subr.mxu0 0.0
      %1483 = vmatpush1.msra.mxu0 %v196
      %1484 = vmatprep.subr.mxu0 0.0
      %1485 = vmatpush1.msra.mxu0 %v197
      %1486 = vmatprep.subr.mxu0 0.0
      %1487 = vmatpush1.msra.mxu0 %v198
      %1488 = vmatprep.subr.mxu0 0.0
      %1489 = vmatpush1.msra.mxu0 %v199
      %1490 = vmatprep.subr.mxu0 0.0
      %1491 = vmatpush1.msra.mxu0 %v200
      %1492 = vmatprep.subr.mxu0 0.0
      %1493 = vmatpush1.msra.mxu0 %v201
      %1494 = vmatprep.subr.mxu0 0.0
      %1495 = vmatpush1.msra.mxu0 %v202
      %1496 = vmatprep.mubr.f32.mxu0 %v1177
      %1497 = vmatmul.mubr.f32.gmra.mrb[0].mxu0 %v1176
      %v1498 = vpop.f32.mrb[0].mxu0
      %v1499 = vadd.f32 0.0, %v1498
      %v1500 = vpop.f32.mrb[0].mxu0
      %1501 = vmatprep.mubr.f32.mxu0 %v1182
      %1502 = vmatmul.mubr.f32.gmra.mrb[0].mxu0 %v1181
      %v1503 = vpop.f32.mrb[0].mxu0
      %v1504 = vadd.f32 0.0, %v1503
      %v1505 = vpop.f32.mrb[0].mxu0
      %1506 = vmatprep.mubr.f32.mxu0 %v1187
      %1507 = vmatmul.mubr.f32.gmra.mrb[0].mxu0 %v1186
      %v1508 = vpop.f32.mrb[0].mxu0
      %v1509 = vadd.f32 0.0, %v1508
      %v1510 = vpop.f32.mrb[0].mxu0
      %1511 = vmatprep.mubr.f32.mxu0 %v1192
      %1512 = vmatmul.mubr.f32.gmra.mrb[0].mxu0 %v1191
      %v1513 = vpop.f32.mrb[0].mxu0
      %v1514 = vadd.f32 0.0, %v1513
      %v1515 = vpop.f32.mrb[0].mxu0
      %1516 = vmatprep.mubr.f32.mxu0 %v1197
      %1517 = vmatmul.mubr.f32.gmra.mrb[0].mxu0 %v1196
      %v1518 = vpop.f32.mrb[0].mxu0
      %v1519 = vadd.f32 0.0, %v1518
      %v1520 = vpop.f32.mrb[0].mxu0
      %1521 = vmatprep.mubr.f32.mxu0 %v1202
      %1522 = vmatmul.mubr.f32.gmra.mrb[0].mxu0 %v1201
      %v1523 = vpop.f32.mrb[0].mxu0
      %v1524 = vadd.f32 0.0, %v1523
      %v1525 = vpop.f32.mrb[0].mxu0
      %1526 = vmatprep.mubr.f32.mxu0 %v1207
      %1527 = vmatmul.mubr.f32.gmra.mrb[0].mxu0 %v1206
      %v1528 = vpop.f32.mrb[0].mxu0
      %v1529 = vadd.f32 0.0, %v1528
      %v1530 = vpop.f32.mrb[0].mxu0
      %1531 = vmatprep.mubr.f32.mxu0 %v1212
      %1532 = vmatmul.mubr.f32.gmra.mrb[0].mxu0 %v1211
      %v1533 = vpop.f32.mrb[0].mxu0
      %v1534 = vadd.f32 0.0, %v1533
      %v1535 = vpop.f32.mrb[0].mxu0
      %1536 = vmatprep.mubr.f32.mxu0 %v1217
      %1537 = vmatmul.mubr.f32.gmra.mrb[0].mxu0 %v1216
      %v1538 = vpop.f32.mrb[0].mxu0
      %v1539 = vadd.f32 0.0, %v1538
      %v1540 = vpop.f32.mrb[0].mxu0
      %1541 = vmatprep.mubr.f32.mxu0 %v1222
      %1542 = vmatmul.mubr.f32.gmra.mrb[0].mxu0 %v1221
      %v1543 = vpop.f32.mrb[0].mxu0
      %v1544 = vadd.f32 0.0, %v1543
      %v1545 = vpop.f32.mrb[0].mxu0
      %1546 = vmatprep.mubr.f32.mxu0 %v1227
      %1547 = vmatmul.mubr.f32.gmra.mrb[0].mxu0 %v1226
      %v1548 = vpop.f32.mrb[0].mxu0
      %v1549 = vadd.f32 0.0, %v1548
      %v1550 = vpop.f32.mrb[0].mxu0
      %1551 = vmatprep.mubr.f32.mxu0 %v1232
      %1552 = vmatmul.mubr.f32.gmra.mrb[0].mxu0 %v1231
      %v1553 = vpop.f32.mrb[0].mxu0
      %v1554 = vadd.f32 0.0, %v1553
      %v1555 = vpop.f32.mrb[0].mxu0
      %1556 = vmatprep.mubr.f32.mxu0 %v1237
      %1557 = vmatmul.mubr.f32.gmra.mrb[0].mxu0 %v1236
      %v1558 = vpop.f32.mrb[0].mxu0
      %v1559 = vadd.f32 0.0, %v1558
      %v1560 = vpop.f32.mrb[0].mxu0
      %1561 = vmatprep.mubr.f32.mxu0 %v1242
      %1562 = vmatmul.mubr.f32.gmra.mrb[0].mxu0 %v1241
      %v1563 = vpop.f32.mrb[0].mxu0
      %v1564 = vadd.f32 0.0, %v1563
      %v1565 = vpop.f32.mrb[0].mxu0
      %1566 = vmatprep.mubr.f32.mxu0 %v1247
      %1567 = vmatmul.mubr.f32.gmra.mrb[0].mxu0 %v1246
      %v1568 = vpop.f32.mrb[0].mxu0
      %v1569 = vadd.f32 0.0, %v1568
      %v1570 = vpop.f32.mrb[0].mxu0
      %1571 = vmatprep.mubr.f32.mxu0 %v1252
      %1572 = vmatmul.mubr.f32.gmra.mrb[0].mxu0 %v1251
      %v1573 = vpop.f32.mrb[0].mxu0
      %v1574 = vadd.f32 0.0, %v1573
      %v1575 = vpop.f32.mrb[0].mxu0
      %1576 = vmatprep.mubr.f32.mxu0 %v1257
      %1577 = vmatmul.mubr.f32.gmra.mrb[0].mxu0 %v1256
      %v1578 = vpop.f32.mrb[0].mxu0
      %v1579 = vadd.f32 0.0, %v1578
      %v1580 = vpop.f32.mrb[0].mxu0
      %1581 = vmatprep.mubr.f32.mxu0 %v1262
      %1582 = vmatmul.mubr.f32.gmra.mrb[0].mxu0 %v1261
      %v1583 = vpop.f32.mrb[0].mxu0
      %v1584 = vadd.f32 0.0, %v1583
      %v1585 = vpop.f32.mrb[0].mxu0
      %1586 = vmatprep.mubr.f32.mxu0 %v1267
      %1587 = vmatmul.mubr.f32.gmra.mrb[0].mxu0 %v1266
      %v1588 = vpop.f32.mrb[0].mxu0
      %v1589 = vadd.f32 0.0, %v1588
      %v1590 = vpop.f32.mrb[0].mxu0
      %1591 = vmatprep.mubr.f32.mxu0 %v1272
      %1592 = vmatmul.mubr.f32.gmra.mrb[0].mxu0 %v1271
      %v1593 = vpop.f32.mrb[0].mxu0
      %v1594 = vadd.f32 0.0, %v1593
      %v1595 = vpop.f32.mrb[0].mxu0
      %1596 = vmatprep.mubr.f32.mxu0 %v1277
      %1597 = vmatmul.mubr.f32.gmra.mrb[0].mxu0 %v1276
      %v1598 = vpop.f32.mrb[0].mxu0
      %v1599 = vadd.f32 0.0, %v1598
      %v1600 = vpop.f32.mrb[0].mxu0
      %1601 = vmatprep.mubr.f32.mxu0 %v1282
      %1602 = vmatmul.mubr.f32.gmra.mrb[0].mxu0 %v1281
      %v1603 = vpop.f32.mrb[0].mxu0
      %v1604 = vadd.f32 0.0, %v1603
      %v1605 = vpop.f32.mrb[0].mxu0
      %1606 = vmatprep.mubr.f32.mxu0 %v1287
      %1607 = vmatmul.mubr.f32.gmra.mrb[0].mxu0 %v1286
      %v1608 = vpop.f32.mrb[0].mxu0
      %v1609 = vadd.f32 0.0, %v1608
      %v1610 = vpop.f32.mrb[0].mxu0
      %1611 = vmatprep.mubr.f32.mxu0 %v1292
      %1612 = vmatmul.mubr.f32.gmra.mrb[0].mxu0 %v1291
      %v1613 = vpop.f32.mrb[0].mxu0
      %v1614 = vadd.f32 0.0, %v1613
      %v1615 = vpop.f32.mrb[0].mxu0
      %1616 = vmatprep.mubr.f32.mxu0 %v1297
      %1617 = vmatmul.mubr.f32.gmra.mrb[0].mxu0 %v1296
      %v1618 = vpop.f32.mrb[0].mxu0
      %v1619 = vadd.f32 0.0, %v1618
      %v1620 = vpop.f32.mrb[0].mxu0
      %1621 = vmatprep.mubr.f32.mxu0 %v1302
      %1622 = vmatmul.mubr.f32.gmra.mrb[0].mxu0 %v1301
      %v1623 = vpop.f32.mrb[0].mxu0
      %v1624 = vadd.f32 0.0, %v1623
      %v1625 = vpop.f32.mrb[0].mxu0
      %1626 = vmatprep.mubr.f32.mxu0 %v1307
      %1627 = vmatmul.mubr.f32.gmra.mrb[0].mxu0 %v1306
      %v1628 = vpop.f32.mrb[0].mxu0
      %v1629 = vadd.f32 0.0, %v1628
      %v1630 = vpop.f32.mrb[0].mxu0
      %1631 = vmatprep.mubr.f32.mxu0 %v1312
      %1632 = vmatmul.mubr.f32.gmra.mrb[0].mxu0 %v1311
      %v1633 = vpop.f32.mrb[0].mxu0
      %v1634 = vadd.f32 0.0, %v1633
      %v1635 = vpop.f32.mrb[0].mxu0
      %1636 = vmatprep.mubr.f32.mxu0 %v1317
      %1637 = vmatmul.mubr.f32.gmra.mrb[0].mxu0 %v1316
      %v1638 = vpop.f32.mrb[0].mxu0
      %v1639 = vadd.f32 0.0, %v1638
      %v1640 = vpop.f32.mrb[0].mxu0
      %1641 = vmatprep.mubr.f32.mxu0 %v1322
      %1642 = vmatmul.mubr.f32.gmra.mrb[0].mxu0 %v1321
      %v1643 = vpop.f32.mrb[0].mxu0
      %v1644 = vadd.f32 0.0, %v1643
      %v1645 = vpop.f32.mrb[0].mxu0
      %1646 = vmatprep.mubr.f32.mxu0 %v1327
      %1647 = vmatmul.mubr.f32.gmra.mrb[0].mxu0 %v1326
      %v1648 = vpop.f32.mrb[0].mxu0
      %v1649 = vadd.f32 0.0, %v1648
      %v1650 = vpop.f32.mrb[0].mxu0
      %1651 = vmatprep.mubr.f32.mxu0 %v1332
      %1652 = vmatmul.mubr.f32.gmra.mrb[0].mxu0 %v1331
      %v1653 = vpop.f32.mrb[0].mxu0
      %v1654 = vadd.f32 0.0, %v1653
      %v1655 = vpop.f32.mrb[0].mxu0
      %1656 = vdwg.mxu0
      %1657 = vmatprep.subr.mxu0 0.0
      %1658 = vmatpush1.msra.mxu0 %v203
      %1659 = vmatprep.subr.mxu0 0.0
      %1660 = vmatpush1.msra.mxu0 %v204
      %1661 = vmatprep.subr.mxu0 0.0
      %1662 = vmatpush1.msra.mxu0 %v205
      %1663 = vmatprep.subr.mxu0 0.0
      %1664 = vmatpush1.msra.mxu0 %v206
      %1665 = vmatprep.subr.mxu0 0.0
      %1666 = vmatpush1.msra.mxu0 %v207
      %1667 = vmatprep.subr.mxu0 0.0
      %1668 = vmatpush1.msra.mxu0 %v208
      %1669 = vmatprep.subr.mxu0 0.0
      %1670 = vmatpush1.msra.mxu0 %v209
      %1671 = vmatprep.subr.mxu0 0.0
      %1672 = vmatpush1.msra.mxu0 %v210
      %1673 = vmatprep.subr.mxu0 0.0
      %1674 = vmatpush1.msra.mxu0 %v211
      %1675 = vmatprep.subr.mxu0 0.0
      %1676 = vmatpush1.msra.mxu0 %v212
      %1677 = vmatprep.subr.mxu0 0.0
      %1678 = vmatpush1.msra.mxu0 %v213
      %1679 = vmatprep.subr.mxu0 0.0
      %1680 = vmatpush1.msra.mxu0 %v214
      %1681 = vmatprep.subr.mxu0 0.0
      %1682 = vmatpush1.msra.mxu0 %v215
      %1683 = vmatprep.subr.mxu0 0.0
      %1684 = vmatpush1.msra.mxu0 %v216
      %1685 = vmatprep.subr.mxu0 0.0
      %1686 = vmatpush1.msra.mxu0 %v217
      %1687 = vmatprep.subr.mxu0 0.0
      %1688 = vmatpush1.msra.mxu0 %v218
      %1689 = vmatprep.subr.mxu0 0.0
      %1690 = vmatpush1.msra.mxu0 %v219
      %1691 = vmatprep.subr.mxu0 0.0
      %1692 = vmatpush1.msra.mxu0 %v220
      %1693 = vmatprep.subr.mxu0 0.0
      %1694 = vmatpush1.msra.mxu0 %v221
      %1695 = vmatprep.subr.mxu0 0.0
      %1696 = vmatpush1.msra.mxu0 %v222
      %1697 = vmatprep.subr.mxu0 0.0
      %1698 = vmatpush1.msra.mxu0 %v223
      %1699 = vmatprep.subr.mxu0 0.0
      %1700 = vmatpush1.msra.mxu0 %v224
      %1701 = vmatprep.subr.mxu0 0.0
      %1702 = vmatpush1.msra.mxu0 %v225
      %1703 = vmatprep.subr.mxu0 0.0
      %1704 = vmatpush1.msra.mxu0 %v226
      %1705 = vmatprep.subr.mxu0 0.0
      %1706 = vmatpush1.msra.mxu0 %v227
      %1707 = vmatprep.subr.mxu0 0.0
      %1708 = vmatpush1.msra.mxu0 %v228
      %1709 = vmatprep.subr.mxu0 0.0
      %1710 = vmatpush1.msra.mxu0 %v229
      %1711 = vmatprep.subr.mxu0 0.0
      %1712 = vmatpush1.msra.mxu0 %v230
      %1713 = vmatprep.subr.mxu0 0.0
      %1714 = vmatpush1.msra.mxu0 %v231
      %1715 = vmatprep.subr.mxu0 0.0
      %1716 = vmatpush1.msra.mxu0 %v232
      %1717 = vmatprep.subr.mxu0 0.0
      %1718 = vmatpush1.msra.mxu0 %v233
      %1719 = vmatprep.subr.mxu0 0.0
      %1720 = vmatpush1.msra.mxu0 %v234
      %1721 = vmatprep.mubr.f32.mxu0 %v1179
      %1722 = vmatmul.mubr.f32.gmra.mrb[0].mxu0 %v1178
      %v1723 = vpop.f32.mrb[0].mxu0
      %v1724 = vadd.f32 %v1499, %v1723
      %v1725 = vpop.f32.mrb[0].mxu0
      %1726 = vmatprep.mubr.f32.mxu0 %v1184
      %1727 = vmatmul.mubr.f32.gmra.mrb[0].mxu0 %v1183
      %v1728 = vpop.f32.mrb[0].mxu0
      %v1729 = vadd.f32 %v1504, %v1728
      %v1730 = vpop.f32.mrb[0].mxu0
      %1731 = vmatprep.mubr.f32.mxu0 %v1189
      %1732 = vmatmul.mubr.f32.gmra.mrb[0].mxu0 %v1188
      %v1733 = vpop.f32.mrb[0].mxu0
      %v1734 = vadd.f32 %v1509, %v1733
      %v1735 = vpop.f32.mrb[0].mxu0
      %1736 = vmatprep.mubr.f32.mxu0 %v1194
      %1737 = vmatmul.mubr.f32.gmra.mrb[0].mxu0 %v1193
      %v1738 = vpop.f32.mrb[0].mxu0
      %v1739 = vadd.f32 %v1514, %v1738
      %v1740 = vpop.f32.mrb[0].mxu0
      %1741 = vmatprep.mubr.f32.mxu0 %v1199
      %1742 = vmatmul.mubr.f32.gmra.mrb[0].mxu0 %v1198
      %v1743 = vpop.f32.mrb[0].mxu0
      %v1744 = vadd.f32 %v1519, %v1743
      %v1745 = vpop.f32.mrb[0].mxu0
      %1746 = vmatprep.mubr.f32.mxu0 %v1204
      %1747 = vmatmul.mubr.f32.gmra.mrb[0].mxu0 %v1203
      %v1748 = vpop.f32.mrb[0].mxu0
      %v1749 = vadd.f32 %v1524, %v1748
      %v1750 = vpop.f32.mrb[0].mxu0
      %1751 = vmatprep.mubr.f32.mxu0 %v1209
      %1752 = vmatmul.mubr.f32.gmra.mrb[0].mxu0 %v1208
      %v1753 = vpop.f32.mrb[0].mxu0
      %v1754 = vadd.f32 %v1529, %v1753
      %v1755 = vpop.f32.mrb[0].mxu0
      %1756 = vmatprep.mubr.f32.mxu0 %v1214
      %1757 = vmatmul.mubr.f32.gmra.mrb[0].mxu0 %v1213
      %v1758 = vpop.f32.mrb[0].mxu0
      %v1759 = vadd.f32 %v1534, %v1758
      %v1760 = vpop.f32.mrb[0].mxu0
      %1761 = vmatprep.mubr.f32.mxu0 %v1219
      %1762 = vmatmul.mubr.f32.gmra.mrb[0].mxu0 %v1218
      %v1763 = vpop.f32.mrb[0].mxu0
      %v1764 = vadd.f32 %v1539, %v1763
      %v1765 = vpop.f32.mrb[0].mxu0
      %1766 = vmatprep.mubr.f32.mxu0 %v1224
      %1767 = vmatmul.mubr.f32.gmra.mrb[0].mxu0 %v1223
      %v1768 = vpop.f32.mrb[0].mxu0
      %v1769 = vadd.f32 %v1544, %v1768
      %v1770 = vpop.f32.mrb[0].mxu0
      %1771 = vmatprep.mubr.f32.mxu0 %v1229
      %1772 = vmatmul.mubr.f32.gmra.mrb[0].mxu0 %v1228
      %v1773 = vpop.f32.mrb[0].mxu0
      %v1774 = vadd.f32 %v1549, %v1773
      %v1775 = vpop.f32.mrb[0].mxu0
      %1776 = vmatprep.mubr.f32.mxu0 %v1234
      %1777 = vmatmul.mubr.f32.gmra.mrb[0].mxu0 %v1233
      %v1778 = vpop.f32.mrb[0].mxu0
      %v1779 = vadd.f32 %v1554, %v1778
      %v1780 = vpop.f32.mrb[0].mxu0
      %1781 = vmatprep.mubr.f32.mxu0 %v1239
      %1782 = vmatmul.mubr.f32.gmra.mrb[0].mxu0 %v1238
      %v1783 = vpop.f32.mrb[0].mxu0
      %v1784 = vadd.f32 %v1559, %v1783
      %v1785 = vpop.f32.mrb[0].mxu0
      %1786 = vmatprep.mubr.f32.mxu0 %v1244
      %1787 = vmatmul.mubr.f32.gmra.mrb[0].mxu0 %v1243
      %v1788 = vpop.f32.mrb[0].mxu0
      %v1789 = vadd.f32 %v1564, %v1788
      %v1790 = vpop.f32.mrb[0].mxu0
      %1791 = vmatprep.mubr.f32.mxu0 %v1249
      %1792 = vmatmul.mubr.f32.gmra.mrb[0].mxu0 %v1248
      %v1793 = vpop.f32.mrb[0].mxu0
      %v1794 = vadd.f32 %v1569, %v1793
      %v1795 = vpop.f32.mrb[0].mxu0
      %1796 = vmatprep.mubr.f32.mxu0 %v1254
      %1797 = vmatmul.mubr.f32.gmra.mrb[0].mxu0 %v1253
      %v1798 = vpop.f32.mrb[0].mxu0
      %v1799 = vadd.f32 %v1574, %v1798
      %v1800 = vpop.f32.mrb[0].mxu0
      %1801 = vmatprep.mubr.f32.mxu0 %v1259
      %1802 = vmatmul.mubr.f32.gmra.mrb[0].mxu0 %v1258
      %v1803 = vpop.f32.mrb[0].mxu0
      %v1804 = vadd.f32 %v1579, %v1803
      %v1805 = vpop.f32.mrb[0].mxu0
      %1806 = vmatprep.mubr.f32.mxu0 %v1264
      %1807 = vmatmul.mubr.f32.gmra.mrb[0].mxu0 %v1263
      %v1808 = vpop.f32.mrb[0].mxu0
      %v1809 = vadd.f32 %v1584, %v1808
      %v1810 = vpop.f32.mrb[0].mxu0
      %1811 = vmatprep.mubr.f32.mxu0 %v1269
      %1812 = vmatmul.mubr.f32.gmra.mrb[0].mxu0 %v1268
      %v1813 = vpop.f32.mrb[0].mxu0
      %v1814 = vadd.f32 %v1589, %v1813
      %v1815 = vpop.f32.mrb[0].mxu0
      %1816 = vmatprep.mubr.f32.mxu0 %v1274
      %1817 = vmatmul.mubr.f32.gmra.mrb[0].mxu0 %v1273
      %v1818 = vpop.f32.mrb[0].mxu0
      %v1819 = vadd.f32 %v1594, %v1818
      %v1820 = vpop.f32.mrb[0].mxu0
      %1821 = vmatprep.mubr.f32.mxu0 %v1279
      %1822 = vmatmul.mubr.f32.gmra.mrb[0].mxu0 %v1278
      %v1823 = vpop.f32.mrb[0].mxu0
      %v1824 = vadd.f32 %v1599, %v1823
      %v1825 = vpop.f32.mrb[0].mxu0
      %1826 = vmatprep.mubr.f32.mxu0 %v1284
      %1827 = vmatmul.mubr.f32.gmra.mrb[0].mxu0 %v1283
      %v1828 = vpop.f32.mrb[0].mxu0
      %v1829 = vadd.f32 %v1604, %v1828
      %v1830 = vpop.f32.mrb[0].mxu0
      %1831 = vmatprep.mubr.f32.mxu0 %v1289
      %1832 = vmatmul.mubr.f32.gmra.mrb[0].mxu0 %v1288
      %v1833 = vpop.f32.mrb[0].mxu0
      %v1834 = vadd.f32 %v1609, %v1833
      %v1835 = vpop.f32.mrb[0].mxu0
      %1836 = vmatprep.mubr.f32.mxu0 %v1294
      %1837 = vmatmul.mubr.f32.gmra.mrb[0].mxu0 %v1293
      %v1838 = vpop.f32.mrb[0].mxu0
      %v1839 = vadd.f32 %v1614, %v1838
      %v1840 = vpop.f32.mrb[0].mxu0
      %1841 = vmatprep.mubr.f32.mxu0 %v1299
      %1842 = vmatmul.mubr.f32.gmra.mrb[0].mxu0 %v1298
      %v1843 = vpop.f32.mrb[0].mxu0
      %v1844 = vadd.f32 %v1619, %v1843
      %v1845 = vpop.f32.mrb[0].mxu0
      %1846 = vmatprep.mubr.f32.mxu0 %v1304
      %1847 = vmatmul.mubr.f32.gmra.mrb[0].mxu0 %v1303
      %v1848 = vpop.f32.mrb[0].mxu0
      %v1849 = vadd.f32 %v1624, %v1848
      %v1850 = vpop.f32.mrb[0].mxu0
      %1851 = vmatprep.mubr.f32.mxu0 %v1309
      %1852 = vmatmul.mubr.f32.gmra.mrb[0].mxu0 %v1308
      %v1853 = vpop.f32.mrb[0].mxu0
      %v1854 = vadd.f32 %v1629, %v1853
      %v1855 = vpop.f32.mrb[0].mxu0
      %1856 = vmatprep.mubr.f32.mxu0 %v1314
      %1857 = vmatmul.mubr.f32.gmra.mrb[0].mxu0 %v1313
      %v1858 = vpop.f32.mrb[0].mxu0
      %v1859 = vadd.f32 %v1634, %v1858
      %v1860 = vpop.f32.mrb[0].mxu0
      %1861 = vmatprep.mubr.f32.mxu0 %v1319
      %1862 = vmatmul.mubr.f32.gmra.mrb[0].mxu0 %v1318
      %v1863 = vpop.f32.mrb[0].mxu0
      %v1864 = vadd.f32 %v1639, %v1863
      %v1865 = vpop.f32.mrb[0].mxu0
      %1866 = vmatprep.mubr.f32.mxu0 %v1324
      %1867 = vmatmul.mubr.f32.gmra.mrb[0].mxu0 %v1323
      %v1868 = vpop.f32.mrb[0].mxu0
      %v1869 = vadd.f32 %v1644, %v1868
      %v1870 = vpop.f32.mrb[0].mxu0
      %1871 = vmatprep.mubr.f32.mxu0 %v1329
      %1872 = vmatmul.mubr.f32.gmra.mrb[0].mxu0 %v1328
      %v1873 = vpop.f32.mrb[0].mxu0
      %v1874 = vadd.f32 %v1649, %v1873
      %v1875 = vpop.f32.mrb[0].mxu0
      %1876 = vmatprep.mubr.f32.mxu0 %v1334
      %1877 = vmatmul.mubr.f32.gmra.mrb[0].mxu0 %v1333
      %v1878 = vpop.f32.mrb[0].mxu0
      %v1879 = vadd.f32 %v1654, %v1878
      %v1880 = vpop.f32.mrb[0].mxu0
      %1881 = vdwg.mxu0
      %1882 = vmatprep.subr.mxu0 0.0
      %1883 = vmatpush1.msra.mxu0 %v235
      %1884 = vmatprep.subr.mxu0 0.0
      %1885 = vmatpush1.msra.mxu0 %v236
      %1886 = vmatprep.subr.mxu0 0.0
      %1887 = vmatpush1.msra.mxu0 %v237
      %1888 = vmatprep.subr.mxu0 0.0
      %1889 = vmatpush1.msra.mxu0 %v238
      %1890 = vmatprep.subr.mxu0 0.0
      %1891 = vmatpush1.msra.mxu0 %v239
      %1892 = vmatprep.subr.mxu0 0.0
      %1893 = vmatpush1.msra.mxu0 %v240
      %1894 = vmatprep.subr.mxu0 0.0
      %1895 = vmatpush1.msra.mxu0 %v241
      %1896 = vmatprep.subr.mxu0 0.0
      %1897 = vmatpush1.msra.mxu0 %v242
      %1898 = vmatprep.subr.mxu0 0.0
      %1899 = vmatpush1.msra.mxu0 0.0
      %1900 = vmatprep.subr.mxu0 0.0
      %1901 = vmatpush1.msra.mxu0 0.0
      %1902 = vmatprep.subr.mxu0 0.0
      %1903 = vmatpush1.msra.mxu0 0.0
      %1904 = vmatprep.subr.mxu0 0.0
      %1905 = vmatpush1.msra.mxu0 0.0
      %1906 = vmatprep.subr.mxu0 0.0
      %1907 = vmatpush1.msra.mxu0 0.0
      %1908 = vmatprep.subr.mxu0 0.0
      %1909 = vmatpush1.msra.mxu0 0.0
      %1910 = vmatprep.subr.mxu0 0.0
      %1911 = vmatpush1.msra.mxu0 0.0
      %1912 = vmatprep.subr.mxu0 0.0
      %1913 = vmatpush1.msra.mxu0 0.0
      %1914 = vmatprep.subr.mxu0 0.0
      %1915 = vmatpush1.msra.mxu0 0.0
      %1916 = vmatprep.subr.mxu0 0.0
      %1917 = vmatpush1.msra.mxu0 0.0
      %1918 = vmatprep.subr.mxu0 0.0
      %1919 = vmatpush1.msra.mxu0 0.0
      %1920 = vmatprep.subr.mxu0 0.0
      %1921 = vmatpush1.msra.mxu0 0.0
      %1922 = vmatprep.subr.mxu0 0.0
      %1923 = vmatpush1.msra.mxu0 0.0
      %1924 = vmatprep.subr.mxu0 0.0
      %1925 = vmatpush1.msra.mxu0 0.0
      %1926 = vmatprep.subr.mxu0 0.0
      %1927 = vmatpush1.msra.mxu0 0.0
      %1928 = vmatprep.subr.mxu0 0.0
      %1929 = vmatpush1.msra.mxu0 0.0
      %1930 = vmatprep.subr.mxu0 0.0
      %1931 = vmatpush1.msra.mxu0 0.0
      %1932 = vmatprep.subr.mxu0 0.0
      %1933 = vmatpush1.msra.mxu0 0.0
      %1934 = vmatprep.subr.mxu0 0.0
      %1935 = vmatpush1.msra.mxu0 0.0
      %1936 = vmatprep.subr.mxu0 0.0
      %1937 = vmatpush1.msra.mxu0 0.0
      %1938 = vmatprep.subr.mxu0 0.0
      %1939 = vmatpush1.msra.mxu0 0.0
      %1940 = vmatprep.subr.mxu0 0.0
      %1941 = vmatpush1.msra.mxu0 0.0
      %1942 = vmatprep.subr.mxu0 0.0
      %1943 = vmatpush1.msra.mxu0 0.0
      %1944 = vmatprep.subr.mxu0 0.0
      %1945 = vmatpush1.msra.mxu0 0.0
      %1946 = vmatprep.mubr.f32.mxu0 0.0
      %1947 = vmatmul.mubr.f32.gmra.mrb[0].mxu0 %v1337
      %v1948 = vpop.f32.mrb[0].mxu0
      %v1949 = vadd.f32 %v1724, %v1948
      %v1950 = vpop.f32.mrb[0].mxu0
      %1951 = vmatprep.mubr.f32.mxu0 0.0
      %1952 = vmatmul.mubr.f32.gmra.mrb[0].mxu0 %v1340
      %v1953 = vpop.f32.mrb[0].mxu0
      %v1954 = vadd.f32 %v1729, %v1953
      %v1955 = vpop.f32.mrb[0].mxu0
      %1956 = vmatprep.mubr.f32.mxu0 0.0
      %1957 = vmatmul.mubr.f32.gmra.mrb[0].mxu0 %v1343
      %v1958 = vpop.f32.mrb[0].mxu0
      %v1959 = vadd.f32 %v1734, %v1958
      %v1960 = vpop.f32.mrb[0].mxu0
      %1961 = vmatprep.mubr.f32.mxu0 0.0
      %1962 = vmatmul.mubr.f32.gmra.mrb[0].mxu0 %v1346
      %v1963 = vpop.f32.mrb[0].mxu0
      %v1964 = vadd.f32 %v1739, %v1963
      %v1965 = vpop.f32.mrb[0].mxu0
      %1966 = vmatprep.mubr.f32.mxu0 0.0
      %1967 = vmatmul.mubr.f32.gmra.mrb[0].mxu0 %v1349
      %v1968 = vpop.f32.mrb[0].mxu0
      %v1969 = vadd.f32 %v1744, %v1968
      %v1970 = vpop.f32.mrb[0].mxu0
      %1971 = vmatprep.mubr.f32.mxu0 0.0
      %1972 = vmatmul.mubr.f32.gmra.mrb[0].mxu0 %v1352
      %v1973 = vpop.f32.mrb[0].mxu0
      %v1974 = vadd.f32 %v1749, %v1973
      %v1975 = vpop.f32.mrb[0].mxu0
      %1976 = vmatprep.mubr.f32.mxu0 0.0
      %1977 = vmatmul.mubr.f32.gmra.mrb[0].mxu0 %v1355
      %v1978 = vpop.f32.mrb[0].mxu0
      %v1979 = vadd.f32 %v1754, %v1978
      %v1980 = vpop.f32.mrb[0].mxu0
      %1981 = vmatprep.mubr.f32.mxu0 0.0
      %1982 = vmatmul.mubr.f32.gmra.mrb[0].mxu0 %v1358
      %v1983 = vpop.f32.mrb[0].mxu0
      %v1984 = vadd.f32 %v1759, %v1983
      %v1985 = vpop.f32.mrb[0].mxu0
      %1986 = vmatprep.mubr.f32.mxu0 0.0
      %1987 = vmatmul.mubr.f32.gmra.mrb[0].mxu0 %v1361
      %v1988 = vpop.f32.mrb[0].mxu0
      %v1989 = vadd.f32 %v1764, %v1988
      %v1990 = vpop.f32.mrb[0].mxu0
      %1991 = vmatprep.mubr.f32.mxu0 0.0
      %1992 = vmatmul.mubr.f32.gmra.mrb[0].mxu0 %v1364
      %v1993 = vpop.f32.mrb[0].mxu0
      %v1994 = vadd.f32 %v1769, %v1993
      %v1995 = vpop.f32.mrb[0].mxu0
      %1996 = vmatprep.mubr.f32.mxu0 0.0
      %1997 = vmatmul.mubr.f32.gmra.mrb[0].mxu0 %v1367
      %v1998 = vpop.f32.mrb[0].mxu0
      %v1999 = vadd.f32 %v1774, %v1998
      %v2000 = vpop.f32.mrb[0].mxu0
      %2001 = vmatprep.mubr.f32.mxu0 0.0
      %2002 = vmatmul.mubr.f32.gmra.mrb[0].mxu0 %v1370
      %v2003 = vpop.f32.mrb[0].mxu0
      %v2004 = vadd.f32 %v1779, %v2003
      %v2005 = vpop.f32.mrb[0].mxu0
      %2006 = vmatprep.mubr.f32.mxu0 0.0
      %2007 = vmatmul.mubr.f32.gmra.mrb[0].mxu0 %v1373
      %v2008 = vpop.f32.mrb[0].mxu0
      %v2009 = vadd.f32 %v1784, %v2008
      %v2010 = vpop.f32.mrb[0].mxu0
      %2011 = vmatprep.mubr.f32.mxu0 0.0
      %2012 = vmatmul.mubr.f32.gmra.mrb[0].mxu0 %v1376
      %v2013 = vpop.f32.mrb[0].mxu0
      %v2014 = vadd.f32 %v1789, %v2013
      %v2015 = vpop.f32.mrb[0].mxu0
      %2016 = vmatprep.mubr.f32.mxu0 0.0
      %2017 = vmatmul.mubr.f32.gmra.mrb[0].mxu0 %v1379
      %v2018 = vpop.f32.mrb[0].mxu0
      %v2019 = vadd.f32 %v1794, %v2018
      %v2020 = vpop.f32.mrb[0].mxu0
      %2021 = vmatprep.mubr.f32.mxu0 0.0
      %2022 = vmatmul.mubr.f32.gmra.mrb[0].mxu0 %v1382
      %v2023 = vpop.f32.mrb[0].mxu0
      %v2024 = vadd.f32 %v1799, %v2023
      %v2025 = vpop.f32.mrb[0].mxu0
      %2026 = vmatprep.mubr.f32.mxu0 0.0
      %2027 = vmatmul.mubr.f32.gmra.mrb[0].mxu0 %v1385
      %v2028 = vpop.f32.mrb[0].mxu0
      %v2029 = vadd.f32 %v1804, %v2028
      %v2030 = vpop.f32.mrb[0].mxu0
      %2031 = vmatprep.mubr.f32.mxu0 0.0
      %2032 = vmatmul.mubr.f32.gmra.mrb[0].mxu0 %v1388
      %v2033 = vpop.f32.mrb[0].mxu0
      %v2034 = vadd.f32 %v1809, %v2033
      %v2035 = vpop.f32.mrb[0].mxu0
      %2036 = vmatprep.mubr.f32.mxu0 0.0
      %2037 = vmatmul.mubr.f32.gmra.mrb[0].mxu0 %v1391
      %v2038 = vpop.f32.mrb[0].mxu0
      %v2039 = vadd.f32 %v1814, %v2038
      %v2040 = vpop.f32.mrb[0].mxu0
      %2041 = vmatprep.mubr.f32.mxu0 0.0
      %2042 = vmatmul.mubr.f32.gmra.mrb[0].mxu0 %v1394
      %v2043 = vpop.f32.mrb[0].mxu0
      %v2044 = vadd.f32 %v1819, %v2043
      %v2045 = vpop.f32.mrb[0].mxu0
      %2046 = vmatprep.mubr.f32.mxu0 0.0
      %2047 = vmatmul.mubr.f32.gmra.mrb[0].mxu0 %v1397
      %v2048 = vpop.f32.mrb[0].mxu0
      %v2049 = vadd.f32 %v1824, %v2048
      %v2050 = vpop.f32.mrb[0].mxu0
      %2051 = vmatprep.mubr.f32.mxu0 0.0
      %2052 = vmatmul.mubr.f32.gmra.mrb[0].mxu0 %v1400
      %v2053 = vpop.f32.mrb[0].mxu0
      %v2054 = vadd.f32 %v1829, %v2053
      %v2055 = vpop.f32.mrb[0].mxu0
      %2056 = vmatprep.mubr.f32.mxu0 0.0
      %2057 = vmatmul.mubr.f32.gmra.mrb[0].mxu0 %v1403
      %v2058 = vpop.f32.mrb[0].mxu0
      %v2059 = vadd.f32 %v1834, %v2058
      %v2060 = vpop.f32.mrb[0].mxu0
      %2061 = vmatprep.mubr.f32.mxu0 0.0
      %2062 = vmatmul.mubr.f32.gmra.mrb[0].mxu0 %v1406
      %v2063 = vpop.f32.mrb[0].mxu0
      %v2064 = vadd.f32 %v1839, %v2063
      %v2065 = vpop.f32.mrb[0].mxu0
      %2066 = vmatprep.mubr.f32.mxu0 0.0
      %2067 = vmatmul.mubr.f32.gmra.mrb[0].mxu0 %v1409
      %v2068 = vpop.f32.mrb[0].mxu0
      %v2069 = vadd.f32 %v1844, %v2068
      %v2070 = vpop.f32.mrb[0].mxu0
      %2071 = vmatprep.mubr.f32.mxu0 0.0
      %2072 = vmatmul.mubr.f32.gmra.mrb[0].mxu0 %v1412
      %v2073 = vpop.f32.mrb[0].mxu0
      %v2074 = vadd.f32 %v1849, %v2073
      %v2075 = vpop.f32.mrb[0].mxu0
      %2076 = vmatprep.mubr.f32.mxu0 0.0
      %2077 = vmatmul.mubr.f32.gmra.mrb[0].mxu0 %v1415
      %v2078 = vpop.f32.mrb[0].mxu0
      %v2079 = vadd.f32 %v1854, %v2078
      %v2080 = vpop.f32.mrb[0].mxu0
      %2081 = vmatprep.mubr.f32.mxu0 0.0
      %2082 = vmatmul.mubr.f32.gmra.mrb[0].mxu0 %v1418
      %v2083 = vpop.f32.mrb[0].mxu0
      %v2084 = vadd.f32 %v1859, %v2083
      %v2085 = vpop.f32.mrb[0].mxu0
      %2086 = vmatprep.mubr.f32.mxu0 0.0
      %2087 = vmatmul.mubr.f32.gmra.mrb[0].mxu0 %v1421
      %v2088 = vpop.f32.mrb[0].mxu0
      %v2089 = vadd.f32 %v1864, %v2088
      %v2090 = vpop.f32.mrb[0].mxu0
      %2091 = vmatprep.mubr.f32.mxu0 0.0
      %2092 = vmatmul.mubr.f32.gmra.mrb[0].mxu0 %v1424
      %v2093 = vpop.f32.mrb[0].mxu0
      %v2094 = vadd.f32 %v1869, %v2093
      %v2095 = vpop.f32.mrb[0].mxu0
      %2096 = vmatprep.mubr.f32.mxu0 0.0
      %2097 = vmatmul.mubr.f32.gmra.mrb[0].mxu0 %v1427
      %v2098 = vpop.f32.mrb[0].mxu0
      %v2099 = vadd.f32 %v1874, %v2098
      %v2100 = vpop.f32.mrb[0].mxu0
      %2101 = vmatprep.mubr.f32.mxu0 0.0
      %2102 = vmatmul.mubr.f32.gmra.mrb[0].mxu0 %v1430
      %v2103 = vpop.f32.mrb[0].mxu0
      %v2104 = vadd.f32 %v1879, %v2103
      %v2105 = vpop.f32.mrb[0].mxu0
      %2106 = vdwg.mxu0
      %v2107 = vmax.f32 %v1017, %v1949
      %v2108 = vmax.f32 %v1022, %v1954
      %v2109 = vmax.f32 %v1027, %v1959
      %v2110 = vmax.f32 %v1032, %v1964
      %v2111 = vmax.f32 %v1037, %v1969
      %v2112 = vmax.f32 %v1042, %v1974
      %v2113 = vmax.f32 %v1047, %v1979
      %v2114 = vmax.f32 %v1052, %v1984
      %v2115 = vmax.f32 %v1057, %v1989
      %v2116 = vmax.f32 %v1062, %v1994
      %v2117 = vmax.f32 %v1067, %v1999
      %v2118 = vmax.f32 %v1072, %v2004
      %v2119 = vmax.f32 %v1077, %v2009
      %v2120 = vmax.f32 %v1082, %v2014
      %v2121 = vmax.f32 %v1087, %v2019
      %v2122 = vmax.f32 %v1092, %v2024
      %v2123 = vmax.f32 %v1097, %v2029
      %v2124 = vmax.f32 %v1102, %v2034
      %v2125 = vmax.f32 %v1107, %v2039
      %v2126 = vmax.f32 %v1112, %v2044
      %v2127 = vmax.f32 %v1117, %v2049
      %v2128 = vmax.f32 %v1122, %v2054
      %v2129 = vmax.f32 %v1127, %v2059
      %v2130 = vmax.f32 %v1132, %v2064
      %v2131 = vmax.f32 %v1137, %v2069
      %v2132 = vmax.f32 %v1142, %v2074
      %v2133 = vmax.f32 %v1147, %v2079
      %v2134 = vmax.f32 %v1152, %v2084
      %v2135 = vmax.f32 %v1157, %v2089
      %v2136 = vmax.f32 %v1162, %v2094
      %v2137 = vmax.f32 %v1167, %v2099
      %v2138 = vmax.f32 %v1172, %v2104
      %s2139 = scalar_lea.vmem %s165, 2560
      %v2140 = vld [vmem:[%s2139] sm:$0xff]
      %v2141 = vld [vmem:[%s2139 + $0x8] sm:$0xff]
      %v2142 = vld [vmem:[%s2139 + $0x10] sm:$0xff]
      %v2143 = vld [vmem:[%s2139 + $0x18] sm:$0xff]
      %v2144 = vld [vmem:[%s2139 + $0x20] sm:$0xff]
      %v2145 = vld [vmem:[%s2139 + $0x28] sm:$0xff]
      %v2146 = vld [vmem:[%s2139 + $0x30] sm:$0xff]
      %v2147 = vld [vmem:[%s2139 + $0x38] sm:$0xff]
      %v2148 = vld [vmem:[%s2139 + $0x40] sm:$0xff]
      %v2149 = vld [vmem:[%s2139 + $0x48] sm:$0xff]
      %v2150 = vld [vmem:[%s2139 + $0x50] sm:$0xff]
      %v2151 = vld [vmem:[%s2139 + $0x58] sm:$0xff]
      %v2152 = vld [vmem:[%s2139 + $0x60] sm:$0xff]
      %v2153 = vld [vmem:[%s2139 + $0x68] sm:$0xff]
      %v2154 = vld [vmem:[%s2139 + $0x70] sm:$0xff]
      %v2155 = vld [vmem:[%s2139 + $0x78] sm:$0xff]
      %v2156 = vld [vmem:[%s2139 + $0x80] sm:$0xff]
      %v2157 = vld [vmem:[%s2139 + $0x88] sm:$0xff]
      %v2158 = vld [vmem:[%s2139 + $0x90] sm:$0xff]
      %v2159 = vld [vmem:[%s2139 + $0x98] sm:$0xff]
      %v2160 = vld [vmem:[%s2139 + $0xa0] sm:$0xff]
      %v2161 = vld [vmem:[%s2139 + $0xa8] sm:$0xff]
      %v2162 = vld [vmem:[%s2139 + $0xb0] sm:$0xff]
      %v2163 = vld [vmem:[%s2139 + $0xb8] sm:$0xff]
      %v2164 = vld [vmem:[%s2139 + $0xc0] sm:$0xff]
      %v2165 = vld [vmem:[%s2139 + $0xc8] sm:$0xff]
      %v2166 = vld [vmem:[%s2139 + $0xd0] sm:$0xff]
      %v2167 = vld [vmem:[%s2139 + $0xd8] sm:$0xff]
      %v2168 = vld [vmem:[%s2139 + $0xe0] sm:$0xff]
      %v2169 = vld [vmem:[%s2139 + $0xe8] sm:$0xff]
      %v2170 = vld [vmem:[%s2139 + $0xf0] sm:$0xff]
      %v2171 = vld [vmem:[%s2139 + $0xf8] sm:$0xff]
      %v2172 = vld [vmem:[%s2139 + $0x100] sm:$0xff]
      %v2173 = vld [vmem:[%s2139 + $0x108] sm:$0xff]
      %v2174 = vld [vmem:[%s2139 + $0x110] sm:$0xff]
      %v2175 = vld [vmem:[%s2139 + $0x118] sm:$0xff]
      %v2176 = vld [vmem:[%s2139 + $0x120] sm:$0xff]
      %v2177 = vld [vmem:[%s2139 + $0x128] sm:$0xff]
      %v2178 = vld [vmem:[%s2139 + $0x130] sm:$0xff]
      %v2179 = vld [vmem:[%s2139 + $0x138] sm:$0xff]
      %v2180 = vld [vmem:[%s2139 + $0x140] sm:$0xff]
      %v2181 = vld [vmem:[%s2139 + $0x148] sm:$0xff]
      %v2182 = vld [vmem:[%s2139 + $0x150] sm:$0xff]
      %v2183 = vld [vmem:[%s2139 + $0x158] sm:$0xff]
      %v2184 = vld [vmem:[%s2139 + $0x160] sm:$0xff]
      %v2185 = vld [vmem:[%s2139 + $0x168] sm:$0xff]
      %v2186 = vld [vmem:[%s2139 + $0x170] sm:$0xff]
      %v2187 = vld [vmem:[%s2139 + $0x178] sm:$0xff]
      %v2188 = vld [vmem:[%s2139 + $0x180] sm:$0xff]
      %v2189 = vld [vmem:[%s2139 + $0x188] sm:$0xff]
      %v2190 = vld [vmem:[%s2139 + $0x190] sm:$0xff]
      %v2191 = vld [vmem:[%s2139 + $0x198] sm:$0xff]
      %v2192 = vld [vmem:[%s2139 + $0x1a0] sm:$0xff]
      %v2193 = vld [vmem:[%s2139 + $0x1a8] sm:$0xff]
      %v2194 = vld [vmem:[%s2139 + $0x1b0] sm:$0xff]
      %v2195 = vld [vmem:[%s2139 + $0x1b8] sm:$0xff]
      %v2196 = vld [vmem:[%s2139 + $0x1c0] sm:$0xff]
      %v2197 = vld [vmem:[%s2139 + $0x1c8] sm:$0xff]
      %v2198 = vld [vmem:[%s2139 + $0x1d0] sm:$0xff]
      %v2199 = vld [vmem:[%s2139 + $0x1d8] sm:$0xff]
      %v2200 = vld [vmem:[%s2139 + $0x1e0] sm:$0xff]
      %v2201 = vld [vmem:[%s2139 + $0x1e8] sm:$0xff]
      %v2202 = vld [vmem:[%s2139 + $0x1f0] sm:$0xff]
      %v2203 = vld [vmem:[%s2139 + $0x1f8] sm:$0xff]
      %v2204 = vld [vmem:[%s2139 + $0x200] sm:$0xff]
      %v2205 = vld [vmem:[%s2139 + $0x208] sm:$0xff]
      %v2206 = vld [vmem:[%s2139 + $0x210] sm:$0xff]
      %v2207 = vld [vmem:[%s2139 + $0x218] sm:$0xff]
      %v2208 = vld [vmem:[%s2139 + $0x220] sm:$0xff]
      %v2209 = vld [vmem:[%s2139 + $0x228] sm:$0xff]
      %v2210 = vld [vmem:[%s2139 + $0x230] sm:$0xff]
      %v2211 = vld [vmem:[%s2139 + $0x238] sm:$0xff]
      %v2212 = vld [vmem:[%s2139 + $0x240] sm:$0xff]
      %v2213 = vld [vmem:[%s2139 + $0x248] sm:$0xff]
      %v2214 = vld [vmem:[%s2139 + $0x250] sm:$0xff]
      %v2215 = vld [vmem:[%s2139 + $0x258] sm:$0xff]
      %v2216 = vld [vmem:[%s2139 + $0x260] sm:$0xff]
      %v2217 = vld [vmem:[%s2139 + $0x268] sm:$0xff]
      %v2218 = vld [vmem:[%s2139 + $0x270] sm:$0xff]
      %v2219 = vld [vmem:[%s2139 + $0x278] sm:$0xff]
      %v2220 = vld [vmem:[%s2139 + $0x280] sm:$0xff]
      %v2221 = vld [vmem:[%s2139 + $0x288] sm:$0xff]
      %v2222 = vld [vmem:[%s2139 + $0x290] sm:$0xff]
      %v2223 = vld [vmem:[%s2139 + $0x298] sm:$0xff]
      %v2224 = vld [vmem:[%s2139 + $0x2a0] sm:$0xff]
      %v2225 = vld [vmem:[%s2139 + $0x2a8] sm:$0xff]
      %v2226 = vld [vmem:[%s2139 + $0x2b0] sm:$0xff]
      %v2227 = vld [vmem:[%s2139 + $0x2b8] sm:$0xff]
      %v2228 = vld [vmem:[%s2139 + $0x2c0] sm:$0xff]
      %v2229 = vld [vmem:[%s2139 + $0x2c8] sm:$0xff]
      %v2230 = vld [vmem:[%s2139 + $0x2d0] sm:$0xff]
      %v2231 = vld [vmem:[%s2139 + $0x2d8] sm:$0xff]
      %v2232 = vld [vmem:[%s2139 + $0x2e0] sm:$0xff]
      %v2233 = vld [vmem:[%s2139 + $0x2e8] sm:$0xff]
      %v2234 = vld [vmem:[%s2139 + $0x2f0] sm:$0xff]
      %v2235 = vld [vmem:[%s2139 + $0x2f8] sm:$0xff]
      %v2236 = vld [vmem:[%s2139 + $0x300] sm:$0xff]
      %v2237 = vld [vmem:[%s2139 + $0x308] sm:$0xff]
      %v2238 = vld [vmem:[%s2139 + $0x310] sm:$0xff]
      %v2239 = vld [vmem:[%s2139 + $0x318] sm:$0xff]
      %v2240 = vld [vmem:[%s2139 + $0x320] sm:$0xff]
      %v2241 = vld [vmem:[%s2139 + $0x328] sm:$0xff]
      %v2242 = vld [vmem:[%s2139 + $0x330] sm:$0xff]
      %v2243 = vld [vmem:[%s2139 + $0x338] sm:$0xff]
      %v2244 = vld [vmem:[%s2139 + $0x340] sm:$0xff]
      %v2245 = vld [vmem:[%s2139 + $0x348] sm:$0xff]
      %v2246 = vld [vmem:[%s2139 + $0x350] sm:$0xff]
      %v2247 = vld [vmem:[%s2139 + $0x358] sm:$0xff]
      %v2248 = vld [vmem:[%s2139 + $0x360] sm:$0xff]
      %v2249 = vld [vmem:[%s2139 + $0x368] sm:$0xff]
      %v2250 = vld [vmem:[%s2139 + $0x370] sm:$0xff]
      %v2251 = vld [vmem:[%s2139 + $0x378] sm:$0xff]
      %v2252 = vld [vmem:[%s2139 + $0x380] sm:$0xff]
      %v2253 = vld [vmem:[%s2139 + $0x388] sm:$0xff]
      %v2254 = vld [vmem:[%s2139 + $0x390] sm:$0xff]
      %v2255 = vld [vmem:[%s2139 + $0x398] sm:$0xff]
      %v2256 = vld [vmem:[%s2139 + $0x3a0] sm:$0xff]
      %v2257 = vld [vmem:[%s2139 + $0x3a8] sm:$0xff]
      %v2258 = vld [vmem:[%s2139 + $0x3b0] sm:$0xff]
      %v2259 = vld [vmem:[%s2139 + $0x3b8] sm:$0xff]
      %v2260 = vld [vmem:[%s2139 + $0x3c0] sm:$0xff]
      %v2261 = vld [vmem:[%s2139 + $0x3c8] sm:$0xff]
      %v2262 = vld [vmem:[%s2139 + $0x3d0] sm:$0xff]
      %v2263 = vld [vmem:[%s2139 + $0x3d8] sm:$0xff]
      %v2264 = vld [vmem:[%s2139 + $0x3e0] sm:$0xff]
      %v2265 = vld [vmem:[%s2139 + $0x3e8] sm:$0xff]
      %v2266 = vld [vmem:[%s2139 + $0x3f0] sm:$0xff]
      %v2267 = vld [vmem:[%s2139 + $0x3f8] sm:$0xff]
      %v2268 = vld [vmem:[%s2139 + $0x400] sm:$0xff]
      %v2269 = vld [vmem:[%s2139 + $0x408] sm:$0xff]
      %v2270 = vld [vmem:[%s2139 + $0x410] sm:$0xff]
      %v2271 = vld [vmem:[%s2139 + $0x418] sm:$0xff]
      %v2272 = vld [vmem:[%s2139 + $0x420] sm:$0xff]
      %v2273 = vld [vmem:[%s2139 + $0x428] sm:$0xff]
      %v2274 = vld [vmem:[%s2139 + $0x430] sm:$0xff]
      %v2275 = vld [vmem:[%s2139 + $0x438] sm:$0xff]
      %v2276 = vld [vmem:[%s2139 + $0x440] sm:$0xff]
      %v2277 = vld [vmem:[%s2139 + $0x448] sm:$0xff]
      %v2278 = vld [vmem:[%s2139 + $0x450] sm:$0xff]
      %v2279 = vld [vmem:[%s2139 + $0x458] sm:$0xff]
      %v2280 = vld [vmem:[%s2139 + $0x460] sm:$0xff]
      %v2281 = vld [vmem:[%s2139 + $0x468] sm:$0xff]
      %v2282 = vld [vmem:[%s2139 + $0x470] sm:$0xff]
      %v2283 = vld [vmem:[%s2139 + $0x478] sm:$0xff]
      %v2284 = vld [vmem:[%s2139 + $0x480] sm:$0xff]
      %v2285 = vld [vmem:[%s2139 + $0x488] sm:$0xff]
      %v2286 = vld [vmem:[%s2139 + $0x490] sm:$0xff]
      %v2287 = vld [vmem:[%s2139 + $0x498] sm:$0xff]
      %v2288 = vld [vmem:[%s2139 + $0x4a0] sm:$0xff]
      %v2289 = vld [vmem:[%s2139 + $0x4a8] sm:$0xff]
      %v2290 = vld [vmem:[%s2139 + $0x4b0] sm:$0xff]
      %v2291 = vld [vmem:[%s2139 + $0x4b8] sm:$0xff]
      %v2292 = vld [vmem:[%s2139 + $0x4c0] sm:$0xff]
      %v2293 = vld [vmem:[%s2139 + $0x4c8] sm:$0xff]
      %v2294 = vld [vmem:[%s2139 + $0x4d0] sm:$0xff]
      %v2295 = vld [vmem:[%s2139 + $0x4d8] sm:$0xff]
      %v2296 = vld [vmem:[%s2139 + $0x4e0] sm:$0xff]
      %v2297 = vld [vmem:[%s2139 + $0x4e8] sm:$0xff]
      %v2298 = vld [vmem:[%s2139 + $0x4f0] sm:$0xff]
      %v2299 = vld [vmem:[%s2139 + $0x4f8] sm:$0xff]
      %v2301 = vsel %vm403, %v2144, 0
      %v2304 = vsel %vm403, %v2149, 0
      %v2307 = vsel %vm403, %v2154, 0
      %v2310 = vsel %vm403, %v2159, 0
      %v2313 = vsel %vm403, %v2164, 0
      %v2316 = vsel %vm403, %v2169, 0
      %v2319 = vsel %vm403, %v2174, 0
      %v2322 = vsel %vm403, %v2179, 0
      %v2325 = vsel %vm403, %v2184, 0
      %v2328 = vsel %vm403, %v2189, 0
      %v2331 = vsel %vm403, %v2194, 0
      %v2334 = vsel %vm403, %v2199, 0
      %v2337 = vsel %vm403, %v2204, 0
      %v2340 = vsel %vm403, %v2209, 0
      %v2343 = vsel %vm403, %v2214, 0
      %v2346 = vsel %vm403, %v2219, 0
      %v2349 = vsel %vm403, %v2224, 0
      %v2352 = vsel %vm403, %v2229, 0
      %v2355 = vsel %vm403, %v2234, 0
      %v2358 = vsel %vm403, %v2239, 0
      %v2361 = vsel %vm403, %v2244, 0
      %v2364 = vsel %vm403, %v2249, 0
      %v2367 = vsel %vm403, %v2254, 0
      %v2370 = vsel %vm403, %v2259, 0
      %v2373 = vsel %vm403, %v2264, 0
      %v2376 = vsel %vm403, %v2269, 0
      %v2379 = vsel %vm403, %v2274, 0
      %v2382 = vsel %vm403, %v2279, 0
      %v2385 = vsel %vm403, %v2284, 0
      %v2388 = vsel %vm403, %v2289, 0
      %v2391 = vsel %vm403, %v2294, 0
      %v2394 = vsel %vm403, %v2299, 0
      %2396 = vmatprep.subr.mxu0 0.0
      %2397 = vmatpush1.msra.mxu0 %v171
      %2398 = vmatprep.subr.mxu0 0.0
      %2399 = vmatpush1.msra.mxu0 %v172
      %2400 = vmatprep.subr.mxu0 0.0
      %2401 = vmatpush1.msra.mxu0 %v173
      %2402 = vmatprep.subr.mxu0 0.0
      %2403 = vmatpush1.msra.mxu0 %v174
      %2404 = vmatprep.subr.mxu0 0.0
      %2405 = vmatpush1.msra.mxu0 %v175
      %2406 = vmatprep.subr.mxu0 0.0
      %2407 = vmatpush1.msra.mxu0 %v176
      %2408 = vmatprep.subr.mxu0 0.0
      %2409 = vmatpush1.msra.mxu0 %v177
      %2410 = vmatprep.subr.mxu0 0.0
      %2411 = vmatpush1.msra.mxu0 %v178
      %2412 = vmatprep.subr.mxu0 0.0
      %2413 = vmatpush1.msra.mxu0 %v179
      %2414 = vmatprep.subr.mxu0 0.0
      %2415 = vmatpush1.msra.mxu0 %v180
      %2416 = vmatprep.subr.mxu0 0.0
      %2417 = vmatpush1.msra.mxu0 %v181
      %2418 = vmatprep.subr.mxu0 0.0
      %2419 = vmatpush1.msra.mxu0 %v182
      %2420 = vmatprep.subr.mxu0 0.0
      %2421 = vmatpush1.msra.mxu0 %v183
      %2422 = vmatprep.subr.mxu0 0.0
      %2423 = vmatpush1.msra.mxu0 %v184
      %2424 = vmatprep.subr.mxu0 0.0
      %2425 = vmatpush1.msra.mxu0 %v185
      %2426 = vmatprep.subr.mxu0 0.0
      %2427 = vmatpush1.msra.mxu0 %v186
      %2428 = vmatprep.subr.mxu0 0.0
      %2429 = vmatpush1.msra.mxu0 %v187
      %2430 = vmatprep.subr.mxu0 0.0
      %2431 = vmatpush1.msra.mxu0 %v188
      %2432 = vmatprep.subr.mxu0 0.0
      %2433 = vmatpush1.msra.mxu0 %v189
      %2434 = vmatprep.subr.mxu0 0.0
      %2435 = vmatpush1.msra.mxu0 %v190
      %2436 = vmatprep.subr.mxu0 0.0
      %2437 = vmatpush1.msra.mxu0 %v191
      %2438 = vmatprep.subr.mxu0 0.0
      %2439 = vmatpush1.msra.mxu0 %v192
      %2440 = vmatprep.subr.mxu0 0.0
      %2441 = vmatpush1.msra.mxu0 %v193
      %2442 = vmatprep.subr.mxu0 0.0
      %2443 = vmatpush1.msra.mxu0 %v194
      %2444 = vmatprep.subr.mxu0 0.0
      %2445 = vmatpush1.msra.mxu0 %v195
      %2446 = vmatprep.subr.mxu0 0.0
      %2447 = vmatpush1.msra.mxu0 %v196
      %2448 = vmatprep.subr.mxu0 0.0
      %2449 = vmatpush1.msra.mxu0 %v197
      %2450 = vmatprep.subr.mxu0 0.0
      %2451 = vmatpush1.msra.mxu0 %v198
      %2452 = vmatprep.subr.mxu0 0.0
      %2453 = vmatpush1.msra.mxu0 %v199
      %2454 = vmatprep.subr.mxu0 0.0
      %2455 = vmatpush1.msra.mxu0 %v200
      %2456 = vmatprep.subr.mxu0 0.0
      %2457 = vmatpush1.msra.mxu0 %v201
      %2458 = vmatprep.subr.mxu0 0.0
      %2459 = vmatpush1.msra.mxu0 %v202
      %2460 = vmatprep.mubr.f32.mxu0 %v2141
      %2461 = vmatmul.mubr.f32.gmra.mrb[0].mxu0 %v2140
      %v2462 = vpop.f32.mrb[0].mxu0
      %v2463 = vadd.f32 0.0, %v2462
      %v2464 = vpop.f32.mrb[0].mxu0
      %2465 = vmatprep.mubr.f32.mxu0 %v2146
      %2466 = vmatmul.mubr.f32.gmra.mrb[0].mxu0 %v2145
      %v2467 = vpop.f32.mrb[0].mxu0
      %v2468 = vadd.f32 0.0, %v2467
      %v2469 = vpop.f32.mrb[0].mxu0
      %2470 = vmatprep.mubr.f32.mxu0 %v2151
      %2471 = vmatmul.mubr.f32.gmra.mrb[0].mxu0 %v2150
      %v2472 = vpop.f32.mrb[0].mxu0
      %v2473 = vadd.f32 0.0, %v2472
      %v2474 = vpop.f32.mrb[0].mxu0
      %2475 = vmatprep.mubr.f32.mxu0 %v2156
      %2476 = vmatmul.mubr.f32.gmra.mrb[0].mxu0 %v2155
      %v2477 = vpop.f32.mrb[0].mxu0
      %v2478 = vadd.f32 0.0, %v2477
      %v2479 = vpop.f32.mrb[0].mxu0
      %2480 = vmatprep.mubr.f32.mxu0 %v2161
      %2481 = vmatmul.mubr.f32.gmra.mrb[0].mxu0 %v2160
      %v2482 = vpop.f32.mrb[0].mxu0
      %v2483 = vadd.f32 0.0, %v2482
      %v2484 = vpop.f32.mrb[0].mxu0
      %2485 = vmatprep.mubr.f32.mxu0 %v2166
      %2486 = vmatmul.mubr.f32.gmra.mrb[0].mxu0 %v2165
      %v2487 = vpop.f32.mrb[0].mxu0
      %v2488 = vadd.f32 0.0, %v2487
      %v2489 = vpop.f32.mrb[0].mxu0
      %2490 = vmatprep.mubr.f32.mxu0 %v2171
      %2491 = vmatmul.mubr.f32.gmra.mrb[0].mxu0 %v2170
      %v2492 = vpop.f32.mrb[0].mxu0
      %v2493 = vadd.f32 0.0, %v2492
      %v2494 = vpop.f32.mrb[0].mxu0
      %2495 = vmatprep.mubr.f32.mxu0 %v2176
      %2496 = vmatmul.mubr.f32.gmra.mrb[0].mxu0 %v2175
      %v2497 = vpop.f32.mrb[0].mxu0
      %v2498 = vadd.f32 0.0, %v2497
      %v2499 = vpop.f32.mrb[0].mxu0
      %2500 = vmatprep.mubr.f32.mxu0 %v2181
      %2501 = vmatmul.mubr.f32.gmra.mrb[0].mxu0 %v2180
      %v2502 = vpop.f32.mrb[0].mxu0
      %v2503 = vadd.f32 0.0, %v2502
      %v2504 = vpop.f32.mrb[0].mxu0
      %2505 = vmatprep.mubr.f32.mxu0 %v2186
      %2506 = vmatmul.mubr.f32.gmra.mrb[0].mxu0 %v2185
      %v2507 = vpop.f32.mrb[0].mxu0
      %v2508 = vadd.f32 0.0, %v2507
      %v2509 = vpop.f32.mrb[0].mxu0
      %2510 = vmatprep.mubr.f32.mxu0 %v2191
      %2511 = vmatmul.mubr.f32.gmra.mrb[0].mxu0 %v2190
      %v2512 = vpop.f32.mrb[0].mxu0
      %v2513 = vadd.f32 0.0, %v2512
      %v2514 = vpop.f32.mrb[0].mxu0
      %2515 = vmatprep.mubr.f32.mxu0 %v2196
      %2516 = vmatmul.mubr.f32.gmra.mrb[0].mxu0 %v2195
      %v2517 = vpop.f32.mrb[0].mxu0
      %v2518 = vadd.f32 0.0, %v2517
      %v2519 = vpop.f32.mrb[0].mxu0
      %2520 = vmatprep.mubr.f32.mxu0 %v2201
      %2521 = vmatmul.mubr.f32.gmra.mrb[0].mxu0 %v2200
      %v2522 = vpop.f32.mrb[0].mxu0
      %v2523 = vadd.f32 0.0, %v2522
      %v2524 = vpop.f32.mrb[0].mxu0
      %2525 = vmatprep.mubr.f32.mxu0 %v2206
      %2526 = vmatmul.mubr.f32.gmra.mrb[0].mxu0 %v2205
      %v2527 = vpop.f32.mrb[0].mxu0
      %v2528 = vadd.f32 0.0, %v2527
      %v2529 = vpop.f32.mrb[0].mxu0
      %2530 = vmatprep.mubr.f32.mxu0 %v2211
      %2531 = vmatmul.mubr.f32.gmra.mrb[0].mxu0 %v2210
      %v2532 = vpop.f32.mrb[0].mxu0
      %v2533 = vadd.f32 0.0, %v2532
      %v2534 = vpop.f32.mrb[0].mxu0
      %2535 = vmatprep.mubr.f32.mxu0 %v2216
      %2536 = vmatmul.mubr.f32.gmra.mrb[0].mxu0 %v2215
      %v2537 = vpop.f32.mrb[0].mxu0
      %v2538 = vadd.f32 0.0, %v2537
      %v2539 = vpop.f32.mrb[0].mxu0
      %2540 = vmatprep.mubr.f32.mxu0 %v2221
      %2541 = vmatmul.mubr.f32.gmra.mrb[0].mxu0 %v2220
      %v2542 = vpop.f32.mrb[0].mxu0
      %v2543 = vadd.f32 0.0, %v2542
      %v2544 = vpop.f32.mrb[0].mxu0
      %2545 = vmatprep.mubr.f32.mxu0 %v2226
      %2546 = vmatmul.mubr.f32.gmra.mrb[0].mxu0 %v2225
      %v2547 = vpop.f32.mrb[0].mxu0
      %v2548 = vadd.f32 0.0, %v2547
      %v2549 = vpop.f32.mrb[0].mxu0
      %2550 = vmatprep.mubr.f32.mxu0 %v2231
      %2551 = vmatmul.mubr.f32.gmra.mrb[0].mxu0 %v2230
      %v2552 = vpop.f32.mrb[0].mxu0
      %v2553 = vadd.f32 0.0, %v2552
      %v2554 = vpop.f32.mrb[0].mxu0
      %2555 = vmatprep.mubr.f32.mxu0 %v2236
      %2556 = vmatmul.mubr.f32.gmra.mrb[0].mxu0 %v2235
      %v2557 = vpop.f32.mrb[0].mxu0
      %v2558 = vadd.f32 0.0, %v2557
      %v2559 = vpop.f32.mrb[0].mxu0
      %2560 = vmatprep.mubr.f32.mxu0 %v2241
      %2561 = vmatmul.mubr.f32.gmra.mrb[0].mxu0 %v2240
      %v2562 = vpop.f32.mrb[0].mxu0
      %v2563 = vadd.f32 0.0, %v2562
      %v2564 = vpop.f32.mrb[0].mxu0
      %2565 = vmatprep.mubr.f32.mxu0 %v2246
      %2566 = vmatmul.mubr.f32.gmra.mrb[0].mxu0 %v2245
      %v2567 = vpop.f32.mrb[0].mxu0
      %v2568 = vadd.f32 0.0, %v2567
      %v2569 = vpop.f32.mrb[0].mxu0
      %2570 = vmatprep.mubr.f32.mxu0 %v2251
      %2571 = vmatmul.mubr.f32.gmra.mrb[0].mxu0 %v2250
      %v2572 = vpop.f32.mrb[0].mxu0
      %v2573 = vadd.f32 0.0, %v2572
      %v2574 = vpop.f32.mrb[0].mxu0
      %2575 = vmatprep.mubr.f32.mxu0 %v2256
      %2576 = vmatmul.mubr.f32.gmra.mrb[0].mxu0 %v2255
      %v2577 = vpop.f32.mrb[0].mxu0
      %v2578 = vadd.f32 0.0, %v2577
      %v2579 = vpop.f32.mrb[0].mxu0
      %2580 = vmatprep.mubr.f32.mxu0 %v2261
      %2581 = vmatmul.mubr.f32.gmra.mrb[0].mxu0 %v2260
      %v2582 = vpop.f32.mrb[0].mxu0
      %v2583 = vadd.f32 0.0, %v2582
      %v2584 = vpop.f32.mrb[0].mxu0
      %2585 = vmatprep.mubr.f32.mxu0 %v2266
      %2586 = vmatmul.mubr.f32.gmra.mrb[0].mxu0 %v2265
      %v2587 = vpop.f32.mrb[0].mxu0
      %v2588 = vadd.f32 0.0, %v2587
      %v2589 = vpop.f32.mrb[0].mxu0
      %2590 = vmatprep.mubr.f32.mxu0 %v2271
      %2591 = vmatmul.mubr.f32.gmra.mrb[0].mxu0 %v2270
      %v2592 = vpop.f32.mrb[0].mxu0
      %v2593 = vadd.f32 0.0, %v2592
      %v2594 = vpop.f32.mrb[0].mxu0
      %2595 = vmatprep.mubr.f32.mxu0 %v2276
      %2596 = vmatmul.mubr.f32.gmra.mrb[0].mxu0 %v2275
      %v2597 = vpop.f32.mrb[0].mxu0
      %v2598 = vadd.f32 0.0, %v2597
      %v2599 = vpop.f32.mrb[0].mxu0
      %2600 = vmatprep.mubr.f32.mxu0 %v2281
      %2601 = vmatmul.mubr.f32.gmra.mrb[0].mxu0 %v2280
      %v2602 = vpop.f32.mrb[0].mxu0
      %v2603 = vadd.f32 0.0, %v2602
      %v2604 = vpop.f32.mrb[0].mxu0
      %2605 = vmatprep.mubr.f32.mxu0 %v2286
      %2606 = vmatmul.mubr.f32.gmra.mrb[0].mxu0 %v2285
      %v2607 = vpop.f32.mrb[0].mxu0
      %v2608 = vadd.f32 0.0, %v2607
      %v2609 = vpop.f32.mrb[0].mxu0
      %2610 = vmatprep.mubr.f32.mxu0 %v2291
      %2611 = vmatmul.mubr.f32.gmra.mrb[0].mxu0 %v2290
      %v2612 = vpop.f32.mrb[0].mxu0
      %v2613 = vadd.f32 0.0, %v2612
      %v2614 = vpop.f32.mrb[0].mxu0
      %2615 = vmatprep.mubr.f32.mxu0 %v2296
      %2616 = vmatmul.mubr.f32.gmra.mrb[0].mxu0 %v2295
      %v2617 = vpop.f32.mrb[0].mxu0
      %v2618 = vadd.f32 0.0, %v2617
      %v2619 = vpop.f32.mrb[0].mxu0
      %2620 = vdwg.mxu0
      %2621 = vmatprep.subr.mxu0 0.0
      %2622 = vmatpush1.msra.mxu0 %v203
      %2623 = vmatprep.subr.mxu0 0.0
      %2624 = vmatpush1.msra.mxu0 %v204
      %2625 = vmatprep.subr.mxu0 0.0
      %2626 = vmatpush1.msra.mxu0 %v205
      %2627 = vmatprep.subr.mxu0 0.0
      %2628 = vmatpush1.msra.mxu0 %v206
      %2629 = vmatprep.subr.mxu0 0.0
      %2630 = vmatpush1.msra.mxu0 %v207
      %2631 = vmatprep.subr.mxu0 0.0
      %2632 = vmatpush1.msra.mxu0 %v208
      %2633 = vmatprep.subr.mxu0 0.0
      %2634 = vmatpush1.msra.mxu0 %v209
      %2635 = vmatprep.subr.mxu0 0.0
      %2636 = vmatpush1.msra.mxu0 %v210
      %2637 = vmatprep.subr.mxu0 0.0
      %2638 = vmatpush1.msra.mxu0 %v211
      %2639 = vmatprep.subr.mxu0 0.0
      %2640 = vmatpush1.msra.mxu0 %v212
      %2641 = vmatprep.subr.mxu0 0.0
      %2642 = vmatpush1.msra.mxu0 %v213
      %2643 = vmatprep.subr.mxu0 0.0
      %2644 = vmatpush1.msra.mxu0 %v214
      %2645 = vmatprep.subr.mxu0 0.0
      %2646 = vmatpush1.msra.mxu0 %v215
      %2647 = vmatprep.subr.mxu0 0.0
      %2648 = vmatpush1.msra.mxu0 %v216
      %2649 = vmatprep.subr.mxu0 0.0
      %2650 = vmatpush1.msra.mxu0 %v217
      %2651 = vmatprep.subr.mxu0 0.0
      %2652 = vmatpush1.msra.mxu0 %v218
      %2653 = vmatprep.subr.mxu0 0.0
      %2654 = vmatpush1.msra.mxu0 %v219
      %2655 = vmatprep.subr.mxu0 0.0
      %2656 = vmatpush1.msra.mxu0 %v220
      %2657 = vmatprep.subr.mxu0 0.0
      %2658 = vmatpush1.msra.mxu0 %v221
      %2659 = vmatprep.subr.mxu0 0.0
      %2660 = vmatpush1.msra.mxu0 %v222
      %2661 = vmatprep.subr.mxu0 0.0
      %2662 = vmatpush1.msra.mxu0 %v223
      %2663 = vmatprep.subr.mxu0 0.0
      %2664 = vmatpush1.msra.mxu0 %v224
      %2665 = vmatprep.subr.mxu0 0.0
      %2666 = vmatpush1.msra.mxu0 %v225
      %2667 = vmatprep.subr.mxu0 0.0
      %2668 = vmatpush1.msra.mxu0 %v226
      %2669 = vmatprep.subr.mxu0 0.0
      %2670 = vmatpush1.msra.mxu0 %v227
      %2671 = vmatprep.subr.mxu0 0.0
      %2672 = vmatpush1.msra.mxu0 %v228
      %2673 = vmatprep.subr.mxu0 0.0
      %2674 = vmatpush1.msra.mxu0 %v229
      %2675 = vmatprep.subr.mxu0 0.0
      %2676 = vmatpush1.msra.mxu0 %v230
      %2677 = vmatprep.subr.mxu0 0.0
      %2678 = vmatpush1.msra.mxu0 %v231
      %2679 = vmatprep.subr.mxu0 0.0
      %2680 = vmatpush1.msra.mxu0 %v232
      %2681 = vmatprep.subr.mxu0 0.0
      %2682 = vmatpush1.msra.mxu0 %v233
      %2683 = vmatprep.subr.mxu0 0.0
      %2684 = vmatpush1.msra.mxu0 %v234
      %2685 = vmatprep.mubr.f32.mxu0 %v2143
      %2686 = vmatmul.mubr.f32.gmra.mrb[0].mxu0 %v2142
      %v2687 = vpop.f32.mrb[0].mxu0
      %v2688 = vadd.f32 %v2463, %v2687
      %v2689 = vpop.f32.mrb[0].mxu0
      %2690 = vmatprep.mubr.f32.mxu0 %v2148
      %2691 = vmatmul.mubr.f32.gmra.mrb[0].mxu0 %v2147
      %v2692 = vpop.f32.mrb[0].mxu0
      %v2693 = vadd.f32 %v2468, %v2692
      %v2694 = vpop.f32.mrb[0].mxu0
      %2695 = vmatprep.mubr.f32.mxu0 %v2153
      %2696 = vmatmul.mubr.f32.gmra.mrb[0].mxu0 %v2152
      %v2697 = vpop.f32.mrb[0].mxu0
      %v2698 = vadd.f32 %v2473, %v2697
      %v2699 = vpop.f32.mrb[0].mxu0
      %2700 = vmatprep.mubr.f32.mxu0 %v2158
      %2701 = vmatmul.mubr.f32.gmra.mrb[0].mxu0 %v2157
      %v2702 = vpop.f32.mrb[0].mxu0
      %v2703 = vadd.f32 %v2478, %v2702
      %v2704 = vpop.f32.mrb[0].mxu0
      %2705 = vmatprep.mubr.f32.mxu0 %v2163
      %2706 = vmatmul.mubr.f32.gmra.mrb[0].mxu0 %v2162
      %v2707 = vpop.f32.mrb[0].mxu0
      %v2708 = vadd.f32 %v2483, %v2707
      %v2709 = vpop.f32.mrb[0].mxu0
      %2710 = vmatprep.mubr.f32.mxu0 %v2168
      %2711 = vmatmul.mubr.f32.gmra.mrb[0].mxu0 %v2167
      %v2712 = vpop.f32.mrb[0].mxu0
      %v2713 = vadd.f32 %v2488, %v2712
      %v2714 = vpop.f32.mrb[0].mxu0
      %2715 = vmatprep.mubr.f32.mxu0 %v2173
      %2716 = vmatmul.mubr.f32.gmra.mrb[0].mxu0 %v2172
      %v2717 = vpop.f32.mrb[0].mxu0
      %v2718 = vadd.f32 %v2493, %v2717
      %v2719 = vpop.f32.mrb[0].mxu0
      %2720 = vmatprep.mubr.f32.mxu0 %v2178
      %2721 = vmatmul.mubr.f32.gmra.mrb[0].mxu0 %v2177
      %v2722 = vpop.f32.mrb[0].mxu0
      %v2723 = vadd.f32 %v2498, %v2722
      %v2724 = vpop.f32.mrb[0].mxu0
      %2725 = vmatprep.mubr.f32.mxu0 %v2183
      %2726 = vmatmul.mubr.f32.gmra.mrb[0].mxu0 %v2182
      %v2727 = vpop.f32.mrb[0].mxu0
      %v2728 = vadd.f32 %v2503, %v2727
      %v2729 = vpop.f32.mrb[0].mxu0
      %2730 = vmatprep.mubr.f32.mxu0 %v2188
      %2731 = vmatmul.mubr.f32.gmra.mrb[0].mxu0 %v2187
      %v2732 = vpop.f32.mrb[0].mxu0
      %v2733 = vadd.f32 %v2508, %v2732
      %v2734 = vpop.f32.mrb[0].mxu0
      %2735 = vmatprep.mubr.f32.mxu0 %v2193
      %2736 = vmatmul.mubr.f32.gmra.mrb[0].mxu0 %v2192
      %v2737 = vpop.f32.mrb[0].mxu0
      %v2738 = vadd.f32 %v2513, %v2737
      %v2739 = vpop.f32.mrb[0].mxu0
      %2740 = vmatprep.mubr.f32.mxu0 %v2198
      %2741 = vmatmul.mubr.f32.gmra.mrb[0].mxu0 %v2197
      %v2742 = vpop.f32.mrb[0].mxu0
      %v2743 = vadd.f32 %v2518, %v2742
      %v2744 = vpop.f32.mrb[0].mxu0
      %2745 = vmatprep.mubr.f32.mxu0 %v2203
      %2746 = vmatmul.mubr.f32.gmra.mrb[0].mxu0 %v2202
      %v2747 = vpop.f32.mrb[0].mxu0
      %v2748 = vadd.f32 %v2523, %v2747
      %v2749 = vpop.f32.mrb[0].mxu0
      %2750 = vmatprep.mubr.f32.mxu0 %v2208
      %2751 = vmatmul.mubr.f32.gmra.mrb[0].mxu0 %v2207
      %v2752 = vpop.f32.mrb[0].mxu0
      %v2753 = vadd.f32 %v2528, %v2752
      %v2754 = vpop.f32.mrb[0].mxu0
      %2755 = vmatprep.mubr.f32.mxu0 %v2213
      %2756 = vmatmul.mubr.f32.gmra.mrb[0].mxu0 %v2212
      %v2757 = vpop.f32.mrb[0].mxu0
      %v2758 = vadd.f32 %v2533, %v2757
      %v2759 = vpop.f32.mrb[0].mxu0
      %2760 = vmatprep.mubr.f32.mxu0 %v2218
      %2761 = vmatmul.mubr.f32.gmra.mrb[0].mxu0 %v2217
      %v2762 = vpop.f32.mrb[0].mxu0
      %v2763 = vadd.f32 %v2538, %v2762
      %v2764 = vpop.f32.mrb[0].mxu0
      %2765 = vmatprep.mubr.f32.mxu0 %v2223
      %2766 = vmatmul.mubr.f32.gmra.mrb[0].mxu0 %v2222
      %v2767 = vpop.f32.mrb[0].mxu0
      %v2768 = vadd.f32 %v2543, %v2767
      %v2769 = vpop.f32.mrb[0].mxu0
      %2770 = vmatprep.mubr.f32.mxu0 %v2228
      %2771 = vmatmul.mubr.f32.gmra.mrb[0].mxu0 %v2227
      %v2772 = vpop.f32.mrb[0].mxu0
      %v2773 = vadd.f32 %v2548, %v2772
      %v2774 = vpop.f32.mrb[0].mxu0
      %2775 = vmatprep.mubr.f32.mxu0 %v2233
      %2776 = vmatmul.mubr.f32.gmra.mrb[0].mxu0 %v2232
      %v2777 = vpop.f32.mrb[0].mxu0
      %v2778 = vadd.f32 %v2553, %v2777
      %v2779 = vpop.f32.mrb[0].mxu0
      %2780 = vmatprep.mubr.f32.mxu0 %v2238
      %2781 = vmatmul.mubr.f32.gmra.mrb[0].mxu0 %v2237
      %v2782 = vpop.f32.mrb[0].mxu0
      %v2783 = vadd.f32 %v2558, %v2782
      %v2784 = vpop.f32.mrb[0].mxu0
      %2785 = vmatprep.mubr.f32.mxu0 %v2243
      %2786 = vmatmul.mubr.f32.gmra.mrb[0].mxu0 %v2242
      %v2787 = vpop.f32.mrb[0].mxu0
      %v2788 = vadd.f32 %v2563, %v2787
      %v2789 = vpop.f32.mrb[0].mxu0
      %2790 = vmatprep.mubr.f32.mxu0 %v2248
      %2791 = vmatmul.mubr.f32.gmra.mrb[0].mxu0 %v2247
      %v2792 = vpop.f32.mrb[0].mxu0
      %v2793 = vadd.f32 %v2568, %v2792
      %v2794 = vpop.f32.mrb[0].mxu0
      %2795 = vmatprep.mubr.f32.mxu0 %v2253
      %2796 = vmatmul.mubr.f32.gmra.mrb[0].mxu0 %v2252
      %v2797 = vpop.f32.mrb[0].mxu0
      %v2798 = vadd.f32 %v2573, %v2797
      %v2799 = vpop.f32.mrb[0].mxu0
      %2800 = vmatprep.mubr.f32.mxu0 %v2258
      %2801 = vmatmul.mubr.f32.gmra.mrb[0].mxu0 %v2257
      %v2802 = vpop.f32.mrb[0].mxu0
      %v2803 = vadd.f32 %v2578, %v2802
      %v2804 = vpop.f32.mrb[0].mxu0
      %2805 = vmatprep.mubr.f32.mxu0 %v2263
      %2806 = vmatmul.mubr.f32.gmra.mrb[0].mxu0 %v2262
      %v2807 = vpop.f32.mrb[0].mxu0
      %v2808 = vadd.f32 %v2583, %v2807
      %v2809 = vpop.f32.mrb[0].mxu0
      %2810 = vmatprep.mubr.f32.mxu0 %v2268
      %2811 = vmatmul.mubr.f32.gmra.mrb[0].mxu0 %v2267
      %v2812 = vpop.f32.mrb[0].mxu0
      %v2813 = vadd.f32 %v2588, %v2812
      %v2814 = vpop.f32.mrb[0].mxu0
      %2815 = vmatprep.mubr.f32.mxu0 %v2273
      %2816 = vmatmul.mubr.f32.gmra.mrb[0].mxu0 %v2272
      %v2817 = vpop.f32.mrb[0].mxu0
      %v2818 = vadd.f32 %v2593, %v2817
      %v2819 = vpop.f32.mrb[0].mxu0
      %2820 = vmatprep.mubr.f32.mxu0 %v2278
      %2821 = vmatmul.mubr.f32.gmra.mrb[0].mxu0 %v2277
      %v2822 = vpop.f32.mrb[0].mxu0
      %v2823 = vadd.f32 %v2598, %v2822
      %v2824 = vpop.f32.mrb[0].mxu0
      %2825 = vmatprep.mubr.f32.mxu0 %v2283
      %2826 = vmatmul.mubr.f32.gmra.mrb[0].mxu0 %v2282
      %v2827 = vpop.f32.mrb[0].mxu0
      %v2828 = vadd.f32 %v2603, %v2827
      %v2829 = vpop.f32.mrb[0].mxu0
      %2830 = vmatprep.mubr.f32.mxu0 %v2288
      %2831 = vmatmul.mubr.f32.gmra.mrb[0].mxu0 %v2287
      %v2832 = vpop.f32.mrb[0].mxu0
      %v2833 = vadd.f32 %v2608, %v2832
      %v2834 = vpop.f32.mrb[0].mxu0
      %2835 = vmatprep.mubr.f32.mxu0 %v2293
      %2836 = vmatmul.mubr.f32.gmra.mrb[0].mxu0 %v2292
      %v2837 = vpop.f32.mrb[0].mxu0
      %v2838 = vadd.f32 %v2613, %v2837
      %v2839 = vpop.f32.mrb[0].mxu0
      %2840 = vmatprep.mubr.f32.mxu0 %v2298
      %2841 = vmatmul.mubr.f32.gmra.mrb[0].mxu0 %v2297
      %v2842 = vpop.f32.mrb[0].mxu0
      %v2843 = vadd.f32 %v2618, %v2842
      %v2844 = vpop.f32.mrb[0].mxu0
      %2845 = vdwg.mxu0
      %2846 = vmatprep.subr.mxu0 0.0
      %2847 = vmatpush1.msra.mxu0 %v235
      %2848 = vmatprep.subr.mxu0 0.0
      %2849 = vmatpush1.msra.mxu0 %v236
      %2850 = vmatprep.subr.mxu0 0.0
      %2851 = vmatpush1.msra.mxu0 %v237
      %2852 = vmatprep.subr.mxu0 0.0
      %2853 = vmatpush1.msra.mxu0 %v238
      %2854 = vmatprep.subr.mxu0 0.0
      %2855 = vmatpush1.msra.mxu0 %v239
      %2856 = vmatprep.subr.mxu0 0.0
      %2857 = vmatpush1.msra.mxu0 %v240
      %2858 = vmatprep.subr.mxu0 0.0
      %2859 = vmatpush1.msra.mxu0 %v241
      %2860 = vmatprep.subr.mxu0 0.0
      %2861 = vmatpush1.msra.mxu0 %v242
      %2862 = vmatprep.subr.mxu0 0.0
      %2863 = vmatpush1.msra.mxu0 0.0
      %2864 = vmatprep.subr.mxu0 0.0
      %2865 = vmatpush1.msra.mxu0 0.0
      %2866 = vmatprep.subr.mxu0 0.0
      %2867 = vmatpush1.msra.mxu0 0.0
      %2868 = vmatprep.subr.mxu0 0.0
      %2869 = vmatpush1.msra.mxu0 0.0
      %2870 = vmatprep.subr.mxu0 0.0
      %2871 = vmatpush1.msra.mxu0 0.0
      %2872 = vmatprep.subr.mxu0 0.0
      %2873 = vmatpush1.msra.mxu0 0.0
      %2874 = vmatprep.subr.mxu0 0.0
      %2875 = vmatpush1.msra.mxu0 0.0
      %2876 = vmatprep.subr.mxu0 0.0
      %2877 = vmatpush1.msra.mxu0 0.0
      %2878 = vmatprep.subr.mxu0 0.0
      %2879 = vmatpush1.msra.mxu0 0.0
      %2880 = vmatprep.subr.mxu0 0.0
      %2881 = vmatpush1.msra.mxu0 0.0
      %2882 = vmatprep.subr.mxu0 0.0
      %2883 = vmatpush1.msra.mxu0 0.0
      %2884 = vmatprep.subr.mxu0 0.0
      %2885 = vmatpush1.msra.mxu0 0.0
      %2886 = vmatprep.subr.mxu0 0.0
      %2887 = vmatpush1.msra.mxu0 0.0
      %2888 = vmatprep.subr.mxu0 0.0
      %2889 = vmatpush1.msra.mxu0 0.0
      %2890 = vmatprep.subr.mxu0 0.0
      %2891 = vmatpush1.msra.mxu0 0.0
      %2892 = vmatprep.subr.mxu0 0.0
      %2893 = vmatpush1.msra.mxu0 0.0
      %2894 = vmatprep.subr.mxu0 0.0
      %2895 = vmatpush1.msra.mxu0 0.0
      %2896 = vmatprep.subr.mxu0 0.0
      %2897 = vmatpush1.msra.mxu0 0.0
      %2898 = vmatprep.subr.mxu0 0.0
      %2899 = vmatpush1.msra.mxu0 0.0
      %2900 = vmatprep.subr.mxu0 0.0
      %2901 = vmatpush1.msra.mxu0 0.0
      %2902 = vmatprep.subr.mxu0 0.0
      %2903 = vmatpush1.msra.mxu0 0.0
      %2904 = vmatprep.subr.mxu0 0.0
      %2905 = vmatpush1.msra.mxu0 0.0
      %2906 = vmatprep.subr.mxu0 0.0
      %2907 = vmatpush1.msra.mxu0 0.0
      %2908 = vmatprep.subr.mxu0 0.0
      %2909 = vmatpush1.msra.mxu0 0.0
      %2910 = vmatprep.mubr.f32.mxu0 0.0
      %2911 = vmatmul.mubr.f32.gmra.mrb[0].mxu0 %v2301
      %v2912 = vpop.f32.mrb[0].mxu0
      %v2913 = vadd.f32 %v2688, %v2912
      %v2914 = vpop.f32.mrb[0].mxu0
      %2915 = vmatprep.mubr.f32.mxu0 0.0
      %2916 = vmatmul.mubr.f32.gmra.mrb[0].mxu0 %v2304
      %v2917 = vpop.f32.mrb[0].mxu0
      %v2918 = vadd.f32 %v2693, %v2917
      %v2919 = vpop.f32.mrb[0].mxu0
      %2920 = vmatprep.mubr.f32.mxu0 0.0
      %2921 = vmatmul.mubr.f32.gmra.mrb[0].mxu0 %v2307
      %v2922 = vpop.f32.mrb[0].mxu0
      %v2923 = vadd.f32 %v2698, %v2922
      %v2924 = vpop.f32.mrb[0].mxu0
      %2925 = vmatprep.mubr.f32.mxu0 0.0
      %2926 = vmatmul.mubr.f32.gmra.mrb[0].mxu0 %v2310
      %v2927 = vpop.f32.mrb[0].mxu0
      %v2928 = vadd.f32 %v2703, %v2927
      %v2929 = vpop.f32.mrb[0].mxu0
      %2930 = vmatprep.mubr.f32.mxu0 0.0
      %2931 = vmatmul.mubr.f32.gmra.mrb[0].mxu0 %v2313
      %v2932 = vpop.f32.mrb[0].mxu0
      %v2933 = vadd.f32 %v2708, %v2932
      %v2934 = vpop.f32.mrb[0].mxu0
      %2935 = vmatprep.mubr.f32.mxu0 0.0
      %2936 = vmatmul.mubr.f32.gmra.mrb[0].mxu0 %v2316
      %v2937 = vpop.f32.mrb[0].mxu0
      %v2938 = vadd.f32 %v2713, %v2937
      %v2939 = vpop.f32.mrb[0].mxu0
      %2940 = vmatprep.mubr.f32.mxu0 0.0
      %2941 = vmatmul.mubr.f32.gmra.mrb[0].mxu0 %v2319
      %v2942 = vpop.f32.mrb[0].mxu0
      %v2943 = vadd.f32 %v2718, %v2942
      %v2944 = vpop.f32.mrb[0].mxu0
      %2945 = vmatprep.mubr.f32.mxu0 0.0
      %2946 = vmatmul.mubr.f32.gmra.mrb[0].mxu0 %v2322
      %v2947 = vpop.f32.mrb[0].mxu0
      %v2948 = vadd.f32 %v2723, %v2947
      %v2949 = vpop.f32.mrb[0].mxu0
      %2950 = vmatprep.mubr.f32.mxu0 0.0
      %2951 = vmatmul.mubr.f32.gmra.mrb[0].mxu0 %v2325
      %v2952 = vpop.f32.mrb[0].mxu0
      %v2953 = vadd.f32 %v2728, %v2952
      %v2954 = vpop.f32.mrb[0].mxu0
      %2955 = vmatprep.mubr.f32.mxu0 0.0
      %2956 = vmatmul.mubr.f32.gmra.mrb[0].mxu0 %v2328
      %v2957 = vpop.f32.mrb[0].mxu0
      %v2958 = vadd.f32 %v2733, %v2957
      %v2959 = vpop.f32.mrb[0].mxu0
      %2960 = vmatprep.mubr.f32.mxu0 0.0
      %2961 = vmatmul.mubr.f32.gmra.mrb[0].mxu0 %v2331
      %v2962 = vpop.f32.mrb[0].mxu0
      %v2963 = vadd.f32 %v2738, %v2962
      %v2964 = vpop.f32.mrb[0].mxu0
      %2965 = vmatprep.mubr.f32.mxu0 0.0
      %2966 = vmatmul.mubr.f32.gmra.mrb[0].mxu0 %v2334
      %v2967 = vpop.f32.mrb[0].mxu0
      %v2968 = vadd.f32 %v2743, %v2967
      %v2969 = vpop.f32.mrb[0].mxu0
      %2970 = vmatprep.mubr.f32.mxu0 0.0
      %2971 = vmatmul.mubr.f32.gmra.mrb[0].mxu0 %v2337
      %v2972 = vpop.f32.mrb[0].mxu0
      %v2973 = vadd.f32 %v2748, %v2972
      %v2974 = vpop.f32.mrb[0].mxu0
      %2975 = vmatprep.mubr.f32.mxu0 0.0
      %2976 = vmatmul.mubr.f32.gmra.mrb[0].mxu0 %v2340
      %v2977 = vpop.f32.mrb[0].mxu0
      %v2978 = vadd.f32 %v2753, %v2977
      %v2979 = vpop.f32.mrb[0].mxu0
      %2980 = vmatprep.mubr.f32.mxu0 0.0
      %2981 = vmatmul.mubr.f32.gmra.mrb[0].mxu0 %v2343
      %v2982 = vpop.f32.mrb[0].mxu0
      %v2983 = vadd.f32 %v2758, %v2982
      %v2984 = vpop.f32.mrb[0].mxu0
      %2985 = vmatprep.mubr.f32.mxu0 0.0
      %2986 = vmatmul.mubr.f32.gmra.mrb[0].mxu0 %v2346
      %v2987 = vpop.f32.mrb[0].mxu0
      %v2988 = vadd.f32 %v2763, %v2987
      %v2989 = vpop.f32.mrb[0].mxu0
      %2990 = vmatprep.mubr.f32.mxu0 0.0
      %2991 = vmatmul.mubr.f32.gmra.mrb[0].mxu0 %v2349
      %v2992 = vpop.f32.mrb[0].mxu0
      %v2993 = vadd.f32 %v2768, %v2992
      %v2994 = vpop.f32.mrb[0].mxu0
      %2995 = vmatprep.mubr.f32.mxu0 0.0
      %2996 = vmatmul.mubr.f32.gmra.mrb[0].mxu0 %v2352
      %v2997 = vpop.f32.mrb[0].mxu0
      %v2998 = vadd.f32 %v2773, %v2997
      %v2999 = vpop.f32.mrb[0].mxu0
      %3000 = vmatprep.mubr.f32.mxu0 0.0
      %3001 = vmatmul.mubr.f32.gmra.mrb[0].mxu0 %v2355
      %v3002 = vpop.f32.mrb[0].mxu0
      %v3003 = vadd.f32 %v2778, %v3002
      %v3004 = vpop.f32.mrb[0].mxu0
      %3005 = vmatprep.mubr.f32.mxu0 0.0
      %3006 = vmatmul.mubr.f32.gmra.mrb[0].mxu0 %v2358
      %v3007 = vpop.f32.mrb[0].mxu0
      %v3008 = vadd.f32 %v2783, %v3007
      %v3009 = vpop.f32.mrb[0].mxu0
      %3010 = vmatprep.mubr.f32.mxu0 0.0
      %3011 = vmatmul.mubr.f32.gmra.mrb[0].mxu0 %v2361
      %v3012 = vpop.f32.mrb[0].mxu0
      %v3013 = vadd.f32 %v2788, %v3012
      %v3014 = vpop.f32.mrb[0].mxu0
      %3015 = vmatprep.mubr.f32.mxu0 0.0
      %3016 = vmatmul.mubr.f32.gmra.mrb[0].mxu0 %v2364
      %v3017 = vpop.f32.mrb[0].mxu0
      %v3018 = vadd.f32 %v2793, %v3017
      %v3019 = vpop.f32.mrb[0].mxu0
      %3020 = vmatprep.mubr.f32.mxu0 0.0
      %3021 = vmatmul.mubr.f32.gmra.mrb[0].mxu0 %v2367
      %v3022 = vpop.f32.mrb[0].mxu0
      %v3023 = vadd.f32 %v2798, %v3022
      %v3024 = vpop.f32.mrb[0].mxu0
      %3025 = vmatprep.mubr.f32.mxu0 0.0
      %3026 = vmatmul.mubr.f32.gmra.mrb[0].mxu0 %v2370
      %v3027 = vpop.f32.mrb[0].mxu0
      %v3028 = vadd.f32 %v2803, %v3027
      %v3029 = vpop.f32.mrb[0].mxu0
      %3030 = vmatprep.mubr.f32.mxu0 0.0
      %3031 = vmatmul.mubr.f32.gmra.mrb[0].mxu0 %v2373
      %v3032 = vpop.f32.mrb[0].mxu0
      %v3033 = vadd.f32 %v2808, %v3032
      %v3034 = vpop.f32.mrb[0].mxu0
      %3035 = vmatprep.mubr.f32.mxu0 0.0
      %3036 = vmatmul.mubr.f32.gmra.mrb[0].mxu0 %v2376
      %v3037 = vpop.f32.mrb[0].mxu0
      %v3038 = vadd.f32 %v2813, %v3037
      %v3039 = vpop.f32.mrb[0].mxu0
      %3040 = vmatprep.mubr.f32.mxu0 0.0
      %3041 = vmatmul.mubr.f32.gmra.mrb[0].mxu0 %v2379
      %v3042 = vpop.f32.mrb[0].mxu0
      %v3043 = vadd.f32 %v2818, %v3042
      %v3044 = vpop.f32.mrb[0].mxu0
      %3045 = vmatprep.mubr.f32.mxu0 0.0
      %3046 = vmatmul.mubr.f32.gmra.mrb[0].mxu0 %v2382
      %v3047 = vpop.f32.mrb[0].mxu0
      %v3048 = vadd.f32 %v2823, %v3047
      %v3049 = vpop.f32.mrb[0].mxu0
      %3050 = vmatprep.mubr.f32.mxu0 0.0
      %3051 = vmatmul.mubr.f32.gmra.mrb[0].mxu0 %v2385
      %v3052 = vpop.f32.mrb[0].mxu0
      %v3053 = vadd.f32 %v2828, %v3052
      %v3054 = vpop.f32.mrb[0].mxu0
      %3055 = vmatprep.mubr.f32.mxu0 0.0
      %3056 = vmatmul.mubr.f32.gmra.mrb[0].mxu0 %v2388
      %v3057 = vpop.f32.mrb[0].mxu0
      %v3058 = vadd.f32 %v2833, %v3057
      %v3059 = vpop.f32.mrb[0].mxu0
      %3060 = vmatprep.mubr.f32.mxu0 0.0
      %3061 = vmatmul.mubr.f32.gmra.mrb[0].mxu0 %v2391
      %v3062 = vpop.f32.mrb[0].mxu0
      %v3063 = vadd.f32 %v2838, %v3062
      %v3064 = vpop.f32.mrb[0].mxu0
      %3065 = vmatprep.mubr.f32.mxu0 0.0
      %3066 = vmatmul.mubr.f32.gmra.mrb[0].mxu0 %v2394
      %v3067 = vpop.f32.mrb[0].mxu0
      %v3068 = vadd.f32 %v2843, %v3067
      %v3069 = vpop.f32.mrb[0].mxu0
      %3070 = vdwg.mxu0
      %v3071 = vmax.f32 %v2107, %v2913
      %v3072 = vmax.f32 %v2108, %v2918
      %v3073 = vmax.f32 %v2109, %v2923
      %v3074 = vmax.f32 %v2110, %v2928
      %v3075 = vmax.f32 %v2111, %v2933
      %v3076 = vmax.f32 %v2112, %v2938
      %v3077 = vmax.f32 %v2113, %v2943
      %v3078 = vmax.f32 %v2114, %v2948
      %v3079 = vmax.f32 %v2115, %v2953
      %v3080 = vmax.f32 %v2116, %v2958
      %v3081 = vmax.f32 %v2117, %v2963
      %v3082 = vmax.f32 %v2118, %v2968
      %v3083 = vmax.f32 %v2119, %v2973
      %v3084 = vmax.f32 %v2120, %v2978
      %v3085 = vmax.f32 %v2121, %v2983
      %v3086 = vmax.f32 %v2122, %v2988
      %v3087 = vmax.f32 %v2123, %v2993
      %v3088 = vmax.f32 %v2124, %v2998
      %v3089 = vmax.f32 %v2125, %v3003
      %v3090 = vmax.f32 %v2126, %v3008
      %v3091 = vmax.f32 %v2127, %v3013
      %v3092 = vmax.f32 %v2128, %v3018
      %v3093 = vmax.f32 %v2129, %v3023
      %v3094 = vmax.f32 %v2130, %v3028
      %v3095 = vmax.f32 %v2131, %v3033
      %v3096 = vmax.f32 %v2132, %v3038
      %v3097 = vmax.f32 %v2133, %v3043
      %v3098 = vmax.f32 %v2134, %v3048
      %v3099 = vmax.f32 %v2135, %v3053
      %v3100 = vmax.f32 %v2136, %v3058
      %v3101 = vmax.f32 %v2137, %v3063
      %v3102 = vmax.f32 %v2138, %v3068
      %s3103 = scalar_lea.vmem %s165, 3840
      %v3104 = vld [vmem:[%s3103] sm:$0xff]
      %v3105 = vld [vmem:[%s3103 + $0x8] sm:$0xff]
      %v3106 = vld [vmem:[%s3103 + $0x10] sm:$0xff]
      %v3107 = vld [vmem:[%s3103 + $0x18] sm:$0xff]
      %v3108 = vld [vmem:[%s3103 + $0x20] sm:$0xff]
      %v3109 = vld [vmem:[%s3103 + $0x28] sm:$0xff]
      %v3110 = vld [vmem:[%s3103 + $0x30] sm:$0xff]
      %v3111 = vld [vmem:[%s3103 + $0x38] sm:$0xff]
      %v3112 = vld [vmem:[%s3103 + $0x40] sm:$0xff]
      %v3113 = vld [vmem:[%s3103 + $0x48] sm:$0xff]
      %v3114 = vld [vmem:[%s3103 + $0x50] sm:$0xff]
      %v3115 = vld [vmem:[%s3103 + $0x58] sm:$0xff]
      %v3116 = vld [vmem:[%s3103 + $0x60] sm:$0xff]
      %v3117 = vld [vmem:[%s3103 + $0x68] sm:$0xff]
      %v3118 = vld [vmem:[%s3103 + $0x70] sm:$0xff]
      %v3119 = vld [vmem:[%s3103 + $0x78] sm:$0xff]
      %v3120 = vld [vmem:[%s3103 + $0x80] sm:$0xff]
      %v3121 = vld [vmem:[%s3103 + $0x88] sm:$0xff]
      %v3122 = vld [vmem:[%s3103 + $0x90] sm:$0xff]
      %v3123 = vld [vmem:[%s3103 + $0x98] sm:$0xff]
      %v3124 = vld [vmem:[%s3103 + $0xa0] sm:$0xff]
      %v3125 = vld [vmem:[%s3103 + $0xa8] sm:$0xff]
      %v3126 = vld [vmem:[%s3103 + $0xb0] sm:$0xff]
      %v3127 = vld [vmem:[%s3103 + $0xb8] sm:$0xff]
      %v3128 = vld [vmem:[%s3103 + $0xc0] sm:$0xff]
      %v3129 = vld [vmem:[%s3103 + $0xc8] sm:$0xff]
      %v3130 = vld [vmem:[%s3103 + $0xd0] sm:$0xff]
      %v3131 = vld [vmem:[%s3103 + $0xd8] sm:$0xff]
      %v3132 = vld [vmem:[%s3103 + $0xe0] sm:$0xff]
      %v3133 = vld [vmem:[%s3103 + $0xe8] sm:$0xff]
      %v3134 = vld [vmem:[%s3103 + $0xf0] sm:$0xff]
      %v3135 = vld [vmem:[%s3103 + $0xf8] sm:$0xff]
      %v3136 = vld [vmem:[%s3103 + $0x100] sm:$0xff]
      %v3137 = vld [vmem:[%s3103 + $0x108] sm:$0xff]
      %v3138 = vld [vmem:[%s3103 + $0x110] sm:$0xff]
      %v3139 = vld [vmem:[%s3103 + $0x118] sm:$0xff]
      %v3140 = vld [vmem:[%s3103 + $0x120] sm:$0xff]
      %v3141 = vld [vmem:[%s3103 + $0x128] sm:$0xff]
      %v3142 = vld [vmem:[%s3103 + $0x130] sm:$0xff]
      %v3143 = vld [vmem:[%s3103 + $0x138] sm:$0xff]
      %v3144 = vld [vmem:[%s3103 + $0x140] sm:$0xff]
      %v3145 = vld [vmem:[%s3103 + $0x148] sm:$0xff]
      %v3146 = vld [vmem:[%s3103 + $0x150] sm:$0xff]
      %v3147 = vld [vmem:[%s3103 + $0x158] sm:$0xff]
      %v3148 = vld [vmem:[%s3103 + $0x160] sm:$0xff]
      %v3149 = vld [vmem:[%s3103 + $0x168] sm:$0xff]
      %v3150 = vld [vmem:[%s3103 + $0x170] sm:$0xff]
      %v3151 = vld [vmem:[%s3103 + $0x178] sm:$0xff]
      %v3152 = vld [vmem:[%s3103 + $0x180] sm:$0xff]
      %v3153 = vld [vmem:[%s3103 + $0x188] sm:$0xff]
      %v3154 = vld [vmem:[%s3103 + $0x190] sm:$0xff]
      %v3155 = vld [vmem:[%s3103 + $0x198] sm:$0xff]
      %v3156 = vld [vmem:[%s3103 + $0x1a0] sm:$0xff]
      %v3157 = vld [vmem:[%s3103 + $0x1a8] sm:$0xff]
      %v3158 = vld [vmem:[%s3103 + $0x1b0] sm:$0xff]
      %v3159 = vld [vmem:[%s3103 + $0x1b8] sm:$0xff]
      %v3160 = vld [vmem:[%s3103 + $0x1c0] sm:$0xff]
      %v3161 = vld [vmem:[%s3103 + $0x1c8] sm:$0xff]
      %v3162 = vld [vmem:[%s3103 + $0x1d0] sm:$0xff]
      %v3163 = vld [vmem:[%s3103 + $0x1d8] sm:$0xff]
      %v3164 = vld [vmem:[%s3103 + $0x1e0] sm:$0xff]
      %v3165 = vld [vmem:[%s3103 + $0x1e8] sm:$0xff]
      %v3166 = vld [vmem:[%s3103 + $0x1f0] sm:$0xff]
      %v3167 = vld [vmem:[%s3103 + $0x1f8] sm:$0xff]
      %v3168 = vld [vmem:[%s3103 + $0x200] sm:$0xff]
      %v3169 = vld [vmem:[%s3103 + $0x208] sm:$0xff]
      %v3170 = vld [vmem:[%s3103 + $0x210] sm:$0xff]
      %v3171 = vld [vmem:[%s3103 + $0x218] sm:$0xff]
      %v3172 = vld [vmem:[%s3103 + $0x220] sm:$0xff]
      %v3173 = vld [vmem:[%s3103 + $0x228] sm:$0xff]
      %v3174 = vld [vmem:[%s3103 + $0x230] sm:$0xff]
      %v3175 = vld [vmem:[%s3103 + $0x238] sm:$0xff]
      %v3176 = vld [vmem:[%s3103 + $0x240] sm:$0xff]
      %v3177 = vld [vmem:[%s3103 + $0x248] sm:$0xff]
      %v3178 = vld [vmem:[%s3103 + $0x250] sm:$0xff]
      %v3179 = vld [vmem:[%s3103 + $0x258] sm:$0xff]
      %v3180 = vld [vmem:[%s3103 + $0x260] sm:$0xff]
      %v3181 = vld [vmem:[%s3103 + $0x268] sm:$0xff]
      %v3182 = vld [vmem:[%s3103 + $0x270] sm:$0xff]
      %v3183 = vld [vmem:[%s3103 + $0x278] sm:$0xff]
      %v3184 = vld [vmem:[%s3103 + $0x280] sm:$0xff]
      %v3185 = vld [vmem:[%s3103 + $0x288] sm:$0xff]
      %v3186 = vld [vmem:[%s3103 + $0x290] sm:$0xff]
      %v3187 = vld [vmem:[%s3103 + $0x298] sm:$0xff]
      %v3188 = vld [vmem:[%s3103 + $0x2a0] sm:$0xff]
      %v3189 = vld [vmem:[%s3103 + $0x2a8] sm:$0xff]
      %v3190 = vld [vmem:[%s3103 + $0x2b0] sm:$0xff]
      %v3191 = vld [vmem:[%s3103 + $0x2b8] sm:$0xff]
      %v3192 = vld [vmem:[%s3103 + $0x2c0] sm:$0xff]
      %v3193 = vld [vmem:[%s3103 + $0x2c8] sm:$0xff]
      %v3194 = vld [vmem:[%s3103 + $0x2d0] sm:$0xff]
      %v3195 = vld [vmem:[%s3103 + $0x2d8] sm:$0xff]
      %v3196 = vld [vmem:[%s3103 + $0x2e0] sm:$0xff]
      %v3197 = vld [vmem:[%s3103 + $0x2e8] sm:$0xff]
      %v3198 = vld [vmem:[%s3103 + $0x2f0] sm:$0xff]
      %v3199 = vld [vmem:[%s3103 + $0x2f8] sm:$0xff]
      %v3200 = vld [vmem:[%s3103 + $0x300] sm:$0xff]
      %v3201 = vld [vmem:[%s3103 + $0x308] sm:$0xff]
      %v3202 = vld [vmem:[%s3103 + $0x310] sm:$0xff]
      %v3203 = vld [vmem:[%s3103 + $0x318] sm:$0xff]
      %v3204 = vld [vmem:[%s3103 + $0x320] sm:$0xff]
      %v3205 = vld [vmem:[%s3103 + $0x328] sm:$0xff]
      %v3206 = vld [vmem:[%s3103 + $0x330] sm:$0xff]
      %v3207 = vld [vmem:[%s3103 + $0x338] sm:$0xff]
      %v3208 = vld [vmem:[%s3103 + $0x340] sm:$0xff]
      %v3209 = vld [vmem:[%s3103 + $0x348] sm:$0xff]
      %v3210 = vld [vmem:[%s3103 + $0x350] sm:$0xff]
      %v3211 = vld [vmem:[%s3103 + $0x358] sm:$0xff]
      %v3212 = vld [vmem:[%s3103 + $0x360] sm:$0xff]
      %v3213 = vld [vmem:[%s3103 + $0x368] sm:$0xff]
      %v3214 = vld [vmem:[%s3103 + $0x370] sm:$0xff]
      %v3215 = vld [vmem:[%s3103 + $0x378] sm:$0xff]
      %v3216 = vld [vmem:[%s3103 + $0x380] sm:$0xff]
      %v3217 = vld [vmem:[%s3103 + $0x388] sm:$0xff]
      %v3218 = vld [vmem:[%s3103 + $0x390] sm:$0xff]
      %v3219 = vld [vmem:[%s3103 + $0x398] sm:$0xff]
      %v3220 = vld [vmem:[%s3103 + $0x3a0] sm:$0xff]
      %v3221 = vld [vmem:[%s3103 + $0x3a8] sm:$0xff]
      %v3222 = vld [vmem:[%s3103 + $0x3b0] sm:$0xff]
      %v3223 = vld [vmem:[%s3103 + $0x3b8] sm:$0xff]
      %v3224 = vld [vmem:[%s3103 + $0x3c0] sm:$0xff]
      %v3225 = vld [vmem:[%s3103 + $0x3c8] sm:$0xff]
      %v3226 = vld [vmem:[%s3103 + $0x3d0] sm:$0xff]
      %v3227 = vld [vmem:[%s3103 + $0x3d8] sm:$0xff]
      %v3228 = vld [vmem:[%s3103 + $0x3e0] sm:$0xff]
      %v3229 = vld [vmem:[%s3103 + $0x3e8] sm:$0xff]
      %v3230 = vld [vmem:[%s3103 + $0x3f0] sm:$0xff]
      %v3231 = vld [vmem:[%s3103 + $0x3f8] sm:$0xff]
      %v3232 = vld [vmem:[%s3103 + $0x400] sm:$0xff]
      %v3233 = vld [vmem:[%s3103 + $0x408] sm:$0xff]
      %v3234 = vld [vmem:[%s3103 + $0x410] sm:$0xff]
      %v3235 = vld [vmem:[%s3103 + $0x418] sm:$0xff]
      %v3236 = vld [vmem:[%s3103 + $0x420] sm:$0xff]
      %v3237 = vld [vmem:[%s3103 + $0x428] sm:$0xff]
      %v3238 = vld [vmem:[%s3103 + $0x430] sm:$0xff]
      %v3239 = vld [vmem:[%s3103 + $0x438] sm:$0xff]
      %v3240 = vld [vmem:[%s3103 + $0x440] sm:$0xff]
      %v3241 = vld [vmem:[%s3103 + $0x448] sm:$0xff]
      %v3242 = vld [vmem:[%s3103 + $0x450] sm:$0xff]
      %v3243 = vld [vmem:[%s3103 + $0x458] sm:$0xff]
      %v3244 = vld [vmem:[%s3103 + $0x460] sm:$0xff]
      %v3245 = vld [vmem:[%s3103 + $0x468] sm:$0xff]
      %v3246 = vld [vmem:[%s3103 + $0x470] sm:$0xff]
      %v3247 = vld [vmem:[%s3103 + $0x478] sm:$0xff]
      %v3248 = vld [vmem:[%s3103 + $0x480] sm:$0xff]
      %v3249 = vld [vmem:[%s3103 + $0x488] sm:$0xff]
      %v3250 = vld [vmem:[%s3103 + $0x490] sm:$0xff]
      %v3251 = vld [vmem:[%s3103 + $0x498] sm:$0xff]
      %v3252 = vld [vmem:[%s3103 + $0x4a0] sm:$0xff]
      %v3253 = vld [vmem:[%s3103 + $0x4a8] sm:$0xff]
      %v3254 = vld [vmem:[%s3103 + $0x4b0] sm:$0xff]
      %v3255 = vld [vmem:[%s3103 + $0x4b8] sm:$0xff]
      %v3256 = vld [vmem:[%s3103 + $0x4c0] sm:$0xff]
      %v3257 = vld [vmem:[%s3103 + $0x4c8] sm:$0xff]
      %v3258 = vld [vmem:[%s3103 + $0x4d0] sm:$0xff]
      %v3259 = vld [vmem:[%s3103 + $0x4d8] sm:$0xff]
      %v3260 = vld [vmem:[%s3103 + $0x4e0] sm:$0xff]
      %v3261 = vld [vmem:[%s3103 + $0x4e8] sm:$0xff]
      %v3262 = vld [vmem:[%s3103 + $0x4f0] sm:$0xff]
      %v3263 = vld [vmem:[%s3103 + $0x4f8] sm:$0xff]
      %v3265 = vsel %vm403, %v3108, 0
      %v3268 = vsel %vm403, %v3113, 0
      %v3271 = vsel %vm403, %v3118, 0
      %v3274 = vsel %vm403, %v3123, 0
      %v3277 = vsel %vm403, %v3128, 0
      %v3280 = vsel %vm403, %v3133, 0
      %v3283 = vsel %vm403, %v3138, 0
      %v3286 = vsel %vm403, %v3143, 0
      %v3289 = vsel %vm403, %v3148, 0
      %v3292 = vsel %vm403, %v3153, 0
      %v3295 = vsel %vm403, %v3158, 0
      %v3298 = vsel %vm403, %v3163, 0
      %v3301 = vsel %vm403, %v3168, 0
      %v3304 = vsel %vm403, %v3173, 0
      %v3307 = vsel %vm403, %v3178, 0
      %v3310 = vsel %vm403, %v3183, 0
      %v3313 = vsel %vm403, %v3188, 0
      %v3316 = vsel %vm403, %v3193, 0
      %v3319 = vsel %vm403, %v3198, 0
      %v3322 = vsel %vm403, %v3203, 0
      %v3325 = vsel %vm403, %v3208, 0
      %v3328 = vsel %vm403, %v3213, 0
      %v3331 = vsel %vm403, %v3218, 0
      %v3334 = vsel %vm403, %v3223, 0
      %v3337 = vsel %vm403, %v3228, 0
      %v3340 = vsel %vm403, %v3233, 0
      %v3343 = vsel %vm403, %v3238, 0
      %v3346 = vsel %vm403, %v3243, 0
      %v3349 = vsel %vm403, %v3248, 0
      %v3352 = vsel %vm403, %v3253, 0
      %v3355 = vsel %vm403, %v3258, 0
      %v3358 = vsel %vm403, %v3263, 0
      %3360 = vmatprep.subr.mxu0 0.0
      %3361 = vmatpush1.msra.mxu0 %v171
      %3362 = vmatprep.subr.mxu0 0.0
      %3363 = vmatpush1.msra.mxu0 %v172
      %3364 = vmatprep.subr.mxu0 0.0
      %3365 = vmatpush1.msra.mxu0 %v173
      %3366 = vmatprep.subr.mxu0 0.0
      %3367 = vmatpush1.msra.mxu0 %v174
      %3368 = vmatprep.subr.mxu0 0.0
      %3369 = vmatpush1.msra.mxu0 %v175
      %3370 = vmatprep.subr.mxu0 0.0
      %3371 = vmatpush1.msra.mxu0 %v176
      %3372 = vmatprep.subr.mxu0 0.0
      %3373 = vmatpush1.msra.mxu0 %v177
      %3374 = vmatprep.subr.mxu0 0.0
      %3375 = vmatpush1.msra.mxu0 %v178
      %3376 = vmatprep.subr.mxu0 0.0
      %3377 = vmatpush1.msra.mxu0 %v179
      %3378 = vmatprep.subr.mxu0 0.0
      %3379 = vmatpush1.msra.mxu0 %v180
      %3380 = vmatprep.subr.mxu0 0.0
      %3381 = vmatpush1.msra.mxu0 %v181
      %3382 = vmatprep.subr.mxu0 0.0
      %3383 = vmatpush1.msra.mxu0 %v182
      %3384 = vmatprep.subr.mxu0 0.0
      %3385 = vmatpush1.msra.mxu0 %v183
      %3386 = vmatprep.subr.mxu0 0.0
      %3387 = vmatpush1.msra.mxu0 %v184
      %3388 = vmatprep.subr.mxu0 0.0
      %3389 = vmatpush1.msra.mxu0 %v185
      %3390 = vmatprep.subr.mxu0 0.0
      %3391 = vmatpush1.msra.mxu0 %v186
      %3392 = vmatprep.subr.mxu0 0.0
      %3393 = vmatpush1.msra.mxu0 %v187
      %3394 = vmatprep.subr.mxu0 0.0
      %3395 = vmatpush1.msra.mxu0 %v188
      %3396 = vmatprep.subr.mxu0 0.0
      %3397 = vmatpush1.msra.mxu0 %v189
      %3398 = vmatprep.subr.mxu0 0.0
      %3399 = vmatpush1.msra.mxu0 %v190
      %3400 = vmatprep.subr.mxu0 0.0
      %3401 = vmatpush1.msra.mxu0 %v191
      %3402 = vmatprep.subr.mxu0 0.0
      %3403 = vmatpush1.msra.mxu0 %v192
      %3404 = vmatprep.subr.mxu0 0.0
      %3405 = vmatpush1.msra.mxu0 %v193
      %3406 = vmatprep.subr.mxu0 0.0
      %3407 = vmatpush1.msra.mxu0 %v194
      %3408 = vmatprep.subr.mxu0 0.0
      %3409 = vmatpush1.msra.mxu0 %v195
      %3410 = vmatprep.subr.mxu0 0.0
      %3411 = vmatpush1.msra.mxu0 %v196
      %3412 = vmatprep.subr.mxu0 0.0
      %3413 = vmatpush1.msra.mxu0 %v197
      %3414 = vmatprep.subr.mxu0 0.0
      %3415 = vmatpush1.msra.mxu0 %v198
      %3416 = vmatprep.subr.mxu0 0.0
      %3417 = vmatpush1.msra.mxu0 %v199
      %3418 = vmatprep.subr.mxu0 0.0
      %3419 = vmatpush1.msra.mxu0 %v200
      %3420 = vmatprep.subr.mxu0 0.0
      %3421 = vmatpush1.msra.mxu0 %v201
      %3422 = vmatprep.subr.mxu0 0.0
      %3423 = vmatpush1.msra.mxu0 %v202
      %3424 = vmatprep.mubr.f32.mxu0 %v3105
      %3425 = vmatmul.mubr.f32.gmra.mrb[0].mxu0 %v3104
      %v3426 = vpop.f32.mrb[0].mxu0
      %v3427 = vadd.f32 0.0, %v3426
      %v3428 = vpop.f32.mrb[0].mxu0
      %3429 = vmatprep.mubr.f32.mxu0 %v3110
      %3430 = vmatmul.mubr.f32.gmra.mrb[0].mxu0 %v3109
      %v3431 = vpop.f32.mrb[0].mxu0
      %v3432 = vadd.f32 0.0, %v3431
      %v3433 = vpop.f32.mrb[0].mxu0
      %3434 = vmatprep.mubr.f32.mxu0 %v3115
      %3435 = vmatmul.mubr.f32.gmra.mrb[0].mxu0 %v3114
      %v3436 = vpop.f32.mrb[0].mxu0
      %v3437 = vadd.f32 0.0, %v3436
      %v3438 = vpop.f32.mrb[0].mxu0
      %3439 = vmatprep.mubr.f32.mxu0 %v3120
      %3440 = vmatmul.mubr.f32.gmra.mrb[0].mxu0 %v3119
      %v3441 = vpop.f32.mrb[0].mxu0
      %v3442 = vadd.f32 0.0, %v3441
      %v3443 = vpop.f32.mrb[0].mxu0
      %3444 = vmatprep.mubr.f32.mxu0 %v3125
      %3445 = vmatmul.mubr.f32.gmra.mrb[0].mxu0 %v3124
      %v3446 = vpop.f32.mrb[0].mxu0
      %v3447 = vadd.f32 0.0, %v3446
      %v3448 = vpop.f32.mrb[0].mxu0
      %3449 = vmatprep.mubr.f32.mxu0 %v3130
      %3450 = vmatmul.mubr.f32.gmra.mrb[0].mxu0 %v3129
      %v3451 = vpop.f32.mrb[0].mxu0
      %v3452 = vadd.f32 0.0, %v3451
      %v3453 = vpop.f32.mrb[0].mxu0
      %3454 = vmatprep.mubr.f32.mxu0 %v3135
      %3455 = vmatmul.mubr.f32.gmra.mrb[0].mxu0 %v3134
      %v3456 = vpop.f32.mrb[0].mxu0
      %v3457 = vadd.f32 0.0, %v3456
      %v3458 = vpop.f32.mrb[0].mxu0
      %3459 = vmatprep.mubr.f32.mxu0 %v3140
      %3460 = vmatmul.mubr.f32.gmra.mrb[0].mxu0 %v3139
      %v3461 = vpop.f32.mrb[0].mxu0
      %v3462 = vadd.f32 0.0, %v3461
      %v3463 = vpop.f32.mrb[0].mxu0
      %3464 = vmatprep.mubr.f32.mxu0 %v3145
      %3465 = vmatmul.mubr.f32.gmra.mrb[0].mxu0 %v3144
      %v3466 = vpop.f32.mrb[0].mxu0
      %v3467 = vadd.f32 0.0, %v3466
      %v3468 = vpop.f32.mrb[0].mxu0
      %3469 = vmatprep.mubr.f32.mxu0 %v3150
      %3470 = vmatmul.mubr.f32.gmra.mrb[0].mxu0 %v3149
      %v3471 = vpop.f32.mrb[0].mxu0
      %v3472 = vadd.f32 0.0, %v3471
      %v3473 = vpop.f32.mrb[0].mxu0
      %3474 = vmatprep.mubr.f32.mxu0 %v3155
      %3475 = vmatmul.mubr.f32.gmra.mrb[0].mxu0 %v3154
      %v3476 = vpop.f32.mrb[0].mxu0
      %v3477 = vadd.f32 0.0, %v3476
      %v3478 = vpop.f32.mrb[0].mxu0
      %3479 = vmatprep.mubr.f32.mxu0 %v3160
      %3480 = vmatmul.mubr.f32.gmra.mrb[0].mxu0 %v3159
      %v3481 = vpop.f32.mrb[0].mxu0
      %v3482 = vadd.f32 0.0, %v3481
      %v3483 = vpop.f32.mrb[0].mxu0
      %3484 = vmatprep.mubr.f32.mxu0 %v3165
      %3485 = vmatmul.mubr.f32.gmra.mrb[0].mxu0 %v3164
      %v3486 = vpop.f32.mrb[0].mxu0
      %v3487 = vadd.f32 0.0, %v3486
      %v3488 = vpop.f32.mrb[0].mxu0
      %3489 = vmatprep.mubr.f32.mxu0 %v3170
      %3490 = vmatmul.mubr.f32.gmra.mrb[0].mxu0 %v3169
      %v3491 = vpop.f32.mrb[0].mxu0
      %v3492 = vadd.f32 0.0, %v3491
      %v3493 = vpop.f32.mrb[0].mxu0
      %3494 = vmatprep.mubr.f32.mxu0 %v3175
      %3495 = vmatmul.mubr.f32.gmra.mrb[0].mxu0 %v3174
      %v3496 = vpop.f32.mrb[0].mxu0
      %v3497 = vadd.f32 0.0, %v3496
      %v3498 = vpop.f32.mrb[0].mxu0
      %3499 = vmatprep.mubr.f32.mxu0 %v3180
      %3500 = vmatmul.mubr.f32.gmra.mrb[0].mxu0 %v3179
      %v3501 = vpop.f32.mrb[0].mxu0
      %v3502 = vadd.f32 0.0, %v3501
      %v3503 = vpop.f32.mrb[0].mxu0
      %3504 = vmatprep.mubr.f32.mxu0 %v3185
      %3505 = vmatmul.mubr.f32.gmra.mrb[0].mxu0 %v3184
      %v3506 = vpop.f32.mrb[0].mxu0
      %v3507 = vadd.f32 0.0, %v3506
      %v3508 = vpop.f32.mrb[0].mxu0
      %3509 = vmatprep.mubr.f32.mxu0 %v3190
      %3510 = vmatmul.mubr.f32.gmra.mrb[0].mxu0 %v3189
      %v3511 = vpop.f32.mrb[0].mxu0
      %v3512 = vadd.f32 0.0, %v3511
      %v3513 = vpop.f32.mrb[0].mxu0
      %3514 = vmatprep.mubr.f32.mxu0 %v3195
      %3515 = vmatmul.mubr.f32.gmra.mrb[0].mxu0 %v3194
      %v3516 = vpop.f32.mrb[0].mxu0
      %v3517 = vadd.f32 0.0, %v3516
      %v3518 = vpop.f32.mrb[0].mxu0
      %3519 = vmatprep.mubr.f32.mxu0 %v3200
      %3520 = vmatmul.mubr.f32.gmra.mrb[0].mxu0 %v3199
      %v3521 = vpop.f32.mrb[0].mxu0
      %v3522 = vadd.f32 0.0, %v3521
      %v3523 = vpop.f32.mrb[0].mxu0
      %3524 = vmatprep.mubr.f32.mxu0 %v3205
      %3525 = vmatmul.mubr.f32.gmra.mrb[0].mxu0 %v3204
      %v3526 = vpop.f32.mrb[0].mxu0
      %v3527 = vadd.f32 0.0, %v3526
      %v3528 = vpop.f32.mrb[0].mxu0
      %3529 = vmatprep.mubr.f32.mxu0 %v3210
      %3530 = vmatmul.mubr.f32.gmra.mrb[0].mxu0 %v3209
      %v3531 = vpop.f32.mrb[0].mxu0
      %v3532 = vadd.f32 0.0, %v3531
      %v3533 = vpop.f32.mrb[0].mxu0
      %3534 = vmatprep.mubr.f32.mxu0 %v3215
      %3535 = vmatmul.mubr.f32.gmra.mrb[0].mxu0 %v3214
      %v3536 = vpop.f32.mrb[0].mxu0
      %v3537 = vadd.f32 0.0, %v3536
      %v3538 = vpop.f32.mrb[0].mxu0
      %3539 = vmatprep.mubr.f32.mxu0 %v3220
      %3540 = vmatmul.mubr.f32.gmra.mrb[0].mxu0 %v3219
      %v3541 = vpop.f32.mrb[0].mxu0
      %v3542 = vadd.f32 0.0, %v3541
      %v3543 = vpop.f32.mrb[0].mxu0
      %3544 = vmatprep.mubr.f32.mxu0 %v3225
      %3545 = vmatmul.mubr.f32.gmra.mrb[0].mxu0 %v3224
      %v3546 = vpop.f32.mrb[0].mxu0
      %v3547 = vadd.f32 0.0, %v3546
      %v3548 = vpop.f32.mrb[0].mxu0
      %3549 = vmatprep.mubr.f32.mxu0 %v3230
      %3550 = vmatmul.mubr.f32.gmra.mrb[0].mxu0 %v3229
      %v3551 = vpop.f32.mrb[0].mxu0
      %v3552 = vadd.f32 0.0, %v3551
      %v3553 = vpop.f32.mrb[0].mxu0
      %3554 = vmatprep.mubr.f32.mxu0 %v3235
      %3555 = vmatmul.mubr.f32.gmra.mrb[0].mxu0 %v3234
      %v3556 = vpop.f32.mrb[0].mxu0
      %v3557 = vadd.f32 0.0, %v3556
      %v3558 = vpop.f32.mrb[0].mxu0
      %3559 = vmatprep.mubr.f32.mxu0 %v3240
      %3560 = vmatmul.mubr.f32.gmra.mrb[0].mxu0 %v3239
      %v3561 = vpop.f32.mrb[0].mxu0
      %v3562 = vadd.f32 0.0, %v3561
      %v3563 = vpop.f32.mrb[0].mxu0
      %3564 = vmatprep.mubr.f32.mxu0 %v3245
      %3565 = vmatmul.mubr.f32.gmra.mrb[0].mxu0 %v3244
      %v3566 = vpop.f32.mrb[0].mxu0
      %v3567 = vadd.f32 0.0, %v3566
      %v3568 = vpop.f32.mrb[0].mxu0
      %3569 = vmatprep.mubr.f32.mxu0 %v3250
      %3570 = vmatmul.mubr.f32.gmra.mrb[0].mxu0 %v3249
      %v3571 = vpop.f32.mrb[0].mxu0
      %v3572 = vadd.f32 0.0, %v3571
      %v3573 = vpop.f32.mrb[0].mxu0
      %3574 = vmatprep.mubr.f32.mxu0 %v3255
      %3575 = vmatmul.mubr.f32.gmra.mrb[0].mxu0 %v3254
      %v3576 = vpop.f32.mrb[0].mxu0
      %v3577 = vadd.f32 0.0, %v3576
      %v3578 = vpop.f32.mrb[0].mxu0
      %3579 = vmatprep.mubr.f32.mxu0 %v3260
      %3580 = vmatmul.mubr.f32.gmra.mrb[0].mxu0 %v3259
      %v3581 = vpop.f32.mrb[0].mxu0
      %v3582 = vadd.f32 0.0, %v3581
      %v3583 = vpop.f32.mrb[0].mxu0
      %3584 = vdwg.mxu0
      %3585 = vmatprep.subr.mxu0 0.0
      %3586 = vmatpush1.msra.mxu0 %v203
      %3587 = vmatprep.subr.mxu0 0.0
      %3588 = vmatpush1.msra.mxu0 %v204
      %3589 = vmatprep.subr.mxu0 0.0
      %3590 = vmatpush1.msra.mxu0 %v205
      %3591 = vmatprep.subr.mxu0 0.0
      %3592 = vmatpush1.msra.mxu0 %v206
      %3593 = vmatprep.subr.mxu0 0.0
      %3594 = vmatpush1.msra.mxu0 %v207
      %3595 = vmatprep.subr.mxu0 0.0
      %3596 = vmatpush1.msra.mxu0 %v208
      %3597 = vmatprep.subr.mxu0 0.0
      %3598 = vmatpush1.msra.mxu0 %v209
      %3599 = vmatprep.subr.mxu0 0.0
      %3600 = vmatpush1.msra.mxu0 %v210
      %3601 = vmatprep.subr.mxu0 0.0
      %3602 = vmatpush1.msra.mxu0 %v211
      %3603 = vmatprep.subr.mxu0 0.0
      %3604 = vmatpush1.msra.mxu0 %v212
      %3605 = vmatprep.subr.mxu0 0.0
      %3606 = vmatpush1.msra.mxu0 %v213
      %3607 = vmatprep.subr.mxu0 0.0
      %3608 = vmatpush1.msra.mxu0 %v214
      %3609 = vmatprep.subr.mxu0 0.0
      %3610 = vmatpush1.msra.mxu0 %v215
      %3611 = vmatprep.subr.mxu0 0.0
      %3612 = vmatpush1.msra.mxu0 %v216
      %3613 = vmatprep.subr.mxu0 0.0
      %3614 = vmatpush1.msra.mxu0 %v217
      %3615 = vmatprep.subr.mxu0 0.0
      %3616 = vmatpush1.msra.mxu0 %v218
      %3617 = vmatprep.subr.mxu0 0.0
      %3618 = vmatpush1.msra.mxu0 %v219
      %3619 = vmatprep.subr.mxu0 0.0
      %3620 = vmatpush1.msra.mxu0 %v220
      %3621 = vmatprep.subr.mxu0 0.0
      %3622 = vmatpush1.msra.mxu0 %v221
      %3623 = vmatprep.subr.mxu0 0.0
      %3624 = vmatpush1.msra.mxu0 %v222
      %3625 = vmatprep.subr.mxu0 0.0
      %3626 = vmatpush1.msra.mxu0 %v223
      %3627 = vmatprep.subr.mxu0 0.0
      %3628 = vmatpush1.msra.mxu0 %v224
      %3629 = vmatprep.subr.mxu0 0.0
      %3630 = vmatpush1.msra.mxu0 %v225
      %3631 = vmatprep.subr.mxu0 0.0
      %3632 = vmatpush1.msra.mxu0 %v226
      %3633 = vmatprep.subr.mxu0 0.0
      %3634 = vmatpush1.msra.mxu0 %v227
      %3635 = vmatprep.subr.mxu0 0.0
      %3636 = vmatpush1.msra.mxu0 %v228
      %3637 = vmatprep.subr.mxu0 0.0
      %3638 = vmatpush1.msra.mxu0 %v229
      %3639 = vmatprep.subr.mxu0 0.0
      %3640 = vmatpush1.msra.mxu0 %v230
      %3641 = vmatprep.subr.mxu0 0.0
      %3642 = vmatpush1.msra.mxu0 %v231
      %3643 = vmatprep.subr.mxu0 0.0
      %3644 = vmatpush1.msra.mxu0 %v232
      %3645 = vmatprep.subr.mxu0 0.0
      %3646 = vmatpush1.msra.mxu0 %v233
      %3647 = vmatprep.subr.mxu0 0.0
      %3648 = vmatpush1.msra.mxu0 %v234
      %3649 = vmatprep.mubr.f32.mxu0 %v3107
      %3650 = vmatmul.mubr.f32.gmra.mrb[0].mxu0 %v3106
      %v3651 = vpop.f32.mrb[0].mxu0
      %v3652 = vadd.f32 %v3427, %v3651
      %v3653 = vpop.f32.mrb[0].mxu0
      %3654 = vmatprep.mubr.f32.mxu0 %v3112
      %3655 = vmatmul.mubr.f32.gmra.mrb[0].mxu0 %v3111
      %v3656 = vpop.f32.mrb[0].mxu0
      %v3657 = vadd.f32 %v3432, %v3656
      %v3658 = vpop.f32.mrb[0].mxu0
      %3659 = vmatprep.mubr.f32.mxu0 %v3117
      %3660 = vmatmul.mubr.f32.gmra.mrb[0].mxu0 %v3116
      %v3661 = vpop.f32.mrb[0].mxu0
      %v3662 = vadd.f32 %v3437, %v3661
      %v3663 = vpop.f32.mrb[0].mxu0
      %3664 = vmatprep.mubr.f32.mxu0 %v3122
      %3665 = vmatmul.mubr.f32.gmra.mrb[0].mxu0 %v3121
      %v3666 = vpop.f32.mrb[0].mxu0
      %v3667 = vadd.f32 %v3442, %v3666
      %v3668 = vpop.f32.mrb[0].mxu0
      %3669 = vmatprep.mubr.f32.mxu0 %v3127
      %3670 = vmatmul.mubr.f32.gmra.mrb[0].mxu0 %v3126
      %v3671 = vpop.f32.mrb[0].mxu0
      %v3672 = vadd.f32 %v3447, %v3671
      %v3673 = vpop.f32.mrb[0].mxu0
      %3674 = vmatprep.mubr.f32.mxu0 %v3132
      %3675 = vmatmul.mubr.f32.gmra.mrb[0].mxu0 %v3131
      %v3676 = vpop.f32.mrb[0].mxu0
      %v3677 = vadd.f32 %v3452, %v3676
      %v3678 = vpop.f32.mrb[0].mxu0
      %3679 = vmatprep.mubr.f32.mxu0 %v3137
      %3680 = vmatmul.mubr.f32.gmra.mrb[0].mxu0 %v3136
      %v3681 = vpop.f32.mrb[0].mxu0
      %v3682 = vadd.f32 %v3457, %v3681
      %v3683 = vpop.f32.mrb[0].mxu0
      %3684 = vmatprep.mubr.f32.mxu0 %v3142
      %3685 = vmatmul.mubr.f32.gmra.mrb[0].mxu0 %v3141
      %v3686 = vpop.f32.mrb[0].mxu0
      %v3687 = vadd.f32 %v3462, %v3686
      %v3688 = vpop.f32.mrb[0].mxu0
      %3689 = vmatprep.mubr.f32.mxu0 %v3147
      %3690 = vmatmul.mubr.f32.gmra.mrb[0].mxu0 %v3146
      %v3691 = vpop.f32.mrb[0].mxu0
      %v3692 = vadd.f32 %v3467, %v3691
      %v3693 = vpop.f32.mrb[0].mxu0
      %3694 = vmatprep.mubr.f32.mxu0 %v3152
      %3695 = vmatmul.mubr.f32.gmra.mrb[0].mxu0 %v3151
      %v3696 = vpop.f32.mrb[0].mxu0
      %v3697 = vadd.f32 %v3472, %v3696
      %v3698 = vpop.f32.mrb[0].mxu0
      %3699 = vmatprep.mubr.f32.mxu0 %v3157
      %3700 = vmatmul.mubr.f32.gmra.mrb[0].mxu0 %v3156
      %v3701 = vpop.f32.mrb[0].mxu0
      %v3702 = vadd.f32 %v3477, %v3701
      %v3703 = vpop.f32.mrb[0].mxu0
      %3704 = vmatprep.mubr.f32.mxu0 %v3162
      %3705 = vmatmul.mubr.f32.gmra.mrb[0].mxu0 %v3161
      %v3706 = vpop.f32.mrb[0].mxu0
      %v3707 = vadd.f32 %v3482, %v3706
      %v3708 = vpop.f32.mrb[0].mxu0
      %3709 = vmatprep.mubr.f32.mxu0 %v3167
      %3710 = vmatmul.mubr.f32.gmra.mrb[0].mxu0 %v3166
      %v3711 = vpop.f32.mrb[0].mxu0
      %v3712 = vadd.f32 %v3487, %v3711
      %v3713 = vpop.f32.mrb[0].mxu0
      %3714 = vmatprep.mubr.f32.mxu0 %v3172
      %3715 = vmatmul.mubr.f32.gmra.mrb[0].mxu0 %v3171
      %v3716 = vpop.f32.mrb[0].mxu0
      %v3717 = vadd.f32 %v3492, %v3716
      %v3718 = vpop.f32.mrb[0].mxu0
      %3719 = vmatprep.mubr.f32.mxu0 %v3177
      %3720 = vmatmul.mubr.f32.gmra.mrb[0].mxu0 %v3176
      %v3721 = vpop.f32.mrb[0].mxu0
      %v3722 = vadd.f32 %v3497, %v3721
      %v3723 = vpop.f32.mrb[0].mxu0
      %3724 = vmatprep.mubr.f32.mxu0 %v3182
      %3725 = vmatmul.mubr.f32.gmra.mrb[0].mxu0 %v3181
      %v3726 = vpop.f32.mrb[0].mxu0
      %v3727 = vadd.f32 %v3502, %v3726
      %v3728 = vpop.f32.mrb[0].mxu0
      %3729 = vmatprep.mubr.f32.mxu0 %v3187
      %3730 = vmatmul.mubr.f32.gmra.mrb[0].mxu0 %v3186
      %v3731 = vpop.f32.mrb[0].mxu0
      %v3732 = vadd.f32 %v3507, %v3731
      %v3733 = vpop.f32.mrb[0].mxu0
      %3734 = vmatprep.mubr.f32.mxu0 %v3192
      %3735 = vmatmul.mubr.f32.gmra.mrb[0].mxu0 %v3191
      %v3736 = vpop.f32.mrb[0].mxu0
      %v3737 = vadd.f32 %v3512, %v3736
      %v3738 = vpop.f32.mrb[0].mxu0
      %3739 = vmatprep.mubr.f32.mxu0 %v3197
      %3740 = vmatmul.mubr.f32.gmra.mrb[0].mxu0 %v3196
      %v3741 = vpop.f32.mrb[0].mxu0
      %v3742 = vadd.f32 %v3517, %v3741
      %v3743 = vpop.f32.mrb[0].mxu0
      %3744 = vmatprep.mubr.f32.mxu0 %v3202
      %3745 = vmatmul.mubr.f32.gmra.mrb[0].mxu0 %v3201
      %v3746 = vpop.f32.mrb[0].mxu0
      %v3747 = vadd.f32 %v3522, %v3746
      %v3748 = vpop.f32.mrb[0].mxu0
      %3749 = vmatprep.mubr.f32.mxu0 %v3207
      %3750 = vmatmul.mubr.f32.gmra.mrb[0].mxu0 %v3206
      %v3751 = vpop.f32.mrb[0].mxu0
      %v3752 = vadd.f32 %v3527, %v3751
      %v3753 = vpop.f32.mrb[0].mxu0
      %3754 = vmatprep.mubr.f32.mxu0 %v3212
      %3755 = vmatmul.mubr.f32.gmra.mrb[0].mxu0 %v3211
      %v3756 = vpop.f32.mrb[0].mxu0
      %v3757 = vadd.f32 %v3532, %v3756
      %v3758 = vpop.f32.mrb[0].mxu0
      %3759 = vmatprep.mubr.f32.mxu0 %v3217
      %3760 = vmatmul.mubr.f32.gmra.mrb[0].mxu0 %v3216
      %v3761 = vpop.f32.mrb[0].mxu0
      %v3762 = vadd.f32 %v3537, %v3761
      %v3763 = vpop.f32.mrb[0].mxu0
      %3764 = vmatprep.mubr.f32.mxu0 %v3222
      %3765 = vmatmul.mubr.f32.gmra.mrb[0].mxu0 %v3221
      %v3766 = vpop.f32.mrb[0].mxu0
      %v3767 = vadd.f32 %v3542, %v3766
      %v3768 = vpop.f32.mrb[0].mxu0
      %3769 = vmatprep.mubr.f32.mxu0 %v3227
      %3770 = vmatmul.mubr.f32.gmra.mrb[0].mxu0 %v3226
      %v3771 = vpop.f32.mrb[0].mxu0
      %v3772 = vadd.f32 %v3547, %v3771
      %v3773 = vpop.f32.mrb[0].mxu0
      %3774 = vmatprep.mubr.f32.mxu0 %v3232
      %3775 = vmatmul.mubr.f32.gmra.mrb[0].mxu0 %v3231
      %v3776 = vpop.f32.mrb[0].mxu0
      %v3777 = vadd.f32 %v3552, %v3776
      %v3778 = vpop.f32.mrb[0].mxu0
      %3779 = vmatprep.mubr.f32.mxu0 %v3237
      %3780 = vmatmul.mubr.f32.gmra.mrb[0].mxu0 %v3236
      %v3781 = vpop.f32.mrb[0].mxu0
      %v3782 = vadd.f32 %v3557, %v3781
      %v3783 = vpop.f32.mrb[0].mxu0
      %3784 = vmatprep.mubr.f32.mxu0 %v3242
      %3785 = vmatmul.mubr.f32.gmra.mrb[0].mxu0 %v3241
      %v3786 = vpop.f32.mrb[0].mxu0
      %v3787 = vadd.f32 %v3562, %v3786
      %v3788 = vpop.f32.mrb[0].mxu0
      %3789 = vmatprep.mubr.f32.mxu0 %v3247
      %3790 = vmatmul.mubr.f32.gmra.mrb[0].mxu0 %v3246
      %v3791 = vpop.f32.mrb[0].mxu0
      %v3792 = vadd.f32 %v3567, %v3791
      %v3793 = vpop.f32.mrb[0].mxu0
      %3794 = vmatprep.mubr.f32.mxu0 %v3252
      %3795 = vmatmul.mubr.f32.gmra.mrb[0].mxu0 %v3251
      %v3796 = vpop.f32.mrb[0].mxu0
      %v3797 = vadd.f32 %v3572, %v3796
      %v3798 = vpop.f32.mrb[0].mxu0
      %3799 = vmatprep.mubr.f32.mxu0 %v3257
      %3800 = vmatmul.mubr.f32.gmra.mrb[0].mxu0 %v3256
      %v3801 = vpop.f32.mrb[0].mxu0
      %v3802 = vadd.f32 %v3577, %v3801
      %v3803 = vpop.f32.mrb[0].mxu0
      %3804 = vmatprep.mubr.f32.mxu0 %v3262
      %3805 = vmatmul.mubr.f32.gmra.mrb[0].mxu0 %v3261
      %v3806 = vpop.f32.mrb[0].mxu0
      %v3807 = vadd.f32 %v3582, %v3806
      %v3808 = vpop.f32.mrb[0].mxu0
      %3809 = vdwg.mxu0
      %3810 = vmatprep.subr.mxu0 0.0
      %3811 = vmatpush1.msra.mxu0 %v235
      %3812 = vmatprep.subr.mxu0 0.0
      %3813 = vmatpush1.msra.mxu0 %v236
      %3814 = vmatprep.subr.mxu0 0.0
      %3815 = vmatpush1.msra.mxu0 %v237
      %3816 = vmatprep.subr.mxu0 0.0
      %3817 = vmatpush1.msra.mxu0 %v238
      %3818 = vmatprep.subr.mxu0 0.0
      %3819 = vmatpush1.msra.mxu0 %v239
      %3820 = vmatprep.subr.mxu0 0.0
      %3821 = vmatpush1.msra.mxu0 %v240
      %3822 = vmatprep.subr.mxu0 0.0
      %3823 = vmatpush1.msra.mxu0 %v241
      %3824 = vmatprep.subr.mxu0 0.0
      %3825 = vmatpush1.msra.mxu0 %v242
      %3826 = vmatprep.subr.mxu0 0.0
      %3827 = vmatpush1.msra.mxu0 0.0
      %3828 = vmatprep.subr.mxu0 0.0
      %3829 = vmatpush1.msra.mxu0 0.0
      %3830 = vmatprep.subr.mxu0 0.0
      %3831 = vmatpush1.msra.mxu0 0.0
      %3832 = vmatprep.subr.mxu0 0.0
      %3833 = vmatpush1.msra.mxu0 0.0
      %3834 = vmatprep.subr.mxu0 0.0
      %3835 = vmatpush1.msra.mxu0 0.0
      %3836 = vmatprep.subr.mxu0 0.0
      %3837 = vmatpush1.msra.mxu0 0.0
      %3838 = vmatprep.subr.mxu0 0.0
      %3839 = vmatpush1.msra.mxu0 0.0
      %3840 = vmatprep.subr.mxu0 0.0
      %3841 = vmatpush1.msra.mxu0 0.0
      %3842 = vmatprep.subr.mxu0 0.0
      %3843 = vmatpush1.msra.mxu0 0.0
      %3844 = vmatprep.subr.mxu0 0.0
      %3845 = vmatpush1.msra.mxu0 0.0
      %3846 = vmatprep.subr.mxu0 0.0
      %3847 = vmatpush1.msra.mxu0 0.0
      %3848 = vmatprep.subr.mxu0 0.0
      %3849 = vmatpush1.msra.mxu0 0.0
      %3850 = vmatprep.subr.mxu0 0.0
      %3851 = vmatpush1.msra.mxu0 0.0
      %3852 = vmatprep.subr.mxu0 0.0
      %3853 = vmatpush1.msra.mxu0 0.0
      %3854 = vmatprep.subr.mxu0 0.0
      %3855 = vmatpush1.msra.mxu0 0.0
      %3856 = vmatprep.subr.mxu0 0.0
      %3857 = vmatpush1.msra.mxu0 0.0
      %3858 = vmatprep.subr.mxu0 0.0
      %3859 = vmatpush1.msra.mxu0 0.0
      %3860 = vmatprep.subr.mxu0 0.0
      %3861 = vmatpush1.msra.mxu0 0.0
      %3862 = vmatprep.subr.mxu0 0.0
      %3863 = vmatpush1.msra.mxu0 0.0
      %3864 = vmatprep.subr.mxu0 0.0
      %3865 = vmatpush1.msra.mxu0 0.0
      %3866 = vmatprep.subr.mxu0 0.0
      %3867 = vmatpush1.msra.mxu0 0.0
      %3868 = vmatprep.subr.mxu0 0.0
      %3869 = vmatpush1.msra.mxu0 0.0
      %3870 = vmatprep.subr.mxu0 0.0
      %3871 = vmatpush1.msra.mxu0 0.0
      %3872 = vmatprep.subr.mxu0 0.0
      %3873 = vmatpush1.msra.mxu0 0.0
      %3874 = vmatprep.mubr.f32.mxu0 0.0
      %3875 = vmatmul.mubr.f32.gmra.mrb[0].mxu0 %v3265
      %v3876 = vpop.f32.mrb[0].mxu0
      %v3877 = vadd.f32 %v3652, %v3876
      %v3878 = vpop.f32.mrb[0].mxu0
      %3879 = vmatprep.mubr.f32.mxu0 0.0
      %3880 = vmatmul.mubr.f32.gmra.mrb[0].mxu0 %v3268
      %v3881 = vpop.f32.mrb[0].mxu0
      %v3882 = vadd.f32 %v3657, %v3881
      %v3883 = vpop.f32.mrb[0].mxu0
      %3884 = vmatprep.mubr.f32.mxu0 0.0
      %3885 = vmatmul.mubr.f32.gmra.mrb[0].mxu0 %v3271
      %v3886 = vpop.f32.mrb[0].mxu0
      %v3887 = vadd.f32 %v3662, %v3886
      %v3888 = vpop.f32.mrb[0].mxu0
      %3889 = vmatprep.mubr.f32.mxu0 0.0
      %3890 = vmatmul.mubr.f32.gmra.mrb[0].mxu0 %v3274
      %v3891 = vpop.f32.mrb[0].mxu0
      %v3892 = vadd.f32 %v3667, %v3891
      %v3893 = vpop.f32.mrb[0].mxu0
      %3894 = vmatprep.mubr.f32.mxu0 0.0
      %3895 = vmatmul.mubr.f32.gmra.mrb[0].mxu0 %v3277
      %v3896 = vpop.f32.mrb[0].mxu0
      %v3897 = vadd.f32 %v3672, %v3896
      %v3898 = vpop.f32.mrb[0].mxu0
      %3899 = vmatprep.mubr.f32.mxu0 0.0
      %3900 = vmatmul.mubr.f32.gmra.mrb[0].mxu0 %v3280
      %v3901 = vpop.f32.mrb[0].mxu0
      %v3902 = vadd.f32 %v3677, %v3901
      %v3903 = vpop.f32.mrb[0].mxu0
      %3904 = vmatprep.mubr.f32.mxu0 0.0
      %3905 = vmatmul.mubr.f32.gmra.mrb[0].mxu0 %v3283
      %v3906 = vpop.f32.mrb[0].mxu0
      %v3907 = vadd.f32 %v3682, %v3906
      %v3908 = vpop.f32.mrb[0].mxu0
      %3909 = vmatprep.mubr.f32.mxu0 0.0
      %3910 = vmatmul.mubr.f32.gmra.mrb[0].mxu0 %v3286
      %v3911 = vpop.f32.mrb[0].mxu0
      %v3912 = vadd.f32 %v3687, %v3911
      %v3913 = vpop.f32.mrb[0].mxu0
      %3914 = vmatprep.mubr.f32.mxu0 0.0
      %3915 = vmatmul.mubr.f32.gmra.mrb[0].mxu0 %v3289
      %v3916 = vpop.f32.mrb[0].mxu0
      %v3917 = vadd.f32 %v3692, %v3916
      %v3918 = vpop.f32.mrb[0].mxu0
      %3919 = vmatprep.mubr.f32.mxu0 0.0
      %3920 = vmatmul.mubr.f32.gmra.mrb[0].mxu0 %v3292
      %v3921 = vpop.f32.mrb[0].mxu0
      %v3922 = vadd.f32 %v3697, %v3921
      %v3923 = vpop.f32.mrb[0].mxu0
      %3924 = vmatprep.mubr.f32.mxu0 0.0
      %3925 = vmatmul.mubr.f32.gmra.mrb[0].mxu0 %v3295
      %v3926 = vpop.f32.mrb[0].mxu0
      %v3927 = vadd.f32 %v3702, %v3926
      %v3928 = vpop.f32.mrb[0].mxu0
      %3929 = vmatprep.mubr.f32.mxu0 0.0
      %3930 = vmatmul.mubr.f32.gmra.mrb[0].mxu0 %v3298
      %v3931 = vpop.f32.mrb[0].mxu0
      %v3932 = vadd.f32 %v3707, %v3931
      %v3933 = vpop.f32.mrb[0].mxu0
      %3934 = vmatprep.mubr.f32.mxu0 0.0
      %3935 = vmatmul.mubr.f32.gmra.mrb[0].mxu0 %v3301
      %v3936 = vpop.f32.mrb[0].mxu0
      %v3937 = vadd.f32 %v3712, %v3936
      %v3938 = vpop.f32.mrb[0].mxu0
      %3939 = vmatprep.mubr.f32.mxu0 0.0
      %3940 = vmatmul.mubr.f32.gmra.mrb[0].mxu0 %v3304
      %v3941 = vpop.f32.mrb[0].mxu0
      %v3942 = vadd.f32 %v3717, %v3941
      %v3943 = vpop.f32.mrb[0].mxu0
      %3944 = vmatprep.mubr.f32.mxu0 0.0
      %3945 = vmatmul.mubr.f32.gmra.mrb[0].mxu0 %v3307
      %v3946 = vpop.f32.mrb[0].mxu0
      %v3947 = vadd.f32 %v3722, %v3946
      %v3948 = vpop.f32.mrb[0].mxu0
      %3949 = vmatprep.mubr.f32.mxu0 0.0
      %3950 = vmatmul.mubr.f32.gmra.mrb[0].mxu0 %v3310
      %v3951 = vpop.f32.mrb[0].mxu0
      %v3952 = vadd.f32 %v3727, %v3951
      %v3953 = vpop.f32.mrb[0].mxu0
      %3954 = vmatprep.mubr.f32.mxu0 0.0
      %3955 = vmatmul.mubr.f32.gmra.mrb[0].mxu0 %v3313
      %v3956 = vpop.f32.mrb[0].mxu0
      %v3957 = vadd.f32 %v3732, %v3956
      %v3958 = vpop.f32.mrb[0].mxu0
      %3959 = vmatprep.mubr.f32.mxu0 0.0
      %3960 = vmatmul.mubr.f32.gmra.mrb[0].mxu0 %v3316
      %v3961 = vpop.f32.mrb[0].mxu0
      %v3962 = vadd.f32 %v3737, %v3961
      %v3963 = vpop.f32.mrb[0].mxu0
      %3964 = vmatprep.mubr.f32.mxu0 0.0
      %3965 = vmatmul.mubr.f32.gmra.mrb[0].mxu0 %v3319
      %v3966 = vpop.f32.mrb[0].mxu0
      %v3967 = vadd.f32 %v3742, %v3966
      %v3968 = vpop.f32.mrb[0].mxu0
      %3969 = vmatprep.mubr.f32.mxu0 0.0
      %3970 = vmatmul.mubr.f32.gmra.mrb[0].mxu0 %v3322
      %v3971 = vpop.f32.mrb[0].mxu0
      %v3972 = vadd.f32 %v3747, %v3971
      %v3973 = vpop.f32.mrb[0].mxu0
      %3974 = vmatprep.mubr.f32.mxu0 0.0
      %3975 = vmatmul.mubr.f32.gmra.mrb[0].mxu0 %v3325
      %v3976 = vpop.f32.mrb[0].mxu0
      %v3977 = vadd.f32 %v3752, %v3976
      %v3978 = vpop.f32.mrb[0].mxu0
      %3979 = vmatprep.mubr.f32.mxu0 0.0
      %3980 = vmatmul.mubr.f32.gmra.mrb[0].mxu0 %v3328
      %v3981 = vpop.f32.mrb[0].mxu0
      %v3982 = vadd.f32 %v3757, %v3981
      %v3983 = vpop.f32.mrb[0].mxu0
      %3984 = vmatprep.mubr.f32.mxu0 0.0
      %3985 = vmatmul.mubr.f32.gmra.mrb[0].mxu0 %v3331
      %v3986 = vpop.f32.mrb[0].mxu0
      %v3987 = vadd.f32 %v3762, %v3986
      %v3988 = vpop.f32.mrb[0].mxu0
      %3989 = vmatprep.mubr.f32.mxu0 0.0
      %3990 = vmatmul.mubr.f32.gmra.mrb[0].mxu0 %v3334
      %v3991 = vpop.f32.mrb[0].mxu0
      %v3992 = vadd.f32 %v3767, %v3991
      %v3993 = vpop.f32.mrb[0].mxu0
      %3994 = vmatprep.mubr.f32.mxu0 0.0
      %3995 = vmatmul.mubr.f32.gmra.mrb[0].mxu0 %v3337
      %v3996 = vpop.f32.mrb[0].mxu0
      %v3997 = vadd.f32 %v3772, %v3996
      %v3998 = vpop.f32.mrb[0].mxu0
      %3999 = vmatprep.mubr.f32.mxu0 0.0
      %4000 = vmatmul.mubr.f32.gmra.mrb[0].mxu0 %v3340
      %v4001 = vpop.f32.mrb[0].mxu0
      %v4002 = vadd.f32 %v3777, %v4001
      %v4003 = vpop.f32.mrb[0].mxu0
      %4004 = vmatprep.mubr.f32.mxu0 0.0
      %4005 = vmatmul.mubr.f32.gmra.mrb[0].mxu0 %v3343
      %v4006 = vpop.f32.mrb[0].mxu0
      %v4007 = vadd.f32 %v3782, %v4006
      %v4008 = vpop.f32.mrb[0].mxu0
      %4009 = vmatprep.mubr.f32.mxu0 0.0
      %4010 = vmatmul.mubr.f32.gmra.mrb[0].mxu0 %v3346
      %v4011 = vpop.f32.mrb[0].mxu0
      %v4012 = vadd.f32 %v3787, %v4011
      %v4013 = vpop.f32.mrb[0].mxu0
      %4014 = vmatprep.mubr.f32.mxu0 0.0
      %4015 = vmatmul.mubr.f32.gmra.mrb[0].mxu0 %v3349
      %v4016 = vpop.f32.mrb[0].mxu0
      %v4017 = vadd.f32 %v3792, %v4016
      %v4018 = vpop.f32.mrb[0].mxu0
      %4019 = vmatprep.mubr.f32.mxu0 0.0
      %4020 = vmatmul.mubr.f32.gmra.mrb[0].mxu0 %v3352
      %v4021 = vpop.f32.mrb[0].mxu0
      %v4022 = vadd.f32 %v3797, %v4021
      %v4023 = vpop.f32.mrb[0].mxu0
      %4024 = vmatprep.mubr.f32.mxu0 0.0
      %4025 = vmatmul.mubr.f32.gmra.mrb[0].mxu0 %v3355
      %v4026 = vpop.f32.mrb[0].mxu0
      %v4027 = vadd.f32 %v3802, %v4026
      %v4028 = vpop.f32.mrb[0].mxu0
      %4029 = vmatprep.mubr.f32.mxu0 0.0
      %4030 = vmatmul.mubr.f32.gmra.mrb[0].mxu0 %v3358
      %v4031 = vpop.f32.mrb[0].mxu0
      %v4032 = vadd.f32 %v3807, %v4031
      %v4033 = vpop.f32.mrb[0].mxu0
      %4034 = vdwg.mxu0
      %v4035 = vmax.f32 %v3071, %v3877
      %v4036 = vmax.f32 %v3072, %v3882
      %v4037 = vmax.f32 %v3073, %v3887
      %v4038 = vmax.f32 %v3074, %v3892
      %v4039 = vmax.f32 %v3075, %v3897
      %v4040 = vmax.f32 %v3076, %v3902
      %v4041 = vmax.f32 %v3077, %v3907
      %v4042 = vmax.f32 %v3078, %v3912
      %v4043 = vmax.f32 %v3079, %v3917
      %v4044 = vmax.f32 %v3080, %v3922
      %v4045 = vmax.f32 %v3081, %v3927
      %v4046 = vmax.f32 %v3082, %v3932
      %v4047 = vmax.f32 %v3083, %v3937
      %v4048 = vmax.f32 %v3084, %v3942
      %v4049 = vmax.f32 %v3085, %v3947
      %v4050 = vmax.f32 %v3086, %v3952
      %v4051 = vmax.f32 %v3087, %v3957
      %v4052 = vmax.f32 %v3088, %v3962
      %v4053 = vmax.f32 %v3089, %v3967
      %v4054 = vmax.f32 %v3090, %v3972
      %v4055 = vmax.f32 %v3091, %v3977
      %v4056 = vmax.f32 %v3092, %v3982
      %v4057 = vmax.f32 %v3093, %v3987
      %v4058 = vmax.f32 %v3094, %v3992
      %v4059 = vmax.f32 %v3095, %v3997
      %v4060 = vmax.f32 %v3096, %v4002
      %v4061 = vmax.f32 %v3097, %v4007
      %v4062 = vmax.f32 %v3098, %v4012
      %v4063 = vmax.f32 %v3099, %v4017
      %v4064 = vmax.f32 %v3100, %v4022
      %v4065 = vmax.f32 %v3101, %v4027
      %v4066 = vmax.f32 %v3102, %v4032
      %v4067 = vld [vmem:[%s2] sm:$0x1]
      %v4069 = vlaneseq
      %v4070 = vshrl.u32 %v4069, 7
      %v4071 = vsub.s32 0, %v4070
      %v4072 = vrot.slane %v4067, %v4071
      %v4074 = vadd.f32 %v4035, %v4072
      %v4075 = vadd.f32 %v4036, %v4072
      %v4076 = vadd.f32 %v4037, %v4072
      %v4077 = vadd.f32 %v4038, %v4072
      %v4078 = vadd.f32 %v4039, %v4072
      %v4079 = vadd.f32 %v4040, %v4072
      %v4080 = vadd.f32 %v4041, %v4072
      %v4081 = vadd.f32 %v4042, %v4072
      %v4082 = vadd.f32 %v4043, %v4072
      %v4083 = vadd.f32 %v4044, %v4072
      %v4084 = vadd.f32 %v4045, %v4072
      %v4085 = vadd.f32 %v4046, %v4072
      %v4086 = vadd.f32 %v4047, %v4072
      %v4087 = vadd.f32 %v4048, %v4072
      %v4088 = vadd.f32 %v4049, %v4072
      %v4089 = vadd.f32 %v4050, %v4072
      %v4090 = vadd.f32 %v4051, %v4072
      %v4091 = vadd.f32 %v4052, %v4072
      %v4092 = vadd.f32 %v4053, %v4072
      %v4093 = vadd.f32 %v4054, %v4072
      %v4094 = vadd.f32 %v4055, %v4072
      %v4095 = vadd.f32 %v4056, %v4072
      %v4096 = vadd.f32 %v4057, %v4072
      %v4097 = vadd.f32 %v4058, %v4072
      %v4098 = vadd.f32 %v4059, %v4072
      %v4099 = vadd.f32 %v4060, %v4072
      %v4100 = vadd.f32 %v4061, %v4072
      %v4101 = vadd.f32 %v4062, %v4072
      %v4102 = vadd.f32 %v4063, %v4072
      %v4103 = vadd.f32 %v4064, %v4072
      %v4104 = vadd.f32 %v4065, %v4072
      %v4105 = vadd.f32 %v4066, %v4072
      %v4106 = vmax.f32 %v4074, 0.0
      %v4107 = vmax.f32 %v4075, 0.0
      %v4108 = vmax.f32 %v4076, 0.0
      %v4109 = vmax.f32 %v4077, 0.0
      %v4110 = vmax.f32 %v4078, 0.0
      %v4111 = vmax.f32 %v4079, 0.0
      %v4112 = vmax.f32 %v4080, 0.0
      %v4113 = vmax.f32 %v4081, 0.0
      %v4114 = vmax.f32 %v4082, 0.0
      %v4115 = vmax.f32 %v4083, 0.0
      %v4116 = vmax.f32 %v4084, 0.0
      %v4117 = vmax.f32 %v4085, 0.0
      %v4118 = vmax.f32 %v4086, 0.0
      %v4119 = vmax.f32 %v4087, 0.0
      %v4120 = vmax.f32 %v4088, 0.0
      %v4121 = vmax.f32 %v4089, 0.0
      %v4122 = vmax.f32 %v4090, 0.0
      %v4123 = vmax.f32 %v4091, 0.0
      %v4124 = vmax.f32 %v4092, 0.0
      %v4125 = vmax.f32 %v4093, 0.0
      %v4126 = vmax.f32 %v4094, 0.0
      %v4127 = vmax.f32 %v4095, 0.0
      %v4128 = vmax.f32 %v4096, 0.0
      %v4129 = vmax.f32 %v4097, 0.0
      %v4130 = vmax.f32 %v4098, 0.0
      %v4131 = vmax.f32 %v4099, 0.0
      %v4132 = vmax.f32 %v4100, 0.0
      %v4133 = vmax.f32 %v4101, 0.0
      %v4134 = vmax.f32 %v4102, 0.0
      %v4135 = vmax.f32 %v4103, 0.0
      %v4136 = vmax.f32 %v4104, 0.0
      %v4137 = vmax.f32 %v4105, 0.0
      %4138 = vst [vmem:[%s170] sm:$0xff] %v4106
      %4139 = vst [vmem:[%s170 + $0x8] sm:$0xff] %v4107
      %4140 = vst [vmem:[%s170 + $0x10] sm:$0xff] %v4108
      %4141 = vst [vmem:[%s170 + $0x18] sm:$0xff] %v4109
      %4142 = vst [vmem:[%s170 + $0x20] sm:$0xff] %v4110
      %4143 = vst [vmem:[%s170 + $0x28] sm:$0xff] %v4111
      %4144 = vst [vmem:[%s170 + $0x30] sm:$0xff] %v4112
      %4145 = vst [vmem:[%s170 + $0x38] sm:$0xff] %v4113
      %4146 = vst [vmem:[%s170 + $0x40] sm:$0xff] %v4114
      %4147 = vst [vmem:[%s170 + $0x48] sm:$0xff] %v4115
      %4148 = vst [vmem:[%s170 + $0x50] sm:$0xff] %v4116
      %4149 = vst [vmem:[%s170 + $0x58] sm:$0xff] %v4117
      %4150 = vst [vmem:[%s170 + $0x60] sm:$0xff] %v4118
      %4151 = vst [vmem:[%s170 + $0x68] sm:$0xff] %v4119
      %4152 = vst [vmem:[%s170 + $0x70] sm:$0xff] %v4120
      %4153 = vst [vmem:[%s170 + $0x78] sm:$0xff] %v4121
      %4154 = vst [vmem:[%s170 + $0x80] sm:$0xff] %v4122
      %4155 = vst [vmem:[%s170 + $0x88] sm:$0xff] %v4123
      %4156 = vst [vmem:[%s170 + $0x90] sm:$0xff] %v4124
      %4157 = vst [vmem:[%s170 + $0x98] sm:$0xff] %v4125
      %4158 = vst [vmem:[%s170 + $0xa0] sm:$0xff] %v4126
      %4159 = vst [vmem:[%s170 + $0xa8] sm:$0xff] %v4127
      %4160 = vst [vmem:[%s170 + $0xb0] sm:$0xff] %v4128
      %4161 = vst [vmem:[%s170 + $0xb8] sm:$0xff] %v4129
      %4162 = vst [vmem:[%s170 + $0xc0] sm:$0xff] %v4130
      %4163 = vst [vmem:[%s170 + $0xc8] sm:$0xff] %v4131
      %4164 = vst [vmem:[%s170 + $0xd0] sm:$0xff] %v4132
      %4165 = vst [vmem:[%s170 + $0xd8] sm:$0xff] %v4133
      %4166 = vst [vmem:[%s170 + $0xe0] sm:$0xff] %v4134
      %4167 = vst [vmem:[%s170 + $0xe8] sm:$0xff] %v4135
      %4168 = vst [vmem:[%s170 + $0xf0] sm:$0xff] %v4136
      %4169 = vst [vmem:[%s170 + $0xf8] sm:$0xff] %v4137
      %p4170 = scmp.lt.s32.totalorder %s14, 1
      %s4171 = scalar_select %p4170, %s14, 1
      %s4172 = smul.addr %s4171, 32
      %s4173 = smul.addr %s4172, 8
      %s4174 = scalar_lea.vmem %s3, %s4173
      // Predicated region
      $region33: #{_lambda_.4} parent=31 // pred_check
        %p4175 = pneg %p100
      $region34: #{_lambda_.4} parent=31 // pred_check_branch
        %4177 = sbr.rel (%p4175) target = $region36
      $region35: #{_lambda_.4} parent=31 // pred_region
        _
      $region36: #{_lambda_.4} parent=31 // pred_fallthru
        _
    $region32: #{_lambda_.4} parent=5 // pred_fallthru
      _
    %p4178 = scmp.le.s32.totalorder 2, %s9
    // Predicated region
    $region37: #{_lambda_.4} parent=5 // pred_check
      %p4179 = pneg %p4178
    $region38: #{_lambda_.4} parent=5 // pred_check_branch
      %4181 = sbr.rel (%p4179) target = $region40
    $region39: #{_lambda_.4} parent=5 // pred_region
      %s4182 = ssub.s32 %s9, 2
      // Predicated region
      $region41: #{_lambda_.4} parent=39 // pred_check
        %p4183 = pneg %p106
      $region42: #{_lambda_.4} parent=39 // pred_check_branch
        %4185 = sbr.rel (%p4183) target = $region44
      $region43: #{_lambda_.4} parent=39 // pred_region
        %p4186 = scmp.lt.s32.totalorder %s15, 1
        %s4187 = scalar_select %p4186, %s15, 1
        %s4188 = smul.addr %s4187, 32
        %s4189 = smul.addr %s4188, 8
        %s4190 = scalar_lea.vmem %s3, %s4189
      $region44: #{_lambda_.4} parent=39 // pred_fallthru
        _
    $region40: #{_lambda_.4} parent=5 // pred_fallthru
      _
  $region6: #{_lambda_.4} parent=0 // loop_footer
    %s13 = sadd.s32 1, %s9
  $region7: #{_lambda_.4} parent=0 // loop_footer_branch
    %8 = sbr.rel target = $region3
  $region8: #{_lambda_.4} parent=0 // loop_exit
    _

// kernel: _lambda_.5
$region0: #{_lambda_.5}
  #allocation0 [shape = 'u32[]', space=smem, size = 0x4, offset = 0x4, fixed_abs, tag = 'smem constant byte address 0x4 - core index']
  #allocation1 [shape = 'u32[144,128]{1,0:T(1,128)}', space=vmem, size = 0x12000, scoped, tag = 'internal scratch']
  #allocation2 [shape = 'f32[2,128]{1,0:T(2,128)}', space=vmem, size = 0x400, scoped, tag = 'scratch operand']
  %s0 = inlined_call_operand.vmem [shape: f32[2,32768], index: 0, kind: input, shape index: {}]
  %s1 = inlined_call_operand.vmem [shape: f32[32768,128], index: 1, kind: input, shape index: {}]
  %s2 = inlined_call_operand.vmem [shape: f32[1,128], index: 2, kind: input, shape index: {}]
  %s3 = inlined_call_operand.vmem [shape: f32[128,5], index: 3, kind: input, shape index: {}]
  %s4 = inlined_call_operand.vmem [shape: f32[1,5], index: 4, kind: input, shape index: {}]
  %s5 = inlined_call_operand.vmem [shape: f32[2,5], index: 5, kind: output, shape index: {}]
  %s6 = sld [smem:[#allocation0]]
  $region61: #{_lambda_.5} parent=0
    _
  %s8 = ssub.s32 1, %s6
  %s9 = scalar_select 0, %s8, %s6
  loop: start=0, step=1, limit=6
  $region2: #{_lambda_.5} parent=0 // loop_pre_header
    _
  $region3: #{_lambda_.5} parent=0 // loop_header
    %s11 = sphi 0, %s15
    %p12 = scmp.ge.s32.totalorder %s11, 6
    %s21 = sphi 0, %s23
    %s24 = sphi 0, %s21
    %s25 = sphi 0, %s24
    %s41 = sphi 0, %s25
    %s47 = sphi 0, %s49
    %s50 = sphi 0, %s47
    %s51 = sphi 0, %s50
    %s67 = sphi 0, %s51
    %s71 = sphi 0, %s71
    %s73 = sphi 0, %s71
    %s74 = sphi 0, %s73
    %s88 = sphi 0, %s74
    %s92 = sphi 0, %s92
    %s94 = sphi 0, %s92
    %s95 = sphi 0, %s94
    %s109 = sphi 0, %s95
    %s113 = sphi 0, %s113
    %s115 = sphi 0, %s113
    %s116 = sphi 0, %s115
    %s130 = sphi 0, %s116
    %s134 = sphi 0, %s134
    %s136 = sphi 0, %s134
    %s137 = sphi 0, %s136
    %s151 = sphi 0, %s137
  $region4: #{_lambda_.5} parent=0 // loop_header_branch
    %14 = sbr.rel (%p12) target = $region8
  $region5: #{_lambda_.5} parent=0 // loop_body
    %s16 = ssub.s32 %s11, 1
    %s17 = ssub.s32 %s11, 2
    %s18 = sadd.s32 %s11, 1
    %s19 = ssub.s32 %s11, %s18
    %p20 = scmp.eq.s32.totalorder %s19, 0
    %s22 = sadd.s32 %s21, 1
    %s23 = scalar_select %p20, %s21, %s22
    %p26 = pneg %p20
    %p27 = scmp.eq.s32.totalorder %s11, 3
    %p28 = por %p26, %p27
    %p29 = scmp.ne.s32.totalorder %s21, %s24
    %p30 = scmp.eq.s32.totalorder %s11, 0
    %p31 = por %p29, %p30
    %p32 = scmp.ne.s32.totalorder %s21, %s24
    %p33 = scmp.eq.s32.totalorder %s16, 3
    %p34 = por %p32, %p33
    %p35 = scmp.ne.s32.totalorder %s24, %s25
    %p36 = scmp.eq.s32.totalorder %s16, 0
    %p37 = por %p35, %p36
    %p38 = scmp.ne.s32.totalorder %s24, %s25
    %p39 = scmp.eq.s32.totalorder %s17, 3
    %p40 = por %p38, %p39
    %p42 = scmp.ne.s32.totalorder %s25, %s41
    %p43 = scmp.eq.s32.totalorder %s17, 0
    %p44 = por %p42, %p43
    %s45 = ssub.s32 %s11, %s18
    %p46 = scmp.eq.s32.totalorder %s45, 0
    %s48 = sadd.s32 %s47, 1
    %s49 = scalar_select %p46, %s47, %s48
    %p52 = pneg %p46
    %p53 = scmp.eq.s32.totalorder %s11, 3
    %p54 = por %p52, %p53
    %p55 = scmp.ne.s32.totalorder %s47, %s50
    %p56 = scmp.eq.s32.totalorder %s11, 0
    %p57 = por %p55, %p56
    %p58 = scmp.ne.s32.totalorder %s47, %s50
    %p59 = scmp.eq.s32.totalorder %s16, 3
    %p60 = por %p58, %p59
    %p61 = scmp.ne.s32.totalorder %s50, %s51
    %p62 = scmp.eq.s32.totalorder %s16, 0
    %p63 = por %p61, %p62
    %p64 = scmp.ne.s32.totalorder %s50, %s51
    %p65 = scmp.eq.s32.totalorder %s17, 3
    %p66 = por %p64, %p65
    %p68 = scmp.ne.s32.totalorder %s51, %s67
    %p69 = scmp.eq.s32.totalorder %s17, 0
    %p70 = por %p68, %p69
    %s72 = sadd.s32 %s71, 1
    %p75 = scmp.eq.s32.totalorder %s11, 3
    %p76 = scmp.ne.s32.totalorder %s71, %s73
    %p77 = scmp.eq.s32.totalorder %s11, 0
    %p78 = por %p76, %p77
    %p79 = scmp.ne.s32.totalorder %s71, %s73
    %p80 = scmp.eq.s32.totalorder %s16, 3
    %p81 = por %p79, %p80
    %p82 = scmp.ne.s32.totalorder %s73, %s74
    %p83 = scmp.eq.s32.totalorder %s16, 0
    %p84 = por %p82, %p83
    %p85 = scmp.ne.s32.totalorder %s73, %s74
    %p86 = scmp.eq.s32.totalorder %s17, 3
    %p87 = por %p85, %p86
    %p89 = scmp.ne.s32.totalorder %s74, %s88
    %p90 = scmp.eq.s32.totalorder %s17, 0
    %p91 = por %p89, %p90
    %s93 = sadd.s32 %s92, 1
    %p96 = scmp.eq.s32.totalorder %s11, 3
    %p97 = scmp.ne.s32.totalorder %s92, %s94
    %p98 = scmp.eq.s32.totalorder %s11, 0
    %p99 = por %p97, %p98
    %p100 = scmp.ne.s32.totalorder %s92, %s94
    %p101 = scmp.eq.s32.totalorder %s16, 3
    %p102 = por %p100, %p101
    %p103 = scmp.ne.s32.totalorder %s94, %s95
    %p104 = scmp.eq.s32.totalorder %s16, 0
    %p105 = por %p103, %p104
    %p106 = scmp.ne.s32.totalorder %s94, %s95
    %p107 = scmp.eq.s32.totalorder %s17, 3
    %p108 = por %p106, %p107
    %p110 = scmp.ne.s32.totalorder %s95, %s109
    %p111 = scmp.eq.s32.totalorder %s17, 0
    %p112 = por %p110, %p111
    %s114 = sadd.s32 %s113, 1
    %p117 = scmp.eq.s32.totalorder %s11, 3
    %p118 = scmp.ne.s32.totalorder %s113, %s115
    %p119 = scmp.eq.s32.totalorder %s11, 0
    %p120 = por %p118, %p119
    %p121 = scmp.ne.s32.totalorder %s113, %s115
    %p122 = scmp.eq.s32.totalorder %s16, 3
    %p123 = por %p121, %p122
    %p124 = scmp.ne.s32.totalorder %s115, %s116
    %p125 = scmp.eq.s32.totalorder %s16, 0
    %p126 = por %p124, %p125
    %p127 = scmp.ne.s32.totalorder %s115, %s116
    %p128 = scmp.eq.s32.totalorder %s17, 3
    %p129 = por %p127, %p128
    %p131 = scmp.ne.s32.totalorder %s116, %s130
    %p132 = scmp.eq.s32.totalorder %s17, 0
    %p133 = por %p131, %p132
    %s135 = sadd.s32 %s134, 1
    %p138 = scmp.eq.s32.totalorder %s11, 3
    %p139 = scmp.ne.s32.totalorder %s134, %s136
    %p140 = scmp.eq.s32.totalorder %s11, 0
    %p141 = por %p139, %p140
    %p142 = scmp.ne.s32.totalorder %s134, %s136
    %p143 = scmp.eq.s32.totalorder %s16, 3
    %p144 = por %p142, %p143
    %p145 = scmp.ne.s32.totalorder %s136, %s137
    %p146 = scmp.eq.s32.totalorder %s16, 0
    %p147 = por %p145, %p146
    %p148 = scmp.ne.s32.totalorder %s136, %s137
    %p149 = scmp.eq.s32.totalorder %s17, 3
    %p150 = por %p148, %p149
    %p152 = scmp.ne.s32.totalorder %s137, %s151
    %p153 = scmp.eq.s32.totalorder %s17, 0
    %p154 = por %p152, %p153
    %p155 = scmp.le.s32.totalorder 1, %s11
    %p156 = scmp.lt.s32.totalorder %s11, 5
    %p157 = pnand %p155, %p156
    %p158 = pneg %p157
    // Predicated region
    $region9: #{_lambda_.5} parent=5 // pred_check
      _
    $region10: #{_lambda_.5} parent=5 // pred_check_branch
      %160 = sbr.rel (%p157) target = $region12
    $region11: #{_lambda_.5} parent=5 // pred_region
      %s161 = ssub.s32 %s11, 1
      // Predicated region
      $region13: #{_lambda_.5} parent=11 // pred_check
        %p162 = pneg %p84
      $region14: #{_lambda_.5} parent=11 // pred_check_branch
        %164 = sbr.rel (%p162) target = $region16
      $region15: #{_lambda_.5} parent=11 // pred_region
        _
      $region16: #{_lambda_.5} parent=11 // pred_fallthru
        _
      // Predicated region
      $region17: #{_lambda_.5} parent=11 // pred_check
        %p165 = pneg %p105
      $region18: #{_lambda_.5} parent=11 // pred_check_branch
        %167 = sbr.rel (%p165) target = $region20
      $region19: #{_lambda_.5} parent=11 // pred_region
        _
      $region20: #{_lambda_.5} parent=11 // pred_fallthru
        _
      // Predicated region
      $region21: #{_lambda_.5} parent=11 // pred_check
        %p168 = pneg %p126
      $region22: #{_lambda_.5} parent=11 // pred_check_branch
        %170 = sbr.rel (%p168) target = $region24
      $region23: #{_lambda_.5} parent=11 // pred_region
        _
      $region24: #{_lambda_.5} parent=11 // pred_fallthru
        _
    $region12: #{_lambda_.5} parent=5 // pred_fallthru
      _
    %p171 = scmp.lt.s32.totalorder %s11, 4
    // Predicated region
    $region25: #{_lambda_.5} parent=5 // pred_check
      %p172 = pneg %p171
    $region26: #{_lambda_.5} parent=5 // pred_check_branch
      %174 = sbr.rel (%p172) target = $region28
    $region27: #{_lambda_.5} parent=5 // pred_region
      // Predicated region
      $region29: #{_lambda_.5} parent=27 // pred_check
        %p175 = pneg %p31
      $region30: #{_lambda_.5} parent=27 // pred_check_branch
        %177 = sbr.rel (%p175) target = $region32
      $region31: #{_lambda_.5} parent=27 // pred_region
        %s178 = smul.u32 64, %s11
        %p179 = scmp.lt.s32.totalorder %s178, 255
        %s180 = scalar_select %p179, %s178, 255
        %s181 = smul.addr %s180, 2
        %s182 = scalar_lea.vmem %s0, %s181
        %s183 = smul.u32 64, %s11
      $region32: #{_lambda_.5} parent=27 // pred_fallthru
        _
      // Predicated region
      $region33: #{_lambda_.5} parent=27 // pred_check
        %p184 = pneg %p57
      $region34: #{_lambda_.5} parent=27 // pred_check_branch
        %186 = sbr.rel (%p184) target = $region36
      $region35: #{_lambda_.5} parent=27 // pred_region
        %s187 = smul.u32 1024, %s11
        %p188 = scmp.lt.s32.totalorder %s187, 4095
        %s189 = scalar_select %p188, %s187, 4095
        %s190 = smul.addr %s189, 8
        %s191 = scalar_lea.vmem %s1, %s190
        %s192 = smul.u32 1024, %s11
      $region36: #{_lambda_.5} parent=27 // pred_fallthru
        _
    $region28: #{_lambda_.5} parent=5 // pred_fallthru
      _
    %p193 = scmp.le.s32.totalorder 1, %s11
    %p194 = scmp.lt.s32.totalorder %s11, 5
    %p195 = pnand %p193, %p194
    %p196 = pneg %p195
    // Predicated region
    $region37: #{_lambda_.5} parent=5 // pred_check
      _
    $region38: #{_lambda_.5} parent=5 // pred_check_branch
      %198 = sbr.rel (%p195) target = $region40
    $region39: #{_lambda_.5} parent=5 // pred_region
      %s199 = ssub.s32 %s11, 1
      %s200 = smul.u32 64, %s16
      %p201 = scmp.lt.s32.totalorder %s200, 255
      %s202 = scalar_select %p201, %s200, 255
      %s203 = smul.addr %s202, 2
      %s204 = scalar_lea.vmem %s0, %s203
      %p205 = pneg %p37
      %p206 = pneg %p34
      %s207 = smul.u32 1024, %s16
      %p208 = scmp.lt.s32.totalorder %s207, 4095
      %s209 = scalar_select %p208, %s207, 4095
      %s210 = smul.addr %s209, 8
      %s211 = scalar_lea.vmem %s1, %s210
      %p212 = pneg %p63
      %p213 = pneg %p60
      %p214 = pneg %p84
      %p215 = pneg %p81
      %p216 = pneg %p105
      %p217 = pneg %p102
      %p218 = pneg %p126
      %p219 = pneg %p123
      %p220 = pneg %p147
      %p221 = pneg %p144
      %s222 = smul.u32 64, %s16
      %p223 = scmp.lt.s32.totalorder %s222, 255
      %s224 = scalar_select %p223, %s222, 255
      %s225 = smul.addr %s224, 2
      %s226 = scalar_lea.vmem %s0, %s225
      %s227 = smul.u32 64, %s16
      %s228 = smul.u32 1024, %s16
      %p229 = scmp.lt.s32.totalorder %s228, 4095
      %s230 = scalar_select %p229, %s228, 4095
      %s231 = smul.addr %s230, 8
      %s232 = scalar_lea.vmem %s1, %s231
      %s233 = smul.u32 1024, %s16
      %p234 = scmp.eq.s32.totalorder %s16, 0
      // Predicated region
      $region41: #{_lambda_.5} parent=39 // pred_check
        %p235 = pneg %p234
      $region42: #{_lambda_.5} parent=39 // pred_check_branch
        %237 = sbr.rel (%p235) target = $region44
      $region43: #{_lambda_.5} parent=39 // pred_region
        %238 = vst [vmem:[#allocation2] sm:$0x3] 0.0
      $region44: #{_lambda_.5} parent=39 // pred_fallthru
        _
      %v239 = vld [vmem:[#allocation2] sm:$0x3]
      %v240 = vld [vmem:[%s226] sm:$0xff]
      %v241 = vld [vmem:[%s226 + $0x8] sm:$0xff]
      %v242 = vld [vmem:[%s226 + $0x10] sm:$0xff]
      %v243 = vld [vmem:[%s226 + $0x18] sm:$0xff]
      %v244 = vld [vmem:[%s226 + $0x20] sm:$0xff]
      %v245 = vld [vmem:[%s226 + $0x28] sm:$0xff]
      %v246 = vld [vmem:[%s226 + $0x30] sm:$0xff]
      %v247 = vld [vmem:[%s226 + $0x38] sm:$0xff]
      %v248 = vld [vmem:[%s226 + $0x40] sm:$0xff]
      %v249 = vld [vmem:[%s226 + $0x48] sm:$0xff]
      %v250 = vld [vmem:[%s226 + $0x50] sm:$0xff]
      %v251 = vld [vmem:[%s226 + $0x58] sm:$0xff]
      %v252 = vld [vmem:[%s226 + $0x60] sm:$0xff]
      %v253 = vld [vmem:[%s226 + $0x68] sm:$0xff]
      %v254 = vld [vmem:[%s226 + $0x70] sm:$0xff]
      %v255 = vld [vmem:[%s226 + $0x78] sm:$0xff]
      %v256 = vld [vmem:[%s232] sm:$0xff]
      %v257 = vld [vmem:[%s232 + $0x8] sm:$0xff]
      %v258 = vld [vmem:[%s232 + $0x10] sm:$0xff]
      %v259 = vld [vmem:[%s232 + $0x18] sm:$0xff]
      %v260 = vld [vmem:[%s232 + $0x20] sm:$0xff]
      %v261 = vld [vmem:[%s232 + $0x28] sm:$0xff]
      %v262 = vld [vmem:[%s232 + $0x30] sm:$0xff]
      %v263 = vld [vmem:[%s232 + $0x38] sm:$0xff]
      %v264 = vld [vmem:[%s232 + $0x40] sm:$0xff]
      %v265 = vld [vmem:[%s232 + $0x48] sm:$0xff]
      %v266 = vld [vmem:[%s232 + $0x50] sm:$0xff]
      %v267 = vld [vmem:[%s232 + $0x58] sm:$0xff]
      %v268 = vld [vmem:[%s232 + $0x60] sm:$0xff]
      %v269 = vld [vmem:[%s232 + $0x68] sm:$0xff]
      %v270 = vld [vmem:[%s232 + $0x70] sm:$0xff]
      %v271 = vld [vmem:[%s232 + $0x78] sm:$0xff]
      %v272 = vld [vmem:[%s232 + $0x80] sm:$0xff]
      %v273 = vld [vmem:[%s232 + $0x88] sm:$0xff]
      %v274 = vld [vmem:[%s232 + $0x90] sm:$0xff]
      %v275 = vld [vmem:[%s232 + $0x98] sm:$0xff]
      %v276 = vld [vmem:[%s232 + $0xa0] sm:$0xff]
      %v277 = vld [vmem:[%s232 + $0xa8] sm:$0xff]
      %v278 = vld [vmem:[%s232 + $0xb0] sm:$0xff]
      %v279 = vld [vmem:[%s232 + $0xb8] sm:$0xff]
      %v280 = vld [vmem:[%s232 + $0xc0] sm:$0xff]
      %v281 = vld [vmem:[%s232 + $0xc8] sm:$0xff]
      %v282 = vld [vmem:[%s232 + $0xd0] sm:$0xff]
      %v283 = vld [vmem:[%s232 + $0xd8] sm:$0xff]
      %v284 = vld [vmem:[%s232 + $0xe0] sm:$0xff]
      %v285 = vld [vmem:[%s232 + $0xe8] sm:$0xff]
      %v286 = vld [vmem:[%s232 + $0xf0] sm:$0xff]
      %v287 = vld [vmem:[%s232 + $0xf8] sm:$0xff]
      %v288 = vld [vmem:[%s232 + $0x100] sm:$0xff]
      %v289 = vld [vmem:[%s232 + $0x108] sm:$0xff]
      %v290 = vld [vmem:[%s232 + $0x110] sm:$0xff]
      %v291 = vld [vmem:[%s232 + $0x118] sm:$0xff]
      %v292 = vld [vmem:[%s232 + $0x120] sm:$0xff]
      %v293 = vld [vmem:[%s232 + $0x128] sm:$0xff]
      %v294 = vld [vmem:[%s232 + $0x130] sm:$0xff]
      %v295 = vld [vmem:[%s232 + $0x138] sm:$0xff]
      %v296 = vld [vmem:[%s232 + $0x140] sm:$0xff]
      %v297 = vld [vmem:[%s232 + $0x148] sm:$0xff]
      %v298 = vld [vmem:[%s232 + $0x150] sm:$0xff]
      %v299 = vld [vmem:[%s232 + $0x158] sm:$0xff]
      %v300 = vld [vmem:[%s232 + $0x160] sm:$0xff]
      %v301 = vld [vmem:[%s232 + $0x168] sm:$0xff]
      %v302 = vld [vmem:[%s232 + $0x170] sm:$0xff]
      %v303 = vld [vmem:[%s232 + $0x178] sm:$0xff]
      %v304 = vld [vmem:[%s232 + $0x180] sm:$0xff]
      %v305 = vld [vmem:[%s232 + $0x188] sm:$0xff]
      %v306 = vld [vmem:[%s232 + $0x190] sm:$0xff]
      %v307 = vld [vmem:[%s232 + $0x198] sm:$0xff]
      %v308 = vld [vmem:[%s232 + $0x1a0] sm:$0xff]
      %v309 = vld [vmem:[%s232 + $0x1a8] sm:$0xff]
      %v310 = vld [vmem:[%s232 + $0x1b0] sm:$0xff]
      %v311 = vld [vmem:[%s232 + $0x1b8] sm:$0xff]
      %v312 = vld [vmem:[%s232 + $0x1c0] sm:$0xff]
      %v313 = vld [vmem:[%s232 + $0x1c8] sm:$0xff]
      %v314 = vld [vmem:[%s232 + $0x1d0] sm:$0xff]
      %v315 = vld [vmem:[%s232 + $0x1d8] sm:$0xff]
      %v316 = vld [vmem:[%s232 + $0x1e0] sm:$0xff]
      %v317 = vld [vmem:[%s232 + $0x1e8] sm:$0xff]
      %v318 = vld [vmem:[%s232 + $0x1f0] sm:$0xff]
      %v319 = vld [vmem:[%s232 + $0x1f8] sm:$0xff]
      %v320 = vld [vmem:[%s232 + $0x200] sm:$0xff]
      %v321 = vld [vmem:[%s232 + $0x208] sm:$0xff]
      %v322 = vld [vmem:[%s232 + $0x210] sm:$0xff]
      %v323 = vld [vmem:[%s232 + $0x218] sm:$0xff]
      %v324 = vld [vmem:[%s232 + $0x220] sm:$0xff]
      %v325 = vld [vmem:[%s232 + $0x228] sm:$0xff]
      %v326 = vld [vmem:[%s232 + $0x230] sm:$0xff]
      %v327 = vld [vmem:[%s232 + $0x238] sm:$0xff]
      %v328 = vld [vmem:[%s232 + $0x240] sm:$0xff]
      %v329 = vld [vmem:[%s232 + $0x248] sm:$0xff]
      %v330 = vld [vmem:[%s232 + $0x250] sm:$0xff]
      %v331 = vld [vmem:[%s232 + $0x258] sm:$0xff]
      %v332 = vld [vmem:[%s232 + $0x260] sm:$0xff]
      %v333 = vld [vmem:[%s232 + $0x268] sm:$0xff]
      %v334 = vld [vmem:[%s232 + $0x270] sm:$0xff]
      %v335 = vld [vmem:[%s232 + $0x278] sm:$0xff]
      %v336 = vld [vmem:[%s232 + $0x280] sm:$0xff]
      %v337 = vld [vmem:[%s232 + $0x288] sm:$0xff]
      %v338 = vld [vmem:[%s232 + $0x290] sm:$0xff]
      %v339 = vld [vmem:[%s232 + $0x298] sm:$0xff]
      %v340 = vld [vmem:[%s232 + $0x2a0] sm:$0xff]
      %v341 = vld [vmem:[%s232 + $0x2a8] sm:$0xff]
      %v342 = vld [vmem:[%s232 + $0x2b0] sm:$0xff]
      %v343 = vld [vmem:[%s232 + $0x2b8] sm:$0xff]
      %v344 = vld [vmem:[%s232 + $0x2c0] sm:$0xff]
      %v345 = vld [vmem:[%s232 + $0x2c8] sm:$0xff]
      %v346 = vld [vmem:[%s232 + $0x2d0] sm:$0xff]
      %v347 = vld [vmem:[%s232 + $0x2d8] sm:$0xff]
      %v348 = vld [vmem:[%s232 + $0x2e0] sm:$0xff]
      %v349 = vld [vmem:[%s232 + $0x2e8] sm:$0xff]
      %v350 = vld [vmem:[%s232 + $0x2f0] sm:$0xff]
      %v351 = vld [vmem:[%s232 + $0x2f8] sm:$0xff]
      %v352 = vld [vmem:[%s232 + $0x300] sm:$0xff]
      %v353 = vld [vmem:[%s232 + $0x308] sm:$0xff]
      %v354 = vld [vmem:[%s232 + $0x310] sm:$0xff]
      %v355 = vld [vmem:[%s232 + $0x318] sm:$0xff]
      %v356 = vld [vmem:[%s232 + $0x320] sm:$0xff]
      %v357 = vld [vmem:[%s232 + $0x328] sm:$0xff]
      %v358 = vld [vmem:[%s232 + $0x330] sm:$0xff]
      %v359 = vld [vmem:[%s232 + $0x338] sm:$0xff]
      %v360 = vld [vmem:[%s232 + $0x340] sm:$0xff]
      %v361 = vld [vmem:[%s232 + $0x348] sm:$0xff]
      %v362 = vld [vmem:[%s232 + $0x350] sm:$0xff]
      %v363 = vld [vmem:[%s232 + $0x358] sm:$0xff]
      %v364 = vld [vmem:[%s232 + $0x360] sm:$0xff]
      %v365 = vld [vmem:[%s232 + $0x368] sm:$0xff]
      %v366 = vld [vmem:[%s232 + $0x370] sm:$0xff]
      %v367 = vld [vmem:[%s232 + $0x378] sm:$0xff]
      %v368 = vld [vmem:[%s232 + $0x380] sm:$0xff]
      %v369 = vld [vmem:[%s232 + $0x388] sm:$0xff]
      %v370 = vld [vmem:[%s232 + $0x390] sm:$0xff]
      %v371 = vld [vmem:[%s232 + $0x398] sm:$0xff]
      %v372 = vld [vmem:[%s232 + $0x3a0] sm:$0xff]
      %v373 = vld [vmem:[%s232 + $0x3a8] sm:$0xff]
      %v374 = vld [vmem:[%s232 + $0x3b0] sm:$0xff]
      %v375 = vld [vmem:[%s232 + $0x3b8] sm:$0xff]
      %v376 = vld [vmem:[%s232 + $0x3c0] sm:$0xff]
      %v377 = vld [vmem:[%s232 + $0x3c8] sm:$0xff]
      %v378 = vld [vmem:[%s232 + $0x3d0] sm:$0xff]
      %v379 = vld [vmem:[%s232 + $0x3d8] sm:$0xff]
      %v380 = vld [vmem:[%s232 + $0x3e0] sm:$0xff]
      %v381 = vld [vmem:[%s232 + $0x3e8] sm:$0xff]
      %v382 = vld [vmem:[%s232 + $0x3f0] sm:$0xff]
      %v383 = vld [vmem:[%s232 + $0x3f8] sm:$0xff]
      %v384 = vld [vmem:[%s232 + $0x400] sm:$0xff]
      %v385 = vld [vmem:[%s232 + $0x408] sm:$0xff]
      %v386 = vld [vmem:[%s232 + $0x410] sm:$0xff]
      %v387 = vld [vmem:[%s232 + $0x418] sm:$0xff]
      %v388 = vld [vmem:[%s232 + $0x420] sm:$0xff]
      %v389 = vld [vmem:[%s232 + $0x428] sm:$0xff]
      %v390 = vld [vmem:[%s232 + $0x430] sm:$0xff]
      %v391 = vld [vmem:[%s232 + $0x438] sm:$0xff]
      %v392 = vld [vmem:[%s232 + $0x440] sm:$0xff]
      %v393 = vld [vmem:[%s232 + $0x448] sm:$0xff]
      %v394 = vld [vmem:[%s232 + $0x450] sm:$0xff]
      %v395 = vld [vmem:[%s232 + $0x458] sm:$0xff]
      %v396 = vld [vmem:[%s232 + $0x460] sm:$0xff]
      %v397 = vld [vmem:[%s232 + $0x468] sm:$0xff]
      %v398 = vld [vmem:[%s232 + $0x470] sm:$0xff]
      %v399 = vld [vmem:[%s232 + $0x478] sm:$0xff]
      %v400 = vld [vmem:[%s232 + $0x480] sm:$0xff]
      %v401 = vld [vmem:[%s232 + $0x488] sm:$0xff]
      %v402 = vld [vmem:[%s232 + $0x490] sm:$0xff]
      %v403 = vld [vmem:[%s232 + $0x498] sm:$0xff]
      %v404 = vld [vmem:[%s232 + $0x4a0] sm:$0xff]
      %v405 = vld [vmem:[%s232 + $0x4a8] sm:$0xff]
      %v406 = vld [vmem:[%s232 + $0x4b0] sm:$0xff]
      %v407 = vld [vmem:[%s232 + $0x4b8] sm:$0xff]
      %v408 = vld [vmem:[%s232 + $0x4c0] sm:$0xff]
      %v409 = vld [vmem:[%s232 + $0x4c8] sm:$0xff]
      %v410 = vld [vmem:[%s232 + $0x4d0] sm:$0xff]
      %v411 = vld [vmem:[%s232 + $0x4d8] sm:$0xff]
      %v412 = vld [vmem:[%s232 + $0x4e0] sm:$0xff]
      %v413 = vld [vmem:[%s232 + $0x4e8] sm:$0xff]
      %v414 = vld [vmem:[%s232 + $0x4f0] sm:$0xff]
      %v415 = vld [vmem:[%s232 + $0x4f8] sm:$0xff]
      %v416 = vld [vmem:[%s232 + $0x500] sm:$0xff]
      %v417 = vld [vmem:[%s232 + $0x508] sm:$0xff]
      %v418 = vld [vmem:[%s232 + $0x510] sm:$0xff]
      %v419 = vld [vmem:[%s232 + $0x518] sm:$0xff]
      %v420 = vld [vmem:[%s232 + $0x520] sm:$0xff]
      %v421 = vld [vmem:[%s232 + $0x528] sm:$0xff]
      %v422 = vld [vmem:[%s232 + $0x530] sm:$0xff]
      %v423 = vld [vmem:[%s232 + $0x538] sm:$0xff]
      %v424 = vld [vmem:[%s232 + $0x540] sm:$0xff]
      %v425 = vld [vmem:[%s232 + $0x548] sm:$0xff]
      %v426 = vld [vmem:[%s232 + $0x550] sm:$0xff]
      %v427 = vld [vmem:[%s232 + $0x558] sm:$0xff]
      %v428 = vld [vmem:[%s232 + $0x560] sm:$0xff]
      %v429 = vld [vmem:[%s232 + $0x568] sm:$0xff]
      %v430 = vld [vmem:[%s232 + $0x570] sm:$0xff]
      %v431 = vld [vmem:[%s232 + $0x578] sm:$0xff]
      %v432 = vld [vmem:[%s232 + $0x580] sm:$0xff]
      %v433 = vld [vmem:[%s232 + $0x588] sm:$0xff]
      %v434 = vld [vmem:[%s232 + $0x590] sm:$0xff]
      %v435 = vld [vmem:[%s232 + $0x598] sm:$0xff]
      %v436 = vld [vmem:[%s232 + $0x5a0] sm:$0xff]
      %v437 = vld [vmem:[%s232 + $0x5a8] sm:$0xff]
      %v438 = vld [vmem:[%s232 + $0x5b0] sm:$0xff]
      %v439 = vld [vmem:[%s232 + $0x5b8] sm:$0xff]
      %v440 = vld [vmem:[%s232 + $0x5c0] sm:$0xff]
      %v441 = vld [vmem:[%s232 + $0x5c8] sm:$0xff]
      %v442 = vld [vmem:[%s232 + $0x5d0] sm:$0xff]
      %v443 = vld [vmem:[%s232 + $0x5d8] sm:$0xff]
      %v444 = vld [vmem:[%s232 + $0x5e0] sm:$0xff]
      %v445 = vld [vmem:[%s232 + $0x5e8] sm:$0xff]
      %v446 = vld [vmem:[%s232 + $0x5f0] sm:$0xff]
      %v447 = vld [vmem:[%s232 + $0x5f8] sm:$0xff]
      %v448 = vld [vmem:[%s232 + $0x600] sm:$0xff]
      %v449 = vld [vmem:[%s232 + $0x608] sm:$0xff]
      %v450 = vld [vmem:[%s232 + $0x610] sm:$0xff]
      %v451 = vld [vmem:[%s232 + $0x618] sm:$0xff]
      %v452 = vld [vmem:[%s232 + $0x620] sm:$0xff]
      %v453 = vld [vmem:[%s232 + $0x628] sm:$0xff]
      %v454 = vld [vmem:[%s232 + $0x630] sm:$0xff]
      %v455 = vld [vmem:[%s232 + $0x638] sm:$0xff]
      %v456 = vld [vmem:[%s232 + $0x640] sm:$0xff]
      %v457 = vld [vmem:[%s232 + $0x648] sm:$0xff]
      %v458 = vld [vmem:[%s232 + $0x650] sm:$0xff]
      %v459 = vld [vmem:[%s232 + $0x658] sm:$0xff]
      %v460 = vld [vmem:[%s232 + $0x660] sm:$0xff]
      %v461 = vld [vmem:[%s232 + $0x668] sm:$0xff]
      %v462 = vld [vmem:[%s232 + $0x670] sm:$0xff]
      %v463 = vld [vmem:[%s232 + $0x678] sm:$0xff]
      %v464 = vld [vmem:[%s232 + $0x680] sm:$0xff]
      %v465 = vld [vmem:[%s232 + $0x688] sm:$0xff]
      %v466 = vld [vmem:[%s232 + $0x690] sm:$0xff]
      %v467 = vld [vmem:[%s232 + $0x698] sm:$0xff]
      %v468 = vld [vmem:[%s232 + $0x6a0] sm:$0xff]
      %v469 = vld [vmem:[%s232 + $0x6a8] sm:$0xff]
      %v470 = vld [vmem:[%s232 + $0x6b0] sm:$0xff]
      %v471 = vld [vmem:[%s232 + $0x6b8] sm:$0xff]
      %v472 = vld [vmem:[%s232 + $0x6c0] sm:$0xff]
      %v473 = vld [vmem:[%s232 + $0x6c8] sm:$0xff]
      %v474 = vld [vmem:[%s232 + $0x6d0] sm:$0xff]
      %v475 = vld [vmem:[%s232 + $0x6d8] sm:$0xff]
      %v476 = vld [vmem:[%s232 + $0x6e0] sm:$0xff]
      %v477 = vld [vmem:[%s232 + $0x6e8] sm:$0xff]
      %v478 = vld [vmem:[%s232 + $0x6f0] sm:$0xff]
      %v479 = vld [vmem:[%s232 + $0x6f8] sm:$0xff]
      %v480 = vld [vmem:[%s232 + $0x700] sm:$0xff]
      %v481 = vld [vmem:[%s232 + $0x708] sm:$0xff]
      %v482 = vld [vmem:[%s232 + $0x710] sm:$0xff]
      %v483 = vld [vmem:[%s232 + $0x718] sm:$0xff]
      %v484 = vld [vmem:[%s232 + $0x720] sm:$0xff]
      %v485 = vld [vmem:[%s232 + $0x728] sm:$0xff]
      %v486 = vld [vmem:[%s232 + $0x730] sm:$0xff]
      %v487 = vld [vmem:[%s232 + $0x738] sm:$0xff]
      %v488 = vld [vmem:[%s232 + $0x740] sm:$0xff]
      %v489 = vld [vmem:[%s232 + $0x748] sm:$0xff]
      %v490 = vld [vmem:[%s232 + $0x750] sm:$0xff]
      %v491 = vld [vmem:[%s232 + $0x758] sm:$0xff]
      %v492 = vld [vmem:[%s232 + $0x760] sm:$0xff]
      %v493 = vld [vmem:[%s232 + $0x768] sm:$0xff]
      %v494 = vld [vmem:[%s232 + $0x770] sm:$0xff]
      %v495 = vld [vmem:[%s232 + $0x778] sm:$0xff]
      %v496 = vld [vmem:[%s232 + $0x780] sm:$0xff]
      %v497 = vld [vmem:[%s232 + $0x788] sm:$0xff]
      %v498 = vld [vmem:[%s232 + $0x790] sm:$0xff]
      %v499 = vld [vmem:[%s232 + $0x798] sm:$0xff]
      %v500 = vld [vmem:[%s232 + $0x7a0] sm:$0xff]
      %v501 = vld [vmem:[%s232 + $0x7a8] sm:$0xff]
      %v502 = vld [vmem:[%s232 + $0x7b0] sm:$0xff]
      %v503 = vld [vmem:[%s232 + $0x7b8] sm:$0xff]
      %v504 = vld [vmem:[%s232 + $0x7c0] sm:$0xff]
      %v505 = vld [vmem:[%s232 + $0x7c8] sm:$0xff]
      %v506 = vld [vmem:[%s232 + $0x7d0] sm:$0xff]
      %v507 = vld [vmem:[%s232 + $0x7d8] sm:$0xff]
      %v508 = vld [vmem:[%s232 + $0x7e0] sm:$0xff]
      %v509 = vld [vmem:[%s232 + $0x7e8] sm:$0xff]
      %v510 = vld [vmem:[%s232 + $0x7f0] sm:$0xff]
      %v511 = vld [vmem:[%s232 + $0x7f8] sm:$0xff]
      %v512 = vld [vmem:[%s232 + $0x800] sm:$0xff]
      %v513 = vld [vmem:[%s232 + $0x808] sm:$0xff]
      %v514 = vld [vmem:[%s232 + $0x810] sm:$0xff]
      %v515 = vld [vmem:[%s232 + $0x818] sm:$0xff]
      %v516 = vld [vmem:[%s232 + $0x820] sm:$0xff]
      %v517 = vld [vmem:[%s232 + $0x828] sm:$0xff]
      %v518 = vld [vmem:[%s232 + $0x830] sm:$0xff]
      %v519 = vld [vmem:[%s232 + $0x838] sm:$0xff]
      %v520 = vld [vmem:[%s232 + $0x840] sm:$0xff]
      %v521 = vld [vmem:[%s232 + $0x848] sm:$0xff]
      %v522 = vld [vmem:[%s232 + $0x850] sm:$0xff]
      %v523 = vld [vmem:[%s232 + $0x858] sm:$0xff]
      %v524 = vld [vmem:[%s232 + $0x860] sm:$0xff]
      %v525 = vld [vmem:[%s232 + $0x868] sm:$0xff]
      %v526 = vld [vmem:[%s232 + $0x870] sm:$0xff]
      %v527 = vld [vmem:[%s232 + $0x878] sm:$0xff]
      %v528 = vld [vmem:[%s232 + $0x880] sm:$0xff]
      %v529 = vld [vmem:[%s232 + $0x888] sm:$0xff]
      %v530 = vld [vmem:[%s232 + $0x890] sm:$0xff]
      %v531 = vld [vmem:[%s232 + $0x898] sm:$0xff]
      %v532 = vld [vmem:[%s232 + $0x8a0] sm:$0xff]
      %v533 = vld [vmem:[%s232 + $0x8a8] sm:$0xff]
      %v534 = vld [vmem:[%s232 + $0x8b0] sm:$0xff]
      %v535 = vld [vmem:[%s232 + $0x8b8] sm:$0xff]
      %v536 = vld [vmem:[%s232 + $0x8c0] sm:$0xff]
      %v537 = vld [vmem:[%s232 + $0x8c8] sm:$0xff]
      %v538 = vld [vmem:[%s232 + $0x8d0] sm:$0xff]
      %v539 = vld [vmem:[%s232 + $0x8d8] sm:$0xff]
      %v540 = vld [vmem:[%s232 + $0x8e0] sm:$0xff]
      %v541 = vld [vmem:[%s232 + $0x8e8] sm:$0xff]
      %v542 = vld [vmem:[%s232 + $0x8f0] sm:$0xff]
      %v543 = vld [vmem:[%s232 + $0x8f8] sm:$0xff]
      %v544 = vld [vmem:[%s232 + $0x900] sm:$0xff]
      %v545 = vld [vmem:[%s232 + $0x908] sm:$0xff]
      %v546 = vld [vmem:[%s232 + $0x910] sm:$0xff]
      %v547 = vld [vmem:[%s232 + $0x918] sm:$0xff]
      %v548 = vld [vmem:[%s232 + $0x920] sm:$0xff]
      %v549 = vld [vmem:[%s232 + $0x928] sm:$0xff]
      %v550 = vld [vmem:[%s232 + $0x930] sm:$0xff]
      %v551 = vld [vmem:[%s232 + $0x938] sm:$0xff]
      %v552 = vld [vmem:[%s232 + $0x940] sm:$0xff]
      %v553 = vld [vmem:[%s232 + $0x948] sm:$0xff]
      %v554 = vld [vmem:[%s232 + $0x950] sm:$0xff]
      %v555 = vld [vmem:[%s232 + $0x958] sm:$0xff]
      %v556 = vld [vmem:[%s232 + $0x960] sm:$0xff]
      %v557 = vld [vmem:[%s232 + $0x968] sm:$0xff]
      %v558 = vld [vmem:[%s232 + $0x970] sm:$0xff]
      %v559 = vld [vmem:[%s232 + $0x978] sm:$0xff]
      %v560 = vld [vmem:[%s232 + $0x980] sm:$0xff]
      %v561 = vld [vmem:[%s232 + $0x988] sm:$0xff]
      %v562 = vld [vmem:[%s232 + $0x990] sm:$0xff]
      %v563 = vld [vmem:[%s232 + $0x998] sm:$0xff]
      %v564 = vld [vmem:[%s232 + $0x9a0] sm:$0xff]
      %v565 = vld [vmem:[%s232 + $0x9a8] sm:$0xff]
      %v566 = vld [vmem:[%s232 + $0x9b0] sm:$0xff]
      %v567 = vld [vmem:[%s232 + $0x9b8] sm:$0xff]
      %v568 = vld [vmem:[%s232 + $0x9c0] sm:$0xff]
      %v569 = vld [vmem:[%s232 + $0x9c8] sm:$0xff]
      %v570 = vld [vmem:[%s232 + $0x9d0] sm:$0xff]
      %v571 = vld [vmem:[%s232 + $0x9d8] sm:$0xff]
      %v572 = vld [vmem:[%s232 + $0x9e0] sm:$0xff]
      %v573 = vld [vmem:[%s232 + $0x9e8] sm:$0xff]
      %v574 = vld [vmem:[%s232 + $0x9f0] sm:$0xff]
      %v575 = vld [vmem:[%s232 + $0x9f8] sm:$0xff]
      %v576 = vld [vmem:[%s232 + $0xa00] sm:$0xff]
      %v577 = vld [vmem:[%s232 + $0xa08] sm:$0xff]
      %v578 = vld [vmem:[%s232 + $0xa10] sm:$0xff]
      %v579 = vld [vmem:[%s232 + $0xa18] sm:$0xff]
      %v580 = vld [vmem:[%s232 + $0xa20] sm:$0xff]
      %v581 = vld [vmem:[%s232 + $0xa28] sm:$0xff]
      %v582 = vld [vmem:[%s232 + $0xa30] sm:$0xff]
      %v583 = vld [vmem:[%s232 + $0xa38] sm:$0xff]
      %v584 = vld [vmem:[%s232 + $0xa40] sm:$0xff]
      %v585 = vld [vmem:[%s232 + $0xa48] sm:$0xff]
      %v586 = vld [vmem:[%s232 + $0xa50] sm:$0xff]
      %v587 = vld [vmem:[%s232 + $0xa58] sm:$0xff]
      %v588 = vld [vmem:[%s232 + $0xa60] sm:$0xff]
      %v589 = vld [vmem:[%s232 + $0xa68] sm:$0xff]
      %v590 = vld [vmem:[%s232 + $0xa70] sm:$0xff]
      %v591 = vld [vmem:[%s232 + $0xa78] sm:$0xff]
      %v592 = vld [vmem:[%s232 + $0xa80] sm:$0xff]
      %v593 = vld [vmem:[%s232 + $0xa88] sm:$0xff]
      %v594 = vld [vmem:[%s232 + $0xa90] sm:$0xff]
      %v595 = vld [vmem:[%s232 + $0xa98] sm:$0xff]
      %v596 = vld [vmem:[%s232 + $0xaa0] sm:$0xff]
      %v597 = vld [vmem:[%s232 + $0xaa8] sm:$0xff]
      %v598 = vld [vmem:[%s232 + $0xab0] sm:$0xff]
      %v599 = vld [vmem:[%s232 + $0xab8] sm:$0xff]
      %v600 = vld [vmem:[%s232 + $0xac0] sm:$0xff]
      %v601 = vld [vmem:[%s232 + $0xac8] sm:$0xff]
      %v602 = vld [vmem:[%s232 + $0xad0] sm:$0xff]
      %v603 = vld [vmem:[%s232 + $0xad8] sm:$0xff]
      %v604 = vld [vmem:[%s232 + $0xae0] sm:$0xff]
      %v605 = vld [vmem:[%s232 + $0xae8] sm:$0xff]
      %v606 = vld [vmem:[%s232 + $0xaf0] sm:$0xff]
      %v607 = vld [vmem:[%s232 + $0xaf8] sm:$0xff]
      %v608 = vld [vmem:[%s232 + $0xb00] sm:$0xff]
      %v609 = vld [vmem:[%s232 + $0xb08] sm:$0xff]
      %v610 = vld [vmem:[%s232 + $0xb10] sm:$0xff]
      %v611 = vld [vmem:[%s232 + $0xb18] sm:$0xff]
      %v612 = vld [vmem:[%s232 + $0xb20] sm:$0xff]
      %v613 = vld [vmem:[%s232 + $0xb28] sm:$0xff]
      %v614 = vld [vmem:[%s232 + $0xb30] sm:$0xff]
      %v615 = vld [vmem:[%s232 + $0xb38] sm:$0xff]
      %v616 = vld [vmem:[%s232 + $0xb40] sm:$0xff]
      %v617 = vld [vmem:[%s232 + $0xb48] sm:$0xff]
      %v618 = vld [vmem:[%s232 + $0xb50] sm:$0xff]
      %v619 = vld [vmem:[%s232 + $0xb58] sm:$0xff]
      %v620 = vld [vmem:[%s232 + $0xb60] sm:$0xff]
      %v621 = vld [vmem:[%s232 + $0xb68] sm:$0xff]
      %v622 = vld [vmem:[%s232 + $0xb70] sm:$0xff]
      %v623 = vld [vmem:[%s232 + $0xb78] sm:$0xff]
      %v624 = vld [vmem:[%s232 + $0xb80] sm:$0xff]
      %v625 = vld [vmem:[%s232 + $0xb88] sm:$0xff]
      %v626 = vld [vmem:[%s232 + $0xb90] sm:$0xff]
      %v627 = vld [vmem:[%s232 + $0xb98] sm:$0xff]
      %v628 = vld [vmem:[%s232 + $0xba0] sm:$0xff]
      %v629 = vld [vmem:[%s232 + $0xba8] sm:$0xff]
      %v630 = vld [vmem:[%s232 + $0xbb0] sm:$0xff]
      %v631 = vld [vmem:[%s232 + $0xbb8] sm:$0xff]
      %v632 = vld [vmem:[%s232 + $0xbc0] sm:$0xff]
      %v633 = vld [vmem:[%s232 + $0xbc8] sm:$0xff]
      %v634 = vld [vmem:[%s232 + $0xbd0] sm:$0xff]
      %v635 = vld [vmem:[%s232 + $0xbd8] sm:$0xff]
      %v636 = vld [vmem:[%s232 + $0xbe0] sm:$0xff]
      %v637 = vld [vmem:[%s232 + $0xbe8] sm:$0xff]
      %v638 = vld [vmem:[%s232 + $0xbf0] sm:$0xff]
      %v639 = vld [vmem:[%s232 + $0xbf8] sm:$0xff]
      %v640 = vld [vmem:[%s232 + $0xc00] sm:$0xff]
      %v641 = vld [vmem:[%s232 + $0xc08] sm:$0xff]
      %v642 = vld [vmem:[%s232 + $0xc10] sm:$0xff]
      %v643 = vld [vmem:[%s232 + $0xc18] sm:$0xff]
      %v644 = vld [vmem:[%s232 + $0xc20] sm:$0xff]
      %v645 = vld [vmem:[%s232 + $0xc28] sm:$0xff]
      %v646 = vld [vmem:[%s232 + $0xc30] sm:$0xff]
      %v647 = vld [vmem:[%s232 + $0xc38] sm:$0xff]
      %v648 = vld [vmem:[%s232 + $0xc40] sm:$0xff]
      %v649 = vld [vmem:[%s232 + $0xc48] sm:$0xff]
      %v650 = vld [vmem:[%s232 + $0xc50] sm:$0xff]
      %v651 = vld [vmem:[%s232 + $0xc58] sm:$0xff]
      %v652 = vld [vmem:[%s232 + $0xc60] sm:$0xff]
      %v653 = vld [vmem:[%s232 + $0xc68] sm:$0xff]
      %v654 = vld [vmem:[%s232 + $0xc70] sm:$0xff]
      %v655 = vld [vmem:[%s232 + $0xc78] sm:$0xff]
      %v656 = vld [vmem:[%s232 + $0xc80] sm:$0xff]
      %v657 = vld [vmem:[%s232 + $0xc88] sm:$0xff]
      %v658 = vld [vmem:[%s232 + $0xc90] sm:$0xff]
      %v659 = vld [vmem:[%s232 + $0xc98] sm:$0xff]
      %v660 = vld [vmem:[%s232 + $0xca0] sm:$0xff]
      %v661 = vld [vmem:[%s232 + $0xca8] sm:$0xff]
      %v662 = vld [vmem:[%s232 + $0xcb0] sm:$0xff]
      %v663 = vld [vmem:[%s232 + $0xcb8] sm:$0xff]
      %v664 = vld [vmem:[%s232 + $0xcc0] sm:$0xff]
      %v665 = vld [vmem:[%s232 + $0xcc8] sm:$0xff]
      %v666 = vld [vmem:[%s232 + $0xcd0] sm:$0xff]
      %v667 = vld [vmem:[%s232 + $0xcd8] sm:$0xff]
      %v668 = vld [vmem:[%s232 + $0xce0] sm:$0xff]
      %v669 = vld [vmem:[%s232 + $0xce8] sm:$0xff]
      %v670 = vld [vmem:[%s232 + $0xcf0] sm:$0xff]
      %v671 = vld [vmem:[%s232 + $0xcf8] sm:$0xff]
      %v672 = vld [vmem:[%s232 + $0xd00] sm:$0xff]
      %v673 = vld [vmem:[%s232 + $0xd08] sm:$0xff]
      %v674 = vld [vmem:[%s232 + $0xd10] sm:$0xff]
      %v675 = vld [vmem:[%s232 + $0xd18] sm:$0xff]
      %v676 = vld [vmem:[%s232 + $0xd20] sm:$0xff]
      %v677 = vld [vmem:[%s232 + $0xd28] sm:$0xff]
      %v678 = vld [vmem:[%s232 + $0xd30] sm:$0xff]
      %v679 = vld [vmem:[%s232 + $0xd38] sm:$0xff]
      %v680 = vld [vmem:[%s232 + $0xd40] sm:$0xff]
      %v681 = vld [vmem:[%s232 + $0xd48] sm:$0xff]
      %v682 = vld [vmem:[%s232 + $0xd50] sm:$0xff]
      %v683 = vld [vmem:[%s232 + $0xd58] sm:$0xff]
      %v684 = vld [vmem:[%s232 + $0xd60] sm:$0xff]
      %v685 = vld [vmem:[%s232 + $0xd68] sm:$0xff]
      %v686 = vld [vmem:[%s232 + $0xd70] sm:$0xff]
      %v687 = vld [vmem:[%s232 + $0xd78] sm:$0xff]
      %v688 = vld [vmem:[%s232 + $0xd80] sm:$0xff]
      %v689 = vld [vmem:[%s232 + $0xd88] sm:$0xff]
      %v690 = vld [vmem:[%s232 + $0xd90] sm:$0xff]
      %v691 = vld [vmem:[%s232 + $0xd98] sm:$0xff]
      %v692 = vld [vmem:[%s232 + $0xda0] sm:$0xff]
      %v693 = vld [vmem:[%s232 + $0xda8] sm:$0xff]
      %v694 = vld [vmem:[%s232 + $0xdb0] sm:$0xff]
      %v695 = vld [vmem:[%s232 + $0xdb8] sm:$0xff]
      %v696 = vld [vmem:[%s232 + $0xdc0] sm:$0xff]
      %v697 = vld [vmem:[%s232 + $0xdc8] sm:$0xff]
      %v698 = vld [vmem:[%s232 + $0xdd0] sm:$0xff]
      %v699 = vld [vmem:[%s232 + $0xdd8] sm:$0xff]
      %v700 = vld [vmem:[%s232 + $0xde0] sm:$0xff]
      %v701 = vld [vmem:[%s232 + $0xde8] sm:$0xff]
      %v702 = vld [vmem:[%s232 + $0xdf0] sm:$0xff]
      %v703 = vld [vmem:[%s232 + $0xdf8] sm:$0xff]
      %v704 = vld [vmem:[%s232 + $0xe00] sm:$0xff]
      %v705 = vld [vmem:[%s232 + $0xe08] sm:$0xff]
      %v706 = vld [vmem:[%s232 + $0xe10] sm:$0xff]
      %v707 = vld [vmem:[%s232 + $0xe18] sm:$0xff]
      %v708 = vld [vmem:[%s232 + $0xe20] sm:$0xff]
      %v709 = vld [vmem:[%s232 + $0xe28] sm:$0xff]
      %v710 = vld [vmem:[%s232 + $0xe30] sm:$0xff]
      %v711 = vld [vmem:[%s232 + $0xe38] sm:$0xff]
      %v712 = vld [vmem:[%s232 + $0xe40] sm:$0xff]
      %v713 = vld [vmem:[%s232 + $0xe48] sm:$0xff]
      %v714 = vld [vmem:[%s232 + $0xe50] sm:$0xff]
      %v715 = vld [vmem:[%s232 + $0xe58] sm:$0xff]
      %v716 = vld [vmem:[%s232 + $0xe60] sm:$0xff]
      %v717 = vld [vmem:[%s232 + $0xe68] sm:$0xff]
      %v718 = vld [vmem:[%s232 + $0xe70] sm:$0xff]
      %v719 = vld [vmem:[%s232 + $0xe78] sm:$0xff]
      %v720 = vld [vmem:[%s232 + $0xe80] sm:$0xff]
      %v721 = vld [vmem:[%s232 + $0xe88] sm:$0xff]
      %v722 = vld [vmem:[%s232 + $0xe90] sm:$0xff]
      %v723 = vld [vmem:[%s232 + $0xe98] sm:$0xff]
      %v724 = vld [vmem:[%s232 + $0xea0] sm:$0xff]
      %v725 = vld [vmem:[%s232 + $0xea8] sm:$0xff]
      %v726 = vld [vmem:[%s232 + $0xeb0] sm:$0xff]
      %v727 = vld [vmem:[%s232 + $0xeb8] sm:$0xff]
      %v728 = vld [vmem:[%s232 + $0xec0] sm:$0xff]
      %v729 = vld [vmem:[%s232 + $0xec8] sm:$0xff]
      %v730 = vld [vmem:[%s232 + $0xed0] sm:$0xff]
      %v731 = vld [vmem:[%s232 + $0xed8] sm:$0xff]
      %v732 = vld [vmem:[%s232 + $0xee0] sm:$0xff]
      %v733 = vld [vmem:[%s232 + $0xee8] sm:$0xff]
      %v734 = vld [vmem:[%s232 + $0xef0] sm:$0xff]
      %v735 = vld [vmem:[%s232 + $0xef8] sm:$0xff]
      %v736 = vld [vmem:[%s232 + $0xf00] sm:$0xff]
      %v737 = vld [vmem:[%s232 + $0xf08] sm:$0xff]
      %v738 = vld [vmem:[%s232 + $0xf10] sm:$0xff]
      %v739 = vld [vmem:[%s232 + $0xf18] sm:$0xff]
      %v740 = vld [vmem:[%s232 + $0xf20] sm:$0xff]
      %v741 = vld [vmem:[%s232 + $0xf28] sm:$0xff]
      %v742 = vld [vmem:[%s232 + $0xf30] sm:$0xff]
      %v743 = vld [vmem:[%s232 + $0xf38] sm:$0xff]
      %v744 = vld [vmem:[%s232 + $0xf40] sm:$0xff]
      %v745 = vld [vmem:[%s232 + $0xf48] sm:$0xff]
      %v746 = vld [vmem:[%s232 + $0xf50] sm:$0xff]
      %v747 = vld [vmem:[%s232 + $0xf58] sm:$0xff]
      %v748 = vld [vmem:[%s232 + $0xf60] sm:$0xff]
      %v749 = vld [vmem:[%s232 + $0xf68] sm:$0xff]
      %v750 = vld [vmem:[%s232 + $0xf70] sm:$0xff]
      %v751 = vld [vmem:[%s232 + $0xf78] sm:$0xff]
      %v752 = vld [vmem:[%s232 + $0xf80] sm:$0xff]
      %v753 = vld [vmem:[%s232 + $0xf88] sm:$0xff]
      %v754 = vld [vmem:[%s232 + $0xf90] sm:$0xff]
      %v755 = vld [vmem:[%s232 + $0xf98] sm:$0xff]
      %v756 = vld [vmem:[%s232 + $0xfa0] sm:$0xff]
      %v757 = vld [vmem:[%s232 + $0xfa8] sm:$0xff]
      %v758 = vld [vmem:[%s232 + $0xfb0] sm:$0xff]
      %v759 = vld [vmem:[%s232 + $0xfb8] sm:$0xff]
      %v760 = vld [vmem:[%s232 + $0xfc0] sm:$0xff]
      %v761 = vld [vmem:[%s232 + $0xfc8] sm:$0xff]
      %v762 = vld [vmem:[%s232 + $0xfd0] sm:$0xff]
      %v763 = vld [vmem:[%s232 + $0xfd8] sm:$0xff]
      %v764 = vld [vmem:[%s232 + $0xfe0] sm:$0xff]
      %v765 = vld [vmem:[%s232 + $0xfe8] sm:$0xff]
      %v766 = vld [vmem:[%s232 + $0xff0] sm:$0xff]
      %v767 = vld [vmem:[%s232 + $0xff8] sm:$0xff]
      %v768 = vld [vmem:[%s232 + $0x1000] sm:$0xff]
      %v769 = vld [vmem:[%s232 + $0x1008] sm:$0xff]
      %v770 = vld [vmem:[%s232 + $0x1010] sm:$0xff]
      %v771 = vld [vmem:[%s232 + $0x1018] sm:$0xff]
      %v772 = vld [vmem:[%s232 + $0x1020] sm:$0xff]
      %v773 = vld [vmem:[%s232 + $0x1028] sm:$0xff]
      %v774 = vld [vmem:[%s232 + $0x1030] sm:$0xff]
      %v775 = vld [vmem:[%s232 + $0x1038] sm:$0xff]
      %v776 = vld [vmem:[%s232 + $0x1040] sm:$0xff]
      %v777 = vld [vmem:[%s232 + $0x1048] sm:$0xff]
      %v778 = vld [vmem:[%s232 + $0x1050] sm:$0xff]
      %v779 = vld [vmem:[%s232 + $0x1058] sm:$0xff]
      %v780 = vld [vmem:[%s232 + $0x1060] sm:$0xff]
      %v781 = vld [vmem:[%s232 + $0x1068] sm:$0xff]
      %v782 = vld [vmem:[%s232 + $0x1070] sm:$0xff]
      %v783 = vld [vmem:[%s232 + $0x1078] sm:$0xff]
      %v784 = vld [vmem:[%s232 + $0x1080] sm:$0xff]
      %v785 = vld [vmem:[%s232 + $0x1088] sm:$0xff]
      %v786 = vld [vmem:[%s232 + $0x1090] sm:$0xff]
      %v787 = vld [vmem:[%s232 + $0x1098] sm:$0xff]
      %v788 = vld [vmem:[%s232 + $0x10a0] sm:$0xff]
      %v789 = vld [vmem:[%s232 + $0x10a8] sm:$0xff]
      %v790 = vld [vmem:[%s232 + $0x10b0] sm:$0xff]
      %v791 = vld [vmem:[%s232 + $0x10b8] sm:$0xff]
      %v792 = vld [vmem:[%s232 + $0x10c0] sm:$0xff]
      %v793 = vld [vmem:[%s232 + $0x10c8] sm:$0xff]
      %v794 = vld [vmem:[%s232 + $0x10d0] sm:$0xff]
      %v795 = vld [vmem:[%s232 + $0x10d8] sm:$0xff]
      %v796 = vld [vmem:[%s232 + $0x10e0] sm:$0xff]
      %v797 = vld [vmem:[%s232 + $0x10e8] sm:$0xff]
      %v798 = vld [vmem:[%s232 + $0x10f0] sm:$0xff]
      %v799 = vld [vmem:[%s232 + $0x10f8] sm:$0xff]
      %v800 = vld [vmem:[%s232 + $0x1100] sm:$0xff]
      %v801 = vld [vmem:[%s232 + $0x1108] sm:$0xff]
      %v802 = vld [vmem:[%s232 + $0x1110] sm:$0xff]
      %v803 = vld [vmem:[%s232 + $0x1118] sm:$0xff]
      %v804 = vld [vmem:[%s232 + $0x1120] sm:$0xff]
      %v805 = vld [vmem:[%s232 + $0x1128] sm:$0xff]
      %v806 = vld [vmem:[%s232 + $0x1130] sm:$0xff]
      %v807 = vld [vmem:[%s232 + $0x1138] sm:$0xff]
      %v808 = vld [vmem:[%s232 + $0x1140] sm:$0xff]
      %v809 = vld [vmem:[%s232 + $0x1148] sm:$0xff]
      %v810 = vld [vmem:[%s232 + $0x1150] sm:$0xff]
      %v811 = vld [vmem:[%s232 + $0x1158] sm:$0xff]
      %v812 = vld [vmem:[%s232 + $0x1160] sm:$0xff]
      %v813 = vld [vmem:[%s232 + $0x1168] sm:$0xff]
      %v814 = vld [vmem:[%s232 + $0x1170] sm:$0xff]
      %v815 = vld [vmem:[%s232 + $0x1178] sm:$0xff]
      %v816 = vld [vmem:[%s232 + $0x1180] sm:$0xff]
      %v817 = vld [vmem:[%s232 + $0x1188] sm:$0xff]
      %v818 = vld [vmem:[%s232 + $0x1190] sm:$0xff]
      %v819 = vld [vmem:[%s232 + $0x1198] sm:$0xff]
      %v820 = vld [vmem:[%s232 + $0x11a0] sm:$0xff]
      %v821 = vld [vmem:[%s232 + $0x11a8] sm:$0xff]
      %v822 = vld [vmem:[%s232 + $0x11b0] sm:$0xff]
      %v823 = vld [vmem:[%s232 + $0x11b8] sm:$0xff]
      %v824 = vld [vmem:[%s232 + $0x11c0] sm:$0xff]
      %v825 = vld [vmem:[%s232 + $0x11c8] sm:$0xff]
      %v826 = vld [vmem:[%s232 + $0x11d0] sm:$0xff]
      %v827 = vld [vmem:[%s232 + $0x11d8] sm:$0xff]
      %v828 = vld [vmem:[%s232 + $0x11e0] sm:$0xff]
      %v829 = vld [vmem:[%s232 + $0x11e8] sm:$0xff]
      %v830 = vld [vmem:[%s232 + $0x11f0] sm:$0xff]
      %v831 = vld [vmem:[%s232 + $0x11f8] sm:$0xff]
      %v832 = vld [vmem:[%s232 + $0x1200] sm:$0xff]
      %v833 = vld [vmem:[%s232 + $0x1208] sm:$0xff]
      %v834 = vld [vmem:[%s232 + $0x1210] sm:$0xff]
      %v835 = vld [vmem:[%s232 + $0x1218] sm:$0xff]
      %v836 = vld [vmem:[%s232 + $0x1220] sm:$0xff]
      %v837 = vld [vmem:[%s232 + $0x1228] sm:$0xff]
      %v838 = vld [vmem:[%s232 + $0x1230] sm:$0xff]
      %v839 = vld [vmem:[%s232 + $0x1238] sm:$0xff]
      %v840 = vld [vmem:[%s232 + $0x1240] sm:$0xff]
      %v841 = vld [vmem:[%s232 + $0x1248] sm:$0xff]
      %v842 = vld [vmem:[%s232 + $0x1250] sm:$0xff]
      %v843 = vld [vmem:[%s232 + $0x1258] sm:$0xff]
      %v844 = vld [vmem:[%s232 + $0x1260] sm:$0xff]
      %v845 = vld [vmem:[%s232 + $0x1268] sm:$0xff]
      %v846 = vld [vmem:[%s232 + $0x1270] sm:$0xff]
      %v847 = vld [vmem:[%s232 + $0x1278] sm:$0xff]
      %v848 = vld [vmem:[%s232 + $0x1280] sm:$0xff]
      %v849 = vld [vmem:[%s232 + $0x1288] sm:$0xff]
      %v850 = vld [vmem:[%s232 + $0x1290] sm:$0xff]
      %v851 = vld [vmem:[%s232 + $0x1298] sm:$0xff]
      %v852 = vld [vmem:[%s232 + $0x12a0] sm:$0xff]
      %v853 = vld [vmem:[%s232 + $0x12a8] sm:$0xff]
      %v854 = vld [vmem:[%s232 + $0x12b0] sm:$0xff]
      %v855 = vld [vmem:[%s232 + $0x12b8] sm:$0xff]
      %v856 = vld [vmem:[%s232 + $0x12c0] sm:$0xff]
      %v857 = vld [vmem:[%s232 + $0x12c8] sm:$0xff]
      %v858 = vld [vmem:[%s232 + $0x12d0] sm:$0xff]
      %v859 = vld [vmem:[%s232 + $0x12d8] sm:$0xff]
      %v860 = vld [vmem:[%s232 + $0x12e0] sm:$0xff]
      %v861 = vld [vmem:[%s232 + $0x12e8] sm:$0xff]
      %v862 = vld [vmem:[%s232 + $0x12f0] sm:$0xff]
      %v863 = vld [vmem:[%s232 + $0x12f8] sm:$0xff]
      %v864 = vld [vmem:[%s232 + $0x1300] sm:$0xff]
      %v865 = vld [vmem:[%s232 + $0x1308] sm:$0xff]
      %v866 = vld [vmem:[%s232 + $0x1310] sm:$0xff]
      %v867 = vld [vmem:[%s232 + $0x1318] sm:$0xff]
      %v868 = vld [vmem:[%s232 + $0x1320] sm:$0xff]
      %v869 = vld [vmem:[%s232 + $0x1328] sm:$0xff]
      %v870 = vld [vmem:[%s232 + $0x1330] sm:$0xff]
      %v871 = vld [vmem:[%s232 + $0x1338] sm:$0xff]
      %v872 = vld [vmem:[%s232 + $0x1340] sm:$0xff]
      %v873 = vld [vmem:[%s232 + $0x1348] sm:$0xff]
      %v874 = vld [vmem:[%s232 + $0x1350] sm:$0xff]
      %v875 = vld [vmem:[%s232 + $0x1358] sm:$0xff]
      %v876 = vld [vmem:[%s232 + $0x1360] sm:$0xff]
      %v877 = vld [vmem:[%s232 + $0x1368] sm:$0xff]
      %v878 = vld [vmem:[%s232 + $0x1370] sm:$0xff]
      %v879 = vld [vmem:[%s232 + $0x1378] sm:$0xff]
      %v880 = vld [vmem:[%s232 + $0x1380] sm:$0xff]
      %v881 = vld [vmem:[%s232 + $0x1388] sm:$0xff]
      %v882 = vld [vmem:[%s232 + $0x1390] sm:$0xff]
      %v883 = vld [vmem:[%s232 + $0x1398] sm:$0xff]
      %v884 = vld [vmem:[%s232 + $0x13a0] sm:$0xff]
      %v885 = vld [vmem:[%s232 + $0x13a8] sm:$0xff]
      %v886 = vld [vmem:[%s232 + $0x13b0] sm:$0xff]
      %v887 = vld [vmem:[%s232 + $0x13b8] sm:$0xff]
      %v888 = vld [vmem:[%s232 + $0x13c0] sm:$0xff]
      %v889 = vld [vmem:[%s232 + $0x13c8] sm:$0xff]
      %v890 = vld [vmem:[%s232 + $0x13d0] sm:$0xff]
      %v891 = vld [vmem:[%s232 + $0x13d8] sm:$0xff]
      %v892 = vld [vmem:[%s232 + $0x13e0] sm:$0xff]
      %v893 = vld [vmem:[%s232 + $0x13e8] sm:$0xff]
      %v894 = vld [vmem:[%s232 + $0x13f0] sm:$0xff]
      %v895 = vld [vmem:[%s232 + $0x13f8] sm:$0xff]
      %v896 = vld [vmem:[%s232 + $0x1400] sm:$0xff]
      %v897 = vld [vmem:[%s232 + $0x1408] sm:$0xff]
      %v898 = vld [vmem:[%s232 + $0x1410] sm:$0xff]
      %v899 = vld [vmem:[%s232 + $0x1418] sm:$0xff]
      %v900 = vld [vmem:[%s232 + $0x1420] sm:$0xff]
      %v901 = vld [vmem:[%s232 + $0x1428] sm:$0xff]
      %v902 = vld [vmem:[%s232 + $0x1430] sm:$0xff]
      %v903 = vld [vmem:[%s232 + $0x1438] sm:$0xff]
      %v904 = vld [vmem:[%s232 + $0x1440] sm:$0xff]
      %v905 = vld [vmem:[%s232 + $0x1448] sm:$0xff]
      %v906 = vld [vmem:[%s232 + $0x1450] sm:$0xff]
      %v907 = vld [vmem:[%s232 + $0x1458] sm:$0xff]
      %v908 = vld [vmem:[%s232 + $0x1460] sm:$0xff]
      %v909 = vld [vmem:[%s232 + $0x1468] sm:$0xff]
      %v910 = vld [vmem:[%s232 + $0x1470] sm:$0xff]
      %v911 = vld [vmem:[%s232 + $0x1478] sm:$0xff]
      %v912 = vld [vmem:[%s232 + $0x1480] sm:$0xff]
      %v913 = vld [vmem:[%s232 + $0x1488] sm:$0xff]
      %v914 = vld [vmem:[%s232 + $0x1490] sm:$0xff]
      %v915 = vld [vmem:[%s232 + $0x1498] sm:$0xff]
      %v916 = vld [vmem:[%s232 + $0x14a0] sm:$0xff]
      %v917 = vld [vmem:[%s232 + $0x14a8] sm:$0xff]
      %v918 = vld [vmem:[%s232 + $0x14b0] sm:$0xff]
      %v919 = vld [vmem:[%s232 + $0x14b8] sm:$0xff]
      %v920 = vld [vmem:[%s232 + $0x14c0] sm:$0xff]
      %v921 = vld [vmem:[%s232 + $0x14c8] sm:$0xff]
      %v922 = vld [vmem:[%s232 + $0x14d0] sm:$0xff]
      %v923 = vld [vmem:[%s232 + $0x14d8] sm:$0xff]
      %v924 = vld [vmem:[%s232 + $0x14e0] sm:$0xff]
      %v925 = vld [vmem:[%s232 + $0x14e8] sm:$0xff]
      %v926 = vld [vmem:[%s232 + $0x14f0] sm:$0xff]
      %v927 = vld [vmem:[%s232 + $0x14f8] sm:$0xff]
      %v928 = vld [vmem:[%s232 + $0x1500] sm:$0xff]
      %v929 = vld [vmem:[%s232 + $0x1508] sm:$0xff]
      %v930 = vld [vmem:[%s232 + $0x1510] sm:$0xff]
      %v931 = vld [vmem:[%s232 + $0x1518] sm:$0xff]
      %v932 = vld [vmem:[%s232 + $0x1520] sm:$0xff]
      %v933 = vld [vmem:[%s232 + $0x1528] sm:$0xff]
      %v934 = vld [vmem:[%s232 + $0x1530] sm:$0xff]
      %v935 = vld [vmem:[%s232 + $0x1538] sm:$0xff]
      %v936 = vld [vmem:[%s232 + $0x1540] sm:$0xff]
      %v937 = vld [vmem:[%s232 + $0x1548] sm:$0xff]
      %v938 = vld [vmem:[%s232 + $0x1550] sm:$0xff]
      %v939 = vld [vmem:[%s232 + $0x1558] sm:$0xff]
      %v940 = vld [vmem:[%s232 + $0x1560] sm:$0xff]
      %v941 = vld [vmem:[%s232 + $0x1568] sm:$0xff]
      %v942 = vld [vmem:[%s232 + $0x1570] sm:$0xff]
      %v943 = vld [vmem:[%s232 + $0x1578] sm:$0xff]
      %v944 = vld [vmem:[%s232 + $0x1580] sm:$0xff]
      %v945 = vld [vmem:[%s232 + $0x1588] sm:$0xff]
      %v946 = vld [vmem:[%s232 + $0x1590] sm:$0xff]
      %v947 = vld [vmem:[%s232 + $0x1598] sm:$0xff]
      %v948 = vld [vmem:[%s232 + $0x15a0] sm:$0xff]
      %v949 = vld [vmem:[%s232 + $0x15a8] sm:$0xff]
      %v950 = vld [vmem:[%s232 + $0x15b0] sm:$0xff]
      %v951 = vld [vmem:[%s232 + $0x15b8] sm:$0xff]
      %v952 = vld [vmem:[%s232 + $0x15c0] sm:$0xff]
      %v953 = vld [vmem:[%s232 + $0x15c8] sm:$0xff]
      %v954 = vld [vmem:[%s232 + $0x15d0] sm:$0xff]
      %v955 = vld [vmem:[%s232 + $0x15d8] sm:$0xff]
      %v956 = vld [vmem:[%s232 + $0x15e0] sm:$0xff]
      %v957 = vld [vmem:[%s232 + $0x15e8] sm:$0xff]
      %v958 = vld [vmem:[%s232 + $0x15f0] sm:$0xff]
      %v959 = vld [vmem:[%s232 + $0x15f8] sm:$0xff]
      %v960 = vld [vmem:[%s232 + $0x1600] sm:$0xff]
      %v961 = vld [vmem:[%s232 + $0x1608] sm:$0xff]
      %v962 = vld [vmem:[%s232 + $0x1610] sm:$0xff]
      %v963 = vld [vmem:[%s232 + $0x1618] sm:$0xff]
      %v964 = vld [vmem:[%s232 + $0x1620] sm:$0xff]
      %v965 = vld [vmem:[%s232 + $0x1628] sm:$0xff]
      %v966 = vld [vmem:[%s232 + $0x1630] sm:$0xff]
      %v967 = vld [vmem:[%s232 + $0x1638] sm:$0xff]
      %v968 = vld [vmem:[%s232 + $0x1640] sm:$0xff]
      %v969 = vld [vmem:[%s232 + $0x1648] sm:$0xff]
      %v970 = vld [vmem:[%s232 + $0x1650] sm:$0xff]
      %v971 = vld [vmem:[%s232 + $0x1658] sm:$0xff]
      %v972 = vld [vmem:[%s232 + $0x1660] sm:$0xff]
      %v973 = vld [vmem:[%s232 + $0x1668] sm:$0xff]
      %v974 = vld [vmem:[%s232 + $0x1670] sm:$0xff]
      %v975 = vld [vmem:[%s232 + $0x1678] sm:$0xff]
      %v976 = vld [vmem:[%s232 + $0x1680] sm:$0xff]
      %v977 = vld [vmem:[%s232 + $0x1688] sm:$0xff]
      %v978 = vld [vmem:[%s232 + $0x1690] sm:$0xff]
      %v979 = vld [vmem:[%s232 + $0x1698] sm:$0xff]
      %v980 = vld [vmem:[%s232 + $0x16a0] sm:$0xff]
      %v981 = vld [vmem:[%s232 + $0x16a8] sm:$0xff]
      %v982 = vld [vmem:[%s232 + $0x16b0] sm:$0xff]
      %v983 = vld [vmem:[%s232 + $0x16b8] sm:$0xff]
      %v984 = vld [vmem:[%s232 + $0x16c0] sm:$0xff]
      %v985 = vld [vmem:[%s232 + $0x16c8] sm:$0xff]
      %v986 = vld [vmem:[%s232 + $0x16d0] sm:$0xff]
      %v987 = vld [vmem:[%s232 + $0x16d8] sm:$0xff]
      %v988 = vld [vmem:[%s232 + $0x16e0] sm:$0xff]
      %v989 = vld [vmem:[%s232 + $0x16e8] sm:$0xff]
      %v990 = vld [vmem:[%s232 + $0x16f0] sm:$0xff]
      %v991 = vld [vmem:[%s232 + $0x16f8] sm:$0xff]
      %v992 = vld [vmem:[%s232 + $0x1700] sm:$0xff]
      %v993 = vld [vmem:[%s232 + $0x1708] sm:$0xff]
      %v994 = vld [vmem:[%s232 + $0x1710] sm:$0xff]
      %v995 = vld [vmem:[%s232 + $0x1718] sm:$0xff]
      %v996 = vld [vmem:[%s232 + $0x1720] sm:$0xff]
      %v997 = vld [vmem:[%s232 + $0x1728] sm:$0xff]
      %v998 = vld [vmem:[%s232 + $0x1730] sm:$0xff]
      %v999 = vld [vmem:[%s232 + $0x1738] sm:$0xff]
      %v1000 = vld [vmem:[%s232 + $0x1740] sm:$0xff]
      %v1001 = vld [vmem:[%s232 + $0x1748] sm:$0xff]
      %v1002 = vld [vmem:[%s232 + $0x1750] sm:$0xff]
      %v1003 = vld [vmem:[%s232 + $0x1758] sm:$0xff]
      %v1004 = vld [vmem:[%s232 + $0x1760] sm:$0xff]
      %v1005 = vld [vmem:[%s232 + $0x1768] sm:$0xff]
      %v1006 = vld [vmem:[%s232 + $0x1770] sm:$0xff]
      %v1007 = vld [vmem:[%s232 + $0x1778] sm:$0xff]
      %v1008 = vld [vmem:[%s232 + $0x1780] sm:$0xff]
      %v1009 = vld [vmem:[%s232 + $0x1788] sm:$0xff]
      %v1010 = vld [vmem:[%s232 + $0x1790] sm:$0xff]
      %v1011 = vld [vmem:[%s232 + $0x1798] sm:$0xff]
      %v1012 = vld [vmem:[%s232 + $0x17a0] sm:$0xff]
      %v1013 = vld [vmem:[%s232 + $0x17a8] sm:$0xff]
      %v1014 = vld [vmem:[%s232 + $0x17b0] sm:$0xff]
      %v1015 = vld [vmem:[%s232 + $0x17b8] sm:$0xff]
      %v1016 = vld [vmem:[%s232 + $0x17c0] sm:$0xff]
      %v1017 = vld [vmem:[%s232 + $0x17c8] sm:$0xff]
      %v1018 = vld [vmem:[%s232 + $0x17d0] sm:$0xff]
      %v1019 = vld [vmem:[%s232 + $0x17d8] sm:$0xff]
      %v1020 = vld [vmem:[%s232 + $0x17e0] sm:$0xff]
      %v1021 = vld [vmem:[%s232 + $0x17e8] sm:$0xff]
      %v1022 = vld [vmem:[%s232 + $0x17f0] sm:$0xff]
      %v1023 = vld [vmem:[%s232 + $0x17f8] sm:$0xff]
      %v1024 = vld [vmem:[%s232 + $0x1800] sm:$0xff]
      %v1025 = vld [vmem:[%s232 + $0x1808] sm:$0xff]
      %v1026 = vld [vmem:[%s232 + $0x1810] sm:$0xff]
      %v1027 = vld [vmem:[%s232 + $0x1818] sm:$0xff]
      %v1028 = vld [vmem:[%s232 + $0x1820] sm:$0xff]
      %v1029 = vld [vmem:[%s232 + $0x1828] sm:$0xff]
      %v1030 = vld [vmem:[%s232 + $0x1830] sm:$0xff]
      %v1031 = vld [vmem:[%s232 + $0x1838] sm:$0xff]
      %v1032 = vld [vmem:[%s232 + $0x1840] sm:$0xff]
      %v1033 = vld [vmem:[%s232 + $0x1848] sm:$0xff]
      %v1034 = vld [vmem:[%s232 + $0x1850] sm:$0xff]
      %v1035 = vld [vmem:[%s232 + $0x1858] sm:$0xff]
      %v1036 = vld [vmem:[%s232 + $0x1860] sm:$0xff]
      %v1037 = vld [vmem:[%s232 + $0x1868] sm:$0xff]
      %v1038 = vld [vmem:[%s232 + $0x1870] sm:$0xff]
      %v1039 = vld [vmem:[%s232 + $0x1878] sm:$0xff]
      %v1040 = vld [vmem:[%s232 + $0x1880] sm:$0xff]
      %v1041 = vld [vmem:[%s232 + $0x1888] sm:$0xff]
      %v1042 = vld [vmem:[%s232 + $0x1890] sm:$0xff]
      %v1043 = vld [vmem:[%s232 + $0x1898] sm:$0xff]
      %v1044 = vld [vmem:[%s232 + $0x18a0] sm:$0xff]
      %v1045 = vld [vmem:[%s232 + $0x18a8] sm:$0xff]
      %v1046 = vld [vmem:[%s232 + $0x18b0] sm:$0xff]
      %v1047 = vld [vmem:[%s232 + $0x18b8] sm:$0xff]
      %v1048 = vld [vmem:[%s232 + $0x18c0] sm:$0xff]
      %v1049 = vld [vmem:[%s232 + $0x18c8] sm:$0xff]
      %v1050 = vld [vmem:[%s232 + $0x18d0] sm:$0xff]
      %v1051 = vld [vmem:[%s232 + $0x18d8] sm:$0xff]
      %v1052 = vld [vmem:[%s232 + $0x18e0] sm:$0xff]
      %v1053 = vld [vmem:[%s232 + $0x18e8] sm:$0xff]
      %v1054 = vld [vmem:[%s232 + $0x18f0] sm:$0xff]
      %v1055 = vld [vmem:[%s232 + $0x18f8] sm:$0xff]
      %v1056 = vld [vmem:[%s232 + $0x1900] sm:$0xff]
      %v1057 = vld [vmem:[%s232 + $0x1908] sm:$0xff]
      %v1058 = vld [vmem:[%s232 + $0x1910] sm:$0xff]
      %v1059 = vld [vmem:[%s232 + $0x1918] sm:$0xff]
      %v1060 = vld [vmem:[%s232 + $0x1920] sm:$0xff]
      %v1061 = vld [vmem:[%s232 + $0x1928] sm:$0xff]
      %v1062 = vld [vmem:[%s232 + $0x1930] sm:$0xff]
      %v1063 = vld [vmem:[%s232 + $0x1938] sm:$0xff]
      %v1064 = vld [vmem:[%s232 + $0x1940] sm:$0xff]
      %v1065 = vld [vmem:[%s232 + $0x1948] sm:$0xff]
      %v1066 = vld [vmem:[%s232 + $0x1950] sm:$0xff]
      %v1067 = vld [vmem:[%s232 + $0x1958] sm:$0xff]
      %v1068 = vld [vmem:[%s232 + $0x1960] sm:$0xff]
      %v1069 = vld [vmem:[%s232 + $0x1968] sm:$0xff]
      %v1070 = vld [vmem:[%s232 + $0x1970] sm:$0xff]
      %v1071 = vld [vmem:[%s232 + $0x1978] sm:$0xff]
      %v1072 = vld [vmem:[%s232 + $0x1980] sm:$0xff]
      %v1073 = vld [vmem:[%s232 + $0x1988] sm:$0xff]
      %v1074 = vld [vmem:[%s232 + $0x1990] sm:$0xff]
      %v1075 = vld [vmem:[%s232 + $0x1998] sm:$0xff]
      %v1076 = vld [vmem:[%s232 + $0x19a0] sm:$0xff]
      %v1077 = vld [vmem:[%s232 + $0x19a8] sm:$0xff]
      %v1078 = vld [vmem:[%s232 + $0x19b0] sm:$0xff]
      %v1079 = vld [vmem:[%s232 + $0x19b8] sm:$0xff]
      %v1080 = vld [vmem:[%s232 + $0x19c0] sm:$0xff]
      %v1081 = vld [vmem:[%s232 + $0x19c8] sm:$0xff]
      %v1082 = vld [vmem:[%s232 + $0x19d0] sm:$0xff]
      %v1083 = vld [vmem:[%s232 + $0x19d8] sm:$0xff]
      %v1084 = vld [vmem:[%s232 + $0x19e0] sm:$0xff]
      %v1085 = vld [vmem:[%s232 + $0x19e8] sm:$0xff]
      %v1086 = vld [vmem:[%s232 + $0x19f0] sm:$0xff]
      %v1087 = vld [vmem:[%s232 + $0x19f8] sm:$0xff]
      %v1088 = vld [vmem:[%s232 + $0x1a00] sm:$0xff]
      %v1089 = vld [vmem:[%s232 + $0x1a08] sm:$0xff]
      %v1090 = vld [vmem:[%s232 + $0x1a10] sm:$0xff]
      %v1091 = vld [vmem:[%s232 + $0x1a18] sm:$0xff]
      %v1092 = vld [vmem:[%s232 + $0x1a20] sm:$0xff]
      %v1093 = vld [vmem:[%s232 + $0x1a28] sm:$0xff]
      %v1094 = vld [vmem:[%s232 + $0x1a30] sm:$0xff]
      %v1095 = vld [vmem:[%s232 + $0x1a38] sm:$0xff]
      %v1096 = vld [vmem:[%s232 + $0x1a40] sm:$0xff]
      %v1097 = vld [vmem:[%s232 + $0x1a48] sm:$0xff]
      %v1098 = vld [vmem:[%s232 + $0x1a50] sm:$0xff]
      %v1099 = vld [vmem:[%s232 + $0x1a58] sm:$0xff]
      %v1100 = vld [vmem:[%s232 + $0x1a60] sm:$0xff]
      %v1101 = vld [vmem:[%s232 + $0x1a68] sm:$0xff]
      %v1102 = vld [vmem:[%s232 + $0x1a70] sm:$0xff]
      %v1103 = vld [vmem:[%s232 + $0x1a78] sm:$0xff]
      %v1104 = vld [vmem:[%s232 + $0x1a80] sm:$0xff]
      %v1105 = vld [vmem:[%s232 + $0x1a88] sm:$0xff]
      %v1106 = vld [vmem:[%s232 + $0x1a90] sm:$0xff]
      %v1107 = vld [vmem:[%s232 + $0x1a98] sm:$0xff]
      %v1108 = vld [vmem:[%s232 + $0x1aa0] sm:$0xff]
      %v1109 = vld [vmem:[%s232 + $0x1aa8] sm:$0xff]
      %v1110 = vld [vmem:[%s232 + $0x1ab0] sm:$0xff]
      %v1111 = vld [vmem:[%s232 + $0x1ab8] sm:$0xff]
      %v1112 = vld [vmem:[%s232 + $0x1ac0] sm:$0xff]
      %v1113 = vld [vmem:[%s232 + $0x1ac8] sm:$0xff]
      %v1114 = vld [vmem:[%s232 + $0x1ad0] sm:$0xff]
      %v1115 = vld [vmem:[%s232 + $0x1ad8] sm:$0xff]
      %v1116 = vld [vmem:[%s232 + $0x1ae0] sm:$0xff]
      %v1117 = vld [vmem:[%s232 + $0x1ae8] sm:$0xff]
      %v1118 = vld [vmem:[%s232 + $0x1af0] sm:$0xff]
      %v1119 = vld [vmem:[%s232 + $0x1af8] sm:$0xff]
      %v1120 = vld [vmem:[%s232 + $0x1b00] sm:$0xff]
      %v1121 = vld [vmem:[%s232 + $0x1b08] sm:$0xff]
      %v1122 = vld [vmem:[%s232 + $0x1b10] sm:$0xff]
      %v1123 = vld [vmem:[%s232 + $0x1b18] sm:$0xff]
      %v1124 = vld [vmem:[%s232 + $0x1b20] sm:$0xff]
      %v1125 = vld [vmem:[%s232 + $0x1b28] sm:$0xff]
      %v1126 = vld [vmem:[%s232 + $0x1b30] sm:$0xff]
      %v1127 = vld [vmem:[%s232 + $0x1b38] sm:$0xff]
      %v1128 = vld [vmem:[%s232 + $0x1b40] sm:$0xff]
      %v1129 = vld [vmem:[%s232 + $0x1b48] sm:$0xff]
      %v1130 = vld [vmem:[%s232 + $0x1b50] sm:$0xff]
      %v1131 = vld [vmem:[%s232 + $0x1b58] sm:$0xff]
      %v1132 = vld [vmem:[%s232 + $0x1b60] sm:$0xff]
      %v1133 = vld [vmem:[%s232 + $0x1b68] sm:$0xff]
      %v1134 = vld [vmem:[%s232 + $0x1b70] sm:$0xff]
      %v1135 = vld [vmem:[%s232 + $0x1b78] sm:$0xff]
      %v1136 = vld [vmem:[%s232 + $0x1b80] sm:$0xff]
      %v1137 = vld [vmem:[%s232 + $0x1b88] sm:$0xff]
      %v1138 = vld [vmem:[%s232 + $0x1b90] sm:$0xff]
      %v1139 = vld [vmem:[%s232 + $0x1b98] sm:$0xff]
      %v1140 = vld [vmem:[%s232 + $0x1ba0] sm:$0xff]
      %v1141 = vld [vmem:[%s232 + $0x1ba8] sm:$0xff]
      %v1142 = vld [vmem:[%s232 + $0x1bb0] sm:$0xff]
      %v1143 = vld [vmem:[%s232 + $0x1bb8] sm:$0xff]
      %v1144 = vld [vmem:[%s232 + $0x1bc0] sm:$0xff]
      %v1145 = vld [vmem:[%s232 + $0x1bc8] sm:$0xff]
      %v1146 = vld [vmem:[%s232 + $0x1bd0] sm:$0xff]
      %v1147 = vld [vmem:[%s232 + $0x1bd8] sm:$0xff]
      %v1148 = vld [vmem:[%s232 + $0x1be0] sm:$0xff]
      %v1149 = vld [vmem:[%s232 + $0x1be8] sm:$0xff]
      %v1150 = vld [vmem:[%s232 + $0x1bf0] sm:$0xff]
      %v1151 = vld [vmem:[%s232 + $0x1bf8] sm:$0xff]
      %v1152 = vld [vmem:[%s232 + $0x1c00] sm:$0xff]
      %v1153 = vld [vmem:[%s232 + $0x1c08] sm:$0xff]
      %v1154 = vld [vmem:[%s232 + $0x1c10] sm:$0xff]
      %v1155 = vld [vmem:[%s232 + $0x1c18] sm:$0xff]
      %v1156 = vld [vmem:[%s232 + $0x1c20] sm:$0xff]
      %v1157 = vld [vmem:[%s232 + $0x1c28] sm:$0xff]
      %v1158 = vld [vmem:[%s232 + $0x1c30] sm:$0xff]
      %v1159 = vld [vmem:[%s232 + $0x1c38] sm:$0xff]
      %v1160 = vld [vmem:[%s232 + $0x1c40] sm:$0xff]
      %v1161 = vld [vmem:[%s232 + $0x1c48] sm:$0xff]
      %v1162 = vld [vmem:[%s232 + $0x1c50] sm:$0xff]
      %v1163 = vld [vmem:[%s232 + $0x1c58] sm:$0xff]
      %v1164 = vld [vmem:[%s232 + $0x1c60] sm:$0xff]
      %v1165 = vld [vmem:[%s232 + $0x1c68] sm:$0xff]
      %v1166 = vld [vmem:[%s232 + $0x1c70] sm:$0xff]
      %v1167 = vld [vmem:[%s232 + $0x1c78] sm:$0xff]
      %v1168 = vld [vmem:[%s232 + $0x1c80] sm:$0xff]
      %v1169 = vld [vmem:[%s232 + $0x1c88] sm:$0xff]
      %v1170 = vld [vmem:[%s232 + $0x1c90] sm:$0xff]
      %v1171 = vld [vmem:[%s232 + $0x1c98] sm:$0xff]
      %v1172 = vld [vmem:[%s232 + $0x1ca0] sm:$0xff]
      %v1173 = vld [vmem:[%s232 + $0x1ca8] sm:$0xff]
      %v1174 = vld [vmem:[%s232 + $0x1cb0] sm:$0xff]
      %v1175 = vld [vmem:[%s232 + $0x1cb8] sm:$0xff]
      %v1176 = vld [vmem:[%s232 + $0x1cc0] sm:$0xff]
      %v1177 = vld [vmem:[%s232 + $0x1cc8] sm:$0xff]
      %v1178 = vld [vmem:[%s232 + $0x1cd0] sm:$0xff]
      %v1179 = vld [vmem:[%s232 + $0x1cd8] sm:$0xff]
      %v1180 = vld [vmem:[%s232 + $0x1ce0] sm:$0xff]
      %v1181 = vld [vmem:[%s232 + $0x1ce8] sm:$0xff]
      %v1182 = vld [vmem:[%s232 + $0x1cf0] sm:$0xff]
      %v1183 = vld [vmem:[%s232 + $0x1cf8] sm:$0xff]
      %v1184 = vld [vmem:[%s232 + $0x1d00] sm:$0xff]
      %v1185 = vld [vmem:[%s232 + $0x1d08] sm:$0xff]
      %v1186 = vld [vmem:[%s232 + $0x1d10] sm:$0xff]
      %v1187 = vld [vmem:[%s232 + $0x1d18] sm:$0xff]
      %v1188 = vld [vmem:[%s232 + $0x1d20] sm:$0xff]
      %v1189 = vld [vmem:[%s232 + $0x1d28] sm:$0xff]
      %v1190 = vld [vmem:[%s232 + $0x1d30] sm:$0xff]
      %v1191 = vld [vmem:[%s232 + $0x1d38] sm:$0xff]
      %v1192 = vld [vmem:[%s232 + $0x1d40] sm:$0xff]
      %v1193 = vld [vmem:[%s232 + $0x1d48] sm:$0xff]
      %v1194 = vld [vmem:[%s232 + $0x1d50] sm:$0xff]
      %v1195 = vld [vmem:[%s232 + $0x1d58] sm:$0xff]
      %v1196 = vld [vmem:[%s232 + $0x1d60] sm:$0xff]
      %v1197 = vld [vmem:[%s232 + $0x1d68] sm:$0xff]
      %v1198 = vld [vmem:[%s232 + $0x1d70] sm:$0xff]
      %v1199 = vld [vmem:[%s232 + $0x1d78] sm:$0xff]
      %v1200 = vld [vmem:[%s232 + $0x1d80] sm:$0xff]
      %v1201 = vld [vmem:[%s232 + $0x1d88] sm:$0xff]
      %v1202 = vld [vmem:[%s232 + $0x1d90] sm:$0xff]
      %v1203 = vld [vmem:[%s232 + $0x1d98] sm:$0xff]
      %v1204 = vld [vmem:[%s232 + $0x1da0] sm:$0xff]
      %v1205 = vld [vmem:[%s232 + $0x1da8] sm:$0xff]
      %v1206 = vld [vmem:[%s232 + $0x1db0] sm:$0xff]
      %v1207 = vld [vmem:[%s232 + $0x1db8] sm:$0xff]
      %v1208 = vld [vmem:[%s232 + $0x1dc0] sm:$0xff]
      %v1209 = vld [vmem:[%s232 + $0x1dc8] sm:$0xff]
      %v1210 = vld [vmem:[%s232 + $0x1dd0] sm:$0xff]
      %v1211 = vld [vmem:[%s232 + $0x1dd8] sm:$0xff]
      %v1212 = vld [vmem:[%s232 + $0x1de0] sm:$0xff]
      %v1213 = vld [vmem:[%s232 + $0x1de8] sm:$0xff]
      %v1214 = vld [vmem:[%s232 + $0x1df0] sm:$0xff]
      %v1215 = vld [vmem:[%s232 + $0x1df8] sm:$0xff]
      %v1216 = vld [vmem:[%s232 + $0x1e00] sm:$0xff]
      %v1217 = vld [vmem:[%s232 + $0x1e08] sm:$0xff]
      %v1218 = vld [vmem:[%s232 + $0x1e10] sm:$0xff]
      %v1219 = vld [vmem:[%s232 + $0x1e18] sm:$0xff]
      %v1220 = vld [vmem:[%s232 + $0x1e20] sm:$0xff]
      %v1221 = vld [vmem:[%s232 + $0x1e28] sm:$0xff]
      %v1222 = vld [vmem:[%s232 + $0x1e30] sm:$0xff]
      %v1223 = vld [vmem:[%s232 + $0x1e38] sm:$0xff]
      %v1224 = vld [vmem:[%s232 + $0x1e40] sm:$0xff]
      %v1225 = vld [vmem:[%s232 + $0x1e48] sm:$0xff]
      %v1226 = vld [vmem:[%s232 + $0x1e50] sm:$0xff]
      %v1227 = vld [vmem:[%s232 + $0x1e58] sm:$0xff]
      %v1228 = vld [vmem:[%s232 + $0x1e60] sm:$0xff]
      %v1229 = vld [vmem:[%s232 + $0x1e68] sm:$0xff]
      %v1230 = vld [vmem:[%s232 + $0x1e70] sm:$0xff]
      %v1231 = vld [vmem:[%s232 + $0x1e78] sm:$0xff]
      %v1232 = vld [vmem:[%s232 + $0x1e80] sm:$0xff]
      %v1233 = vld [vmem:[%s232 + $0x1e88] sm:$0xff]
      %v1234 = vld [vmem:[%s232 + $0x1e90] sm:$0xff]
      %v1235 = vld [vmem:[%s232 + $0x1e98] sm:$0xff]
      %v1236 = vld [vmem:[%s232 + $0x1ea0] sm:$0xff]
      %v1237 = vld [vmem:[%s232 + $0x1ea8] sm:$0xff]
      %v1238 = vld [vmem:[%s232 + $0x1eb0] sm:$0xff]
      %v1239 = vld [vmem:[%s232 + $0x1eb8] sm:$0xff]
      %v1240 = vld [vmem:[%s232 + $0x1ec0] sm:$0xff]
      %v1241 = vld [vmem:[%s232 + $0x1ec8] sm:$0xff]
      %v1242 = vld [vmem:[%s232 + $0x1ed0] sm:$0xff]
      %v1243 = vld [vmem:[%s232 + $0x1ed8] sm:$0xff]
      %v1244 = vld [vmem:[%s232 + $0x1ee0] sm:$0xff]
      %v1245 = vld [vmem:[%s232 + $0x1ee8] sm:$0xff]
      %v1246 = vld [vmem:[%s232 + $0x1ef0] sm:$0xff]
      %v1247 = vld [vmem:[%s232 + $0x1ef8] sm:$0xff]
      %v1248 = vld [vmem:[%s232 + $0x1f00] sm:$0xff]
      %v1249 = vld [vmem:[%s232 + $0x1f08] sm:$0xff]
      %v1250 = vld [vmem:[%s232 + $0x1f10] sm:$0xff]
      %v1251 = vld [vmem:[%s232 + $0x1f18] sm:$0xff]
      %v1252 = vld [vmem:[%s232 + $0x1f20] sm:$0xff]
      %v1253 = vld [vmem:[%s232 + $0x1f28] sm:$0xff]
      %v1254 = vld [vmem:[%s232 + $0x1f30] sm:$0xff]
      %v1255 = vld [vmem:[%s232 + $0x1f38] sm:$0xff]
      %v1256 = vld [vmem:[%s232 + $0x1f40] sm:$0xff]
      %v1257 = vld [vmem:[%s232 + $0x1f48] sm:$0xff]
      %v1258 = vld [vmem:[%s232 + $0x1f50] sm:$0xff]
      %v1259 = vld [vmem:[%s232 + $0x1f58] sm:$0xff]
      %v1260 = vld [vmem:[%s232 + $0x1f60] sm:$0xff]
      %v1261 = vld [vmem:[%s232 + $0x1f68] sm:$0xff]
      %v1262 = vld [vmem:[%s232 + $0x1f70] sm:$0xff]
      %v1263 = vld [vmem:[%s232 + $0x1f78] sm:$0xff]
      %v1264 = vld [vmem:[%s232 + $0x1f80] sm:$0xff]
      %v1265 = vld [vmem:[%s232 + $0x1f88] sm:$0xff]
      %v1266 = vld [vmem:[%s232 + $0x1f90] sm:$0xff]
      %v1267 = vld [vmem:[%s232 + $0x1f98] sm:$0xff]
      %v1268 = vld [vmem:[%s232 + $0x1fa0] sm:$0xff]
      %v1269 = vld [vmem:[%s232 + $0x1fa8] sm:$0xff]
      %v1270 = vld [vmem:[%s232 + $0x1fb0] sm:$0xff]
      %v1271 = vld [vmem:[%s232 + $0x1fb8] sm:$0xff]
      %v1272 = vld [vmem:[%s232 + $0x1fc0] sm:$0xff]
      %v1273 = vld [vmem:[%s232 + $0x1fc8] sm:$0xff]
      %v1274 = vld [vmem:[%s232 + $0x1fd0] sm:$0xff]
      %v1275 = vld [vmem:[%s232 + $0x1fd8] sm:$0xff]
      %v1276 = vld [vmem:[%s232 + $0x1fe0] sm:$0xff]
      %v1277 = vld [vmem:[%s232 + $0x1fe8] sm:$0xff]
      %v1278 = vld [vmem:[%s232 + $0x1ff0] sm:$0xff]
      %v1279 = vld [vmem:[%s232 + $0x1ff8] sm:$0xff]
      %v1296 = vcombine.high %v240, %v240
      %v1298 = vunpack.c.l.s4 1983009808
      %v1299 = vunpack.c.0.s8 %v1298
      %v1300 = vlaneseq
      %v1301 = vshrl.u32 %v1300, 7
      %v1302 = vsub.s32 %v1299, %v1301
      %v1303 = vrot.slane %v240, %v1302
      %v1305 = vunpack.c.l.s4 1983009808
      %v1306 = vunpack.c.0.s8 %v1305
      %v1307 = vlaneseq
      %v1308 = vshrl.u32 %v1307, 7
      %v1309 = vsub.s32 %v1306, %v1308
      %v1310 = vrot.slane %v1296, %v1309
      %v1311 = vcombine.high %v1303, %v1303
      %v1312 = vcombine.high %v1310, %v1310
      %v1313 = vcombine.high %v241, %v241
      %v1315 = vunpack.c.l.s4 1983009808
      %v1316 = vunpack.c.0.s8 %v1315
      %v1317 = vlaneseq
      %v1318 = vshrl.u32 %v1317, 7
      %v1319 = vsub.s32 %v1316, %v1318
      %v1320 = vrot.slane %v241, %v1319
      %v1322 = vunpack.c.l.s4 1983009808
      %v1323 = vunpack.c.0.s8 %v1322
      %v1324 = vlaneseq
      %v1325 = vshrl.u32 %v1324, 7
      %v1326 = vsub.s32 %v1323, %v1325
      %v1327 = vrot.slane %v1313, %v1326
      %v1328 = vcombine.high %v1320, %v1320
      %v1329 = vcombine.high %v1327, %v1327
      %v1330 = vcombine.high %v242, %v242
      %v1332 = vunpack.c.l.s4 1983009808
      %v1333 = vunpack.c.0.s8 %v1332
      %v1334 = vlaneseq
      %v1335 = vshrl.u32 %v1334, 7
      %v1336 = vsub.s32 %v1333, %v1335
      %v1337 = vrot.slane %v242, %v1336
      %v1339 = vunpack.c.l.s4 1983009808
      %v1340 = vunpack.c.0.s8 %v1339
      %v1341 = vlaneseq
      %v1342 = vshrl.u32 %v1341, 7
      %v1343 = vsub.s32 %v1340, %v1342
      %v1344 = vrot.slane %v1330, %v1343
      %v1345 = vcombine.high %v1337, %v1337
      %v1346 = vcombine.high %v1344, %v1344
      %v1347 = vcombine.high %v243, %v243
      %v1349 = vunpack.c.l.s4 1983009808
      %v1350 = vunpack.c.0.s8 %v1349
      %v1351 = vlaneseq
      %v1352 = vshrl.u32 %v1351, 7
      %v1353 = vsub.s32 %v1350, %v1352
      %v1354 = vrot.slane %v243, %v1353
      %v1356 = vunpack.c.l.s4 1983009808
      %v1357 = vunpack.c.0.s8 %v1356
      %v1358 = vlaneseq
      %v1359 = vshrl.u32 %v1358, 7
      %v1360 = vsub.s32 %v1357, %v1359
      %v1361 = vrot.slane %v1347, %v1360
      %v1362 = vcombine.high %v1354, %v1354
      %v1363 = vcombine.high %v1361, %v1361
      %v1364 = vcombine.high %v244, %v244
      %v1366 = vunpack.c.l.s4 1983009808
      %v1367 = vunpack.c.0.s8 %v1366
      %v1368 = vlaneseq
      %v1369 = vshrl.u32 %v1368, 7
      %v1370 = vsub.s32 %v1367, %v1369
      %v1371 = vrot.slane %v244, %v1370
      %v1373 = vunpack.c.l.s4 1983009808
      %v1374 = vunpack.c.0.s8 %v1373
      %v1375 = vlaneseq
      %v1376 = vshrl.u32 %v1375, 7
      %v1377 = vsub.s32 %v1374, %v1376
      %v1378 = vrot.slane %v1364, %v1377
      %v1379 = vcombine.high %v1371, %v1371
      %v1380 = vcombine.high %v1378, %v1378
      %v1381 = vcombine.high %v245, %v245
      %v1383 = vunpack.c.l.s4 1983009808
      %v1384 = vunpack.c.0.s8 %v1383
      %v1385 = vlaneseq
      %v1386 = vshrl.u32 %v1385, 7
      %v1387 = vsub.s32 %v1384, %v1386
      %v1388 = vrot.slane %v245, %v1387
      %v1390 = vunpack.c.l.s4 1983009808
      %v1391 = vunpack.c.0.s8 %v1390
      %v1392 = vlaneseq
      %v1393 = vshrl.u32 %v1392, 7
      %v1394 = vsub.s32 %v1391, %v1393
      %v1395 = vrot.slane %v1381, %v1394
      %v1396 = vcombine.high %v1388, %v1388
      %v1397 = vcombine.high %v1395, %v1395
      %v1398 = vcombine.high %v246, %v246
      %v1400 = vunpack.c.l.s4 1983009808
      %v1401 = vunpack.c.0.s8 %v1400
      %v1402 = vlaneseq
      %v1403 = vshrl.u32 %v1402, 7
      %v1404 = vsub.s32 %v1401, %v1403
      %v1405 = vrot.slane %v246, %v1404
      %v1407 = vunpack.c.l.s4 1983009808
      %v1408 = vunpack.c.0.s8 %v1407
      %v1409 = vlaneseq
      %v1410 = vshrl.u32 %v1409, 7
      %v1411 = vsub.s32 %v1408, %v1410
      %v1412 = vrot.slane %v1398, %v1411
      %v1413 = vcombine.high %v1405, %v1405
      %v1414 = vcombine.high %v1412, %v1412
      %v1415 = vcombine.high %v247, %v247
      %v1417 = vunpack.c.l.s4 1983009808
      %v1418 = vunpack.c.0.s8 %v1417
      %v1419 = vlaneseq
      %v1420 = vshrl.u32 %v1419, 7
      %v1421 = vsub.s32 %v1418, %v1420
      %v1422 = vrot.slane %v247, %v1421
      %v1424 = vunpack.c.l.s4 1983009808
      %v1425 = vunpack.c.0.s8 %v1424
      %v1426 = vlaneseq
      %v1427 = vshrl.u32 %v1426, 7
      %v1428 = vsub.s32 %v1425, %v1427
      %v1429 = vrot.slane %v1415, %v1428
      %v1430 = vcombine.high %v1422, %v1422
      %v1431 = vcombine.high %v1429, %v1429
      %v1432 = vcombine.high %v248, %v248
      %v1434 = vunpack.c.l.s4 1983009808
      %v1435 = vunpack.c.0.s8 %v1434
      %v1436 = vlaneseq
      %v1437 = vshrl.u32 %v1436, 7
      %v1438 = vsub.s32 %v1435, %v1437
      %v1439 = vrot.slane %v248, %v1438
      %v1441 = vunpack.c.l.s4 1983009808
      %v1442 = vunpack.c.0.s8 %v1441
      %v1443 = vlaneseq
      %v1444 = vshrl.u32 %v1443, 7
      %v1445 = vsub.s32 %v1442, %v1444
      %v1446 = vrot.slane %v1432, %v1445
      %v1447 = vcombine.high %v1439, %v1439
      %v1448 = vcombine.high %v1446, %v1446
      %v1449 = vcombine.high %v249, %v249
      %v1451 = vunpack.c.l.s4 1983009808
      %v1452 = vunpack.c.0.s8 %v1451
      %v1453 = vlaneseq
      %v1454 = vshrl.u32 %v1453, 7
      %v1455 = vsub.s32 %v1452, %v1454
      %v1456 = vrot.slane %v249, %v1455
      %v1458 = vunpack.c.l.s4 1983009808
      %v1459 = vunpack.c.0.s8 %v1458
      %v1460 = vlaneseq
      %v1461 = vshrl.u32 %v1460, 7
      %v1462 = vsub.s32 %v1459, %v1461
      %v1463 = vrot.slane %v1449, %v1462
      %v1464 = vcombine.high %v1456, %v1456
      %v1465 = vcombine.high %v1463, %v1463
      %v1466 = vcombine.high %v250, %v250
      %v1468 = vunpack.c.l.s4 1983009808
      %v1469 = vunpack.c.0.s8 %v1468
      %v1470 = vlaneseq
      %v1471 = vshrl.u32 %v1470, 7
      %v1472 = vsub.s32 %v1469, %v1471
      %v1473 = vrot.slane %v250, %v1472
      %v1475 = vunpack.c.l.s4 1983009808
      %v1476 = vunpack.c.0.s8 %v1475
      %v1477 = vlaneseq
      %v1478 = vshrl.u32 %v1477, 7
      %v1479 = vsub.s32 %v1476, %v1478
      %v1480 = vrot.slane %v1466, %v1479
      %v1481 = vcombine.high %v1473, %v1473
      %v1482 = vcombine.high %v1480, %v1480
      %v1483 = vcombine.high %v251, %v251
      %v1485 = vunpack.c.l.s4 1983009808
      %v1486 = vunpack.c.0.s8 %v1485
      %v1487 = vlaneseq
      %v1488 = vshrl.u32 %v1487, 7
      %v1489 = vsub.s32 %v1486, %v1488
      %v1490 = vrot.slane %v251, %v1489
      %v1492 = vunpack.c.l.s4 1983009808
      %v1493 = vunpack.c.0.s8 %v1492
      %v1494 = vlaneseq
      %v1495 = vshrl.u32 %v1494, 7
      %v1496 = vsub.s32 %v1493, %v1495
      %v1497 = vrot.slane %v1483, %v1496
      %v1498 = vcombine.high %v1490, %v1490
      %v1499 = vcombine.high %v1497, %v1497
      %v1500 = vcombine.high %v252, %v252
      %v1502 = vunpack.c.l.s4 1983009808
      %v1503 = vunpack.c.0.s8 %v1502
      %v1504 = vlaneseq
      %v1505 = vshrl.u32 %v1504, 7
      %v1506 = vsub.s32 %v1503, %v1505
      %v1507 = vrot.slane %v252, %v1506
      %v1509 = vunpack.c.l.s4 1983009808
      %v1510 = vunpack.c.0.s8 %v1509
      %v1511 = vlaneseq
      %v1512 = vshrl.u32 %v1511, 7
      %v1513 = vsub.s32 %v1510, %v1512
      %v1514 = vrot.slane %v1500, %v1513
      %v1515 = vcombine.high %v1507, %v1507
      %v1516 = vcombine.high %v1514, %v1514
      %v1517 = vcombine.high %v253, %v253
      %v1519 = vunpack.c.l.s4 1983009808
      %v1520 = vunpack.c.0.s8 %v1519
      %v1521 = vlaneseq
      %v1522 = vshrl.u32 %v1521, 7
      %v1523 = vsub.s32 %v1520, %v1522
      %v1524 = vrot.slane %v253, %v1523
      %v1526 = vunpack.c.l.s4 1983009808
      %v1527 = vunpack.c.0.s8 %v1526
      %v1528 = vlaneseq
      %v1529 = vshrl.u32 %v1528, 7
      %v1530 = vsub.s32 %v1527, %v1529
      %v1531 = vrot.slane %v1517, %v1530
      %v1532 = vcombine.high %v1524, %v1524
      %v1533 = vcombine.high %v1531, %v1531
      %v1534 = vcombine.high %v254, %v254
      %v1536 = vunpack.c.l.s4 1983009808
      %v1537 = vunpack.c.0.s8 %v1536
      %v1538 = vlaneseq
      %v1539 = vshrl.u32 %v1538, 7
      %v1540 = vsub.s32 %v1537, %v1539
      %v1541 = vrot.slane %v254, %v1540
      %v1543 = vunpack.c.l.s4 1983009808
      %v1544 = vunpack.c.0.s8 %v1543
      %v1545 = vlaneseq
      %v1546 = vshrl.u32 %v1545, 7
      %v1547 = vsub.s32 %v1544, %v1546
      %v1548 = vrot.slane %v1534, %v1547
      %v1549 = vcombine.high %v1541, %v1541
      %v1550 = vcombine.high %v1548, %v1548
      %v1551 = vcombine.high %v255, %v255
      %v1553 = vunpack.c.l.s4 1983009808
      %v1554 = vunpack.c.0.s8 %v1553
      %v1555 = vlaneseq
      %v1556 = vshrl.u32 %v1555, 7
      %v1557 = vsub.s32 %v1554, %v1556
      %v1558 = vrot.slane %v255, %v1557
      %v1560 = vunpack.c.l.s4 1983009808
      %v1561 = vunpack.c.0.s8 %v1560
      %v1562 = vlaneseq
      %v1563 = vshrl.u32 %v1562, 7
      %v1564 = vsub.s32 %v1561, %v1563
      %v1565 = vrot.slane %v1551, %v1564
      %v1566 = vcombine.high %v1558, %v1558
      %v1567 = vcombine.high %v1565, %v1565
      %1632 = vmatprep.subr.mxu0 0.0
      %1633 = vmatpush1.msra.mxu0 %v256
      %1634 = vmatprep.subr.mxu0 0.0
      %1635 = vmatpush1.msra.mxu0 %v257
      %1636 = vmatprep.subr.mxu0 0.0
      %1637 = vmatpush1.msra.mxu0 %v258
      %1638 = vmatprep.subr.mxu0 0.0
      %1639 = vmatpush1.msra.mxu0 %v259
      %1640 = vmatprep.subr.mxu0 0.0
      %1641 = vmatpush1.msra.mxu0 %v260
      %1642 = vmatprep.subr.mxu0 0.0
      %1643 = vmatpush1.msra.mxu0 %v261
      %1644 = vmatprep.subr.mxu0 0.0
      %1645 = vmatpush1.msra.mxu0 %v262
      %1646 = vmatprep.subr.mxu0 0.0
      %1647 = vmatpush1.msra.mxu0 %v263
      %1648 = vmatprep.subr.mxu0 0.0
      %1649 = vmatpush1.msra.mxu0 %v264
      %1650 = vmatprep.subr.mxu0 0.0
      %1651 = vmatpush1.msra.mxu0 %v265
      %1652 = vmatprep.subr.mxu0 0.0
      %1653 = vmatpush1.msra.mxu0 %v266
      %1654 = vmatprep.subr.mxu0 0.0
      %1655 = vmatpush1.msra.mxu0 %v267
      %1656 = vmatprep.subr.mxu0 0.0
      %1657 = vmatpush1.msra.mxu0 %v268
      %1658 = vmatprep.subr.mxu0 0.0
      %1659 = vmatpush1.msra.mxu0 %v269
      %1660 = vmatprep.subr.mxu0 0.0
      %1661 = vmatpush1.msra.mxu0 %v270
      %1662 = vmatprep.subr.mxu0 0.0
      %1663 = vmatpush1.msra.mxu0 %v271
      %1664 = vmatprep.subr.mxu0 0.0
      %1665 = vmatpush1.msra.mxu0 %v272
      %1666 = vmatprep.subr.mxu0 0.0
      %1667 = vmatpush1.msra.mxu0 %v273
      %1668 = vmatprep.subr.mxu0 0.0
      %1669 = vmatpush1.msra.mxu0 %v274
      %1670 = vmatprep.subr.mxu0 0.0
      %1671 = vmatpush1.msra.mxu0 %v275
      %1672 = vmatprep.subr.mxu0 0.0
      %1673 = vmatpush1.msra.mxu0 %v276
      %1674 = vmatprep.subr.mxu0 0.0
      %1675 = vmatpush1.msra.mxu0 %v277
      %1676 = vmatprep.subr.mxu0 0.0
      %1677 = vmatpush1.msra.mxu0 %v278
      %1678 = vmatprep.subr.mxu0 0.0
      %1679 = vmatpush1.msra.mxu0 %v279
      %1680 = vmatprep.subr.mxu0 0.0
      %1681 = vmatpush1.msra.mxu0 %v280
      %1682 = vmatprep.subr.mxu0 0.0
      %1683 = vmatpush1.msra.mxu0 %v281
      %1684 = vmatprep.subr.mxu0 0.0
      %1685 = vmatpush1.msra.mxu0 %v282
      %1686 = vmatprep.subr.mxu0 0.0
      %1687 = vmatpush1.msra.mxu0 %v283
      %1688 = vmatprep.subr.mxu0 0.0
      %1689 = vmatpush1.msra.mxu0 %v284
      %1690 = vmatprep.subr.mxu0 0.0
      %1691 = vmatpush1.msra.mxu0 %v285
      %1692 = vmatprep.subr.mxu0 0.0
      %1693 = vmatpush1.msra.mxu0 %v286
      %1694 = vmatprep.subr.mxu0 0.0
      %1695 = vmatpush1.msra.mxu0 %v287
      %1696 = vmatprep.mubr.f32.mxu0 %v1311
      %1697 = vmatmul.mubr.f32.gmra.mrb[0].mxu0 %v1303
      %v1698 = vpop.f32.mrb[0].mxu0
      %v1699 = vadd.f32 0.0, %v1698
      %v1700 = vpop.f32.mrb[0].mxu0
      %1701 = vdwg.mxu0
      %1702 = vmatprep.subr.mxu0 0.0
      %1703 = vmatpush1.msra.mxu0 %v288
      %1704 = vmatprep.subr.mxu0 0.0
      %1705 = vmatpush1.msra.mxu0 %v289
      %1706 = vmatprep.subr.mxu0 0.0
      %1707 = vmatpush1.msra.mxu0 %v290
      %1708 = vmatprep.subr.mxu0 0.0
      %1709 = vmatpush1.msra.mxu0 %v291
      %1710 = vmatprep.subr.mxu0 0.0
      %1711 = vmatpush1.msra.mxu0 %v292
      %1712 = vmatprep.subr.mxu0 0.0
      %1713 = vmatpush1.msra.mxu0 %v293
      %1714 = vmatprep.subr.mxu0 0.0
      %1715 = vmatpush1.msra.mxu0 %v294
      %1716 = vmatprep.subr.mxu0 0.0
      %1717 = vmatpush1.msra.mxu0 %v295
      %1718 = vmatprep.subr.mxu0 0.0
      %1719 = vmatpush1.msra.mxu0 %v296
      %1720 = vmatprep.subr.mxu0 0.0
      %1721 = vmatpush1.msra.mxu0 %v297
      %1722 = vmatprep.subr.mxu0 0.0
      %1723 = vmatpush1.msra.mxu0 %v298
      %1724 = vmatprep.subr.mxu0 0.0
      %1725 = vmatpush1.msra.mxu0 %v299
      %1726 = vmatprep.subr.mxu0 0.0
      %1727 = vmatpush1.msra.mxu0 %v300
      %1728 = vmatprep.subr.mxu0 0.0
      %1729 = vmatpush1.msra.mxu0 %v301
      %1730 = vmatprep.subr.mxu0 0.0
      %1731 = vmatpush1.msra.mxu0 %v302
      %1732 = vmatprep.subr.mxu0 0.0
      %1733 = vmatpush1.msra.mxu0 %v303
      %1734 = vmatprep.subr.mxu0 0.0
      %1735 = vmatpush1.msra.mxu0 %v304
      %1736 = vmatprep.subr.mxu0 0.0
      %1737 = vmatpush1.msra.mxu0 %v305
      %1738 = vmatprep.subr.mxu0 0.0
      %1739 = vmatpush1.msra.mxu0 %v306
      %1740 = vmatprep.subr.mxu0 0.0
      %1741 = vmatpush1.msra.mxu0 %v307
      %1742 = vmatprep.subr.mxu0 0.0
      %1743 = vmatpush1.msra.mxu0 %v308
      %1744 = vmatprep.subr.mxu0 0.0
      %1745 = vmatpush1.msra.mxu0 %v309
      %1746 = vmatprep.subr.mxu0 0.0
      %1747 = vmatpush1.msra.mxu0 %v310
      %1748 = vmatprep.subr.mxu0 0.0
      %1749 = vmatpush1.msra.mxu0 %v311
      %1750 = vmatprep.subr.mxu0 0.0
      %1751 = vmatpush1.msra.mxu0 %v312
      %1752 = vmatprep.subr.mxu0 0.0
      %1753 = vmatpush1.msra.mxu0 %v313
      %1754 = vmatprep.subr.mxu0 0.0
      %1755 = vmatpush1.msra.mxu0 %v314
      %1756 = vmatprep.subr.mxu0 0.0
      %1757 = vmatpush1.msra.mxu0 %v315
      %1758 = vmatprep.subr.mxu0 0.0
      %1759 = vmatpush1.msra.mxu0 %v316
      %1760 = vmatprep.subr.mxu0 0.0
      %1761 = vmatpush1.msra.mxu0 %v317
      %1762 = vmatprep.subr.mxu0 0.0
      %1763 = vmatpush1.msra.mxu0 %v318
      %1764 = vmatprep.subr.mxu0 0.0
      %1765 = vmatpush1.msra.mxu0 %v319
      %1766 = vmatprep.mubr.f32.mxu0 %v1312
      %1767 = vmatmul.mubr.f32.gmra.mrb[0].mxu0 %v1310
      %v1768 = vpop.f32.mrb[0].mxu0
      %v1769 = vadd.f32 %v1699, %v1768
      %v1770 = vpop.f32.mrb[0].mxu0
      %1771 = vdwg.mxu0
      %1772 = vmatprep.subr.mxu0 0.0
      %1773 = vmatpush1.msra.mxu0 %v320
      %1774 = vmatprep.subr.mxu0 0.0
      %1775 = vmatpush1.msra.mxu0 %v321
      %1776 = vmatprep.subr.mxu0 0.0
      %1777 = vmatpush1.msra.mxu0 %v322
      %1778 = vmatprep.subr.mxu0 0.0
      %1779 = vmatpush1.msra.mxu0 %v323
      %1780 = vmatprep.subr.mxu0 0.0
      %1781 = vmatpush1.msra.mxu0 %v324
      %1782 = vmatprep.subr.mxu0 0.0
      %1783 = vmatpush1.msra.mxu0 %v325
      %1784 = vmatprep.subr.mxu0 0.0
      %1785 = vmatpush1.msra.mxu0 %v326
      %1786 = vmatprep.subr.mxu0 0.0
      %1787 = vmatpush1.msra.mxu0 %v327
      %1788 = vmatprep.subr.mxu0 0.0
      %1789 = vmatpush1.msra.mxu0 %v328
      %1790 = vmatprep.subr.mxu0 0.0
      %1791 = vmatpush1.msra.mxu0 %v329
      %1792 = vmatprep.subr.mxu0 0.0
      %1793 = vmatpush1.msra.mxu0 %v330
      %1794 = vmatprep.subr.mxu0 0.0
      %1795 = vmatpush1.msra.mxu0 %v331
      %1796 = vmatprep.subr.mxu0 0.0
      %1797 = vmatpush1.msra.mxu0 %v332
      %1798 = vmatprep.subr.mxu0 0.0
      %1799 = vmatpush1.msra.mxu0 %v333
      %1800 = vmatprep.subr.mxu0 0.0
      %1801 = vmatpush1.msra.mxu0 %v334
      %1802 = vmatprep.subr.mxu0 0.0
      %1803 = vmatpush1.msra.mxu0 %v335
      %1804 = vmatprep.subr.mxu0 0.0
      %1805 = vmatpush1.msra.mxu0 %v336
      %1806 = vmatprep.subr.mxu0 0.0
      %1807 = vmatpush1.msra.mxu0 %v337
      %1808 = vmatprep.subr.mxu0 0.0
      %1809 = vmatpush1.msra.mxu0 %v338
      %1810 = vmatprep.subr.mxu0 0.0
      %1811 = vmatpush1.msra.mxu0 %v339
      %1812 = vmatprep.subr.mxu0 0.0
      %1813 = vmatpush1.msra.mxu0 %v340
      %1814 = vmatprep.subr.mxu0 0.0
      %1815 = vmatpush1.msra.mxu0 %v341
      %1816 = vmatprep.subr.mxu0 0.0
      %1817 = vmatpush1.msra.mxu0 %v342
      %1818 = vmatprep.subr.mxu0 0.0
      %1819 = vmatpush1.msra.mxu0 %v343
      %1820 = vmatprep.subr.mxu0 0.0
      %1821 = vmatpush1.msra.mxu0 %v344
      %1822 = vmatprep.subr.mxu0 0.0
      %1823 = vmatpush1.msra.mxu0 %v345
      %1824 = vmatprep.subr.mxu0 0.0
      %1825 = vmatpush1.msra.mxu0 %v346
      %1826 = vmatprep.subr.mxu0 0.0
      %1827 = vmatpush1.msra.mxu0 %v347
      %1828 = vmatprep.subr.mxu0 0.0
      %1829 = vmatpush1.msra.mxu0 %v348
      %1830 = vmatprep.subr.mxu0 0.0
      %1831 = vmatpush1.msra.mxu0 %v349
      %1832 = vmatprep.subr.mxu0 0.0
      %1833 = vmatpush1.msra.mxu0 %v350
      %1834 = vmatprep.subr.mxu0 0.0
      %1835 = vmatpush1.msra.mxu0 %v351
      %1836 = vmatprep.mubr.f32.mxu0 %v1328
      %1837 = vmatmul.mubr.f32.gmra.mrb[0].mxu0 %v1320
      %v1838 = vpop.f32.mrb[0].mxu0
      %v1839 = vadd.f32 %v1769, %v1838
      %v1840 = vpop.f32.mrb[0].mxu0
      %1841 = vdwg.mxu0
      %1842 = vmatprep.subr.mxu0 0.0
      %1843 = vmatpush1.msra.mxu0 %v352
      %1844 = vmatprep.subr.mxu0 0.0
      %1845 = vmatpush1.msra.mxu0 %v353
      %1846 = vmatprep.subr.mxu0 0.0
      %1847 = vmatpush1.msra.mxu0 %v354
      %1848 = vmatprep.subr.mxu0 0.0
      %1849 = vmatpush1.msra.mxu0 %v355
      %1850 = vmatprep.subr.mxu0 0.0
      %1851 = vmatpush1.msra.mxu0 %v356
      %1852 = vmatprep.subr.mxu0 0.0
      %1853 = vmatpush1.msra.mxu0 %v357
      %1854 = vmatprep.subr.mxu0 0.0
      %1855 = vmatpush1.msra.mxu0 %v358
      %1856 = vmatprep.subr.mxu0 0.0
      %1857 = vmatpush1.msra.mxu0 %v359
      %1858 = vmatprep.subr.mxu0 0.0
      %1859 = vmatpush1.msra.mxu0 %v360
      %1860 = vmatprep.subr.mxu0 0.0
      %1861 = vmatpush1.msra.mxu0 %v361
      %1862 = vmatprep.subr.mxu0 0.0
      %1863 = vmatpush1.msra.mxu0 %v362
      %1864 = vmatprep.subr.mxu0 0.0
      %1865 = vmatpush1.msra.mxu0 %v363
      %1866 = vmatprep.subr.mxu0 0.0
      %1867 = vmatpush1.msra.mxu0 %v364
      %1868 = vmatprep.subr.mxu0 0.0
      %1869 = vmatpush1.msra.mxu0 %v365
      %1870 = vmatprep.subr.mxu0 0.0
      %1871 = vmatpush1.msra.mxu0 %v366
      %1872 = vmatprep.subr.mxu0 0.0
      %1873 = vmatpush1.msra.mxu0 %v367
      %1874 = vmatprep.subr.mxu0 0.0
      %1875 = vmatpush1.msra.mxu0 %v368
      %1876 = vmatprep.subr.mxu0 0.0
      %1877 = vmatpush1.msra.mxu0 %v369
      %1878 = vmatprep.subr.mxu0 0.0
      %1879 = vmatpush1.msra.mxu0 %v370
      %1880 = vmatprep.subr.mxu0 0.0
      %1881 = vmatpush1.msra.mxu0 %v371
      %1882 = vmatprep.subr.mxu0 0.0
      %1883 = vmatpush1.msra.mxu0 %v372
      %1884 = vmatprep.subr.mxu0 0.0
      %1885 = vmatpush1.msra.mxu0 %v373
      %1886 = vmatprep.subr.mxu0 0.0
      %1887 = vmatpush1.msra.mxu0 %v374
      %1888 = vmatprep.subr.mxu0 0.0
      %1889 = vmatpush1.msra.mxu0 %v375
      %1890 = vmatprep.subr.mxu0 0.0
      %1891 = vmatpush1.msra.mxu0 %v376
      %1892 = vmatprep.subr.mxu0 0.0
      %1893 = vmatpush1.msra.mxu0 %v377
      %1894 = vmatprep.subr.mxu0 0.0
      %1895 = vmatpush1.msra.mxu0 %v378
      %1896 = vmatprep.subr.mxu0 0.0
      %1897 = vmatpush1.msra.mxu0 %v379
      %1898 = vmatprep.subr.mxu0 0.0
      %1899 = vmatpush1.msra.mxu0 %v380
      %1900 = vmatprep.subr.mxu0 0.0
      %1901 = vmatpush1.msra.mxu0 %v381
      %1902 = vmatprep.subr.mxu0 0.0
      %1903 = vmatpush1.msra.mxu0 %v382
      %1904 = vmatprep.subr.mxu0 0.0
      %1905 = vmatpush1.msra.mxu0 %v383
      %1906 = vmatprep.mubr.f32.mxu0 %v1329
      %1907 = vmatmul.mubr.f32.gmra.mrb[0].mxu0 %v1327
      %v1908 = vpop.f32.mrb[0].mxu0
      %v1909 = vadd.f32 %v1839, %v1908
      %v1910 = vpop.f32.mrb[0].mxu0
      %1911 = vdwg.mxu0
      %1912 = vmatprep.subr.mxu0 0.0
      %1913 = vmatpush1.msra.mxu0 %v384
      %1914 = vmatprep.subr.mxu0 0.0
      %1915 = vmatpush1.msra.mxu0 %v385
      %1916 = vmatprep.subr.mxu0 0.0
      %1917 = vmatpush1.msra.mxu0 %v386
      %1918 = vmatprep.subr.mxu0 0.0
      %1919 = vmatpush1.msra.mxu0 %v387
      %1920 = vmatprep.subr.mxu0 0.0
      %1921 = vmatpush1.msra.mxu0 %v388
      %1922 = vmatprep.subr.mxu0 0.0
      %1923 = vmatpush1.msra.mxu0 %v389
      %1924 = vmatprep.subr.mxu0 0.0
      %1925 = vmatpush1.msra.mxu0 %v390
      %1926 = vmatprep.subr.mxu0 0.0
      %1927 = vmatpush1.msra.mxu0 %v391
      %1928 = vmatprep.subr.mxu0 0.0
      %1929 = vmatpush1.msra.mxu0 %v392
      %1930 = vmatprep.subr.mxu0 0.0
      %1931 = vmatpush1.msra.mxu0 %v393
      %1932 = vmatprep.subr.mxu0 0.0
      %1933 = vmatpush1.msra.mxu0 %v394
      %1934 = vmatprep.subr.mxu0 0.0
      %1935 = vmatpush1.msra.mxu0 %v395
      %1936 = vmatprep.subr.mxu0 0.0
      %1937 = vmatpush1.msra.mxu0 %v396
      %1938 = vmatprep.subr.mxu0 0.0
      %1939 = vmatpush1.msra.mxu0 %v397
      %1940 = vmatprep.subr.mxu0 0.0
      %1941 = vmatpush1.msra.mxu0 %v398
      %1942 = vmatprep.subr.mxu0 0.0
      %1943 = vmatpush1.msra.mxu0 %v399
      %1944 = vmatprep.subr.mxu0 0.0
      %1945 = vmatpush1.msra.mxu0 %v400
      %1946 = vmatprep.subr.mxu0 0.0
      %1947 = vmatpush1.msra.mxu0 %v401
      %1948 = vmatprep.subr.mxu0 0.0
      %1949 = vmatpush1.msra.mxu0 %v402
      %1950 = vmatprep.subr.mxu0 0.0
      %1951 = vmatpush1.msra.mxu0 %v403
      %1952 = vmatprep.subr.mxu0 0.0
      %1953 = vmatpush1.msra.mxu0 %v404
      %1954 = vmatprep.subr.mxu0 0.0
      %1955 = vmatpush1.msra.mxu0 %v405
      %1956 = vmatprep.subr.mxu0 0.0
      %1957 = vmatpush1.msra.mxu0 %v406
      %1958 = vmatprep.subr.mxu0 0.0
      %1959 = vmatpush1.msra.mxu0 %v407
      %1960 = vmatprep.subr.mxu0 0.0
      %1961 = vmatpush1.msra.mxu0 %v408
      %1962 = vmatprep.subr.mxu0 0.0
      %1963 = vmatpush1.msra.mxu0 %v409
      %1964 = vmatprep.subr.mxu0 0.0
      %1965 = vmatpush1.msra.mxu0 %v410
      %1966 = vmatprep.subr.mxu0 0.0
      %1967 = vmatpush1.msra.mxu0 %v411
      %1968 = vmatprep.subr.mxu0 0.0
      %1969 = vmatpush1.msra.mxu0 %v412
      %1970 = vmatprep.subr.mxu0 0.0
      %1971 = vmatpush1.msra.mxu0 %v413
      %1972 = vmatprep.subr.mxu0 0.0
      %1973 = vmatpush1.msra.mxu0 %v414
      %1974 = vmatprep.subr.mxu0 0.0
      %1975 = vmatpush1.msra.mxu0 %v415
      %1976 = vmatprep.mubr.f32.mxu0 %v1345
      %1977 = vmatmul.mubr.f32.gmra.mrb[0].mxu0 %v1337
      %v1978 = vpop.f32.mrb[0].mxu0
      %v1979 = vadd.f32 %v1909, %v1978
      %v1980 = vpop.f32.mrb[0].mxu0
      %1981 = vdwg.mxu0
      %1982 = vmatprep.subr.mxu0 0.0
      %1983 = vmatpush1.msra.mxu0 %v416
      %1984 = vmatprep.subr.mxu0 0.0
      %1985 = vmatpush1.msra.mxu0 %v417
      %1986 = vmatprep.subr.mxu0 0.0
      %1987 = vmatpush1.msra.mxu0 %v418
      %1988 = vmatprep.subr.mxu0 0.0
      %1989 = vmatpush1.msra.mxu0 %v419
      %1990 = vmatprep.subr.mxu0 0.0
      %1991 = vmatpush1.msra.mxu0 %v420
      %1992 = vmatprep.subr.mxu0 0.0
      %1993 = vmatpush1.msra.mxu0 %v421
      %1994 = vmatprep.subr.mxu0 0.0
      %1995 = vmatpush1.msra.mxu0 %v422
      %1996 = vmatprep.subr.mxu0 0.0
      %1997 = vmatpush1.msra.mxu0 %v423
      %1998 = vmatprep.subr.mxu0 0.0
      %1999 = vmatpush1.msra.mxu0 %v424
      %2000 = vmatprep.subr.mxu0 0.0
      %2001 = vmatpush1.msra.mxu0 %v425
      %2002 = vmatprep.subr.mxu0 0.0
      %2003 = vmatpush1.msra.mxu0 %v426
      %2004 = vmatprep.subr.mxu0 0.0
      %2005 = vmatpush1.msra.mxu0 %v427
      %2006 = vmatprep.subr.mxu0 0.0
      %2007 = vmatpush1.msra.mxu0 %v428
      %2008 = vmatprep.subr.mxu0 0.0
      %2009 = vmatpush1.msra.mxu0 %v429
      %2010 = vmatprep.subr.mxu0 0.0
      %2011 = vmatpush1.msra.mxu0 %v430
      %2012 = vmatprep.subr.mxu0 0.0
      %2013 = vmatpush1.msra.mxu0 %v431
      %2014 = vmatprep.subr.mxu0 0.0
      %2015 = vmatpush1.msra.mxu0 %v432
      %2016 = vmatprep.subr.mxu0 0.0
      %2017 = vmatpush1.msra.mxu0 %v433
      %2018 = vmatprep.subr.mxu0 0.0
      %2019 = vmatpush1.msra.mxu0 %v434
      %2020 = vmatprep.subr.mxu0 0.0
      %2021 = vmatpush1.msra.mxu0 %v435
      %2022 = vmatprep.subr.mxu0 0.0
      %2023 = vmatpush1.msra.mxu0 %v436
      %2024 = vmatprep.subr.mxu0 0.0
      %2025 = vmatpush1.msra.mxu0 %v437
      %2026 = vmatprep.subr.mxu0 0.0
      %2027 = vmatpush1.msra.mxu0 %v438
      %2028 = vmatprep.subr.mxu0 0.0
      %2029 = vmatpush1.msra.mxu0 %v439
      %2030 = vmatprep.subr.mxu0 0.0
      %2031 = vmatpush1.msra.mxu0 %v440
      %2032 = vmatprep.subr.mxu0 0.0
      %2033 = vmatpush1.msra.mxu0 %v441
      %2034 = vmatprep.subr.mxu0 0.0
      %2035 = vmatpush1.msra.mxu0 %v442
      %2036 = vmatprep.subr.mxu0 0.0
      %2037 = vmatpush1.msra.mxu0 %v443
      %2038 = vmatprep.subr.mxu0 0.0
      %2039 = vmatpush1.msra.mxu0 %v444
      %2040 = vmatprep.subr.mxu0 0.0
      %2041 = vmatpush1.msra.mxu0 %v445
      %2042 = vmatprep.subr.mxu0 0.0
      %2043 = vmatpush1.msra.mxu0 %v446
      %2044 = vmatprep.subr.mxu0 0.0
      %2045 = vmatpush1.msra.mxu0 %v447
      %2046 = vmatprep.mubr.f32.mxu0 %v1346
      %2047 = vmatmul.mubr.f32.gmra.mrb[0].mxu0 %v1344
      %v2048 = vpop.f32.mrb[0].mxu0
      %v2049 = vadd.f32 %v1979, %v2048
      %v2050 = vpop.f32.mrb[0].mxu0
      %2051 = vdwg.mxu0
      %2052 = vmatprep.subr.mxu0 0.0
      %2053 = vmatpush1.msra.mxu0 %v448
      %2054 = vmatprep.subr.mxu0 0.0
      %2055 = vmatpush1.msra.mxu0 %v449
      %2056 = vmatprep.subr.mxu0 0.0
      %2057 = vmatpush1.msra.mxu0 %v450
      %2058 = vmatprep.subr.mxu0 0.0
      %2059 = vmatpush1.msra.mxu0 %v451
      %2060 = vmatprep.subr.mxu0 0.0
      %2061 = vmatpush1.msra.mxu0 %v452
      %2062 = vmatprep.subr.mxu0 0.0
      %2063 = vmatpush1.msra.mxu0 %v453
      %2064 = vmatprep.subr.mxu0 0.0
      %2065 = vmatpush1.msra.mxu0 %v454
      %2066 = vmatprep.subr.mxu0 0.0
      %2067 = vmatpush1.msra.mxu0 %v455
      %2068 = vmatprep.subr.mxu0 0.0
      %2069 = vmatpush1.msra.mxu0 %v456
      %2070 = vmatprep.subr.mxu0 0.0
      %2071 = vmatpush1.msra.mxu0 %v457
      %2072 = vmatprep.subr.mxu0 0.0
      %2073 = vmatpush1.msra.mxu0 %v458
      %2074 = vmatprep.subr.mxu0 0.0
      %2075 = vmatpush1.msra.mxu0 %v459
      %2076 = vmatprep.subr.mxu0 0.0
      %2077 = vmatpush1.msra.mxu0 %v460
      %2078 = vmatprep.subr.mxu0 0.0
      %2079 = vmatpush1.msra.mxu0 %v461
      %2080 = vmatprep.subr.mxu0 0.0
      %2081 = vmatpush1.msra.mxu0 %v462
      %2082 = vmatprep.subr.mxu0 0.0
      %2083 = vmatpush1.msra.mxu0 %v463
      %2084 = vmatprep.subr.mxu0 0.0
      %2085 = vmatpush1.msra.mxu0 %v464
      %2086 = vmatprep.subr.mxu0 0.0
      %2087 = vmatpush1.msra.mxu0 %v465
      %2088 = vmatprep.subr.mxu0 0.0
      %2089 = vmatpush1.msra.mxu0 %v466
      %2090 = vmatprep.subr.mxu0 0.0
      %2091 = vmatpush1.msra.mxu0 %v467
      %2092 = vmatprep.subr.mxu0 0.0
      %2093 = vmatpush1.msra.mxu0 %v468
      %2094 = vmatprep.subr.mxu0 0.0
      %2095 = vmatpush1.msra.mxu0 %v469
      %2096 = vmatprep.subr.mxu0 0.0
      %2097 = vmatpush1.msra.mxu0 %v470
      %2098 = vmatprep.subr.mxu0 0.0
      %2099 = vmatpush1.msra.mxu0 %v471
      %2100 = vmatprep.subr.mxu0 0.0
      %2101 = vmatpush1.msra.mxu0 %v472
      %2102 = vmatprep.subr.mxu0 0.0
      %2103 = vmatpush1.msra.mxu0 %v473
      %2104 = vmatprep.subr.mxu0 0.0
      %2105 = vmatpush1.msra.mxu0 %v474
      %2106 = vmatprep.subr.mxu0 0.0
      %2107 = vmatpush1.msra.mxu0 %v475
      %2108 = vmatprep.subr.mxu0 0.0
      %2109 = vmatpush1.msra.mxu0 %v476
      %2110 = vmatprep.subr.mxu0 0.0
      %2111 = vmatpush1.msra.mxu0 %v477
      %2112 = vmatprep.subr.mxu0 0.0
      %2113 = vmatpush1.msra.mxu0 %v478
      %2114 = vmatprep.subr.mxu0 0.0
      %2115 = vmatpush1.msra.mxu0 %v479
      %2116 = vmatprep.mubr.f32.mxu0 %v1362
      %2117 = vmatmul.mubr.f32.gmra.mrb[0].mxu0 %v1354
      %v2118 = vpop.f32.mrb[0].mxu0
      %v2119 = vadd.f32 %v2049, %v2118
      %v2120 = vpop.f32.mrb[0].mxu0
      %2121 = vdwg.mxu0
      %2122 = vmatprep.subr.mxu0 0.0
      %2123 = vmatpush1.msra.mxu0 %v480
      %2124 = vmatprep.subr.mxu0 0.0
      %2125 = vmatpush1.msra.mxu0 %v481
      %2126 = vmatprep.subr.mxu0 0.0
      %2127 = vmatpush1.msra.mxu0 %v482
      %2128 = vmatprep.subr.mxu0 0.0
      %2129 = vmatpush1.msra.mxu0 %v483
      %2130 = vmatprep.subr.mxu0 0.0
      %2131 = vmatpush1.msra.mxu0 %v484
      %2132 = vmatprep.subr.mxu0 0.0
      %2133 = vmatpush1.msra.mxu0 %v485
      %2134 = vmatprep.subr.mxu0 0.0
      %2135 = vmatpush1.msra.mxu0 %v486
      %2136 = vmatprep.subr.mxu0 0.0
      %2137 = vmatpush1.msra.mxu0 %v487
      %2138 = vmatprep.subr.mxu0 0.0
      %2139 = vmatpush1.msra.mxu0 %v488
      %2140 = vmatprep.subr.mxu0 0.0
      %2141 = vmatpush1.msra.mxu0 %v489
      %2142 = vmatprep.subr.mxu0 0.0
      %2143 = vmatpush1.msra.mxu0 %v490
      %2144 = vmatprep.subr.mxu0 0.0
      %2145 = vmatpush1.msra.mxu0 %v491
      %2146 = vmatprep.subr.mxu0 0.0
      %2147 = vmatpush1.msra.mxu0 %v492
      %2148 = vmatprep.subr.mxu0 0.0
      %2149 = vmatpush1.msra.mxu0 %v493
      %2150 = vmatprep.subr.mxu0 0.0
      %2151 = vmatpush1.msra.mxu0 %v494
      %2152 = vmatprep.subr.mxu0 0.0
      %2153 = vmatpush1.msra.mxu0 %v495
      %2154 = vmatprep.subr.mxu0 0.0
      %2155 = vmatpush1.msra.mxu0 %v496
      %2156 = vmatprep.subr.mxu0 0.0
      %2157 = vmatpush1.msra.mxu0 %v497
      %2158 = vmatprep.subr.mxu0 0.0
      %2159 = vmatpush1.msra.mxu0 %v498
      %2160 = vmatprep.subr.mxu0 0.0
      %2161 = vmatpush1.msra.mxu0 %v499
      %2162 = vmatprep.subr.mxu0 0.0
      %2163 = vmatpush1.msra.mxu0 %v500
      %2164 = vmatprep.subr.mxu0 0.0
      %2165 = vmatpush1.msra.mxu0 %v501
      %2166 = vmatprep.subr.mxu0 0.0
      %2167 = vmatpush1.msra.mxu0 %v502
      %2168 = vmatprep.subr.mxu0 0.0
      %2169 = vmatpush1.msra.mxu0 %v503
      %2170 = vmatprep.subr.mxu0 0.0
      %2171 = vmatpush1.msra.mxu0 %v504
      %2172 = vmatprep.subr.mxu0 0.0
      %2173 = vmatpush1.msra.mxu0 %v505
      %2174 = vmatprep.subr.mxu0 0.0
      %2175 = vmatpush1.msra.mxu0 %v506
      %2176 = vmatprep.subr.mxu0 0.0
      %2177 = vmatpush1.msra.mxu0 %v507
      %2178 = vmatprep.subr.mxu0 0.0
      %2179 = vmatpush1.msra.mxu0 %v508
      %2180 = vmatprep.subr.mxu0 0.0
      %2181 = vmatpush1.msra.mxu0 %v509
      %2182 = vmatprep.subr.mxu0 0.0
      %2183 = vmatpush1.msra.mxu0 %v510
      %2184 = vmatprep.subr.mxu0 0.0
      %2185 = vmatpush1.msra.mxu0 %v511
      %2186 = vmatprep.mubr.f32.mxu0 %v1363
      %2187 = vmatmul.mubr.f32.gmra.mrb[0].mxu0 %v1361
      %v2188 = vpop.f32.mrb[0].mxu0
      %v2189 = vadd.f32 %v2119, %v2188
      %v2190 = vpop.f32.mrb[0].mxu0
      %2191 = vdwg.mxu0
      %2192 = vmatprep.subr.mxu0 0.0
      %2193 = vmatpush1.msra.mxu0 %v512
      %2194 = vmatprep.subr.mxu0 0.0
      %2195 = vmatpush1.msra.mxu0 %v513
      %2196 = vmatprep.subr.mxu0 0.0
      %2197 = vmatpush1.msra.mxu0 %v514
      %2198 = vmatprep.subr.mxu0 0.0
      %2199 = vmatpush1.msra.mxu0 %v515
      %2200 = vmatprep.subr.mxu0 0.0
      %2201 = vmatpush1.msra.mxu0 %v516
      %2202 = vmatprep.subr.mxu0 0.0
      %2203 = vmatpush1.msra.mxu0 %v517
      %2204 = vmatprep.subr.mxu0 0.0
      %2205 = vmatpush1.msra.mxu0 %v518
      %2206 = vmatprep.subr.mxu0 0.0
      %2207 = vmatpush1.msra.mxu0 %v519
      %2208 = vmatprep.subr.mxu0 0.0
      %2209 = vmatpush1.msra.mxu0 %v520
      %2210 = vmatprep.subr.mxu0 0.0
      %2211 = vmatpush1.msra.mxu0 %v521
      %2212 = vmatprep.subr.mxu0 0.0
      %2213 = vmatpush1.msra.mxu0 %v522
      %2214 = vmatprep.subr.mxu0 0.0
      %2215 = vmatpush1.msra.mxu0 %v523
      %2216 = vmatprep.subr.mxu0 0.0
      %2217 = vmatpush1.msra.mxu0 %v524
      %2218 = vmatprep.subr.mxu0 0.0
      %2219 = vmatpush1.msra.mxu0 %v525
      %2220 = vmatprep.subr.mxu0 0.0
      %2221 = vmatpush1.msra.mxu0 %v526
      %2222 = vmatprep.subr.mxu0 0.0
      %2223 = vmatpush1.msra.mxu0 %v527
      %2224 = vmatprep.subr.mxu0 0.0
      %2225 = vmatpush1.msra.mxu0 %v528
      %2226 = vmatprep.subr.mxu0 0.0
      %2227 = vmatpush1.msra.mxu0 %v529
      %2228 = vmatprep.subr.mxu0 0.0
      %2229 = vmatpush1.msra.mxu0 %v530
      %2230 = vmatprep.subr.mxu0 0.0
      %2231 = vmatpush1.msra.mxu0 %v531
      %2232 = vmatprep.subr.mxu0 0.0
      %2233 = vmatpush1.msra.mxu0 %v532
      %2234 = vmatprep.subr.mxu0 0.0
      %2235 = vmatpush1.msra.mxu0 %v533
      %2236 = vmatprep.subr.mxu0 0.0
      %2237 = vmatpush1.msra.mxu0 %v534
      %2238 = vmatprep.subr.mxu0 0.0
      %2239 = vmatpush1.msra.mxu0 %v535
      %2240 = vmatprep.subr.mxu0 0.0
      %2241 = vmatpush1.msra.mxu0 %v536
      %2242 = vmatprep.subr.mxu0 0.0
      %2243 = vmatpush1.msra.mxu0 %v537
      %2244 = vmatprep.subr.mxu0 0.0
      %2245 = vmatpush1.msra.mxu0 %v538
      %2246 = vmatprep.subr.mxu0 0.0
      %2247 = vmatpush1.msra.mxu0 %v539
      %2248 = vmatprep.subr.mxu0 0.0
      %2249 = vmatpush1.msra.mxu0 %v540
      %2250 = vmatprep.subr.mxu0 0.0
      %2251 = vmatpush1.msra.mxu0 %v541
      %2252 = vmatprep.subr.mxu0 0.0
      %2253 = vmatpush1.msra.mxu0 %v542
      %2254 = vmatprep.subr.mxu0 0.0
      %2255 = vmatpush1.msra.mxu0 %v543
      %2256 = vmatprep.mubr.f32.mxu0 %v1379
      %2257 = vmatmul.mubr.f32.gmra.mrb[0].mxu0 %v1371
      %v2258 = vpop.f32.mrb[0].mxu0
      %v2259 = vadd.f32 %v2189, %v2258
      %v2260 = vpop.f32.mrb[0].mxu0
      %2261 = vdwg.mxu0
      %2262 = vmatprep.subr.mxu0 0.0
      %2263 = vmatpush1.msra.mxu0 %v544
      %2264 = vmatprep.subr.mxu0 0.0
      %2265 = vmatpush1.msra.mxu0 %v545
      %2266 = vmatprep.subr.mxu0 0.0
      %2267 = vmatpush1.msra.mxu0 %v546
      %2268 = vmatprep.subr.mxu0 0.0
      %2269 = vmatpush1.msra.mxu0 %v547
      %2270 = vmatprep.subr.mxu0 0.0
      %2271 = vmatpush1.msra.mxu0 %v548
      %2272 = vmatprep.subr.mxu0 0.0
      %2273 = vmatpush1.msra.mxu0 %v549
      %2274 = vmatprep.subr.mxu0 0.0
      %2275 = vmatpush1.msra.mxu0 %v550
      %2276 = vmatprep.subr.mxu0 0.0
      %2277 = vmatpush1.msra.mxu0 %v551
      %2278 = vmatprep.subr.mxu0 0.0
      %2279 = vmatpush1.msra.mxu0 %v552
      %2280 = vmatprep.subr.mxu0 0.0
      %2281 = vmatpush1.msra.mxu0 %v553
      %2282 = vmatprep.subr.mxu0 0.0
      %2283 = vmatpush1.msra.mxu0 %v554
      %2284 = vmatprep.subr.mxu0 0.0
      %2285 = vmatpush1.msra.mxu0 %v555
      %2286 = vmatprep.subr.mxu0 0.0
      %2287 = vmatpush1.msra.mxu0 %v556
      %2288 = vmatprep.subr.mxu0 0.0
      %2289 = vmatpush1.msra.mxu0 %v557
      %2290 = vmatprep.subr.mxu0 0.0
      %2291 = vmatpush1.msra.mxu0 %v558
      %2292 = vmatprep.subr.mxu0 0.0
      %2293 = vmatpush1.msra.mxu0 %v559
      %2294 = vmatprep.subr.mxu0 0.0
      %2295 = vmatpush1.msra.mxu0 %v560
      %2296 = vmatprep.subr.mxu0 0.0
      %2297 = vmatpush1.msra.mxu0 %v561
      %2298 = vmatprep.subr.mxu0 0.0
      %2299 = vmatpush1.msra.mxu0 %v562
      %2300 = vmatprep.subr.mxu0 0.0
      %2301 = vmatpush1.msra.mxu0 %v563
      %2302 = vmatprep.subr.mxu0 0.0
      %2303 = vmatpush1.msra.mxu0 %v564
      %2304 = vmatprep.subr.mxu0 0.0
      %2305 = vmatpush1.msra.mxu0 %v565
      %2306 = vmatprep.subr.mxu0 0.0
      %2307 = vmatpush1.msra.mxu0 %v566
      %2308 = vmatprep.subr.mxu0 0.0
      %2309 = vmatpush1.msra.mxu0 %v567
      %2310 = vmatprep.subr.mxu0 0.0
      %2311 = vmatpush1.msra.mxu0 %v568
      %2312 = vmatprep.subr.mxu0 0.0
      %2313 = vmatpush1.msra.mxu0 %v569
      %2314 = vmatprep.subr.mxu0 0.0
      %2315 = vmatpush1.msra.mxu0 %v570
      %2316 = vmatprep.subr.mxu0 0.0
      %2317 = vmatpush1.msra.mxu0 %v571
      %2318 = vmatprep.subr.mxu0 0.0
      %2319 = vmatpush1.msra.mxu0 %v572
      %2320 = vmatprep.subr.mxu0 0.0
      %2321 = vmatpush1.msra.mxu0 %v573
      %2322 = vmatprep.subr.mxu0 0.0
      %2323 = vmatpush1.msra.mxu0 %v574
      %2324 = vmatprep.subr.mxu0 0.0
      %2325 = vmatpush1.msra.mxu0 %v575
      %2326 = vmatprep.mubr.f32.mxu0 %v1380
      %2327 = vmatmul.mubr.f32.gmra.mrb[0].mxu0 %v1378
      %v2328 = vpop.f32.mrb[0].mxu0
      %v2329 = vadd.f32 %v2259, %v2328
      %v2330 = vpop.f32.mrb[0].mxu0
      %2331 = vdwg.mxu0
      %2332 = vmatprep.subr.mxu0 0.0
      %2333 = vmatpush1.msra.mxu0 %v576
      %2334 = vmatprep.subr.mxu0 0.0
      %2335 = vmatpush1.msra.mxu0 %v577
      %2336 = vmatprep.subr.mxu0 0.0
      %2337 = vmatpush1.msra.mxu0 %v578
      %2338 = vmatprep.subr.mxu0 0.0
      %2339 = vmatpush1.msra.mxu0 %v579
      %2340 = vmatprep.subr.mxu0 0.0
      %2341 = vmatpush1.msra.mxu0 %v580
      %2342 = vmatprep.subr.mxu0 0.0
      %2343 = vmatpush1.msra.mxu0 %v581
      %2344 = vmatprep.subr.mxu0 0.0
      %2345 = vmatpush1.msra.mxu0 %v582
      %2346 = vmatprep.subr.mxu0 0.0
      %2347 = vmatpush1.msra.mxu0 %v583
      %2348 = vmatprep.subr.mxu0 0.0
      %2349 = vmatpush1.msra.mxu0 %v584
      %2350 = vmatprep.subr.mxu0 0.0
      %2351 = vmatpush1.msra.mxu0 %v585
      %2352 = vmatprep.subr.mxu0 0.0
      %2353 = vmatpush1.msra.mxu0 %v586
      %2354 = vmatprep.subr.mxu0 0.0
      %2355 = vmatpush1.msra.mxu0 %v587
      %2356 = vmatprep.subr.mxu0 0.0
      %2357 = vmatpush1.msra.mxu0 %v588
      %2358 = vmatprep.subr.mxu0 0.0
      %2359 = vmatpush1.msra.mxu0 %v589
      %2360 = vmatprep.subr.mxu0 0.0
      %2361 = vmatpush1.msra.mxu0 %v590
      %2362 = vmatprep.subr.mxu0 0.0
      %2363 = vmatpush1.msra.mxu0 %v591
      %2364 = vmatprep.subr.mxu0 0.0
      %2365 = vmatpush1.msra.mxu0 %v592
      %2366 = vmatprep.subr.mxu0 0.0
      %2367 = vmatpush1.msra.mxu0 %v593
      %2368 = vmatprep.subr.mxu0 0.0
      %2369 = vmatpush1.msra.mxu0 %v594
      %2370 = vmatprep.subr.mxu0 0.0
      %2371 = vmatpush1.msra.mxu0 %v595
      %2372 = vmatprep.subr.mxu0 0.0
      %2373 = vmatpush1.msra.mxu0 %v596
      %2374 = vmatprep.subr.mxu0 0.0
      %2375 = vmatpush1.msra.mxu0 %v597
      %2376 = vmatprep.subr.mxu0 0.0
      %2377 = vmatpush1.msra.mxu0 %v598
      %2378 = vmatprep.subr.mxu0 0.0
      %2379 = vmatpush1.msra.mxu0 %v599
      %2380 = vmatprep.subr.mxu0 0.0
      %2381 = vmatpush1.msra.mxu0 %v600
      %2382 = vmatprep.subr.mxu0 0.0
      %2383 = vmatpush1.msra.mxu0 %v601
      %2384 = vmatprep.subr.mxu0 0.0
      %2385 = vmatpush1.msra.mxu0 %v602
      %2386 = vmatprep.subr.mxu0 0.0
      %2387 = vmatpush1.msra.mxu0 %v603
      %2388 = vmatprep.subr.mxu0 0.0
      %2389 = vmatpush1.msra.mxu0 %v604
      %2390 = vmatprep.subr.mxu0 0.0
      %2391 = vmatpush1.msra.mxu0 %v605
      %2392 = vmatprep.subr.mxu0 0.0
      %2393 = vmatpush1.msra.mxu0 %v606
      %2394 = vmatprep.subr.mxu0 0.0
      %2395 = vmatpush1.msra.mxu0 %v607
      %2396 = vmatprep.mubr.f32.mxu0 %v1396
      %2397 = vmatmul.mubr.f32.gmra.mrb[0].mxu0 %v1388
      %v2398 = vpop.f32.mrb[0].mxu0
      %v2399 = vadd.f32 %v2329, %v2398
      %v2400 = vpop.f32.mrb[0].mxu0
      %2401 = vdwg.mxu0
      %2402 = vmatprep.subr.mxu0 0.0
      %2403 = vmatpush1.msra.mxu0 %v608
      %2404 = vmatprep.subr.mxu0 0.0
      %2405 = vmatpush1.msra.mxu0 %v609
      %2406 = vmatprep.subr.mxu0 0.0
      %2407 = vmatpush1.msra.mxu0 %v610
      %2408 = vmatprep.subr.mxu0 0.0
      %2409 = vmatpush1.msra.mxu0 %v611
      %2410 = vmatprep.subr.mxu0 0.0
      %2411 = vmatpush1.msra.mxu0 %v612
      %2412 = vmatprep.subr.mxu0 0.0
      %2413 = vmatpush1.msra.mxu0 %v613
      %2414 = vmatprep.subr.mxu0 0.0
      %2415 = vmatpush1.msra.mxu0 %v614
      %2416 = vmatprep.subr.mxu0 0.0
      %2417 = vmatpush1.msra.mxu0 %v615
      %2418 = vmatprep.subr.mxu0 0.0
      %2419 = vmatpush1.msra.mxu0 %v616
      %2420 = vmatprep.subr.mxu0 0.0
      %2421 = vmatpush1.msra.mxu0 %v617
      %2422 = vmatprep.subr.mxu0 0.0
      %2423 = vmatpush1.msra.mxu0 %v618
      %2424 = vmatprep.subr.mxu0 0.0
      %2425 = vmatpush1.msra.mxu0 %v619
      %2426 = vmatprep.subr.mxu0 0.0
      %2427 = vmatpush1.msra.mxu0 %v620
      %2428 = vmatprep.subr.mxu0 0.0
      %2429 = vmatpush1.msra.mxu0 %v621
      %2430 = vmatprep.subr.mxu0 0.0
      %2431 = vmatpush1.msra.mxu0 %v622
      %2432 = vmatprep.subr.mxu0 0.0
      %2433 = vmatpush1.msra.mxu0 %v623
      %2434 = vmatprep.subr.mxu0 0.0
      %2435 = vmatpush1.msra.mxu0 %v624
      %2436 = vmatprep.subr.mxu0 0.0
      %2437 = vmatpush1.msra.mxu0 %v625
      %2438 = vmatprep.subr.mxu0 0.0
      %2439 = vmatpush1.msra.mxu0 %v626
      %2440 = vmatprep.subr.mxu0 0.0
      %2441 = vmatpush1.msra.mxu0 %v627
      %2442 = vmatprep.subr.mxu0 0.0
      %2443 = vmatpush1.msra.mxu0 %v628
      %2444 = vmatprep.subr.mxu0 0.0
      %2445 = vmatpush1.msra.mxu0 %v629
      %2446 = vmatprep.subr.mxu0 0.0
      %2447 = vmatpush1.msra.mxu0 %v630
      %2448 = vmatprep.subr.mxu0 0.0
      %2449 = vmatpush1.msra.mxu0 %v631
      %2450 = vmatprep.subr.mxu0 0.0
      %2451 = vmatpush1.msra.mxu0 %v632
      %2452 = vmatprep.subr.mxu0 0.0
      %2453 = vmatpush1.msra.mxu0 %v633
      %2454 = vmatprep.subr.mxu0 0.0
      %2455 = vmatpush1.msra.mxu0 %v634
      %2456 = vmatprep.subr.mxu0 0.0
      %2457 = vmatpush1.msra.mxu0 %v635
      %2458 = vmatprep.subr.mxu0 0.0
      %2459 = vmatpush1.msra.mxu0 %v636
      %2460 = vmatprep.subr.mxu0 0.0
      %2461 = vmatpush1.msra.mxu0 %v637
      %2462 = vmatprep.subr.mxu0 0.0
      %2463 = vmatpush1.msra.mxu0 %v638
      %2464 = vmatprep.subr.mxu0 0.0
      %2465 = vmatpush1.msra.mxu0 %v639
      %2466 = vmatprep.mubr.f32.mxu0 %v1397
      %2467 = vmatmul.mubr.f32.gmra.mrb[0].mxu0 %v1395
      %v2468 = vpop.f32.mrb[0].mxu0
      %v2469 = vadd.f32 %v2399, %v2468
      %v2470 = vpop.f32.mrb[0].mxu0
      %2471 = vdwg.mxu0
      %2472 = vmatprep.subr.mxu0 0.0
      %2473 = vmatpush1.msra.mxu0 %v640
      %2474 = vmatprep.subr.mxu0 0.0
      %2475 = vmatpush1.msra.mxu0 %v641
      %2476 = vmatprep.subr.mxu0 0.0
      %2477 = vmatpush1.msra.mxu0 %v642
      %2478 = vmatprep.subr.mxu0 0.0
      %2479 = vmatpush1.msra.mxu0 %v643
      %2480 = vmatprep.subr.mxu0 0.0
      %2481 = vmatpush1.msra.mxu0 %v644
      %2482 = vmatprep.subr.mxu0 0.0
      %2483 = vmatpush1.msra.mxu0 %v645
      %2484 = vmatprep.subr.mxu0 0.0
      %2485 = vmatpush1.msra.mxu0 %v646
      %2486 = vmatprep.subr.mxu0 0.0
      %2487 = vmatpush1.msra.mxu0 %v647
      %2488 = vmatprep.subr.mxu0 0.0
      %2489 = vmatpush1.msra.mxu0 %v648
      %2490 = vmatprep.subr.mxu0 0.0
      %2491 = vmatpush1.msra.mxu0 %v649
      %2492 = vmatprep.subr.mxu0 0.0
      %2493 = vmatpush1.msra.mxu0 %v650
      %2494 = vmatprep.subr.mxu0 0.0
      %2495 = vmatpush1.msra.mxu0 %v651
      %2496 = vmatprep.subr.mxu0 0.0
      %2497 = vmatpush1.msra.mxu0 %v652
      %2498 = vmatprep.subr.mxu0 0.0
      %2499 = vmatpush1.msra.mxu0 %v653
      %2500 = vmatprep.subr.mxu0 0.0
      %2501 = vmatpush1.msra.mxu0 %v654
      %2502 = vmatprep.subr.mxu0 0.0
      %2503 = vmatpush1.msra.mxu0 %v655
      %2504 = vmatprep.subr.mxu0 0.0
      %2505 = vmatpush1.msra.mxu0 %v656
      %2506 = vmatprep.subr.mxu0 0.0
      %2507 = vmatpush1.msra.mxu0 %v657
      %2508 = vmatprep.subr.mxu0 0.0
      %2509 = vmatpush1.msra.mxu0 %v658
      %2510 = vmatprep.subr.mxu0 0.0
      %2511 = vmatpush1.msra.mxu0 %v659
      %2512 = vmatprep.subr.mxu0 0.0
      %2513 = vmatpush1.msra.mxu0 %v660
      %2514 = vmatprep.subr.mxu0 0.0
      %2515 = vmatpush1.msra.mxu0 %v661
      %2516 = vmatprep.subr.mxu0 0.0
      %2517 = vmatpush1.msra.mxu0 %v662
      %2518 = vmatprep.subr.mxu0 0.0
      %2519 = vmatpush1.msra.mxu0 %v663
      %2520 = vmatprep.subr.mxu0 0.0
      %2521 = vmatpush1.msra.mxu0 %v664
      %2522 = vmatprep.subr.mxu0 0.0
      %2523 = vmatpush1.msra.mxu0 %v665
      %2524 = vmatprep.subr.mxu0 0.0
      %2525 = vmatpush1.msra.mxu0 %v666
      %2526 = vmatprep.subr.mxu0 0.0
      %2527 = vmatpush1.msra.mxu0 %v667
      %2528 = vmatprep.subr.mxu0 0.0
      %2529 = vmatpush1.msra.mxu0 %v668
      %2530 = vmatprep.subr.mxu0 0.0
      %2531 = vmatpush1.msra.mxu0 %v669
      %2532 = vmatprep.subr.mxu0 0.0
      %2533 = vmatpush1.msra.mxu0 %v670
      %2534 = vmatprep.subr.mxu0 0.0
      %2535 = vmatpush1.msra.mxu0 %v671
      %2536 = vmatprep.mubr.f32.mxu0 %v1413
      %2537 = vmatmul.mubr.f32.gmra.mrb[0].mxu0 %v1405
      %v2538 = vpop.f32.mrb[0].mxu0
      %v2539 = vadd.f32 %v2469, %v2538
      %v2540 = vpop.f32.mrb[0].mxu0
      %2541 = vdwg.mxu0
      %2542 = vmatprep.subr.mxu0 0.0
      %2543 = vmatpush1.msra.mxu0 %v672
      %2544 = vmatprep.subr.mxu0 0.0
      %2545 = vmatpush1.msra.mxu0 %v673
      %2546 = vmatprep.subr.mxu0 0.0
      %2547 = vmatpush1.msra.mxu0 %v674
      %2548 = vmatprep.subr.mxu0 0.0
      %2549 = vmatpush1.msra.mxu0 %v675
      %2550 = vmatprep.subr.mxu0 0.0
      %2551 = vmatpush1.msra.mxu0 %v676
      %2552 = vmatprep.subr.mxu0 0.0
      %2553 = vmatpush1.msra.mxu0 %v677
      %2554 = vmatprep.subr.mxu0 0.0
      %2555 = vmatpush1.msra.mxu0 %v678
      %2556 = vmatprep.subr.mxu0 0.0
      %2557 = vmatpush1.msra.mxu0 %v679
      %2558 = vmatprep.subr.mxu0 0.0
      %2559 = vmatpush1.msra.mxu0 %v680
      %2560 = vmatprep.subr.mxu0 0.0
      %2561 = vmatpush1.msra.mxu0 %v681
      %2562 = vmatprep.subr.mxu0 0.0
      %2563 = vmatpush1.msra.mxu0 %v682
      %2564 = vmatprep.subr.mxu0 0.0
      %2565 = vmatpush1.msra.mxu0 %v683
      %2566 = vmatprep.subr.mxu0 0.0
      %2567 = vmatpush1.msra.mxu0 %v684
      %2568 = vmatprep.subr.mxu0 0.0
      %2569 = vmatpush1.msra.mxu0 %v685
      %2570 = vmatprep.subr.mxu0 0.0
      %2571 = vmatpush1.msra.mxu0 %v686
      %2572 = vmatprep.subr.mxu0 0.0
      %2573 = vmatpush1.msra.mxu0 %v687
      %2574 = vmatprep.subr.mxu0 0.0
      %2575 = vmatpush1.msra.mxu0 %v688
      %2576 = vmatprep.subr.mxu0 0.0
      %2577 = vmatpush1.msra.mxu0 %v689
      %2578 = vmatprep.subr.mxu0 0.0
      %2579 = vmatpush1.msra.mxu0 %v690
      %2580 = vmatprep.subr.mxu0 0.0
      %2581 = vmatpush1.msra.mxu0 %v691
      %2582 = vmatprep.subr.mxu0 0.0
      %2583 = vmatpush1.msra.mxu0 %v692
      %2584 = vmatprep.subr.mxu0 0.0
      %2585 = vmatpush1.msra.mxu0 %v693
      %2586 = vmatprep.subr.mxu0 0.0
      %2587 = vmatpush1.msra.mxu0 %v694
      %2588 = vmatprep.subr.mxu0 0.0
      %2589 = vmatpush1.msra.mxu0 %v695
      %2590 = vmatprep.subr.mxu0 0.0
      %2591 = vmatpush1.msra.mxu0 %v696
      %2592 = vmatprep.subr.mxu0 0.0
      %2593 = vmatpush1.msra.mxu0 %v697
      %2594 = vmatprep.subr.mxu0 0.0
      %2595 = vmatpush1.msra.mxu0 %v698
      %2596 = vmatprep.subr.mxu0 0.0
      %2597 = vmatpush1.msra.mxu0 %v699
      %2598 = vmatprep.subr.mxu0 0.0
      %2599 = vmatpush1.msra.mxu0 %v700
      %2600 = vmatprep.subr.mxu0 0.0
      %2601 = vmatpush1.msra.mxu0 %v701
      %2602 = vmatprep.subr.mxu0 0.0
      %2603 = vmatpush1.msra.mxu0 %v702
      %2604 = vmatprep.subr.mxu0 0.0
      %2605 = vmatpush1.msra.mxu0 %v703
      %2606 = vmatprep.mubr.f32.mxu0 %v1414
      %2607 = vmatmul.mubr.f32.gmra.mrb[0].mxu0 %v1412
      %v2608 = vpop.f32.mrb[0].mxu0
      %v2609 = vadd.f32 %v2539, %v2608
      %v2610 = vpop.f32.mrb[0].mxu0
      %2611 = vdwg.mxu0
      %2612 = vmatprep.subr.mxu0 0.0
      %2613 = vmatpush1.msra.mxu0 %v704
      %2614 = vmatprep.subr.mxu0 0.0
      %2615 = vmatpush1.msra.mxu0 %v705
      %2616 = vmatprep.subr.mxu0 0.0
      %2617 = vmatpush1.msra.mxu0 %v706
      %2618 = vmatprep.subr.mxu0 0.0
      %2619 = vmatpush1.msra.mxu0 %v707
      %2620 = vmatprep.subr.mxu0 0.0
      %2621 = vmatpush1.msra.mxu0 %v708
      %2622 = vmatprep.subr.mxu0 0.0
      %2623 = vmatpush1.msra.mxu0 %v709
      %2624 = vmatprep.subr.mxu0 0.0
      %2625 = vmatpush1.msra.mxu0 %v710
      %2626 = vmatprep.subr.mxu0 0.0
      %2627 = vmatpush1.msra.mxu0 %v711
      %2628 = vmatprep.subr.mxu0 0.0
      %2629 = vmatpush1.msra.mxu0 %v712
      %2630 = vmatprep.subr.mxu0 0.0
      %2631 = vmatpush1.msra.mxu0 %v713
      %2632 = vmatprep.subr.mxu0 0.0
      %2633 = vmatpush1.msra.mxu0 %v714
      %2634 = vmatprep.subr.mxu0 0.0
      %2635 = vmatpush1.msra.mxu0 %v715
      %2636 = vmatprep.subr.mxu0 0.0
      %2637 = vmatpush1.msra.mxu0 %v716
      %2638 = vmatprep.subr.mxu0 0.0
      %2639 = vmatpush1.msra.mxu0 %v717
      %2640 = vmatprep.subr.mxu0 0.0
      %2641 = vmatpush1.msra.mxu0 %v718
      %2642 = vmatprep.subr.mxu0 0.0
      %2643 = vmatpush1.msra.mxu0 %v719
      %2644 = vmatprep.subr.mxu0 0.0
      %2645 = vmatpush1.msra.mxu0 %v720
      %2646 = vmatprep.subr.mxu0 0.0
      %2647 = vmatpush1.msra.mxu0 %v721
      %2648 = vmatprep.subr.mxu0 0.0
      %2649 = vmatpush1.msra.mxu0 %v722
      %2650 = vmatprep.subr.mxu0 0.0
      %2651 = vmatpush1.msra.mxu0 %v723
      %2652 = vmatprep.subr.mxu0 0.0
      %2653 = vmatpush1.msra.mxu0 %v724
      %2654 = vmatprep.subr.mxu0 0.0
      %2655 = vmatpush1.msra.mxu0 %v725
      %2656 = vmatprep.subr.mxu0 0.0
      %2657 = vmatpush1.msra.mxu0 %v726
      %2658 = vmatprep.subr.mxu0 0.0
      %2659 = vmatpush1.msra.mxu0 %v727
      %2660 = vmatprep.subr.mxu0 0.0
      %2661 = vmatpush1.msra.mxu0 %v728
      %2662 = vmatprep.subr.mxu0 0.0
      %2663 = vmatpush1.msra.mxu0 %v729
      %2664 = vmatprep.subr.mxu0 0.0
      %2665 = vmatpush1.msra.mxu0 %v730
      %2666 = vmatprep.subr.mxu0 0.0
      %2667 = vmatpush1.msra.mxu0 %v731
      %2668 = vmatprep.subr.mxu0 0.0
      %2669 = vmatpush1.msra.mxu0 %v732
      %2670 = vmatprep.subr.mxu0 0.0
      %2671 = vmatpush1.msra.mxu0 %v733
      %2672 = vmatprep.subr.mxu0 0.0
      %2673 = vmatpush1.msra.mxu0 %v734
      %2674 = vmatprep.subr.mxu0 0.0
      %2675 = vmatpush1.msra.mxu0 %v735
      %2676 = vmatprep.mubr.f32.mxu0 %v1430
      %2677 = vmatmul.mubr.f32.gmra.mrb[0].mxu0 %v1422
      %v2678 = vpop.f32.mrb[0].mxu0
      %v2679 = vadd.f32 %v2609, %v2678
      %v2680 = vpop.f32.mrb[0].mxu0
      %2681 = vdwg.mxu0
      %2682 = vmatprep.subr.mxu0 0.0
      %2683 = vmatpush1.msra.mxu0 %v736
      %2684 = vmatprep.subr.mxu0 0.0
      %2685 = vmatpush1.msra.mxu0 %v737
      %2686 = vmatprep.subr.mxu0 0.0
      %2687 = vmatpush1.msra.mxu0 %v738
      %2688 = vmatprep.subr.mxu0 0.0
      %2689 = vmatpush1.msra.mxu0 %v739
      %2690 = vmatprep.subr.mxu0 0.0
      %2691 = vmatpush1.msra.mxu0 %v740
      %2692 = vmatprep.subr.mxu0 0.0
      %2693 = vmatpush1.msra.mxu0 %v741
      %2694 = vmatprep.subr.mxu0 0.0
      %2695 = vmatpush1.msra.mxu0 %v742
      %2696 = vmatprep.subr.mxu0 0.0
      %2697 = vmatpush1.msra.mxu0 %v743
      %2698 = vmatprep.subr.mxu0 0.0
      %2699 = vmatpush1.msra.mxu0 %v744
      %2700 = vmatprep.subr.mxu0 0.0
      %2701 = vmatpush1.msra.mxu0 %v745
      %2702 = vmatprep.subr.mxu0 0.0
      %2703 = vmatpush1.msra.mxu0 %v746
      %2704 = vmatprep.subr.mxu0 0.0
      %2705 = vmatpush1.msra.mxu0 %v747
      %2706 = vmatprep.subr.mxu0 0.0
      %2707 = vmatpush1.msra.mxu0 %v748
      %2708 = vmatprep.subr.mxu0 0.0
      %2709 = vmatpush1.msra.mxu0 %v749
      %2710 = vmatprep.subr.mxu0 0.0
      %2711 = vmatpush1.msra.mxu0 %v750
      %2712 = vmatprep.subr.mxu0 0.0
      %2713 = vmatpush1.msra.mxu0 %v751
      %2714 = vmatprep.subr.mxu0 0.0
      %2715 = vmatpush1.msra.mxu0 %v752
      %2716 = vmatprep.subr.mxu0 0.0
      %2717 = vmatpush1.msra.mxu0 %v753
      %2718 = vmatprep.subr.mxu0 0.0
      %2719 = vmatpush1.msra.mxu0 %v754
      %2720 = vmatprep.subr.mxu0 0.0
      %2721 = vmatpush1.msra.mxu0 %v755
      %2722 = vmatprep.subr.mxu0 0.0
      %2723 = vmatpush1.msra.mxu0 %v756
      %2724 = vmatprep.subr.mxu0 0.0
      %2725 = vmatpush1.msra.mxu0 %v757
      %2726 = vmatprep.subr.mxu0 0.0
      %2727 = vmatpush1.msra.mxu0 %v758
      %2728 = vmatprep.subr.mxu0 0.0
      %2729 = vmatpush1.msra.mxu0 %v759
      %2730 = vmatprep.subr.mxu0 0.0
      %2731 = vmatpush1.msra.mxu0 %v760
      %2732 = vmatprep.subr.mxu0 0.0
      %2733 = vmatpush1.msra.mxu0 %v761
      %2734 = vmatprep.subr.mxu0 0.0
      %2735 = vmatpush1.msra.mxu0 %v762
      %2736 = vmatprep.subr.mxu0 0.0
      %2737 = vmatpush1.msra.mxu0 %v763
      %2738 = vmatprep.subr.mxu0 0.0
      %2739 = vmatpush1.msra.mxu0 %v764
      %2740 = vmatprep.subr.mxu0 0.0
      %2741 = vmatpush1.msra.mxu0 %v765
      %2742 = vmatprep.subr.mxu0 0.0
      %2743 = vmatpush1.msra.mxu0 %v766
      %2744 = vmatprep.subr.mxu0 0.0
      %2745 = vmatpush1.msra.mxu0 %v767
      %2746 = vmatprep.mubr.f32.mxu0 %v1431
      %2747 = vmatmul.mubr.f32.gmra.mrb[0].mxu0 %v1429
      %v2748 = vpop.f32.mrb[0].mxu0
      %v2749 = vadd.f32 %v2679, %v2748
      %v2750 = vpop.f32.mrb[0].mxu0
      %2751 = vdwg.mxu0
      %2752 = vmatprep.subr.mxu0 0.0
      %2753 = vmatpush1.msra.mxu0 %v768
      %2754 = vmatprep.subr.mxu0 0.0
      %2755 = vmatpush1.msra.mxu0 %v769
      %2756 = vmatprep.subr.mxu0 0.0
      %2757 = vmatpush1.msra.mxu0 %v770
      %2758 = vmatprep.subr.mxu0 0.0
      %2759 = vmatpush1.msra.mxu0 %v771
      %2760 = vmatprep.subr.mxu0 0.0
      %2761 = vmatpush1.msra.mxu0 %v772
      %2762 = vmatprep.subr.mxu0 0.0
      %2763 = vmatpush1.msra.mxu0 %v773
      %2764 = vmatprep.subr.mxu0 0.0
      %2765 = vmatpush1.msra.mxu0 %v774
      %2766 = vmatprep.subr.mxu0 0.0
      %2767 = vmatpush1.msra.mxu0 %v775
      %2768 = vmatprep.subr.mxu0 0.0
      %2769 = vmatpush1.msra.mxu0 %v776
      %2770 = vmatprep.subr.mxu0 0.0
      %2771 = vmatpush1.msra.mxu0 %v777
      %2772 = vmatprep.subr.mxu0 0.0
      %2773 = vmatpush1.msra.mxu0 %v778
      %2774 = vmatprep.subr.mxu0 0.0
      %2775 = vmatpush1.msra.mxu0 %v779
      %2776 = vmatprep.subr.mxu0 0.0
      %2777 = vmatpush1.msra.mxu0 %v780
      %2778 = vmatprep.subr.mxu0 0.0
      %2779 = vmatpush1.msra.mxu0 %v781
      %2780 = vmatprep.subr.mxu0 0.0
      %2781 = vmatpush1.msra.mxu0 %v782
      %2782 = vmatprep.subr.mxu0 0.0
      %2783 = vmatpush1.msra.mxu0 %v783
      %2784 = vmatprep.subr.mxu0 0.0
      %2785 = vmatpush1.msra.mxu0 %v784
      %2786 = vmatprep.subr.mxu0 0.0
      %2787 = vmatpush1.msra.mxu0 %v785
      %2788 = vmatprep.subr.mxu0 0.0
      %2789 = vmatpush1.msra.mxu0 %v786
      %2790 = vmatprep.subr.mxu0 0.0
      %2791 = vmatpush1.msra.mxu0 %v787
      %2792 = vmatprep.subr.mxu0 0.0
      %2793 = vmatpush1.msra.mxu0 %v788
      %2794 = vmatprep.subr.mxu0 0.0
      %2795 = vmatpush1.msra.mxu0 %v789
      %2796 = vmatprep.subr.mxu0 0.0
      %2797 = vmatpush1.msra.mxu0 %v790
      %2798 = vmatprep.subr.mxu0 0.0
      %2799 = vmatpush1.msra.mxu0 %v791
      %2800 = vmatprep.subr.mxu0 0.0
      %2801 = vmatpush1.msra.mxu0 %v792
      %2802 = vmatprep.subr.mxu0 0.0
      %2803 = vmatpush1.msra.mxu0 %v793
      %2804 = vmatprep.subr.mxu0 0.0
      %2805 = vmatpush1.msra.mxu0 %v794
      %2806 = vmatprep.subr.mxu0 0.0
      %2807 = vmatpush1.msra.mxu0 %v795
      %2808 = vmatprep.subr.mxu0 0.0
      %2809 = vmatpush1.msra.mxu0 %v796
      %2810 = vmatprep.subr.mxu0 0.0
      %2811 = vmatpush1.msra.mxu0 %v797
      %2812 = vmatprep.subr.mxu0 0.0
      %2813 = vmatpush1.msra.mxu0 %v798
      %2814 = vmatprep.subr.mxu0 0.0
      %2815 = vmatpush1.msra.mxu0 %v799
      %2816 = vmatprep.mubr.f32.mxu0 %v1447
      %2817 = vmatmul.mubr.f32.gmra.mrb[0].mxu0 %v1439
      %v2818 = vpop.f32.mrb[0].mxu0
      %v2819 = vadd.f32 %v2749, %v2818
      %v2820 = vpop.f32.mrb[0].mxu0
      %2821 = vdwg.mxu0
      %2822 = vmatprep.subr.mxu0 0.0
      %2823 = vmatpush1.msra.mxu0 %v800
      %2824 = vmatprep.subr.mxu0 0.0
      %2825 = vmatpush1.msra.mxu0 %v801
      %2826 = vmatprep.subr.mxu0 0.0
      %2827 = vmatpush1.msra.mxu0 %v802
      %2828 = vmatprep.subr.mxu0 0.0
      %2829 = vmatpush1.msra.mxu0 %v803
      %2830 = vmatprep.subr.mxu0 0.0
      %2831 = vmatpush1.msra.mxu0 %v804
      %2832 = vmatprep.subr.mxu0 0.0
      %2833 = vmatpush1.msra.mxu0 %v805
      %2834 = vmatprep.subr.mxu0 0.0
      %2835 = vmatpush1.msra.mxu0 %v806
      %2836 = vmatprep.subr.mxu0 0.0
      %2837 = vmatpush1.msra.mxu0 %v807
      %2838 = vmatprep.subr.mxu0 0.0
      %2839 = vmatpush1.msra.mxu0 %v808
      %2840 = vmatprep.subr.mxu0 0.0
      %2841 = vmatpush1.msra.mxu0 %v809
      %2842 = vmatprep.subr.mxu0 0.0
      %2843 = vmatpush1.msra.mxu0 %v810
      %2844 = vmatprep.subr.mxu0 0.0
      %2845 = vmatpush1.msra.mxu0 %v811
      %2846 = vmatprep.subr.mxu0 0.0
      %2847 = vmatpush1.msra.mxu0 %v812
      %2848 = vmatprep.subr.mxu0 0.0
      %2849 = vmatpush1.msra.mxu0 %v813
      %2850 = vmatprep.subr.mxu0 0.0
      %2851 = vmatpush1.msra.mxu0 %v814
      %2852 = vmatprep.subr.mxu0 0.0
      %2853 = vmatpush1.msra.mxu0 %v815
      %2854 = vmatprep.subr.mxu0 0.0
      %2855 = vmatpush1.msra.mxu0 %v816
      %2856 = vmatprep.subr.mxu0 0.0
      %2857 = vmatpush1.msra.mxu0 %v817
      %2858 = vmatprep.subr.mxu0 0.0
      %2859 = vmatpush1.msra.mxu0 %v818
      %2860 = vmatprep.subr.mxu0 0.0
      %2861 = vmatpush1.msra.mxu0 %v819
      %2862 = vmatprep.subr.mxu0 0.0
      %2863 = vmatpush1.msra.mxu0 %v820
      %2864 = vmatprep.subr.mxu0 0.0
      %2865 = vmatpush1.msra.mxu0 %v821
      %2866 = vmatprep.subr.mxu0 0.0
      %2867 = vmatpush1.msra.mxu0 %v822
      %2868 = vmatprep.subr.mxu0 0.0
      %2869 = vmatpush1.msra.mxu0 %v823
      %2870 = vmatprep.subr.mxu0 0.0
      %2871 = vmatpush1.msra.mxu0 %v824
      %2872 = vmatprep.subr.mxu0 0.0
      %2873 = vmatpush1.msra.mxu0 %v825
      %2874 = vmatprep.subr.mxu0 0.0
      %2875 = vmatpush1.msra.mxu0 %v826
      %2876 = vmatprep.subr.mxu0 0.0
      %2877 = vmatpush1.msra.mxu0 %v827
      %2878 = vmatprep.subr.mxu0 0.0
      %2879 = vmatpush1.msra.mxu0 %v828
      %2880 = vmatprep.subr.mxu0 0.0
      %2881 = vmatpush1.msra.mxu0 %v829
      %2882 = vmatprep.subr.mxu0 0.0
      %2883 = vmatpush1.msra.mxu0 %v830
      %2884 = vmatprep.subr.mxu0 0.0
      %2885 = vmatpush1.msra.mxu0 %v831
      %2886 = vmatprep.mubr.f32.mxu0 %v1448
      %2887 = vmatmul.mubr.f32.gmra.mrb[0].mxu0 %v1446
      %v2888 = vpop.f32.mrb[0].mxu0
      %v2889 = vadd.f32 %v2819, %v2888
      %v2890 = vpop.f32.mrb[0].mxu0
      %2891 = vdwg.mxu0
      %2892 = vmatprep.subr.mxu0 0.0
      %2893 = vmatpush1.msra.mxu0 %v832
      %2894 = vmatprep.subr.mxu0 0.0
      %2895 = vmatpush1.msra.mxu0 %v833
      %2896 = vmatprep.subr.mxu0 0.0
      %2897 = vmatpush1.msra.mxu0 %v834
      %2898 = vmatprep.subr.mxu0 0.0
      %2899 = vmatpush1.msra.mxu0 %v835
      %2900 = vmatprep.subr.mxu0 0.0
      %2901 = vmatpush1.msra.mxu0 %v836
      %2902 = vmatprep.subr.mxu0 0.0
      %2903 = vmatpush1.msra.mxu0 %v837
      %2904 = vmatprep.subr.mxu0 0.0
      %2905 = vmatpush1.msra.mxu0 %v838
      %2906 = vmatprep.subr.mxu0 0.0
      %2907 = vmatpush1.msra.mxu0 %v839
      %2908 = vmatprep.subr.mxu0 0.0
      %2909 = vmatpush1.msra.mxu0 %v840
      %2910 = vmatprep.subr.mxu0 0.0
      %2911 = vmatpush1.msra.mxu0 %v841
      %2912 = vmatprep.subr.mxu0 0.0
      %2913 = vmatpush1.msra.mxu0 %v842
      %2914 = vmatprep.subr.mxu0 0.0
      %2915 = vmatpush1.msra.mxu0 %v843
      %2916 = vmatprep.subr.mxu0 0.0
      %2917 = vmatpush1.msra.mxu0 %v844
      %2918 = vmatprep.subr.mxu0 0.0
      %2919 = vmatpush1.msra.mxu0 %v845
      %2920 = vmatprep.subr.mxu0 0.0
      %2921 = vmatpush1.msra.mxu0 %v846
      %2922 = vmatprep.subr.mxu0 0.0
      %2923 = vmatpush1.msra.mxu0 %v847
      %2924 = vmatprep.subr.mxu0 0.0
      %2925 = vmatpush1.msra.mxu0 %v848
      %2926 = vmatprep.subr.mxu0 0.0
      %2927 = vmatpush1.msra.mxu0 %v849
      %2928 = vmatprep.subr.mxu0 0.0
      %2929 = vmatpush1.msra.mxu0 %v850
      %2930 = vmatprep.subr.mxu0 0.0
      %2931 = vmatpush1.msra.mxu0 %v851
      %2932 = vmatprep.subr.mxu0 0.0
      %2933 = vmatpush1.msra.mxu0 %v852
      %2934 = vmatprep.subr.mxu0 0.0
      %2935 = vmatpush1.msra.mxu0 %v853
      %2936 = vmatprep.subr.mxu0 0.0
      %2937 = vmatpush1.msra.mxu0 %v854
      %2938 = vmatprep.subr.mxu0 0.0
      %2939 = vmatpush1.msra.mxu0 %v855
      %2940 = vmatprep.subr.mxu0 0.0
      %2941 = vmatpush1.msra.mxu0 %v856
      %2942 = vmatprep.subr.mxu0 0.0
      %2943 = vmatpush1.msra.mxu0 %v857
      %2944 = vmatprep.subr.mxu0 0.0
      %2945 = vmatpush1.msra.mxu0 %v858
      %2946 = vmatprep.subr.mxu0 0.0
      %2947 = vmatpush1.msra.mxu0 %v859
      %2948 = vmatprep.subr.mxu0 0.0
      %2949 = vmatpush1.msra.mxu0 %v860
      %2950 = vmatprep.subr.mxu0 0.0
      %2951 = vmatpush1.msra.mxu0 %v861
      %2952 = vmatprep.subr.mxu0 0.0
      %2953 = vmatpush1.msra.mxu0 %v862
      %2954 = vmatprep.subr.mxu0 0.0
      %2955 = vmatpush1.msra.mxu0 %v863
      %2956 = vmatprep.mubr.f32.mxu0 %v1464
      %2957 = vmatmul.mubr.f32.gmra.mrb[0].mxu0 %v1456
      %v2958 = vpop.f32.mrb[0].mxu0
      %v2959 = vadd.f32 %v2889, %v2958
      %v2960 = vpop.f32.mrb[0].mxu0
      %2961 = vdwg.mxu0
      %2962 = vmatprep.subr.mxu0 0.0
      %2963 = vmatpush1.msra.mxu0 %v864
      %2964 = vmatprep.subr.mxu0 0.0
      %2965 = vmatpush1.msra.mxu0 %v865
      %2966 = vmatprep.subr.mxu0 0.0
      %2967 = vmatpush1.msra.mxu0 %v866
      %2968 = vmatprep.subr.mxu0 0.0
      %2969 = vmatpush1.msra.mxu0 %v867
      %2970 = vmatprep.subr.mxu0 0.0
      %2971 = vmatpush1.msra.mxu0 %v868
      %2972 = vmatprep.subr.mxu0 0.0
      %2973 = vmatpush1.msra.mxu0 %v869
      %2974 = vmatprep.subr.mxu0 0.0
      %2975 = vmatpush1.msra.mxu0 %v870
      %2976 = vmatprep.subr.mxu0 0.0
      %2977 = vmatpush1.msra.mxu0 %v871
      %2978 = vmatprep.subr.mxu0 0.0
      %2979 = vmatpush1.msra.mxu0 %v872
      %2980 = vmatprep.subr.mxu0 0.0
      %2981 = vmatpush1.msra.mxu0 %v873
      %2982 = vmatprep.subr.mxu0 0.0
      %2983 = vmatpush1.msra.mxu0 %v874
      %2984 = vmatprep.subr.mxu0 0.0
      %2985 = vmatpush1.msra.mxu0 %v875
      %2986 = vmatprep.subr.mxu0 0.0
      %2987 = vmatpush1.msra.mxu0 %v876
      %2988 = vmatprep.subr.mxu0 0.0
      %2989 = vmatpush1.msra.mxu0 %v877
      %2990 = vmatprep.subr.mxu0 0.0
      %2991 = vmatpush1.msra.mxu0 %v878
      %2992 = vmatprep.subr.mxu0 0.0
      %2993 = vmatpush1.msra.mxu0 %v879
      %2994 = vmatprep.subr.mxu0 0.0
      %2995 = vmatpush1.msra.mxu0 %v880
      %2996 = vmatprep.subr.mxu0 0.0
      %2997 = vmatpush1.msra.mxu0 %v881
      %2998 = vmatprep.subr.mxu0 0.0
      %2999 = vmatpush1.msra.mxu0 %v882
      %3000 = vmatprep.subr.mxu0 0.0
      %3001 = vmatpush1.msra.mxu0 %v883
      %3002 = vmatprep.subr.mxu0 0.0
      %3003 = vmatpush1.msra.mxu0 %v884
      %3004 = vmatprep.subr.mxu0 0.0
      %3005 = vmatpush1.msra.mxu0 %v885
      %3006 = vmatprep.subr.mxu0 0.0
      %3007 = vmatpush1.msra.mxu0 %v886
      %3008 = vmatprep.subr.mxu0 0.0
      %3009 = vmatpush1.msra.mxu0 %v887
      %3010 = vmatprep.subr.mxu0 0.0
      %3011 = vmatpush1.msra.mxu0 %v888
      %3012 = vmatprep.subr.mxu0 0.0
      %3013 = vmatpush1.msra.mxu0 %v889
      %3014 = vmatprep.subr.mxu0 0.0
      %3015 = vmatpush1.msra.mxu0 %v890
      %3016 = vmatprep.subr.mxu0 0.0
      %3017 = vmatpush1.msra.mxu0 %v891
      %3018 = vmatprep.subr.mxu0 0.0
      %3019 = vmatpush1.msra.mxu0 %v892
      %3020 = vmatprep.subr.mxu0 0.0
      %3021 = vmatpush1.msra.mxu0 %v893
      %3022 = vmatprep.subr.mxu0 0.0
      %3023 = vmatpush1.msra.mxu0 %v894
      %3024 = vmatprep.subr.mxu0 0.0
      %3025 = vmatpush1.msra.mxu0 %v895
      %3026 = vmatprep.mubr.f32.mxu0 %v1465
      %3027 = vmatmul.mubr.f32.gmra.mrb[0].mxu0 %v1463
      %v3028 = vpop.f32.mrb[0].mxu0
      %v3029 = vadd.f32 %v2959, %v3028
      %v3030 = vpop.f32.mrb[0].mxu0
      %3031 = vdwg.mxu0
      %3032 = vmatprep.subr.mxu0 0.0
      %3033 = vmatpush1.msra.mxu0 %v896
      %3034 = vmatprep.subr.mxu0 0.0
      %3035 = vmatpush1.msra.mxu0 %v897
      %3036 = vmatprep.subr.mxu0 0.0
      %3037 = vmatpush1.msra.mxu0 %v898
      %3038 = vmatprep.subr.mxu0 0.0
      %3039 = vmatpush1.msra.mxu0 %v899
      %3040 = vmatprep.subr.mxu0 0.0
      %3041 = vmatpush1.msra.mxu0 %v900
      %3042 = vmatprep.subr.mxu0 0.0
      %3043 = vmatpush1.msra.mxu0 %v901
      %3044 = vmatprep.subr.mxu0 0.0
      %3045 = vmatpush1.msra.mxu0 %v902
      %3046 = vmatprep.subr.mxu0 0.0
      %3047 = vmatpush1.msra.mxu0 %v903
      %3048 = vmatprep.subr.mxu0 0.0
      %3049 = vmatpush1.msra.mxu0 %v904
      %3050 = vmatprep.subr.mxu0 0.0
      %3051 = vmatpush1.msra.mxu0 %v905
      %3052 = vmatprep.subr.mxu0 0.0
      %3053 = vmatpush1.msra.mxu0 %v906
      %3054 = vmatprep.subr.mxu0 0.0
      %3055 = vmatpush1.msra.mxu0 %v907
      %3056 = vmatprep.subr.mxu0 0.0
      %3057 = vmatpush1.msra.mxu0 %v908
      %3058 = vmatprep.subr.mxu0 0.0
      %3059 = vmatpush1.msra.mxu0 %v909
      %3060 = vmatprep.subr.mxu0 0.0
      %3061 = vmatpush1.msra.mxu0 %v910
      %3062 = vmatprep.subr.mxu0 0.0
      %3063 = vmatpush1.msra.mxu0 %v911
      %3064 = vmatprep.subr.mxu0 0.0
      %3065 = vmatpush1.msra.mxu0 %v912
      %3066 = vmatprep.subr.mxu0 0.0
      %3067 = vmatpush1.msra.mxu0 %v913
      %3068 = vmatprep.subr.mxu0 0.0
      %3069 = vmatpush1.msra.mxu0 %v914
      %3070 = vmatprep.subr.mxu0 0.0
      %3071 = vmatpush1.msra.mxu0 %v915
      %3072 = vmatprep.subr.mxu0 0.0
      %3073 = vmatpush1.msra.mxu0 %v916
      %3074 = vmatprep.subr.mxu0 0.0
      %3075 = vmatpush1.msra.mxu0 %v917
      %3076 = vmatprep.subr.mxu0 0.0
      %3077 = vmatpush1.msra.mxu0 %v918
      %3078 = vmatprep.subr.mxu0 0.0
      %3079 = vmatpush1.msra.mxu0 %v919
      %3080 = vmatprep.subr.mxu0 0.0
      %3081 = vmatpush1.msra.mxu0 %v920
      %3082 = vmatprep.subr.mxu0 0.0
      %3083 = vmatpush1.msra.mxu0 %v921
      %3084 = vmatprep.subr.mxu0 0.0
      %3085 = vmatpush1.msra.mxu0 %v922
      %3086 = vmatprep.subr.mxu0 0.0
      %3087 = vmatpush1.msra.mxu0 %v923
      %3088 = vmatprep.subr.mxu0 0.0
      %3089 = vmatpush1.msra.mxu0 %v924
      %3090 = vmatprep.subr.mxu0 0.0
      %3091 = vmatpush1.msra.mxu0 %v925
      %3092 = vmatprep.subr.mxu0 0.0
      %3093 = vmatpush1.msra.mxu0 %v926
      %3094 = vmatprep.subr.mxu0 0.0
      %3095 = vmatpush1.msra.mxu0 %v927
      %3096 = vmatprep.mubr.f32.mxu0 %v1481
      %3097 = vmatmul.mubr.f32.gmra.mrb[0].mxu0 %v1473
      %v3098 = vpop.f32.mrb[0].mxu0
      %v3099 = vadd.f32 %v3029, %v3098
      %v3100 = vpop.f32.mrb[0].mxu0
      %3101 = vdwg.mxu0
      %3102 = vmatprep.subr.mxu0 0.0
      %3103 = vmatpush1.msra.mxu0 %v928
      %3104 = vmatprep.subr.mxu0 0.0
      %3105 = vmatpush1.msra.mxu0 %v929
      %3106 = vmatprep.subr.mxu0 0.0
      %3107 = vmatpush1.msra.mxu0 %v930
      %3108 = vmatprep.subr.mxu0 0.0
      %3109 = vmatpush1.msra.mxu0 %v931
      %3110 = vmatprep.subr.mxu0 0.0
      %3111 = vmatpush1.msra.mxu0 %v932
      %3112 = vmatprep.subr.mxu0 0.0
      %3113 = vmatpush1.msra.mxu0 %v933
      %3114 = vmatprep.subr.mxu0 0.0
      %3115 = vmatpush1.msra.mxu0 %v934
      %3116 = vmatprep.subr.mxu0 0.0
      %3117 = vmatpush1.msra.mxu0 %v935
      %3118 = vmatprep.subr.mxu0 0.0
      %3119 = vmatpush1.msra.mxu0 %v936
      %3120 = vmatprep.subr.mxu0 0.0
      %3121 = vmatpush1.msra.mxu0 %v937
      %3122 = vmatprep.subr.mxu0 0.0
      %3123 = vmatpush1.msra.mxu0 %v938
      %3124 = vmatprep.subr.mxu0 0.0
      %3125 = vmatpush1.msra.mxu0 %v939
      %3126 = vmatprep.subr.mxu0 0.0
      %3127 = vmatpush1.msra.mxu0 %v940
      %3128 = vmatprep.subr.mxu0 0.0
      %3129 = vmatpush1.msra.mxu0 %v941
      %3130 = vmatprep.subr.mxu0 0.0
      %3131 = vmatpush1.msra.mxu0 %v942
      %3132 = vmatprep.subr.mxu0 0.0
      %3133 = vmatpush1.msra.mxu0 %v943
      %3134 = vmatprep.subr.mxu0 0.0
      %3135 = vmatpush1.msra.mxu0 %v944
      %3136 = vmatprep.subr.mxu0 0.0
      %3137 = vmatpush1.msra.mxu0 %v945
      %3138 = vmatprep.subr.mxu0 0.0
      %3139 = vmatpush1.msra.mxu0 %v946
      %3140 = vmatprep.subr.mxu0 0.0
      %3141 = vmatpush1.msra.mxu0 %v947
      %3142 = vmatprep.subr.mxu0 0.0
      %3143 = vmatpush1.msra.mxu0 %v948
      %3144 = vmatprep.subr.mxu0 0.0
      %3145 = vmatpush1.msra.mxu0 %v949
      %3146 = vmatprep.subr.mxu0 0.0
      %3147 = vmatpush1.msra.mxu0 %v950
      %3148 = vmatprep.subr.mxu0 0.0
      %3149 = vmatpush1.msra.mxu0 %v951
      %3150 = vmatprep.subr.mxu0 0.0
      %3151 = vmatpush1.msra.mxu0 %v952
      %3152 = vmatprep.subr.mxu0 0.0
      %3153 = vmatpush1.msra.mxu0 %v953
      %3154 = vmatprep.subr.mxu0 0.0
      %3155 = vmatpush1.msra.mxu0 %v954
      %3156 = vmatprep.subr.mxu0 0.0
      %3157 = vmatpush1.msra.mxu0 %v955
      %3158 = vmatprep.subr.mxu0 0.0
      %3159 = vmatpush1.msra.mxu0 %v956
      %3160 = vmatprep.subr.mxu0 0.0
      %3161 = vmatpush1.msra.mxu0 %v957
      %3162 = vmatprep.subr.mxu0 0.0
      %3163 = vmatpush1.msra.mxu0 %v958
      %3164 = vmatprep.subr.mxu0 0.0
      %3165 = vmatpush1.msra.mxu0 %v959
      %3166 = vmatprep.mubr.f32.mxu0 %v1482
      %3167 = vmatmul.mubr.f32.gmra.mrb[0].mxu0 %v1480
      %v3168 = vpop.f32.mrb[0].mxu0
      %v3169 = vadd.f32 %v3099, %v3168
      %v3170 = vpop.f32.mrb[0].mxu0
      %3171 = vdwg.mxu0
      %3172 = vmatprep.subr.mxu0 0.0
      %3173 = vmatpush1.msra.mxu0 %v960
      %3174 = vmatprep.subr.mxu0 0.0
      %3175 = vmatpush1.msra.mxu0 %v961
      %3176 = vmatprep.subr.mxu0 0.0
      %3177 = vmatpush1.msra.mxu0 %v962
      %3178 = vmatprep.subr.mxu0 0.0
      %3179 = vmatpush1.msra.mxu0 %v963
      %3180 = vmatprep.subr.mxu0 0.0
      %3181 = vmatpush1.msra.mxu0 %v964
      %3182 = vmatprep.subr.mxu0 0.0
      %3183 = vmatpush1.msra.mxu0 %v965
      %3184 = vmatprep.subr.mxu0 0.0
      %3185 = vmatpush1.msra.mxu0 %v966
      %3186 = vmatprep.subr.mxu0 0.0
      %3187 = vmatpush1.msra.mxu0 %v967
      %3188 = vmatprep.subr.mxu0 0.0
      %3189 = vmatpush1.msra.mxu0 %v968
      %3190 = vmatprep.subr.mxu0 0.0
      %3191 = vmatpush1.msra.mxu0 %v969
      %3192 = vmatprep.subr.mxu0 0.0
      %3193 = vmatpush1.msra.mxu0 %v970
      %3194 = vmatprep.subr.mxu0 0.0
      %3195 = vmatpush1.msra.mxu0 %v971
      %3196 = vmatprep.subr.mxu0 0.0
      %3197 = vmatpush1.msra.mxu0 %v972
      %3198 = vmatprep.subr.mxu0 0.0
      %3199 = vmatpush1.msra.mxu0 %v973
      %3200 = vmatprep.subr.mxu0 0.0
      %3201 = vmatpush1.msra.mxu0 %v974
      %3202 = vmatprep.subr.mxu0 0.0
      %3203 = vmatpush1.msra.mxu0 %v975
      %3204 = vmatprep.subr.mxu0 0.0
      %3205 = vmatpush1.msra.mxu0 %v976
      %3206 = vmatprep.subr.mxu0 0.0
      %3207 = vmatpush1.msra.mxu0 %v977
      %3208 = vmatprep.subr.mxu0 0.0
      %3209 = vmatpush1.msra.mxu0 %v978
      %3210 = vmatprep.subr.mxu0 0.0
      %3211 = vmatpush1.msra.mxu0 %v979
      %3212 = vmatprep.subr.mxu0 0.0
      %3213 = vmatpush1.msra.mxu0 %v980
      %3214 = vmatprep.subr.mxu0 0.0
      %3215 = vmatpush1.msra.mxu0 %v981
      %3216 = vmatprep.subr.mxu0 0.0
      %3217 = vmatpush1.msra.mxu0 %v982
      %3218 = vmatprep.subr.mxu0 0.0
      %3219 = vmatpush1.msra.mxu0 %v983
      %3220 = vmatprep.subr.mxu0 0.0
      %3221 = vmatpush1.msra.mxu0 %v984
      %3222 = vmatprep.subr.mxu0 0.0
      %3223 = vmatpush1.msra.mxu0 %v985
      %3224 = vmatprep.subr.mxu0 0.0
      %3225 = vmatpush1.msra.mxu0 %v986
      %3226 = vmatprep.subr.mxu0 0.0
      %3227 = vmatpush1.msra.mxu0 %v987
      %3228 = vmatprep.subr.mxu0 0.0
      %3229 = vmatpush1.msra.mxu0 %v988
      %3230 = vmatprep.subr.mxu0 0.0
      %3231 = vmatpush1.msra.mxu0 %v989
      %3232 = vmatprep.subr.mxu0 0.0
      %3233 = vmatpush1.msra.mxu0 %v990
      %3234 = vmatprep.subr.mxu0 0.0
      %3235 = vmatpush1.msra.mxu0 %v991
      %3236 = vmatprep.mubr.f32.mxu0 %v1498
      %3237 = vmatmul.mubr.f32.gmra.mrb[0].mxu0 %v1490
      %v3238 = vpop.f32.mrb[0].mxu0
      %v3239 = vadd.f32 %v3169, %v3238
      %v3240 = vpop.f32.mrb[0].mxu0
      %3241 = vdwg.mxu0
      %3242 = vmatprep.subr.mxu0 0.0
      %3243 = vmatpush1.msra.mxu0 %v992
      %3244 = vmatprep.subr.mxu0 0.0
      %3245 = vmatpush1.msra.mxu0 %v993
      %3246 = vmatprep.subr.mxu0 0.0
      %3247 = vmatpush1.msra.mxu0 %v994
      %3248 = vmatprep.subr.mxu0 0.0
      %3249 = vmatpush1.msra.mxu0 %v995
      %3250 = vmatprep.subr.mxu0 0.0
      %3251 = vmatpush1.msra.mxu0 %v996
      %3252 = vmatprep.subr.mxu0 0.0
      %3253 = vmatpush1.msra.mxu0 %v997
      %3254 = vmatprep.subr.mxu0 0.0
      %3255 = vmatpush1.msra.mxu0 %v998
      %3256 = vmatprep.subr.mxu0 0.0
      %3257 = vmatpush1.msra.mxu0 %v999
      %3258 = vmatprep.subr.mxu0 0.0
      %3259 = vmatpush1.msra.mxu0 %v1000
      %3260 = vmatprep.subr.mxu0 0.0
      %3261 = vmatpush1.msra.mxu0 %v1001
      %3262 = vmatprep.subr.mxu0 0.0
      %3263 = vmatpush1.msra.mxu0 %v1002
      %3264 = vmatprep.subr.mxu0 0.0
      %3265 = vmatpush1.msra.mxu0 %v1003
      %3266 = vmatprep.subr.mxu0 0.0
      %3267 = vmatpush1.msra.mxu0 %v1004
      %3268 = vmatprep.subr.mxu0 0.0
      %3269 = vmatpush1.msra.mxu0 %v1005
      %3270 = vmatprep.subr.mxu0 0.0
      %3271 = vmatpush1.msra.mxu0 %v1006
      %3272 = vmatprep.subr.mxu0 0.0
      %3273 = vmatpush1.msra.mxu0 %v1007
      %3274 = vmatprep.subr.mxu0 0.0
      %3275 = vmatpush1.msra.mxu0 %v1008
      %3276 = vmatprep.subr.mxu0 0.0
      %3277 = vmatpush1.msra.mxu0 %v1009
      %3278 = vmatprep.subr.mxu0 0.0
      %3279 = vmatpush1.msra.mxu0 %v1010
      %3280 = vmatprep.subr.mxu0 0.0
      %3281 = vmatpush1.msra.mxu0 %v1011
      %3282 = vmatprep.subr.mxu0 0.0
      %3283 = vmatpush1.msra.mxu0 %v1012
      %3284 = vmatprep.subr.mxu0 0.0
      %3285 = vmatpush1.msra.mxu0 %v1013
      %3286 = vmatprep.subr.mxu0 0.0
      %3287 = vmatpush1.msra.mxu0 %v1014
      %3288 = vmatprep.subr.mxu0 0.0
      %3289 = vmatpush1.msra.mxu0 %v1015
      %3290 = vmatprep.subr.mxu0 0.0
      %3291 = vmatpush1.msra.mxu0 %v1016
      %3292 = vmatprep.subr.mxu0 0.0
      %3293 = vmatpush1.msra.mxu0 %v1017
      %3294 = vmatprep.subr.mxu0 0.0
      %3295 = vmatpush1.msra.mxu0 %v1018
      %3296 = vmatprep.subr.mxu0 0.0
      %3297 = vmatpush1.msra.mxu0 %v1019
      %3298 = vmatprep.subr.mxu0 0.0
      %3299 = vmatpush1.msra.mxu0 %v1020
      %3300 = vmatprep.subr.mxu0 0.0
      %3301 = vmatpush1.msra.mxu0 %v1021
      %3302 = vmatprep.subr.mxu0 0.0
      %3303 = vmatpush1.msra.mxu0 %v1022
      %3304 = vmatprep.subr.mxu0 0.0
      %3305 = vmatpush1.msra.mxu0 %v1023
      %3306 = vmatprep.mubr.f32.mxu0 %v1499
      %3307 = vmatmul.mubr.f32.gmra.mrb[0].mxu0 %v1497
      %v3308 = vpop.f32.mrb[0].mxu0
      %v3309 = vadd.f32 %v3239, %v3308
      %v3310 = vpop.f32.mrb[0].mxu0
      %3311 = vdwg.mxu0
      %3312 = vmatprep.subr.mxu0 0.0
      %3313 = vmatpush1.msra.mxu0 %v1024
      %3314 = vmatprep.subr.mxu0 0.0
      %3315 = vmatpush1.msra.mxu0 %v1025
      %3316 = vmatprep.subr.mxu0 0.0
      %3317 = vmatpush1.msra.mxu0 %v1026
      %3318 = vmatprep.subr.mxu0 0.0
      %3319 = vmatpush1.msra.mxu0 %v1027
      %3320 = vmatprep.subr.mxu0 0.0
      %3321 = vmatpush1.msra.mxu0 %v1028
      %3322 = vmatprep.subr.mxu0 0.0
      %3323 = vmatpush1.msra.mxu0 %v1029
      %3324 = vmatprep.subr.mxu0 0.0
      %3325 = vmatpush1.msra.mxu0 %v1030
      %3326 = vmatprep.subr.mxu0 0.0
      %3327 = vmatpush1.msra.mxu0 %v1031
      %3328 = vmatprep.subr.mxu0 0.0
      %3329 = vmatpush1.msra.mxu0 %v1032
      %3330 = vmatprep.subr.mxu0 0.0
      %3331 = vmatpush1.msra.mxu0 %v1033
      %3332 = vmatprep.subr.mxu0 0.0
      %3333 = vmatpush1.msra.mxu0 %v1034
      %3334 = vmatprep.subr.mxu0 0.0
      %3335 = vmatpush1.msra.mxu0 %v1035
      %3336 = vmatprep.subr.mxu0 0.0
      %3337 = vmatpush1.msra.mxu0 %v1036
      %3338 = vmatprep.subr.mxu0 0.0
      %3339 = vmatpush1.msra.mxu0 %v1037
      %3340 = vmatprep.subr.mxu0 0.0
      %3341 = vmatpush1.msra.mxu0 %v1038
      %3342 = vmatprep.subr.mxu0 0.0
      %3343 = vmatpush1.msra.mxu0 %v1039
      %3344 = vmatprep.subr.mxu0 0.0
      %3345 = vmatpush1.msra.mxu0 %v1040
      %3346 = vmatprep.subr.mxu0 0.0
      %3347 = vmatpush1.msra.mxu0 %v1041
      %3348 = vmatprep.subr.mxu0 0.0
      %3349 = vmatpush1.msra.mxu0 %v1042
      %3350 = vmatprep.subr.mxu0 0.0
      %3351 = vmatpush1.msra.mxu0 %v1043
      %3352 = vmatprep.subr.mxu0 0.0
      %3353 = vmatpush1.msra.mxu0 %v1044
      %3354 = vmatprep.subr.mxu0 0.0
      %3355 = vmatpush1.msra.mxu0 %v1045
      %3356 = vmatprep.subr.mxu0 0.0
      %3357 = vmatpush1.msra.mxu0 %v1046
      %3358 = vmatprep.subr.mxu0 0.0
      %3359 = vmatpush1.msra.mxu0 %v1047
      %3360 = vmatprep.subr.mxu0 0.0
      %3361 = vmatpush1.msra.mxu0 %v1048
      %3362 = vmatprep.subr.mxu0 0.0
      %3363 = vmatpush1.msra.mxu0 %v1049
      %3364 = vmatprep.subr.mxu0 0.0
      %3365 = vmatpush1.msra.mxu0 %v1050
      %3366 = vmatprep.subr.mxu0 0.0
      %3367 = vmatpush1.msra.mxu0 %v1051
      %3368 = vmatprep.subr.mxu0 0.0
      %3369 = vmatpush1.msra.mxu0 %v1052
      %3370 = vmatprep.subr.mxu0 0.0
      %3371 = vmatpush1.msra.mxu0 %v1053
      %3372 = vmatprep.subr.mxu0 0.0
      %3373 = vmatpush1.msra.mxu0 %v1054
      %3374 = vmatprep.subr.mxu0 0.0
      %3375 = vmatpush1.msra.mxu0 %v1055
      %3376 = vmatprep.mubr.f32.mxu0 %v1515
      %3377 = vmatmul.mubr.f32.gmra.mrb[0].mxu0 %v1507
      %v3378 = vpop.f32.mrb[0].mxu0
      %v3379 = vadd.f32 %v3309, %v3378
      %v3380 = vpop.f32.mrb[0].mxu0
      %3381 = vdwg.mxu0
      %3382 = vmatprep.subr.mxu0 0.0
      %3383 = vmatpush1.msra.mxu0 %v1056
      %3384 = vmatprep.subr.mxu0 0.0
      %3385 = vmatpush1.msra.mxu0 %v1057
      %3386 = vmatprep.subr.mxu0 0.0
      %3387 = vmatpush1.msra.mxu0 %v1058
      %3388 = vmatprep.subr.mxu0 0.0
      %3389 = vmatpush1.msra.mxu0 %v1059
      %3390 = vmatprep.subr.mxu0 0.0
      %3391 = vmatpush1.msra.mxu0 %v1060
      %3392 = vmatprep.subr.mxu0 0.0
      %3393 = vmatpush1.msra.mxu0 %v1061
      %3394 = vmatprep.subr.mxu0 0.0
      %3395 = vmatpush1.msra.mxu0 %v1062
      %3396 = vmatprep.subr.mxu0 0.0
      %3397 = vmatpush1.msra.mxu0 %v1063
      %3398 = vmatprep.subr.mxu0 0.0
      %3399 = vmatpush1.msra.mxu0 %v1064
      %3400 = vmatprep.subr.mxu0 0.0
      %3401 = vmatpush1.msra.mxu0 %v1065
      %3402 = vmatprep.subr.mxu0 0.0
      %3403 = vmatpush1.msra.mxu0 %v1066
      %3404 = vmatprep.subr.mxu0 0.0
      %3405 = vmatpush1.msra.mxu0 %v1067
      %3406 = vmatprep.subr.mxu0 0.0
      %3407 = vmatpush1.msra.mxu0 %v1068
      %3408 = vmatprep.subr.mxu0 0.0
      %3409 = vmatpush1.msra.mxu0 %v1069
      %3410 = vmatprep.subr.mxu0 0.0
      %3411 = vmatpush1.msra.mxu0 %v1070
      %3412 = vmatprep.subr.mxu0 0.0
      %3413 = vmatpush1.msra.mxu0 %v1071
      %3414 = vmatprep.subr.mxu0 0.0
      %3415 = vmatpush1.msra.mxu0 %v1072
      %3416 = vmatprep.subr.mxu0 0.0
      %3417 = vmatpush1.msra.mxu0 %v1073
      %3418 = vmatprep.subr.mxu0 0.0
      %3419 = vmatpush1.msra.mxu0 %v1074
      %3420 = vmatprep.subr.mxu0 0.0
      %3421 = vmatpush1.msra.mxu0 %v1075
      %3422 = vmatprep.subr.mxu0 0.0
      %3423 = vmatpush1.msra.mxu0 %v1076
      %3424 = vmatprep.subr.mxu0 0.0
      %3425 = vmatpush1.msra.mxu0 %v1077
      %3426 = vmatprep.subr.mxu0 0.0
      %3427 = vmatpush1.msra.mxu0 %v1078
      %3428 = vmatprep.subr.mxu0 0.0
      %3429 = vmatpush1.msra.mxu0 %v1079
      %3430 = vmatprep.subr.mxu0 0.0
      %3431 = vmatpush1.msra.mxu0 %v1080
      %3432 = vmatprep.subr.mxu0 0.0
      %3433 = vmatpush1.msra.mxu0 %v1081
      %3434 = vmatprep.subr.mxu0 0.0
      %3435 = vmatpush1.msra.mxu0 %v1082
      %3436 = vmatprep.subr.mxu0 0.0
      %3437 = vmatpush1.msra.mxu0 %v1083
      %3438 = vmatprep.subr.mxu0 0.0
      %3439 = vmatpush1.msra.mxu0 %v1084
      %3440 = vmatprep.subr.mxu0 0.0
      %3441 = vmatpush1.msra.mxu0 %v1085
      %3442 = vmatprep.subr.mxu0 0.0
      %3443 = vmatpush1.msra.mxu0 %v1086
      %3444 = vmatprep.subr.mxu0 0.0
      %3445 = vmatpush1.msra.mxu0 %v1087
      %3446 = vmatprep.mubr.f32.mxu0 %v1516
      %3447 = vmatmul.mubr.f32.gmra.mrb[0].mxu0 %v1514
      %v3448 = vpop.f32.mrb[0].mxu0
      %v3449 = vadd.f32 %v3379, %v3448
      %v3450 = vpop.f32.mrb[0].mxu0
      %3451 = vdwg.mxu0
      %3452 = vmatprep.subr.mxu0 0.0
      %3453 = vmatpush1.msra.mxu0 %v1088
      %3454 = vmatprep.subr.mxu0 0.0
      %3455 = vmatpush1.msra.mxu0 %v1089
      %3456 = vmatprep.subr.mxu0 0.0
      %3457 = vmatpush1.msra.mxu0 %v1090
      %3458 = vmatprep.subr.mxu0 0.0
      %3459 = vmatpush1.msra.mxu0 %v1091
      %3460 = vmatprep.subr.mxu0 0.0
      %3461 = vmatpush1.msra.mxu0 %v1092
      %3462 = vmatprep.subr.mxu0 0.0
      %3463 = vmatpush1.msra.mxu0 %v1093
      %3464 = vmatprep.subr.mxu0 0.0
      %3465 = vmatpush1.msra.mxu0 %v1094
      %3466 = vmatprep.subr.mxu0 0.0
      %3467 = vmatpush1.msra.mxu0 %v1095
      %3468 = vmatprep.subr.mxu0 0.0
      %3469 = vmatpush1.msra.mxu0 %v1096
      %3470 = vmatprep.subr.mxu0 0.0
      %3471 = vmatpush1.msra.mxu0 %v1097
      %3472 = vmatprep.subr.mxu0 0.0
      %3473 = vmatpush1.msra.mxu0 %v1098
      %3474 = vmatprep.subr.mxu0 0.0
      %3475 = vmatpush1.msra.mxu0 %v1099
      %3476 = vmatprep.subr.mxu0 0.0
      %3477 = vmatpush1.msra.mxu0 %v1100
      %3478 = vmatprep.subr.mxu0 0.0
      %3479 = vmatpush1.msra.mxu0 %v1101
      %3480 = vmatprep.subr.mxu0 0.0
      %3481 = vmatpush1.msra.mxu0 %v1102
      %3482 = vmatprep.subr.mxu0 0.0
      %3483 = vmatpush1.msra.mxu0 %v1103
      %3484 = vmatprep.subr.mxu0 0.0
      %3485 = vmatpush1.msra.mxu0 %v1104
      %3486 = vmatprep.subr.mxu0 0.0
      %3487 = vmatpush1.msra.mxu0 %v1105
      %3488 = vmatprep.subr.mxu0 0.0
      %3489 = vmatpush1.msra.mxu0 %v1106
      %3490 = vmatprep.subr.mxu0 0.0
      %3491 = vmatpush1.msra.mxu0 %v1107
      %3492 = vmatprep.subr.mxu0 0.0
      %3493 = vmatpush1.msra.mxu0 %v1108
      %3494 = vmatprep.subr.mxu0 0.0
      %3495 = vmatpush1.msra.mxu0 %v1109
      %3496 = vmatprep.subr.mxu0 0.0
      %3497 = vmatpush1.msra.mxu0 %v1110
      %3498 = vmatprep.subr.mxu0 0.0
      %3499 = vmatpush1.msra.mxu0 %v1111
      %3500 = vmatprep.subr.mxu0 0.0
      %3501 = vmatpush1.msra.mxu0 %v1112
      %3502 = vmatprep.subr.mxu0 0.0
      %3503 = vmatpush1.msra.mxu0 %v1113
      %3504 = vmatprep.subr.mxu0 0.0
      %3505 = vmatpush1.msra.mxu0 %v1114
      %3506 = vmatprep.subr.mxu0 0.0
      %3507 = vmatpush1.msra.mxu0 %v1115
      %3508 = vmatprep.subr.mxu0 0.0
      %3509 = vmatpush1.msra.mxu0 %v1116
      %3510 = vmatprep.subr.mxu0 0.0
      %3511 = vmatpush1.msra.mxu0 %v1117
      %3512 = vmatprep.subr.mxu0 0.0
      %3513 = vmatpush1.msra.mxu0 %v1118
      %3514 = vmatprep.subr.mxu0 0.0
      %3515 = vmatpush1.msra.mxu0 %v1119
      %3516 = vmatprep.mubr.f32.mxu0 %v1532
      %3517 = vmatmul.mubr.f32.gmra.mrb[0].mxu0 %v1524
      %v3518 = vpop.f32.mrb[0].mxu0
      %v3519 = vadd.f32 %v3449, %v3518
      %v3520 = vpop.f32.mrb[0].mxu0
      %3521 = vdwg.mxu0
      %3522 = vmatprep.subr.mxu0 0.0
      %3523 = vmatpush1.msra.mxu0 %v1120
      %3524 = vmatprep.subr.mxu0 0.0
      %3525 = vmatpush1.msra.mxu0 %v1121
      %3526 = vmatprep.subr.mxu0 0.0
      %3527 = vmatpush1.msra.mxu0 %v1122
      %3528 = vmatprep.subr.mxu0 0.0
      %3529 = vmatpush1.msra.mxu0 %v1123
      %3530 = vmatprep.subr.mxu0 0.0
      %3531 = vmatpush1.msra.mxu0 %v1124
      %3532 = vmatprep.subr.mxu0 0.0
      %3533 = vmatpush1.msra.mxu0 %v1125
      %3534 = vmatprep.subr.mxu0 0.0
      %3535 = vmatpush1.msra.mxu0 %v1126
      %3536 = vmatprep.subr.mxu0 0.0
      %3537 = vmatpush1.msra.mxu0 %v1127
      %3538 = vmatprep.subr.mxu0 0.0
      %3539 = vmatpush1.msra.mxu0 %v1128
      %3540 = vmatprep.subr.mxu0 0.0
      %3541 = vmatpush1.msra.mxu0 %v1129
      %3542 = vmatprep.subr.mxu0 0.0
      %3543 = vmatpush1.msra.mxu0 %v1130
      %3544 = vmatprep.subr.mxu0 0.0
      %3545 = vmatpush1.msra.mxu0 %v1131
      %3546 = vmatprep.subr.mxu0 0.0
      %3547 = vmatpush1.msra.mxu0 %v1132
      %3548 = vmatprep.subr.mxu0 0.0
      %3549 = vmatpush1.msra.mxu0 %v1133
      %3550 = vmatprep.subr.mxu0 0.0
      %3551 = vmatpush1.msra.mxu0 %v1134
      %3552 = vmatprep.subr.mxu0 0.0
      %3553 = vmatpush1.msra.mxu0 %v1135
      %3554 = vmatprep.subr.mxu0 0.0
      %3555 = vmatpush1.msra.mxu0 %v1136
      %3556 = vmatprep.subr.mxu0 0.0
      %3557 = vmatpush1.msra.mxu0 %v1137
      %3558 = vmatprep.subr.mxu0 0.0
      %3559 = vmatpush1.msra.mxu0 %v1138
      %3560 = vmatprep.subr.mxu0 0.0
      %3561 = vmatpush1.msra.mxu0 %v1139
      %3562 = vmatprep.subr.mxu0 0.0
      %3563 = vmatpush1.msra.mxu0 %v1140
      %3564 = vmatprep.subr.mxu0 0.0
      %3565 = vmatpush1.msra.mxu0 %v1141
      %3566 = vmatprep.subr.mxu0 0.0
      %3567 = vmatpush1.msra.mxu0 %v1142
      %3568 = vmatprep.subr.mxu0 0.0
      %3569 = vmatpush1.msra.mxu0 %v1143
      %3570 = vmatprep.subr.mxu0 0.0
      %3571 = vmatpush1.msra.mxu0 %v1144
      %3572 = vmatprep.subr.mxu0 0.0
      %3573 = vmatpush1.msra.mxu0 %v1145
      %3574 = vmatprep.subr.mxu0 0.0
      %3575 = vmatpush1.msra.mxu0 %v1146
      %3576 = vmatprep.subr.mxu0 0.0
      %3577 = vmatpush1.msra.mxu0 %v1147
      %3578 = vmatprep.subr.mxu0 0.0
      %3579 = vmatpush1.msra.mxu0 %v1148
      %3580 = vmatprep.subr.mxu0 0.0
      %3581 = vmatpush1.msra.mxu0 %v1149
      %3582 = vmatprep.subr.mxu0 0.0
      %3583 = vmatpush1.msra.mxu0 %v1150
      %3584 = vmatprep.subr.mxu0 0.0
      %3585 = vmatpush1.msra.mxu0 %v1151
      %3586 = vmatprep.mubr.f32.mxu0 %v1533
      %3587 = vmatmul.mubr.f32.gmra.mrb[0].mxu0 %v1531
      %v3588 = vpop.f32.mrb[0].mxu0
      %v3589 = vadd.f32 %v3519, %v3588
      %v3590 = vpop.f32.mrb[0].mxu0
      %3591 = vdwg.mxu0
      %3592 = vmatprep.subr.mxu0 0.0
      %3593 = vmatpush1.msra.mxu0 %v1152
      %3594 = vmatprep.subr.mxu0 0.0
      %3595 = vmatpush1.msra.mxu0 %v1153
      %3596 = vmatprep.subr.mxu0 0.0
      %3597 = vmatpush1.msra.mxu0 %v1154
      %3598 = vmatprep.subr.mxu0 0.0
      %3599 = vmatpush1.msra.mxu0 %v1155
      %3600 = vmatprep.subr.mxu0 0.0
      %3601 = vmatpush1.msra.mxu0 %v1156
      %3602 = vmatprep.subr.mxu0 0.0
      %3603 = vmatpush1.msra.mxu0 %v1157
      %3604 = vmatprep.subr.mxu0 0.0
      %3605 = vmatpush1.msra.mxu0 %v1158
      %3606 = vmatprep.subr.mxu0 0.0
      %3607 = vmatpush1.msra.mxu0 %v1159
      %3608 = vmatprep.subr.mxu0 0.0
      %3609 = vmatpush1.msra.mxu0 %v1160
      %3610 = vmatprep.subr.mxu0 0.0
      %3611 = vmatpush1.msra.mxu0 %v1161
      %3612 = vmatprep.subr.mxu0 0.0
      %3613 = vmatpush1.msra.mxu0 %v1162
      %3614 = vmatprep.subr.mxu0 0.0
      %3615 = vmatpush1.msra.mxu0 %v1163
      %3616 = vmatprep.subr.mxu0 0.0
      %3617 = vmatpush1.msra.mxu0 %v1164
      %3618 = vmatprep.subr.mxu0 0.0
      %3619 = vmatpush1.msra.mxu0 %v1165
      %3620 = vmatprep.subr.mxu0 0.0
      %3621 = vmatpush1.msra.mxu0 %v1166
      %3622 = vmatprep.subr.mxu0 0.0
      %3623 = vmatpush1.msra.mxu0 %v1167
      %3624 = vmatprep.subr.mxu0 0.0
      %3625 = vmatpush1.msra.mxu0 %v1168
      %3626 = vmatprep.subr.mxu0 0.0
      %3627 = vmatpush1.msra.mxu0 %v1169
      %3628 = vmatprep.subr.mxu0 0.0
      %3629 = vmatpush1.msra.mxu0 %v1170
      %3630 = vmatprep.subr.mxu0 0.0
      %3631 = vmatpush1.msra.mxu0 %v1171
      %3632 = vmatprep.subr.mxu0 0.0
      %3633 = vmatpush1.msra.mxu0 %v1172
      %3634 = vmatprep.subr.mxu0 0.0
      %3635 = vmatpush1.msra.mxu0 %v1173
      %3636 = vmatprep.subr.mxu0 0.0
      %3637 = vmatpush1.msra.mxu0 %v1174
      %3638 = vmatprep.subr.mxu0 0.0
      %3639 = vmatpush1.msra.mxu0 %v1175
      %3640 = vmatprep.subr.mxu0 0.0
      %3641 = vmatpush1.msra.mxu0 %v1176
      %3642 = vmatprep.subr.mxu0 0.0
      %3643 = vmatpush1.msra.mxu0 %v1177
      %3644 = vmatprep.subr.mxu0 0.0
      %3645 = vmatpush1.msra.mxu0 %v1178
      %3646 = vmatprep.subr.mxu0 0.0
      %3647 = vmatpush1.msra.mxu0 %v1179
      %3648 = vmatprep.subr.mxu0 0.0
      %3649 = vmatpush1.msra.mxu0 %v1180
      %3650 = vmatprep.subr.mxu0 0.0
      %3651 = vmatpush1.msra.mxu0 %v1181
      %3652 = vmatprep.subr.mxu0 0.0
      %3653 = vmatpush1.msra.mxu0 %v1182
      %3654 = vmatprep.subr.mxu0 0.0
      %3655 = vmatpush1.msra.mxu0 %v1183
      %3656 = vmatprep.mubr.f32.mxu0 %v1549
      %3657 = vmatmul.mubr.f32.gmra.mrb[0].mxu0 %v1541
      %v3658 = vpop.f32.mrb[0].mxu0
      %v3659 = vadd.f32 %v3589, %v3658
      %v3660 = vpop.f32.mrb[0].mxu0
      %3661 = vdwg.mxu0
      %3662 = vmatprep.subr.mxu0 0.0
      %3663 = vmatpush1.msra.mxu0 %v1184
      %3664 = vmatprep.subr.mxu0 0.0
      %3665 = vmatpush1.msra.mxu0 %v1185
      %3666 = vmatprep.subr.mxu0 0.0
      %3667 = vmatpush1.msra.mxu0 %v1186
      %3668 = vmatprep.subr.mxu0 0.0
      %3669 = vmatpush1.msra.mxu0 %v1187
      %3670 = vmatprep.subr.mxu0 0.0
      %3671 = vmatpush1.msra.mxu0 %v1188
      %3672 = vmatprep.subr.mxu0 0.0
      %3673 = vmatpush1.msra.mxu0 %v1189
      %3674 = vmatprep.subr.mxu0 0.0
      %3675 = vmatpush1.msra.mxu0 %v1190
      %3676 = vmatprep.subr.mxu0 0.0
      %3677 = vmatpush1.msra.mxu0 %v1191
      %3678 = vmatprep.subr.mxu0 0.0
      %3679 = vmatpush1.msra.mxu0 %v1192
      %3680 = vmatprep.subr.mxu0 0.0
      %3681 = vmatpush1.msra.mxu0 %v1193
      %3682 = vmatprep.subr.mxu0 0.0
      %3683 = vmatpush1.msra.mxu0 %v1194
      %3684 = vmatprep.subr.mxu0 0.0
      %3685 = vmatpush1.msra.mxu0 %v1195
      %3686 = vmatprep.subr.mxu0 0.0
      %3687 = vmatpush1.msra.mxu0 %v1196
      %3688 = vmatprep.subr.mxu0 0.0
      %3689 = vmatpush1.msra.mxu0 %v1197
      %3690 = vmatprep.subr.mxu0 0.0
      %3691 = vmatpush1.msra.mxu0 %v1198
      %3692 = vmatprep.subr.mxu0 0.0
      %3693 = vmatpush1.msra.mxu0 %v1199
      %3694 = vmatprep.subr.mxu0 0.0
      %3695 = vmatpush1.msra.mxu0 %v1200
      %3696 = vmatprep.subr.mxu0 0.0
      %3697 = vmatpush1.msra.mxu0 %v1201
      %3698 = vmatprep.subr.mxu0 0.0
      %3699 = vmatpush1.msra.mxu0 %v1202
      %3700 = vmatprep.subr.mxu0 0.0
      %3701 = vmatpush1.msra.mxu0 %v1203
      %3702 = vmatprep.subr.mxu0 0.0
      %3703 = vmatpush1.msra.mxu0 %v1204
      %3704 = vmatprep.subr.mxu0 0.0
      %3705 = vmatpush1.msra.mxu0 %v1205
      %3706 = vmatprep.subr.mxu0 0.0
      %3707 = vmatpush1.msra.mxu0 %v1206
      %3708 = vmatprep.subr.mxu0 0.0
      %3709 = vmatpush1.msra.mxu0 %v1207
      %3710 = vmatprep.subr.mxu0 0.0
      %3711 = vmatpush1.msra.mxu0 %v1208
      %3712 = vmatprep.subr.mxu0 0.0
      %3713 = vmatpush1.msra.mxu0 %v1209
      %3714 = vmatprep.subr.mxu0 0.0
      %3715 = vmatpush1.msra.mxu0 %v1210
      %3716 = vmatprep.subr.mxu0 0.0
      %3717 = vmatpush1.msra.mxu0 %v1211
      %3718 = vmatprep.subr.mxu0 0.0
      %3719 = vmatpush1.msra.mxu0 %v1212
      %3720 = vmatprep.subr.mxu0 0.0
      %3721 = vmatpush1.msra.mxu0 %v1213
      %3722 = vmatprep.subr.mxu0 0.0
      %3723 = vmatpush1.msra.mxu0 %v1214
      %3724 = vmatprep.subr.mxu0 0.0
      %3725 = vmatpush1.msra.mxu0 %v1215
      %3726 = vmatprep.mubr.f32.mxu0 %v1550
      %3727 = vmatmul.mubr.f32.gmra.mrb[0].mxu0 %v1548
      %v3728 = vpop.f32.mrb[0].mxu0
      %v3729 = vadd.f32 %v3659, %v3728
      %v3730 = vpop.f32.mrb[0].mxu0
      %3731 = vdwg.mxu0
      %3732 = vmatprep.subr.mxu0 0.0
      %3733 = vmatpush1.msra.mxu0 %v1216
      %3734 = vmatprep.subr.mxu0 0.0
      %3735 = vmatpush1.msra.mxu0 %v1217
      %3736 = vmatprep.subr.mxu0 0.0
      %3737 = vmatpush1.msra.mxu0 %v1218
      %3738 = vmatprep.subr.mxu0 0.0
      %3739 = vmatpush1.msra.mxu0 %v1219
      %3740 = vmatprep.subr.mxu0 0.0
      %3741 = vmatpush1.msra.mxu0 %v1220
      %3742 = vmatprep.subr.mxu0 0.0
      %3743 = vmatpush1.msra.mxu0 %v1221
      %3744 = vmatprep.subr.mxu0 0.0
      %3745 = vmatpush1.msra.mxu0 %v1222
      %3746 = vmatprep.subr.mxu0 0.0
      %3747 = vmatpush1.msra.mxu0 %v1223
      %3748 = vmatprep.subr.mxu0 0.0
      %3749 = vmatpush1.msra.mxu0 %v1224
      %3750 = vmatprep.subr.mxu0 0.0
      %3751 = vmatpush1.msra.mxu0 %v1225
      %3752 = vmatprep.subr.mxu0 0.0
      %3753 = vmatpush1.msra.mxu0 %v1226
      %3754 = vmatprep.subr.mxu0 0.0
      %3755 = vmatpush1.msra.mxu0 %v1227
      %3756 = vmatprep.subr.mxu0 0.0
      %3757 = vmatpush1.msra.mxu0 %v1228
      %3758 = vmatprep.subr.mxu0 0.0
      %3759 = vmatpush1.msra.mxu0 %v1229
      %3760 = vmatprep.subr.mxu0 0.0
      %3761 = vmatpush1.msra.mxu0 %v1230
      %3762 = vmatprep.subr.mxu0 0.0
      %3763 = vmatpush1.msra.mxu0 %v1231
      %3764 = vmatprep.subr.mxu0 0.0
      %3765 = vmatpush1.msra.mxu0 %v1232
      %3766 = vmatprep.subr.mxu0 0.0
      %3767 = vmatpush1.msra.mxu0 %v1233
      %3768 = vmatprep.subr.mxu0 0.0
      %3769 = vmatpush1.msra.mxu0 %v1234
      %3770 = vmatprep.subr.mxu0 0.0
      %3771 = vmatpush1.msra.mxu0 %v1235
      %3772 = vmatprep.subr.mxu0 0.0
      %3773 = vmatpush1.msra.mxu0 %v1236
      %3774 = vmatprep.subr.mxu0 0.0
      %3775 = vmatpush1.msra.mxu0 %v1237
      %3776 = vmatprep.subr.mxu0 0.0
      %3777 = vmatpush1.msra.mxu0 %v1238
      %3778 = vmatprep.subr.mxu0 0.0
      %3779 = vmatpush1.msra.mxu0 %v1239
      %3780 = vmatprep.subr.mxu0 0.0
      %3781 = vmatpush1.msra.mxu0 %v1240
      %3782 = vmatprep.subr.mxu0 0.0
      %3783 = vmatpush1.msra.mxu0 %v1241
      %3784 = vmatprep.subr.mxu0 0.0
      %3785 = vmatpush1.msra.mxu0 %v1242
      %3786 = vmatprep.subr.mxu0 0.0
      %3787 = vmatpush1.msra.mxu0 %v1243
      %3788 = vmatprep.subr.mxu0 0.0
      %3789 = vmatpush1.msra.mxu0 %v1244
      %3790 = vmatprep.subr.mxu0 0.0
      %3791 = vmatpush1.msra.mxu0 %v1245
      %3792 = vmatprep.subr.mxu0 0.0
      %3793 = vmatpush1.msra.mxu0 %v1246
      %3794 = vmatprep.subr.mxu0 0.0
      %3795 = vmatpush1.msra.mxu0 %v1247
      %3796 = vmatprep.mubr.f32.mxu0 %v1566
      %3797 = vmatmul.mubr.f32.gmra.mrb[0].mxu0 %v1558
      %v3798 = vpop.f32.mrb[0].mxu0
      %v3799 = vadd.f32 %v3729, %v3798
      %v3800 = vpop.f32.mrb[0].mxu0
      %3801 = vdwg.mxu0
      %3802 = vmatprep.subr.mxu0 0.0
      %3803 = vmatpush1.msra.mxu0 %v1248
      %3804 = vmatprep.subr.mxu0 0.0
      %3805 = vmatpush1.msra.mxu0 %v1249
      %3806 = vmatprep.subr.mxu0 0.0
      %3807 = vmatpush1.msra.mxu0 %v1250
      %3808 = vmatprep.subr.mxu0 0.0
      %3809 = vmatpush1.msra.mxu0 %v1251
      %3810 = vmatprep.subr.mxu0 0.0
      %3811 = vmatpush1.msra.mxu0 %v1252
      %3812 = vmatprep.subr.mxu0 0.0
      %3813 = vmatpush1.msra.mxu0 %v1253
      %3814 = vmatprep.subr.mxu0 0.0
      %3815 = vmatpush1.msra.mxu0 %v1254
      %3816 = vmatprep.subr.mxu0 0.0
      %3817 = vmatpush1.msra.mxu0 %v1255
      %3818 = vmatprep.subr.mxu0 0.0
      %3819 = vmatpush1.msra.mxu0 %v1256
      %3820 = vmatprep.subr.mxu0 0.0
      %3821 = vmatpush1.msra.mxu0 %v1257
      %3822 = vmatprep.subr.mxu0 0.0
      %3823 = vmatpush1.msra.mxu0 %v1258
      %3824 = vmatprep.subr.mxu0 0.0
      %3825 = vmatpush1.msra.mxu0 %v1259
      %3826 = vmatprep.subr.mxu0 0.0
      %3827 = vmatpush1.msra.mxu0 %v1260
      %3828 = vmatprep.subr.mxu0 0.0
      %3829 = vmatpush1.msra.mxu0 %v1261
      %3830 = vmatprep.subr.mxu0 0.0
      %3831 = vmatpush1.msra.mxu0 %v1262
      %3832 = vmatprep.subr.mxu0 0.0
      %3833 = vmatpush1.msra.mxu0 %v1263
      %3834 = vmatprep.subr.mxu0 0.0
      %3835 = vmatpush1.msra.mxu0 %v1264
      %3836 = vmatprep.subr.mxu0 0.0
      %3837 = vmatpush1.msra.mxu0 %v1265
      %3838 = vmatprep.subr.mxu0 0.0
      %3839 = vmatpush1.msra.mxu0 %v1266
      %3840 = vmatprep.subr.mxu0 0.0
      %3841 = vmatpush1.msra.mxu0 %v1267
      %3842 = vmatprep.subr.mxu0 0.0
      %3843 = vmatpush1.msra.mxu0 %v1268
      %3844 = vmatprep.subr.mxu0 0.0
      %3845 = vmatpush1.msra.mxu0 %v1269
      %3846 = vmatprep.subr.mxu0 0.0
      %3847 = vmatpush1.msra.mxu0 %v1270
      %3848 = vmatprep.subr.mxu0 0.0
      %3849 = vmatpush1.msra.mxu0 %v1271
      %3850 = vmatprep.subr.mxu0 0.0
      %3851 = vmatpush1.msra.mxu0 %v1272
      %3852 = vmatprep.subr.mxu0 0.0
      %3853 = vmatpush1.msra.mxu0 %v1273
      %3854 = vmatprep.subr.mxu0 0.0
      %3855 = vmatpush1.msra.mxu0 %v1274
      %3856 = vmatprep.subr.mxu0 0.0
      %3857 = vmatpush1.msra.mxu0 %v1275
      %3858 = vmatprep.subr.mxu0 0.0
      %3859 = vmatpush1.msra.mxu0 %v1276
      %3860 = vmatprep.subr.mxu0 0.0
      %3861 = vmatpush1.msra.mxu0 %v1277
      %3862 = vmatprep.subr.mxu0 0.0
      %3863 = vmatpush1.msra.mxu0 %v1278
      %3864 = vmatprep.subr.mxu0 0.0
      %3865 = vmatpush1.msra.mxu0 %v1279
      %3866 = vmatprep.mubr.f32.mxu0 %v1567
      %3867 = vmatmul.mubr.f32.gmra.mrb[0].mxu0 %v1565
      %v3868 = vpop.f32.mrb[0].mxu0
      %v3869 = vadd.f32 %v3799, %v3868
      %v3870 = vpop.f32.mrb[0].mxu0
      %3871 = vdwg.mxu0
      %v3872 = vadd.f32 %v239, %v3869
      %3873 = vst [vmem:[#allocation2] sm:$0x3] %v3872
      %p3874 = scmp.eq.s32.totalorder %s16, 3
      // Predicated region
      $region45: #{_lambda_.5} parent=39 // pred_check
        %p3875 = pneg %p3874
      $region46: #{_lambda_.5} parent=39 // pred_check_branch
        %3877 = sbr.rel (%p3875) target = $region48
      $region47: #{_lambda_.5} parent=39 // pred_region
        %v3878 = vld [vmem:[#allocation2] sm:$0x3]
        %v3879 = vld [vmem:[%s2] sm:$0x1]
        %v3881 = vlaneseq
        %v3882 = vshrl.u32 %v3881, 7
        %v3883 = vsub.s32 0, %v3882
        %v3884 = vrot.slane %v3879, %v3883
        %v3886 = vadd.f32 %v3878, %v3884
        %v3887 = vmax.f32 %v3886, 0.0
        %v3888 = vld [vmem:[%s3] sm:$0xff]
        %v3889 = vld [vmem:[%s3 + $0x8] sm:$0xff]
        %v3890 = vld [vmem:[%s3 + $0x10] sm:$0xff]
        %v3891 = vld [vmem:[%s3 + $0x18] sm:$0xff]
        %v3892 = vld [vmem:[%s3 + $0x20] sm:$0xff]
        %v3893 = vld [vmem:[%s3 + $0x28] sm:$0xff]
        %v3894 = vld [vmem:[%s3 + $0x30] sm:$0xff]
        %v3895 = vld [vmem:[%s3 + $0x38] sm:$0xff]
        %v3896 = vld [vmem:[%s3 + $0x40] sm:$0xff]
        %v3897 = vld [vmem:[%s3 + $0x48] sm:$0xff]
        %v3898 = vld [vmem:[%s3 + $0x50] sm:$0xff]
        %v3899 = vld [vmem:[%s3 + $0x58] sm:$0xff]
        %v3900 = vld [vmem:[%s3 + $0x60] sm:$0xff]
        %v3901 = vld [vmem:[%s3 + $0x68] sm:$0xff]
        %v3902 = vld [vmem:[%s3 + $0x70] sm:$0xff]
        %v3903 = vld [vmem:[%s3 + $0x78] sm:$0xff]
        %v3904 = vld [vmem:[%s4] sm:$0x1]
        %v3906 = vlaneseq
        %v3907 = vshrl.u32 %v3906, 7
        %v3908 = vsub.s32 0, %v3907
        %v3909 = vrot.slane %v3904, %v3908
        %3911 = vmatprep.subr.mxu0 0.0
        %3912 = vmatpush1.msra.mxu0 %v3888
        %3913 = vmatprep.subr.mxu0 0.0
        %3914 = vmatpush1.msra.mxu0 %v3889
        %3915 = vmatprep.subr.mxu0 0.0
        %3916 = vmatpush1.msra.mxu0 %v3890
        %3917 = vmatprep.subr.mxu0 0.0
        %3918 = vmatpush1.msra.mxu0 %v3891
        %3919 = vmatprep.subr.mxu0 0.0
        %3920 = vmatpush1.msra.mxu0 %v3892
        %3921 = vmatprep.subr.mxu0 0.0
        %3922 = vmatpush1.msra.mxu0 %v3893
        %3923 = vmatprep.subr.mxu0 0.0
        %3924 = vmatpush1.msra.mxu0 %v3894
        %3925 = vmatprep.subr.mxu0 0.0
        %3926 = vmatpush1.msra.mxu0 %v3895
        %3927 = vmatprep.subr.mxu0 0.0
        %3928 = vmatpush1.msra.mxu0 %v3896
        %3929 = vmatprep.subr.mxu0 0.0
        %3930 = vmatpush1.msra.mxu0 %v3897
        %3931 = vmatprep.subr.mxu0 0.0
        %3932 = vmatpush1.msra.mxu0 %v3898
        %3933 = vmatprep.subr.mxu0 0.0
        %3934 = vmatpush1.msra.mxu0 %v3899
        %3935 = vmatprep.subr.mxu0 0.0
        %3936 = vmatpush1.msra.mxu0 %v3900
        %3937 = vmatprep.subr.mxu0 0.0
        %3938 = vmatpush1.msra.mxu0 %v3901
        %3939 = vmatprep.subr.mxu0 0.0
        %3940 = vmatpush1.msra.mxu0 %v3902
        %3941 = vmatprep.subr.mxu0 0.0
        %3942 = vmatpush1.msra.mxu0 %v3903
        %3943 = vmatprep.subr.mxu0 0.0
        %3944 = vmatpush1.msra.mxu0 0.0
        %3945 = vmatprep.subr.mxu0 0.0
        %3946 = vmatpush1.msra.mxu0 0.0
        %3947 = vmatprep.subr.mxu0 0.0
        %3948 = vmatpush1.msra.mxu0 0.0
        %3949 = vmatprep.subr.mxu0 0.0
        %3950 = vmatpush1.msra.mxu0 0.0
        %3951 = vmatprep.subr.mxu0 0.0
        %3952 = vmatpush1.msra.mxu0 0.0
        %3953 = vmatprep.subr.mxu0 0.0
        %3954 = vmatpush1.msra.mxu0 0.0
        %3955 = vmatprep.subr.mxu0 0.0
        %3956 = vmatpush1.msra.mxu0 0.0
        %3957 = vmatprep.subr.mxu0 0.0
        %3958 = vmatpush1.msra.mxu0 0.0
        %3959 = vmatprep.subr.mxu0 0.0
        %3960 = vmatpush1.msra.mxu0 0.0
        %3961 = vmatprep.subr.mxu0 0.0
        %3962 = vmatpush1.msra.mxu0 0.0
        %3963 = vmatprep.subr.mxu0 0.0
        %3964 = vmatpush1.msra.mxu0 0.0
        %3965 = vmatprep.subr.mxu0 0.0
        %3966 = vmatpush1.msra.mxu0 0.0
        %3967 = vmatprep.subr.mxu0 0.0
        %3968 = vmatpush1.msra.mxu0 0.0
        %3969 = vmatprep.subr.mxu0 0.0
        %3970 = vmatpush1.msra.mxu0 0.0
        %3971 = vmatprep.subr.mxu0 0.0
        %3972 = vmatpush1.msra.mxu0 0.0
        %3973 = vmatprep.subr.mxu0 0.0
        %3974 = vmatpush1.msra.mxu0 0.0
        %3975 = vmatprep.mubr.f32.mxu0 0.0
        %3976 = vmatmul.mubr.f32.gmra.mrb[0].mxu0 %v3887
        %v3977 = vpop.f32.mrb[0].mxu0
        %v3978 = vadd.f32 %v3909, %v3977
        %v3979 = vpop.f32.mrb[0].mxu0
        %3980 = vdwg.mxu0
        %vm3981 = vcmask 33792
        %3982 = vst.msk [vmem:[%s5] sm:$0x3] %vm3981, %v3978
      $region48: #{_lambda_.5} parent=39 // pred_fallthru
        _
      // Predicated region
      $region49: #{_lambda_.5} parent=39 // pred_check
        %p3983 = pneg %p144
      $region50: #{_lambda_.5} parent=39 // pred_check_branch
        %3985 = sbr.rel (%p3983) target = $region52
      $region51: #{_lambda_.5} parent=39 // pred_region
        _
      $region52: #{_lambda_.5} parent=39 // pred_fallthru
        _
      // Predicated region
      $region53: #{_lambda_.5} parent=39 // pred_check
        %p3986 = pneg %p144
      $region54: #{_lambda_.5} parent=39 // pred_check_branch
        %3988 = sbr.rel (%p3986) target = $region56
      $region55: #{_lambda_.5} parent=39 // pred_region
        _
      $region56: #{_lambda_.5} parent=39 // pred_fallthru
        _
    $region40: #{_lambda_.5} parent=5 // pred_fallthru
      _
    %p3989 = scmp.le.s32.totalorder 2, %s11
    // Predicated region
    $region57: #{_lambda_.5} parent=5 // pred_check
      %p3990 = pneg %p3989
    $region58: #{_lambda_.5} parent=5 // pred_check_branch
      %3992 = sbr.rel (%p3990) target = $region60
    $region59: #{_lambda_.5} parent=5 // pred_region
      %s3993 = ssub.s32 %s11, 2
    $region60: #{_lambda_.5} parent=5 // pred_fallthru
      _
  $region6: #{_lambda_.5} parent=0 // loop_footer
    %s15 = sadd.s32 1, %s11
  $region7: #{_lambda_.5} parent=0 // loop_footer_branch
    %10 = sbr.rel target = $region3
  $region8: #{_lambda_.5} parent=0 // loop_exit
    _

</llo_original>
